<compile_context>
chip_gen: v7x
topology: tpu7x:2x2x1
jax: 0.10.0
libtpu: 0.0.40
codegen_flags: <defaults>
</compile_context>

<pallas_src>
import jax
import jax.numpy as jnp
from jax import lax
from jax.experimental import pallas as pl
from jax.experimental.pallas import tpu as pltpu

N_GRID_POINT_NUM = 128
M_ANTENNA_NUM = 64              # output = 2*M = 128 (lane-aligned)
HIDDEN = 1024
IN_DIM = N_GRID_POINT_NUM + 2   # 130
PADDED_IN = 256                 # fc1 K padded to a multiple of 128
OUT_DIM = 2 * M_ANTENNA_NUM
BN_EPS = 1e-5


def _linear_bf16(h_f32, w_ref, b_ref):
    # bf16 x bf16 on the MXU, f32 accumulation, f32 bias broadcast over rows.
    return jnp.dot(h_f32.astype(jnp.bfloat16), w_ref[...],
                   preferred_element_type=jnp.float32) + b_ref[...]


def _batchnorm_train(h, g_ref, be_ref):
    # Train-mode BatchNorm1d (batch mean / biased variance).  One-pass stats
    # (E[h^2] - E[h]^2, clamped at 0) folded with gamma/beta into a single
    # per-feature scale/shift -> full-tensor work is one mul + one add.
    mean = jnp.mean(h, axis=0, keepdims=True)
    var = jnp.maximum(jnp.mean(h * h, axis=0, keepdims=True) - mean * mean, 0.0)
    scale = g_ref[...] * lax.rsqrt(var + BN_EPS)
    shift = be_ref[...] - mean * scale
    return h * scale + shift


def my_4layer_dnn_kernel(
    x_ref,
    w1_ref, b1_ref, g1_ref, be1_ref,
    w2_ref, b2_ref, g2_ref, be2_ref,
    w3_ref, b3_ref, g3_ref, be3_ref,
    w4_ref, b4_ref,
    out_ref,
):
    # One grid step == one full BN batch (PyTorch train-mode BN semantics).
    # fc1 -> relu -> bn1
    h = jnp.maximum(_linear_bf16(x_ref[...], w1_ref, b1_ref), 0.0)
    h = _batchnorm_train(h, g1_ref, be1_ref)
    # fc2 -> relu -> bn2
    h = jnp.maximum(_linear_bf16(h, w2_ref, b2_ref), 0.0)
    h = _batchnorm_train(h, g2_ref, be2_ref)
    # fc3 -> relu -> bn3
    h = jnp.maximum(_linear_bf16(h, w3_ref, b3_ref), 0.0)
    h = _batchnorm_train(h, g3_ref, be3_ref)
    # fc4
    w_her = _linear_bf16(h, w4_ref, b4_ref)
    # Row-wise L2 normalization: rsqrt-multiply (EUP) instead of sqrt + divide;
    # tiny floor guards a hypothetical all-zero row against inf/NaN.
    sumsq = jnp.sum(w_her * w_her, axis=1, keepdims=True)
    out_ref[...] = w_her * lax.rsqrt(jnp.maximum(sumsq, 1e-30))


def my_4layer_dnn_batched(x_batches, kparams):
    """Run the DNN over `num_batches` independent BN batches in one call.

    x_batches: (num_batches, bn_batch, IN_DIM) f32.  Each grid step processes
    one full BN batch; weights use constant-index BlockSpecs so they stay
    VMEM-resident across grid steps.  Returns (num_batches, bn_batch, 2*M) f32.
    """
    nb, bn_b, f = x_batches.shape
    if f != PADDED_IN:
        x_batches = jnp.pad(x_batches, ((0, 0), (0, 0), (0, PADDED_IN - f)))

    flat_params = [
        kparams["w1"], kparams["b1"], kparams["g1"], kparams["be1"],
        kparams["w2"], kparams["b2"], kparams["g2"], kparams["be2"],
        kparams["w3"], kparams["b3"], kparams["g3"], kparams["be3"],
        kparams["w4"], kparams["b4"],
    ]

    def const_spec(p):
        # Constant block index across the batch grid -> DMA once, stay resident.
        return pl.BlockSpec(p.shape, lambda b: (0,) * p.ndim)

    rows = nb * bn_b
    flops = 2 * rows * (PADDED_IN * HIDDEN + 2 * HIDDEN * HIDDEN + HIDDEN * OUT_DIM)
    weight_bytes = sum(int(p.size) * int(p.dtype.itemsize) for p in flat_params)
    bytes_accessed = weight_bytes + rows * PADDED_IN * 4 + rows * OUT_DIM * 4
    transcendentals = nb * 3 * HIDDEN + rows   # BN rsqrt per feature + row norms

    out = pl.pallas_call(
        my_4layer_dnn_kernel,
        out_shape=jax.ShapeDtypeStruct((nb, bn_b, OUT_DIM), jnp.float32),
        grid=(nb,),
        in_specs=(
            [pl.BlockSpec((None, bn_b, PADDED_IN), lambda b: (b, 0, 0))]
            + [const_spec(p) for p in flat_params]
        ),
        out_specs=pl.BlockSpec((None, bn_b, OUT_DIM), lambda b: (b, 0, 0)),
        compiler_params=pltpu.CompilerParams(
            dimension_semantics=("parallel",),      # v7x: shard batches over 2 TCs
            vmem_limit_bytes=48 << 20,              # headroom on v7x's 64 MiB VMEM
        ),
        cost_estimate=pl.CostEstimate(
            flops=flops,
            transcendentals=transcendentals,
            bytes_accessed=bytes_accessed,
        ),
    )(x_batches, *flat_params)
    return out


def my_4layer_dnn(x, kparams):
    """PyTorch-module-equivalent forward for a single (B, 130) batch.

    Complex construction from the real/imag halves is glue outside the kernel.
    """
    w_her = my_4layer_dnn_batched(x[None], kparams)[0]
    w_real = w_her[:, :M_ANTENNA_NUM]
    w_imag = w_her[:, M_ANTENNA_NUM:]
    return lax.complex(w_real, w_imag)


def init_params(key):
    """f32 master params (PyTorch Linear-style uniform init, BN gamma=1/beta=0).
    Weights stored as (in, out)."""
    dims = [
        (IN_DIM, HIDDEN),      # fc1
        (HIDDEN, HIDDEN),      # fc2
        (HIDDEN, HIDDEN),      # fc3
        (HIDDEN, OUT_DIM),     # fc4
    ]
    params = {}
    keys = jax.random.split(key, 2 * len(dims))
    for i, (fan_in, fan_out) in enumerate(dims):
        bound = 1.0 / jnp.sqrt(jnp.float32(fan_in))
        params[f"w{i+1}"] = jax.random.uniform(
            keys[2 * i], (fan_in, fan_out), jnp.float32, -bound, bound)
        params[f"b{i+1}"] = jax.random.uniform(
            keys[2 * i + 1], (1, fan_out), jnp.float32, -bound, bound)
    for i in range(1, 4):
        params[f"g{i}"] = jnp.ones((1, HIDDEN), jnp.float32)
        params[f"be{i}"] = jnp.zeros((1, HIDDEN), jnp.float32)
    return params


def prepare_kernel_params(params):
    """Kernel-side params: fc1 K padded 130->256 with zero rows (done once,
    offline), weights cast to bf16; biases / BN params stay f32."""
    kp = dict(params)
    w1_pad = jnp.pad(params["w1"], ((0, PADDED_IN - IN_DIM), (0, 0)))
    kp["w1"] = w1_pad.astype(jnp.bfloat16)
    for name in ("w2", "w3", "w4"):
        kp[name] = params[name].astype(jnp.bfloat16)
    return kp


def reference_forward_f32(x, params):
    """Pure-JAX f32 reference of the PyTorch forward (train-mode BN)."""
    def bn(h, g, be):
        m = jnp.mean(h, axis=0, keepdims=True)
        v = jnp.mean((h - m) ** 2, axis=0, keepdims=True)
        return g * (h - m) / jnp.sqrt(v + BN_EPS) + be

    h = bn(jnp.maximum(x @ params["w1"] + params["b1"], 0.0), params["g1"], params["be1"])
    h = bn(jnp.maximum(h @ params["w2"] + params["b2"], 0.0), params["g2"], params["be2"])
    h = bn(jnp.maximum(h @ params["w3"] + params["b3"], 0.0), params["g3"], params["be3"])
    w_her = h @ params["w4"] + params["b4"]
    w_her = w_her / jnp.linalg.norm(w_her, axis=1, keepdims=True)
    return lax.complex(w_her[:, :M_ANTENNA_NUM], w_her[:, M_ANTENNA_NUM:])


def reference_forward_matched(x, kparams):
    """Pure-JAX reference that mirrors the kernel numerics (bf16 matmul
    operands, f32 accumulation, folded one-pass BN, rsqrt norm)."""
    def lin(h, w, b):
        return jnp.dot(h.astype(jnp.bfloat16), w,
                       preferred_element_type=jnp.float32) + b

    def bn(h, g, be):
        m = jnp.mean(h, axis=0, keepdims=True)
        v = jnp.maximum(jnp.mean(h * h, axis=0, keepdims=True) - m * m, 0.0)
        scale = g * lax.rsqrt(v + BN_EPS)
        return h * scale + (be - m * scale)

    xp = jnp.pad(x, ((0, 0), (0, PADDED_IN - x.shape[1])))
    h = bn(jnp.maximum(lin(xp, kparams["w1"], kparams["b1"]), 0.0),
           kparams["g1"], kparams["be1"])
    h = bn(jnp.maximum(lin(h, kparams["w2"], kparams["b2"]), 0.0),
           kparams["g2"], kparams["be2"])
    h = bn(jnp.maximum(lin(h, kparams["w3"], kparams["b3"]), 0.0),
           kparams["g3"], kparams["be3"])
    w_her = lin(h, kparams["w4"], kparams["b4"])
    sumsq = jnp.sum(w_her * w_her, axis=1, keepdims=True)
    w_her = w_her * lax.rsqrt(jnp.maximum(sumsq, 1e-30))
    return lax.complex(w_her[:, :M_ANTENNA_NUM], w_her[:, M_ANTENNA_NUM:])


if __name__ == "__main__":
    key = jax.random.PRNGKey(0)
    k_x, k_p = jax.random.split(key)

    NUM_BATCHES = 4   # independent BN batches streamed through one kernel call
    B = 8             # rows per BN batch (PyTorch's batch dimension)

    x_batches = jax.random.normal(k_x, (NUM_BATCHES, B, IN_DIM), jnp.float32)
    params = init_params(k_p)
    kparams = prepare_kernel_params(params)

    # Streaming path: several BN batches, weights VMEM-resident across the grid.
    out_all = jax.block_until_ready(my_4layer_dnn_batched(x_batches, kparams))
    assert out_all.shape == (NUM_BATCHES, B, OUT_DIM)
    assert out_all.dtype == jnp.float32

    # Module-equivalent path for a single (B, 130) batch -> complex beamformer.
    out0 = jax.block_until_ready(my_4layer_dnn(x_batches[0], kparams))
    assert out0.shape == (B, M_ANTENNA_NUM) and out0.dtype == jnp.complex64

    # Tight check vs a reference with identical (bf16-weight) numerics,
    # per BN batch (BN stats are per-tile == per-batch, matching PyTorch).
    ok = True
    for i in range(NUM_BATCHES):
        ref_m = reference_forward_matched(x_batches[i], kparams)
        got = lax.complex(out_all[i, :, :M_ANTENNA_NUM],
                          out_all[i, :, M_ANTENNA_NUM:])
        ok = ok and bool(jnp.allclose(got, ref_m, atol=2e-3, rtol=2e-3))

    # Looser sanity check vs the full-f32 PyTorch-equivalent reference
    # (bf16 weights introduce ~1e-3-level deviations on unit-norm outputs).
    ref_f32 = reference_forward_f32(x_batches[0], params)
    ok = ok and bool(jnp.allclose(out0, ref_f32, atol=5e-2, rtol=5e-2))

    assert ok
    print("KERNEL_OK")
</pallas_src>

<mosaic_0001>
module attributes {stable_mosaic.version = 11 : i64} {
  func.func @my_4layer_dnn_kernel(%arg0: i32, %arg1: memref<1x8x256xf32, #tpu.memory_space<vmem>>, %arg2: memref<256x1024xbf16, #tpu.memory_space<vmem>>, %arg3: memref<1x1024xf32, #tpu.memory_space<vmem>>, %arg4: memref<1x1024xf32, #tpu.memory_space<vmem>>, %arg5: memref<1x1024xf32, #tpu.memory_space<vmem>>, %arg6: memref<1024x1024xbf16, #tpu.memory_space<vmem>>, %arg7: memref<1x1024xf32, #tpu.memory_space<vmem>>, %arg8: memref<1x1024xf32, #tpu.memory_space<vmem>>, %arg9: memref<1x1024xf32, #tpu.memory_space<vmem>>, %arg10: memref<1024x1024xbf16, #tpu.memory_space<vmem>>, %arg11: memref<1x1024xf32, #tpu.memory_space<vmem>>, %arg12: memref<1x1024xf32, #tpu.memory_space<vmem>>, %arg13: memref<1x1024xf32, #tpu.memory_space<vmem>>, %arg14: memref<1024x128xbf16, #tpu.memory_space<vmem>>, %arg15: memref<1x128xf32, #tpu.memory_space<vmem>>, %arg16: memref<1x8x128xf32, #tpu.memory_space<vmem>>) attributes {dimension_semantics = [#tpu.dimension_semantics<parallel>], iteration_bounds = array<i64: 4>, scalar_prefetch = 0 : i64, scratch_operands = 0 : i64, tpu.core_type = #tpu.core_type<tc>, window_params = [{transform_indices = @transform_0, window_bounds = array<i64: 1, 8, 256>}, {pipeline_mode = #tpu.pipeline_mode<synchronous>, transform_indices = @transform_1, window_bounds = array<i64: 256, 1024>}, {pipeline_mode = #tpu.pipeline_mode<synchronous>, transform_indices = @transform_2, window_bounds = array<i64: 1, 1024>}, {pipeline_mode = #tpu.pipeline_mode<synchronous>, transform_indices = @transform_3, window_bounds = array<i64: 1, 1024>}, {pipeline_mode = #tpu.pipeline_mode<synchronous>, transform_indices = @transform_4, window_bounds = array<i64: 1, 1024>}, {pipeline_mode = #tpu.pipeline_mode<synchronous>, transform_indices = @transform_5, window_bounds = array<i64: 1024, 1024>}, {pipeline_mode = #tpu.pipeline_mode<synchronous>, transform_indices = @transform_6, window_bounds = array<i64: 1, 1024>}, {pipeline_mode = #tpu.pipeline_mode<synchronous>, transform_indices = @transform_7, window_bounds = array<i64: 1, 1024>}, {pipeline_mode = #tpu.pipeline_mode<synchronous>, transform_indices = @transform_8, window_bounds = array<i64: 1, 1024>}, {pipeline_mode = #tpu.pipeline_mode<synchronous>, transform_indices = @transform_9, window_bounds = array<i64: 1024, 1024>}, {pipeline_mode = #tpu.pipeline_mode<synchronous>, transform_indices = @transform_10, window_bounds = array<i64: 1, 1024>}, {pipeline_mode = #tpu.pipeline_mode<synchronous>, transform_indices = @transform_11, window_bounds = array<i64: 1, 1024>}, {pipeline_mode = #tpu.pipeline_mode<synchronous>, transform_indices = @transform_12, window_bounds = array<i64: 1, 1024>}, {pipeline_mode = #tpu.pipeline_mode<synchronous>, transform_indices = @transform_13, window_bounds = array<i64: 1024, 128>}, {pipeline_mode = #tpu.pipeline_mode<synchronous>, transform_indices = @transform_14, window_bounds = array<i64: 1, 128>}, {transform_indices = @transform_15, window_bounds = array<i64: 1, 8, 128>}]} {
    %c0 = arith.constant 0 : index
    %c0_0 = arith.constant 0 : index
    %c0_1 = arith.constant 0 : index
    %0 = vector.load %arg1[%c0, %c0_0, %c0_1] : memref<1x8x256xf32, #tpu.memory_space<vmem>>, vector<1x8x256xf32>
    %1 = vector.shape_cast %0 : vector<1x8x256xf32> to vector<8x256xf32>
    %2 = arith.truncf %1 : vector<8x256xf32> to vector<8x256xbf16>
    %c0_2 = arith.constant 0 : index
    %c0_3 = arith.constant 0 : index
    %3 = vector.load %arg2[%c0_2, %c0_3] : memref<256x1024xbf16, #tpu.memory_space<vmem>>, vector<256x1024xbf16>
    %cst = arith.constant dense<0.000000e+00> : vector<8x1024xf32>
    %4 = tpu.matmul %2, %3, %cst {dimension_numbers = #tpu.dot_dimension_numbers<[1], [0], [0], [1], [0, 0, 1, 1], [], []>} : vector<8x256xbf16>, vector<256x1024xbf16>, vector<8x1024xf32> -> vector<8x1024xf32>
    %c0_4 = arith.constant 0 : index
    %c0_5 = arith.constant 0 : index
    %5 = vector.load %arg3[%c0_4, %c0_5] : memref<1x1024xf32, #tpu.memory_space<vmem>>, vector<1x1024xf32>
    %6 = vector.broadcast %5 : vector<1x1024xf32> to vector<8x1024xf32>
    %7 = arith.addf %4, %6 : vector<8x1024xf32>
    %cst_6 = arith.constant 0.000000e+00 : f32
    %8 = vector.broadcast %cst_6 : f32 to vector<8x1024xf32>
    %9 = arith.maximumf %7, %8 : vector<8x1024xf32>
    %cst_7 = arith.constant dense<0.000000e+00> : vector<1024xf32>
    %10 = vector.multi_reduction <add>, %9, %cst_7 [0] : vector<8x1024xf32> to vector<1024xf32>
    %11 = vector.shape_cast %10 : vector<1024xf32> to vector<1x1024xf32>
    %cst_8 = arith.constant 8.000000e+00 : f32
    %12 = vector.broadcast %cst_8 : f32 to vector<1x1024xf32>
    %13 = arith.divf %11, %12 : vector<1x1024xf32>
    %14 = arith.mulf %9, %9 : vector<8x1024xf32>
    %cst_9 = arith.constant dense<0.000000e+00> : vector<1024xf32>
    %15 = vector.multi_reduction <add>, %14, %cst_9 [0] : vector<8x1024xf32> to vector<1024xf32>
    %16 = vector.shape_cast %15 : vector<1024xf32> to vector<1x1024xf32>
    %cst_10 = arith.constant 8.000000e+00 : f32
    %17 = vector.broadcast %cst_10 : f32 to vector<1x1024xf32>
    %18 = arith.divf %16, %17 : vector<1x1024xf32>
    %19 = arith.mulf %13, %13 : vector<1x1024xf32>
    %20 = arith.subf %18, %19 : vector<1x1024xf32>
    %cst_11 = arith.constant 0.000000e+00 : f32
    %21 = vector.broadcast %cst_11 : f32 to vector<1x1024xf32>
    %22 = arith.maximumf %20, %21 : vector<1x1024xf32>
    %c0_12 = arith.constant 0 : index
    %c0_13 = arith.constant 0 : index
    %23 = vector.load %arg4[%c0_12, %c0_13] : memref<1x1024xf32, #tpu.memory_space<vmem>>, vector<1x1024xf32>
    %cst_14 = arith.constant 9.99999974E-6 : f32
    %24 = vector.broadcast %cst_14 : f32 to vector<1x1024xf32>
    %25 = arith.addf %22, %24 : vector<1x1024xf32>
    %26 = math.rsqrt %25 : vector<1x1024xf32>
    %27 = arith.mulf %23, %26 : vector<1x1024xf32>
    %c0_15 = arith.constant 0 : index
    %c0_16 = arith.constant 0 : index
    %28 = vector.load %arg5[%c0_15, %c0_16] : memref<1x1024xf32, #tpu.memory_space<vmem>>, vector<1x1024xf32>
    %29 = arith.mulf %13, %27 : vector<1x1024xf32>
    %30 = arith.subf %28, %29 : vector<1x1024xf32>
    %31 = vector.broadcast %27 : vector<1x1024xf32> to vector<8x1024xf32>
    %32 = arith.mulf %9, %31 : vector<8x1024xf32>
    %33 = vector.broadcast %30 : vector<1x1024xf32> to vector<8x1024xf32>
    %34 = arith.addf %32, %33 : vector<8x1024xf32>
    %35 = arith.truncf %34 : vector<8x1024xf32> to vector<8x1024xbf16>
    %c0_17 = arith.constant 0 : index
    %c0_18 = arith.constant 0 : index
    %36 = vector.load %arg6[%c0_17, %c0_18] : memref<1024x1024xbf16, #tpu.memory_space<vmem>>, vector<1024x1024xbf16>
    %cst_19 = arith.constant dense<0.000000e+00> : vector<8x1024xf32>
    %37 = tpu.matmul %35, %36, %cst_19 {dimension_numbers = #tpu.dot_dimension_numbers<[1], [0], [0], [1], [0, 0, 1, 1], [], []>} : vector<8x1024xbf16>, vector<1024x1024xbf16>, vector<8x1024xf32> -> vector<8x1024xf32>
    %c0_20 = arith.constant 0 : index
    %c0_21 = arith.constant 0 : index
    %38 = vector.load %arg7[%c0_20, %c0_21] : memref<1x1024xf32, #tpu.memory_space<vmem>>, vector<1x1024xf32>
    %39 = vector.broadcast %38 : vector<1x1024xf32> to vector<8x1024xf32>
    %40 = arith.addf %37, %39 : vector<8x1024xf32>
    %cst_22 = arith.constant 0.000000e+00 : f32
    %41 = vector.broadcast %cst_22 : f32 to vector<8x1024xf32>
    %42 = arith.maximumf %40, %41 : vector<8x1024xf32>
    %cst_23 = arith.constant dense<0.000000e+00> : vector<1024xf32>
    %43 = vector.multi_reduction <add>, %42, %cst_23 [0] : vector<8x1024xf32> to vector<1024xf32>
    %44 = vector.shape_cast %43 : vector<1024xf32> to vector<1x1024xf32>
    %cst_24 = arith.constant 8.000000e+00 : f32
    %45 = vector.broadcast %cst_24 : f32 to vector<1x1024xf32>
    %46 = arith.divf %44, %45 : vector<1x1024xf32>
    %47 = arith.mulf %42, %42 : vector<8x1024xf32>
    %cst_25 = arith.constant dense<0.000000e+00> : vector<1024xf32>
    %48 = vector.multi_reduction <add>, %47, %cst_25 [0] : vector<8x1024xf32> to vector<1024xf32>
    %49 = vector.shape_cast %48 : vector<1024xf32> to vector<1x1024xf32>
    %cst_26 = arith.constant 8.000000e+00 : f32
    %50 = vector.broadcast %cst_26 : f32 to vector<1x1024xf32>
    %51 = arith.divf %49, %50 : vector<1x1024xf32>
    %52 = arith.mulf %46, %46 : vector<1x1024xf32>
    %53 = arith.subf %51, %52 : vector<1x1024xf32>
    %cst_27 = arith.constant 0.000000e+00 : f32
    %54 = vector.broadcast %cst_27 : f32 to vector<1x1024xf32>
    %55 = arith.maximumf %53, %54 : vector<1x1024xf32>
    %c0_28 = arith.constant 0 : index
    %c0_29 = arith.constant 0 : index
    %56 = vector.load %arg8[%c0_28, %c0_29] : memref<1x1024xf32, #tpu.memory_space<vmem>>, vector<1x1024xf32>
    %cst_30 = arith.constant 9.99999974E-6 : f32
    %57 = vector.broadcast %cst_30 : f32 to vector<1x1024xf32>
    %58 = arith.addf %55, %57 : vector<1x1024xf32>
    %59 = math.rsqrt %58 : vector<1x1024xf32>
    %60 = arith.mulf %56, %59 : vector<1x1024xf32>
    %c0_31 = arith.constant 0 : index
    %c0_32 = arith.constant 0 : index
    %61 = vector.load %arg9[%c0_31, %c0_32] : memref<1x1024xf32, #tpu.memory_space<vmem>>, vector<1x1024xf32>
    %62 = arith.mulf %46, %60 : vector<1x1024xf32>
    %63 = arith.subf %61, %62 : vector<1x1024xf32>
    %64 = vector.broadcast %60 : vector<1x1024xf32> to vector<8x1024xf32>
    %65 = arith.mulf %42, %64 : vector<8x1024xf32>
    %66 = vector.broadcast %63 : vector<1x1024xf32> to vector<8x1024xf32>
    %67 = arith.addf %65, %66 : vector<8x1024xf32>
    %68 = arith.truncf %67 : vector<8x1024xf32> to vector<8x1024xbf16>
    %c0_33 = arith.constant 0 : index
    %c0_34 = arith.constant 0 : index
    %69 = vector.load %arg10[%c0_33, %c0_34] : memref<1024x1024xbf16, #tpu.memory_space<vmem>>, vector<1024x1024xbf16>
    %cst_35 = arith.constant dense<0.000000e+00> : vector<8x1024xf32>
    %70 = tpu.matmul %68, %69, %cst_35 {dimension_numbers = #tpu.dot_dimension_numbers<[1], [0], [0], [1], [0, 0, 1, 1], [], []>} : vector<8x1024xbf16>, vector<1024x1024xbf16>, vector<8x1024xf32> -> vector<8x1024xf32>
    %c0_36 = arith.constant 0 : index
    %c0_37 = arith.constant 0 : index
    %71 = vector.load %arg11[%c0_36, %c0_37] : memref<1x1024xf32, #tpu.memory_space<vmem>>, vector<1x1024xf32>
    %72 = vector.broadcast %71 : vector<1x1024xf32> to vector<8x1024xf32>
    %73 = arith.addf %70, %72 : vector<8x1024xf32>
    %cst_38 = arith.constant 0.000000e+00 : f32
    %74 = vector.broadcast %cst_38 : f32 to vector<8x1024xf32>
    %75 = arith.maximumf %73, %74 : vector<8x1024xf32>
    %cst_39 = arith.constant dense<0.000000e+00> : vector<1024xf32>
    %76 = vector.multi_reduction <add>, %75, %cst_39 [0] : vector<8x1024xf32> to vector<1024xf32>
    %77 = vector.shape_cast %76 : vector<1024xf32> to vector<1x1024xf32>
    %cst_40 = arith.constant 8.000000e+00 : f32
    %78 = vector.broadcast %cst_40 : f32 to vector<1x1024xf32>
    %79 = arith.divf %77, %78 : vector<1x1024xf32>
    %80 = arith.mulf %75, %75 : vector<8x1024xf32>
    %cst_41 = arith.constant dense<0.000000e+00> : vector<1024xf32>
    %81 = vector.multi_reduction <add>, %80, %cst_41 [0] : vector<8x1024xf32> to vector<1024xf32>
    %82 = vector.shape_cast %81 : vector<1024xf32> to vector<1x1024xf32>
    %cst_42 = arith.constant 8.000000e+00 : f32
    %83 = vector.broadcast %cst_42 : f32 to vector<1x1024xf32>
    %84 = arith.divf %82, %83 : vector<1x1024xf32>
    %85 = arith.mulf %79, %79 : vector<1x1024xf32>
    %86 = arith.subf %84, %85 : vector<1x1024xf32>
    %cst_43 = arith.constant 0.000000e+00 : f32
    %87 = vector.broadcast %cst_43 : f32 to vector<1x1024xf32>
    %88 = arith.maximumf %86, %87 : vector<1x1024xf32>
    %c0_44 = arith.constant 0 : index
    %c0_45 = arith.constant 0 : index
    %89 = vector.load %arg12[%c0_44, %c0_45] : memref<1x1024xf32, #tpu.memory_space<vmem>>, vector<1x1024xf32>
    %cst_46 = arith.constant 9.99999974E-6 : f32
    %90 = vector.broadcast %cst_46 : f32 to vector<1x1024xf32>
    %91 = arith.addf %88, %90 : vector<1x1024xf32>
    %92 = math.rsqrt %91 : vector<1x1024xf32>
    %93 = arith.mulf %89, %92 : vector<1x1024xf32>
    %c0_47 = arith.constant 0 : index
    %c0_48 = arith.constant 0 : index
    %94 = vector.load %arg13[%c0_47, %c0_48] : memref<1x1024xf32, #tpu.memory_space<vmem>>, vector<1x1024xf32>
    %95 = arith.mulf %79, %93 : vector<1x1024xf32>
    %96 = arith.subf %94, %95 : vector<1x1024xf32>
    %97 = vector.broadcast %93 : vector<1x1024xf32> to vector<8x1024xf32>
    %98 = arith.mulf %75, %97 : vector<8x1024xf32>
    %99 = vector.broadcast %96 : vector<1x1024xf32> to vector<8x1024xf32>
    %100 = arith.addf %98, %99 : vector<8x1024xf32>
    %101 = arith.truncf %100 : vector<8x1024xf32> to vector<8x1024xbf16>
    %c0_49 = arith.constant 0 : index
    %c0_50 = arith.constant 0 : index
    %102 = vector.load %arg14[%c0_49, %c0_50] : memref<1024x128xbf16, #tpu.memory_space<vmem>>, vector<1024x128xbf16>
    %cst_51 = arith.constant dense<0.000000e+00> : vector<8x128xf32>
    %103 = tpu.matmul %101, %102, %cst_51 {dimension_numbers = #tpu.dot_dimension_numbers<[1], [0], [0], [1], [0, 0, 1, 1], [], []>} : vector<8x1024xbf16>, vector<1024x128xbf16>, vector<8x128xf32> -> vector<8x128xf32>
    %c0_52 = arith.constant 0 : index
    %c0_53 = arith.constant 0 : index
    %104 = vector.load %arg15[%c0_52, %c0_53] : memref<1x128xf32, #tpu.memory_space<vmem>>, vector<1x128xf32>
    %105 = vector.broadcast %104 : vector<1x128xf32> to vector<8x128xf32>
    %106 = arith.addf %103, %105 : vector<8x128xf32>
    %107 = arith.mulf %106, %106 : vector<8x128xf32>
    %cst_54 = arith.constant dense<0.000000e+00> : vector<8xf32>
    %108 = vector.multi_reduction <add>, %107, %cst_54 [1] : vector<8x128xf32> to vector<8xf32>
    %109 = vector.shape_cast %108 : vector<8xf32> to vector<8x1xf32>
    %cst_55 = arith.constant 1.000000e-30 : f32
    %110 = vector.broadcast %cst_55 : f32 to vector<8x1xf32>
    %111 = arith.maximumf %109, %110 : vector<8x1xf32>
    %112 = math.rsqrt %111 : vector<8x1xf32>
    %113 = vector.broadcast %112 : vector<8x1xf32> to vector<8x128xf32>
    %114 = arith.mulf %106, %113 : vector<8x128xf32>
    %c0_56 = arith.constant 0 : index
    %c0_57 = arith.constant 0 : index
    %c0_58 = arith.constant 0 : index
    %115 = vector.load %arg16[%c0_56, %c0_57, %c0_58] : memref<1x8x128xf32, #tpu.memory_space<vmem>>, vector<1x8x128xf32>
    %116 = vector.shape_cast %115 : vector<1x8x128xf32> to vector<8x128xf32>
    %117 = vector.shape_cast %114 : vector<8x128xf32> to vector<1x8x128xf32>
    tpu.vector_store %arg16[%c0_56, %c0_57, %c0_58], %117 {strides = array<i32>} : memref<1x8x128xf32, #tpu.memory_space<vmem>>, vector<1x8x128xf32>,
    return
  }
  func.func @transform_0(%arg0: i32) -> (i32, i32, i32) {
    %c0_i32 = arith.constant 0 : i32
    %c0_i32_0 = arith.constant 0 : i32
    %c0_i32_1 = arith.constant 0 : i32
    return %arg0, %c0_i32, %c0_i32_0 : i32, i32, i32
  }
  func.func @transform_1(%arg0: i32) -> (i32, i32) {
    %c0_i32 = arith.constant 0 : i32
    %c0_i32_0 = arith.constant 0 : i32
    %c0_i32_1 = arith.constant 0 : i32
    return %c0_i32, %c0_i32_0 : i32, i32
  }
  func.func @transform_2(%arg0: i32) -> (i32, i32) {
    %c0_i32 = arith.constant 0 : i32
    %c0_i32_0 = arith.constant 0 : i32
    %c0_i32_1 = arith.constant 0 : i32
    return %c0_i32, %c0_i32_0 : i32, i32
  }
  func.func @transform_3(%arg0: i32) -> (i32, i32) {
    %c0_i32 = arith.constant 0 : i32
    %c0_i32_0 = arith.constant 0 : i32
    %c0_i32_1 = arith.constant 0 : i32
    return %c0_i32, %c0_i32_0 : i32, i32
  }
  func.func @transform_4(%arg0: i32) -> (i32, i32) {
    %c0_i32 = arith.constant 0 : i32
    %c0_i32_0 = arith.constant 0 : i32
    %c0_i32_1 = arith.constant 0 : i32
    return %c0_i32, %c0_i32_0 : i32, i32
  }
  func.func @transform_5(%arg0: i32) -> (i32, i32) {
    %c0_i32 = arith.constant 0 : i32
    %c0_i32_0 = arith.constant 0 : i32
    %c0_i32_1 = arith.constant 0 : i32
    return %c0_i32, %c0_i32_0 : i32, i32
  }
  func.func @transform_6(%arg0: i32) -> (i32, i32) {
    %c0_i32 = arith.constant 0 : i32
    %c0_i32_0 = arith.constant 0 : i32
    %c0_i32_1 = arith.constant 0 : i32
    return %c0_i32, %c0_i32_0 : i32, i32
  }
  func.func @transform_7(%arg0: i32) -> (i32, i32) {
    %c0_i32 = arith.constant 0 : i32
    %c0_i32_0 = arith.constant 0 : i32
    %c0_i32_1 = arith.constant 0 : i32
    return %c0_i32, %c0_i32_0 : i32, i32
  }
  func.func @transform_8(%arg0: i32) -> (i32, i32) {
    %c0_i32 = arith.constant 0 : i32
    %c0_i32_0 = arith.constant 0 : i32
    %c0_i32_1 = arith.constant 0 : i32
    return %c0_i32, %c0_i32_0 : i32, i32
  }
  func.func @transform_9(%arg0: i32) -> (i32, i32) {
    %c0_i32 = arith.constant 0 : i32
    %c0_i32_0 = arith.constant 0 : i32
    %c0_i32_1 = arith.constant 0 : i32
    return %c0_i32, %c0_i32_0 : i32, i32
  }
  func.func @transform_10(%arg0: i32) -> (i32, i32) {
    %c0_i32 = arith.constant 0 : i32
    %c0_i32_0 = arith.constant 0 : i32
    %c0_i32_1 = arith.constant 0 : i32
    return %c0_i32, %c0_i32_0 : i32, i32
  }
  func.func @transform_11(%arg0: i32) -> (i32, i32) {
    %c0_i32 = arith.constant 0 : i32
    %c0_i32_0 = arith.constant 0 : i32
    %c0_i32_1 = arith.constant 0 : i32
    return %c0_i32, %c0_i32_0 : i32, i32
  }
  func.func @transform_12(%arg0: i32) -> (i32, i32) {
    %c0_i32 = arith.constant 0 : i32
    %c0_i32_0 = arith.constant 0 : i32
    %c0_i32_1 = arith.constant 0 : i32
    return %c0_i32, %c0_i32_0 : i32, i32
  }
  func.func @transform_13(%arg0: i32) -> (i32, i32) {
    %c0_i32 = arith.constant 0 : i32
    %c0_i32_0 = arith.constant 0 : i32
    %c0_i32_1 = arith.constant 0 : i32
    return %c0_i32, %c0_i32_0 : i32, i32
  }
  func.func @transform_14(%arg0: i32) -> (i32, i32) {
    %c0_i32 = arith.constant 0 : i32
    %c0_i32_0 = arith.constant 0 : i32
    %c0_i32_1 = arith.constant 0 : i32
    return %c0_i32, %c0_i32_0 : i32, i32
  }
  func.func @transform_15(%arg0: i32) -> (i32, i32, i32) {
    %c0_i32 = arith.constant 0 : i32
    %c0_i32_0 = arith.constant 0 : i32
    %c0_i32_1 = arith.constant 0 : i32
    return %arg0, %c0_i32, %c0_i32_0 : i32, i32, i32
  }
}

</mosaic_0001>

<llo_original>
// kernel: tpu_custom_call.1
$region0: #{tpu_custom_call.1}
  #allocation0 [shape = 'u32[]', space=smem, size = 0x4, offset = 0x4, fixed_abs, tag = 'smem constant byte address 0x4 - core index']
  #allocation1 [shape = 'u32[144,128]{1,0:T(1,128)}', space=vmem, size = 0x12000, scoped, tag = 'internal scratch']
  %s0 = inlined_call_operand.hbm [shape: f32[4,8,256], index: 0, kind: input, shape index: {}]
  %s1 = inlined_call_operand.hbm [shape: bf16[256,1024], index: 1, kind: input, shape index: {}]
  %s2 = inlined_call_operand.hbm [shape: f32[1,1024], index: 2, kind: input, shape index: {}]
  %s3 = inlined_call_operand.hbm [shape: f32[1,1024], index: 3, kind: input, shape index: {}]
  %s4 = inlined_call_operand.hbm [shape: f32[1,1024], index: 4, kind: input, shape index: {}]
  %s5 = inlined_call_operand.hbm [shape: bf16[1024,1024], index: 5, kind: input, shape index: {}]
  %s6 = inlined_call_operand.hbm [shape: f32[1,1024], index: 6, kind: input, shape index: {}]
  %s7 = inlined_call_operand.hbm [shape: f32[1,1024], index: 7, kind: input, shape index: {}]
  %s8 = inlined_call_operand.hbm [shape: f32[1,1024], index: 8, kind: input, shape index: {}]
  %s9 = inlined_call_operand.hbm [shape: bf16[1024,1024], index: 9, kind: input, shape index: {}]
  %s10 = inlined_call_operand.hbm [shape: f32[1,1024], index: 10, kind: input, shape index: {}]
  %s11 = inlined_call_operand.hbm [shape: f32[1,1024], index: 11, kind: input, shape index: {}]
  %s12 = inlined_call_operand.hbm [shape: f32[1,1024], index: 12, kind: input, shape index: {}]
  %s13 = inlined_call_operand.hbm [shape: bf16[1024,128], index: 13, kind: input, shape index: {}]
  %s14 = inlined_call_operand.hbm [shape: f32[1,128], index: 14, kind: input, shape index: {}]
  %s15 = inlined_call_operand.hbm [shape: f32[4,8,128], index: 15, kind: output, shape index: {}]
  %s16 = sld [smem:[#allocation0]]
  $region153: #{tpu_custom_call.1} parent=0
    _
  %s18 = ssub.s32 1, %s16
  %s19 = scalar_select 0, %s18, %s16
  $region1: #{tpu_custom_call.1} parent=0
    #allocation2 [shape = 'u8[16384]{0}', space=vmem, size = 0x4000, scoped, tag = 'input window, operand 0']
    #allocation3 [shape = 's32[2]{0}', space=sflag, size = 0x8, scoped, tag = 'scoped memory for tpu_custom_call.1']
    #allocation4 [shape = 's32[2]{0}', space=sflag, size = 0x8, scoped, tag = 'scoped memory for tpu_custom_call.1']
    #allocation5 [shape = 'u8[524288]{0}', space=vmem, size = 0x80000, scoped, tag = 'input window, operand 1, single buffered']
    #allocation6 [shape = 's32[1]{0}', space=sflag, size = 0x4, scoped, tag = 'scoped memory for tpu_custom_call.1']
    #allocation7 [shape = 'u8[4096]{0}', space=vmem, size = 0x1000, scoped, tag = 'input window, operand 2, single buffered']
    #allocation8 [shape = 'u8[4096]{0}', space=vmem, size = 0x1000, scoped, tag = 'input window, operand 3, single buffered']
    #allocation9 [shape = 's32[1]{0}', space=sflag, size = 0x4, scoped, tag = 'scoped memory for tpu_custom_call.1']
    #allocation10 [shape = 'u8[4096]{0}', space=vmem, size = 0x1000, scoped, tag = 'input window, operand 4, single buffered']
    #allocation11 [shape = 'u8[2097152]{0}', space=vmem, size = 0x200000, scoped, tag = 'input window, operand 5, single buffered']
    #allocation12 [shape = 's32[1]{0}', space=sflag, size = 0x4, scoped, tag = 'scoped memory for tpu_custom_call.1']
    #allocation13 [shape = 'u8[4096]{0}', space=vmem, size = 0x1000, scoped, tag = 'input window, operand 6, single buffered']
    #allocation14 [shape = 'u8[4096]{0}', space=vmem, size = 0x1000, scoped, tag = 'input window, operand 7, single buffered']
    #allocation15 [shape = 's32[1]{0}', space=sflag, size = 0x4, scoped, tag = 'scoped memory for tpu_custom_call.1']
    #allocation16 [shape = 'u8[4096]{0}', space=vmem, size = 0x1000, scoped, tag = 'input window, operand 8, single buffered']
    #allocation17 [shape = 'u8[2097152]{0}', space=vmem, size = 0x200000, scoped, tag = 'input window, operand 9, single buffered']
    #allocation18 [shape = 's32[1]{0}', space=sflag, size = 0x4, scoped, tag = 'scoped memory for tpu_custom_call.1']
    #allocation19 [shape = 'u8[4096]{0}', space=vmem, size = 0x1000, scoped, tag = 'input window, operand 10, single buffered']
    #allocation20 [shape = 'u8[4096]{0}', space=vmem, size = 0x1000, scoped, tag = 'input window, operand 11, single buffered']
    #allocation21 [shape = 's32[1]{0}', space=sflag, size = 0x4, scoped, tag = 'scoped memory for tpu_custom_call.1']
    #allocation22 [shape = 'u8[4096]{0}', space=vmem, size = 0x1000, scoped, tag = 'input window, operand 12, single buffered']
    #allocation23 [shape = 'u8[262144]{0}', space=vmem, size = 0x40000, scoped, tag = 'input window, operand 13, single buffered']
    #allocation24 [shape = 's32[1]{0}', space=sflag, size = 0x4, scoped, tag = 'scoped memory for tpu_custom_call.1']
    #allocation25 [shape = 'u8[512]{0}', space=vmem, size = 0x400, scoped, tag = 'input window, operand 14, single buffered']
    #allocation26 [shape = 'u8[8192]{0}', space=vmem, size = 0x2000, scoped, tag = 'output window, operand 0']
    %20 = vsyncpa [#allocation3], 0
    %s21 = scalar_lea.sflag [#allocation3], 1
    %22 = vsyncpa %s21, 0
    %23 = vsyncpa [#allocation6], 0
    %24 = vsyncpa [#allocation9], 0
    %25 = vsyncpa [#allocation12], 0
    %26 = vsyncpa [#allocation15], 0
    %27 = vsyncpa [#allocation18], 0
    %28 = vsyncpa [#allocation21], 0
    %29 = vsyncpa [#allocation24], 0
    %30 = vsyncpa [#allocation4], 0
    %s31 = scalar_lea.sflag [#allocation4], 1
    %32 = vsyncpa %s31, 0
    loop: start=0, step=1, limit=6
    $region2: #{tpu_custom_call.1} parent=1 // loop_pre_header
      _
    $region3: #{tpu_custom_call.1} parent=1 // loop_header
      %s34 = sphi 0, %s38
      %p35 = scmp.ge.s32.totalorder %s34, 6
      %s44 = sphi 0, %s46
      %s47 = sphi 0, %s44
      %s48 = sphi 0, %s47
      %s64 = sphi 0, %s48
      %s68 = sphi 0, %s68
      %s70 = sphi 0, %s68
      %s71 = sphi 0, %s70
      %s85 = sphi 0, %s71
      %s89 = sphi 0, %s89
      %s91 = sphi 0, %s89
      %s92 = sphi 0, %s91
      %s106 = sphi 0, %s92
      %s110 = sphi 0, %s110
      %s112 = sphi 0, %s110
      %s113 = sphi 0, %s112
      %s127 = sphi 0, %s113
      %s131 = sphi 0, %s131
      %s133 = sphi 0, %s131
      %s134 = sphi 0, %s133
      %s148 = sphi 0, %s134
      %s152 = sphi 0, %s152
      %s154 = sphi 0, %s152
      %s155 = sphi 0, %s154
      %s169 = sphi 0, %s155
      %s173 = sphi 0, %s173
      %s175 = sphi 0, %s173
      %s176 = sphi 0, %s175
      %s190 = sphi 0, %s176
      %s194 = sphi 0, %s194
      %s196 = sphi 0, %s194
      %s197 = sphi 0, %s196
      %s211 = sphi 0, %s197
      %s215 = sphi 0, %s215
      %s217 = sphi 0, %s215
      %s218 = sphi 0, %s217
      %s232 = sphi 0, %s218
      %s236 = sphi 0, %s236
      %s238 = sphi 0, %s236
      %s239 = sphi 0, %s238
      %s253 = sphi 0, %s239
      %s257 = sphi 0, %s257
      %s259 = sphi 0, %s257
      %s260 = sphi 0, %s259
      %s274 = sphi 0, %s260
      %s278 = sphi 0, %s278
      %s280 = sphi 0, %s278
      %s281 = sphi 0, %s280
      %s295 = sphi 0, %s281
      %s299 = sphi 0, %s299
      %s301 = sphi 0, %s299
      %s302 = sphi 0, %s301
      %s316 = sphi 0, %s302
      %s320 = sphi 0, %s320
      %s322 = sphi 0, %s320
      %s323 = sphi 0, %s322
      %s337 = sphi 0, %s323
      %s341 = sphi 0, %s341
      %s343 = sphi 0, %s341
      %s344 = sphi 0, %s343
      %s358 = sphi 0, %s344
      %s364 = sphi 0, %s366
      %s367 = sphi 0, %s364
      %s368 = sphi 0, %s367
      %s384 = sphi 0, %s368
    $region4: #{tpu_custom_call.1} parent=1 // loop_header_branch
      %37 = sbr.rel (%p35) target = $region8
    $region5: #{tpu_custom_call.1} parent=1 // loop_body
      %s39 = ssub.s32 %s34, 1
      %s40 = ssub.s32 %s34, 2
      %s41 = sadd.s32 %s34, 1
      %s42 = ssub.s32 %s34, %s41
      %p43 = scmp.eq.s32.totalorder %s42, 0
      %s45 = sadd.s32 %s44, 1
      %s46 = scalar_select %p43, %s44, %s45
      %p49 = pneg %p43
      %p50 = scmp.eq.s32.totalorder %s34, 3
      %p51 = por %p49, %p50
      %p52 = scmp.ne.s32.totalorder %s44, %s47
      %p53 = scmp.eq.s32.totalorder %s34, 0
      %p54 = por %p52, %p53
      %p55 = scmp.ne.s32.totalorder %s44, %s47
      %p56 = scmp.eq.s32.totalorder %s39, 3
      %p57 = por %p55, %p56
      %p58 = scmp.ne.s32.totalorder %s47, %s48
      %p59 = scmp.eq.s32.totalorder %s39, 0
      %p60 = por %p58, %p59
      %p61 = scmp.ne.s32.totalorder %s47, %s48
      %p62 = scmp.eq.s32.totalorder %s40, 3
      %p63 = por %p61, %p62
      %p65 = scmp.ne.s32.totalorder %s48, %s64
      %p66 = scmp.eq.s32.totalorder %s40, 0
      %p67 = por %p65, %p66
      %s69 = sadd.s32 %s68, 1
      %p72 = scmp.eq.s32.totalorder %s34, 3
      %p73 = scmp.ne.s32.totalorder %s68, %s70
      %p74 = scmp.eq.s32.totalorder %s34, 0
      %p75 = por %p73, %p74
      %p76 = scmp.ne.s32.totalorder %s68, %s70
      %p77 = scmp.eq.s32.totalorder %s39, 3
      %p78 = por %p76, %p77
      %p79 = scmp.ne.s32.totalorder %s70, %s71
      %p80 = scmp.eq.s32.totalorder %s39, 0
      %p81 = por %p79, %p80
      %p82 = scmp.ne.s32.totalorder %s70, %s71
      %p83 = scmp.eq.s32.totalorder %s40, 3
      %p84 = por %p82, %p83
      %p86 = scmp.ne.s32.totalorder %s71, %s85
      %p87 = scmp.eq.s32.totalorder %s40, 0
      %p88 = por %p86, %p87
      %s90 = sadd.s32 %s89, 1
      %p93 = scmp.eq.s32.totalorder %s34, 3
      %p94 = scmp.ne.s32.totalorder %s89, %s91
      %p95 = scmp.eq.s32.totalorder %s34, 0
      %p96 = por %p94, %p95
      %p97 = scmp.ne.s32.totalorder %s89, %s91
      %p98 = scmp.eq.s32.totalorder %s39, 3
      %p99 = por %p97, %p98
      %p100 = scmp.ne.s32.totalorder %s91, %s92
      %p101 = scmp.eq.s32.totalorder %s39, 0
      %p102 = por %p100, %p101
      %p103 = scmp.ne.s32.totalorder %s91, %s92
      %p104 = scmp.eq.s32.totalorder %s40, 3
      %p105 = por %p103, %p104
      %p107 = scmp.ne.s32.totalorder %s92, %s106
      %p108 = scmp.eq.s32.totalorder %s40, 0
      %p109 = por %p107, %p108
      %s111 = sadd.s32 %s110, 1
      %p114 = scmp.eq.s32.totalorder %s34, 3
      %p115 = scmp.ne.s32.totalorder %s110, %s112
      %p116 = scmp.eq.s32.totalorder %s34, 0
      %p117 = por %p115, %p116
      %p118 = scmp.ne.s32.totalorder %s110, %s112
      %p119 = scmp.eq.s32.totalorder %s39, 3
      %p120 = por %p118, %p119
      %p121 = scmp.ne.s32.totalorder %s112, %s113
      %p122 = scmp.eq.s32.totalorder %s39, 0
      %p123 = por %p121, %p122
      %p124 = scmp.ne.s32.totalorder %s112, %s113
      %p125 = scmp.eq.s32.totalorder %s40, 3
      %p126 = por %p124, %p125
      %p128 = scmp.ne.s32.totalorder %s113, %s127
      %p129 = scmp.eq.s32.totalorder %s40, 0
      %p130 = por %p128, %p129
      %s132 = sadd.s32 %s131, 1
      %p135 = scmp.eq.s32.totalorder %s34, 3
      %p136 = scmp.ne.s32.totalorder %s131, %s133
      %p137 = scmp.eq.s32.totalorder %s34, 0
      %p138 = por %p136, %p137
      %p139 = scmp.ne.s32.totalorder %s131, %s133
      %p140 = scmp.eq.s32.totalorder %s39, 3
      %p141 = por %p139, %p140
      %p142 = scmp.ne.s32.totalorder %s133, %s134
      %p143 = scmp.eq.s32.totalorder %s39, 0
      %p144 = por %p142, %p143
      %p145 = scmp.ne.s32.totalorder %s133, %s134
      %p146 = scmp.eq.s32.totalorder %s40, 3
      %p147 = por %p145, %p146
      %p149 = scmp.ne.s32.totalorder %s134, %s148
      %p150 = scmp.eq.s32.totalorder %s40, 0
      %p151 = por %p149, %p150
      %s153 = sadd.s32 %s152, 1
      %p156 = scmp.eq.s32.totalorder %s34, 3
      %p157 = scmp.ne.s32.totalorder %s152, %s154
      %p158 = scmp.eq.s32.totalorder %s34, 0
      %p159 = por %p157, %p158
      %p160 = scmp.ne.s32.totalorder %s152, %s154
      %p161 = scmp.eq.s32.totalorder %s39, 3
      %p162 = por %p160, %p161
      %p163 = scmp.ne.s32.totalorder %s154, %s155
      %p164 = scmp.eq.s32.totalorder %s39, 0
      %p165 = por %p163, %p164
      %p166 = scmp.ne.s32.totalorder %s154, %s155
      %p167 = scmp.eq.s32.totalorder %s40, 3
      %p168 = por %p166, %p167
      %p170 = scmp.ne.s32.totalorder %s155, %s169
      %p171 = scmp.eq.s32.totalorder %s40, 0
      %p172 = por %p170, %p171
      %s174 = sadd.s32 %s173, 1
      %p177 = scmp.eq.s32.totalorder %s34, 3
      %p178 = scmp.ne.s32.totalorder %s173, %s175
      %p179 = scmp.eq.s32.totalorder %s34, 0
      %p180 = por %p178, %p179
      %p181 = scmp.ne.s32.totalorder %s173, %s175
      %p182 = scmp.eq.s32.totalorder %s39, 3
      %p183 = por %p181, %p182
      %p184 = scmp.ne.s32.totalorder %s175, %s176
      %p185 = scmp.eq.s32.totalorder %s39, 0
      %p186 = por %p184, %p185
      %p187 = scmp.ne.s32.totalorder %s175, %s176
      %p188 = scmp.eq.s32.totalorder %s40, 3
      %p189 = por %p187, %p188
      %p191 = scmp.ne.s32.totalorder %s176, %s190
      %p192 = scmp.eq.s32.totalorder %s40, 0
      %p193 = por %p191, %p192
      %s195 = sadd.s32 %s194, 1
      %p198 = scmp.eq.s32.totalorder %s34, 3
      %p199 = scmp.ne.s32.totalorder %s194, %s196
      %p200 = scmp.eq.s32.totalorder %s34, 0
      %p201 = por %p199, %p200
      %p202 = scmp.ne.s32.totalorder %s194, %s196
      %p203 = scmp.eq.s32.totalorder %s39, 3
      %p204 = por %p202, %p203
      %p205 = scmp.ne.s32.totalorder %s196, %s197
      %p206 = scmp.eq.s32.totalorder %s39, 0
      %p207 = por %p205, %p206
      %p208 = scmp.ne.s32.totalorder %s196, %s197
      %p209 = scmp.eq.s32.totalorder %s40, 3
      %p210 = por %p208, %p209
      %p212 = scmp.ne.s32.totalorder %s197, %s211
      %p213 = scmp.eq.s32.totalorder %s40, 0
      %p214 = por %p212, %p213
      %s216 = sadd.s32 %s215, 1
      %p219 = scmp.eq.s32.totalorder %s34, 3
      %p220 = scmp.ne.s32.totalorder %s215, %s217
      %p221 = scmp.eq.s32.totalorder %s34, 0
      %p222 = por %p220, %p221
      %p223 = scmp.ne.s32.totalorder %s215, %s217
      %p224 = scmp.eq.s32.totalorder %s39, 3
      %p225 = por %p223, %p224
      %p226 = scmp.ne.s32.totalorder %s217, %s218
      %p227 = scmp.eq.s32.totalorder %s39, 0
      %p228 = por %p226, %p227
      %p229 = scmp.ne.s32.totalorder %s217, %s218
      %p230 = scmp.eq.s32.totalorder %s40, 3
      %p231 = por %p229, %p230
      %p233 = scmp.ne.s32.totalorder %s218, %s232
      %p234 = scmp.eq.s32.totalorder %s40, 0
      %p235 = por %p233, %p234
      %s237 = sadd.s32 %s236, 1
      %p240 = scmp.eq.s32.totalorder %s34, 3
      %p241 = scmp.ne.s32.totalorder %s236, %s238
      %p242 = scmp.eq.s32.totalorder %s34, 0
      %p243 = por %p241, %p242
      %p244 = scmp.ne.s32.totalorder %s236, %s238
      %p245 = scmp.eq.s32.totalorder %s39, 3
      %p246 = por %p244, %p245
      %p247 = scmp.ne.s32.totalorder %s238, %s239
      %p248 = scmp.eq.s32.totalorder %s39, 0
      %p249 = por %p247, %p248
      %p250 = scmp.ne.s32.totalorder %s238, %s239
      %p251 = scmp.eq.s32.totalorder %s40, 3
      %p252 = por %p250, %p251
      %p254 = scmp.ne.s32.totalorder %s239, %s253
      %p255 = scmp.eq.s32.totalorder %s40, 0
      %p256 = por %p254, %p255
      %s258 = sadd.s32 %s257, 1
      %p261 = scmp.eq.s32.totalorder %s34, 3
      %p262 = scmp.ne.s32.totalorder %s257, %s259
      %p263 = scmp.eq.s32.totalorder %s34, 0
      %p264 = por %p262, %p263
      %p265 = scmp.ne.s32.totalorder %s257, %s259
      %p266 = scmp.eq.s32.totalorder %s39, 3
      %p267 = por %p265, %p266
      %p268 = scmp.ne.s32.totalorder %s259, %s260
      %p269 = scmp.eq.s32.totalorder %s39, 0
      %p270 = por %p268, %p269
      %p271 = scmp.ne.s32.totalorder %s259, %s260
      %p272 = scmp.eq.s32.totalorder %s40, 3
      %p273 = por %p271, %p272
      %p275 = scmp.ne.s32.totalorder %s260, %s274
      %p276 = scmp.eq.s32.totalorder %s40, 0
      %p277 = por %p275, %p276
      %s279 = sadd.s32 %s278, 1
      %p282 = scmp.eq.s32.totalorder %s34, 3
      %p283 = scmp.ne.s32.totalorder %s278, %s280
      %p284 = scmp.eq.s32.totalorder %s34, 0
      %p285 = por %p283, %p284
      %p286 = scmp.ne.s32.totalorder %s278, %s280
      %p287 = scmp.eq.s32.totalorder %s39, 3
      %p288 = por %p286, %p287
      %p289 = scmp.ne.s32.totalorder %s280, %s281
      %p290 = scmp.eq.s32.totalorder %s39, 0
      %p291 = por %p289, %p290
      %p292 = scmp.ne.s32.totalorder %s280, %s281
      %p293 = scmp.eq.s32.totalorder %s40, 3
      %p294 = por %p292, %p293
      %p296 = scmp.ne.s32.totalorder %s281, %s295
      %p297 = scmp.eq.s32.totalorder %s40, 0
      %p298 = por %p296, %p297
      %s300 = sadd.s32 %s299, 1
      %p303 = scmp.eq.s32.totalorder %s34, 3
      %p304 = scmp.ne.s32.totalorder %s299, %s301
      %p305 = scmp.eq.s32.totalorder %s34, 0
      %p306 = por %p304, %p305
      %p307 = scmp.ne.s32.totalorder %s299, %s301
      %p308 = scmp.eq.s32.totalorder %s39, 3
      %p309 = por %p307, %p308
      %p310 = scmp.ne.s32.totalorder %s301, %s302
      %p311 = scmp.eq.s32.totalorder %s39, 0
      %p312 = por %p310, %p311
      %p313 = scmp.ne.s32.totalorder %s301, %s302
      %p314 = scmp.eq.s32.totalorder %s40, 3
      %p315 = por %p313, %p314
      %p317 = scmp.ne.s32.totalorder %s302, %s316
      %p318 = scmp.eq.s32.totalorder %s40, 0
      %p319 = por %p317, %p318
      %s321 = sadd.s32 %s320, 1
      %p324 = scmp.eq.s32.totalorder %s34, 3
      %p325 = scmp.ne.s32.totalorder %s320, %s322
      %p326 = scmp.eq.s32.totalorder %s34, 0
      %p327 = por %p325, %p326
      %p328 = scmp.ne.s32.totalorder %s320, %s322
      %p329 = scmp.eq.s32.totalorder %s39, 3
      %p330 = por %p328, %p329
      %p331 = scmp.ne.s32.totalorder %s322, %s323
      %p332 = scmp.eq.s32.totalorder %s39, 0
      %p333 = por %p331, %p332
      %p334 = scmp.ne.s32.totalorder %s322, %s323
      %p335 = scmp.eq.s32.totalorder %s40, 3
      %p336 = por %p334, %p335
      %p338 = scmp.ne.s32.totalorder %s323, %s337
      %p339 = scmp.eq.s32.totalorder %s40, 0
      %p340 = por %p338, %p339
      %s342 = sadd.s32 %s341, 1
      %p345 = scmp.eq.s32.totalorder %s34, 3
      %p346 = scmp.ne.s32.totalorder %s341, %s343
      %p347 = scmp.eq.s32.totalorder %s34, 0
      %p348 = por %p346, %p347
      %p349 = scmp.ne.s32.totalorder %s341, %s343
      %p350 = scmp.eq.s32.totalorder %s39, 3
      %p351 = por %p349, %p350
      %p352 = scmp.ne.s32.totalorder %s343, %s344
      %p353 = scmp.eq.s32.totalorder %s39, 0
      %p354 = por %p352, %p353
      %p355 = scmp.ne.s32.totalorder %s343, %s344
      %p356 = scmp.eq.s32.totalorder %s40, 3
      %p357 = por %p355, %p356
      %p359 = scmp.ne.s32.totalorder %s344, %s358
      %p360 = scmp.eq.s32.totalorder %s40, 0
      %p361 = por %p359, %p360
      %s362 = ssub.s32 %s34, %s41
      %p363 = scmp.eq.s32.totalorder %s362, 0
      %s365 = sadd.s32 %s364, 1
      %s366 = scalar_select %p363, %s364, %s365
      %p369 = pneg %p363
      %p370 = scmp.eq.s32.totalorder %s34, 3
      %p371 = por %p369, %p370
      %p372 = scmp.ne.s32.totalorder %s364, %s367
      %p373 = scmp.eq.s32.totalorder %s34, 0
      %p374 = por %p372, %p373
      %p375 = scmp.ne.s32.totalorder %s364, %s367
      %p376 = scmp.eq.s32.totalorder %s39, 3
      %p377 = por %p375, %p376
      %p378 = scmp.ne.s32.totalorder %s367, %s368
      %p379 = scmp.eq.s32.totalorder %s39, 0
      %p380 = por %p378, %p379
      %p381 = scmp.ne.s32.totalorder %s367, %s368
      %p382 = scmp.eq.s32.totalorder %s40, 3
      %p383 = por %p381, %p382
      %p385 = scmp.ne.s32.totalorder %s368, %s384
      %p386 = scmp.eq.s32.totalorder %s40, 0
      %p387 = por %p385, %p386
      %p388 = scmp.le.s32.totalorder 1, %s34
      %p389 = scmp.lt.s32.totalorder %s34, 5
      %p390 = pnand %p388, %p389
      %p391 = pneg %p390
      // Predicated region
      $region9: #{tpu_custom_call.1} parent=5 // pred_check
        _
      $region10: #{tpu_custom_call.1} parent=5 // pred_check_branch
        %393 = sbr.rel (%p390) target = $region12
      $region11: #{tpu_custom_call.1} parent=5 // pred_region
        %s394 = ssub.s32 %s34, 1
        // Predicated region
        $region13: #{tpu_custom_call.1} parent=11 // pred_check
          %p395 = pneg %p81
        $region14: #{tpu_custom_call.1} parent=11 // pred_check_branch
          %397 = sbr.rel (%p395) target = $region16
        $region15: #{tpu_custom_call.1} parent=11 // pred_region
          %s399 = ssub.s32 16384, 16384
          %400 = vsyncadd [#allocation6], %s399
          %s401 = sshll.u32 [#allocation5], 4
          %s402 = int_to_ptr.vmem [resolvable:$true] %s401
          %407 = dma.hbm_to_vmem [thread:$0]  %s1, 16384, %s402, [#allocation6], 512, 512, 32
        $region16: #{tpu_custom_call.1} parent=11 // pred_fallthru
          _
        // Predicated region
        $region17: #{tpu_custom_call.1} parent=11 // pred_check
          %p408 = pneg %p102
        $region18: #{tpu_custom_call.1} parent=11 // pred_check_branch
          %410 = sbr.rel (%p408) target = $region20
        $region19: #{tpu_custom_call.1} parent=11 // pred_region
          %s412 = ssub.s32 128, 128
          %413 = vsyncadd [#allocation6], %s412
          %s415 = sshll.u32 [#allocation7], 4
          %s416 = int_to_ptr.vmem [resolvable:$true] %s415
          %418 = dma.hbm_to_vmem [thread:$0]  %s2, 128, %s416, [#allocation6]
        $region20: #{tpu_custom_call.1} parent=11 // pred_fallthru
          _
        // Predicated region
        $region21: #{tpu_custom_call.1} parent=11 // pred_check
          %p419 = pneg %p123
        $region22: #{tpu_custom_call.1} parent=11 // pred_check_branch
          %421 = sbr.rel (%p419) target = $region24
        $region23: #{tpu_custom_call.1} parent=11 // pred_region
          %s423 = ssub.s32 128, 128
          %424 = vsyncadd [#allocation9], %s423
          %s426 = sshll.u32 [#allocation8], 4
          %s427 = int_to_ptr.vmem [resolvable:$true] %s426
          %429 = dma.hbm_to_vmem [thread:$0]  %s3, 128, %s427, [#allocation9]
        $region24: #{tpu_custom_call.1} parent=11 // pred_fallthru
          _
        // Predicated region
        $region25: #{tpu_custom_call.1} parent=11 // pred_check
          %p430 = pneg %p144
        $region26: #{tpu_custom_call.1} parent=11 // pred_check_branch
          %432 = sbr.rel (%p430) target = $region28
        $region27: #{tpu_custom_call.1} parent=11 // pred_region
          %s434 = ssub.s32 128, 128
          %435 = vsyncadd [#allocation9], %s434
          %s437 = sshll.u32 [#allocation10], 4
          %s438 = int_to_ptr.vmem [resolvable:$true] %s437
          %440 = dma.hbm_to_vmem [thread:$0]  %s4, 128, %s438, [#allocation9]
        $region28: #{tpu_custom_call.1} parent=11 // pred_fallthru
          _
        // Predicated region
        $region29: #{tpu_custom_call.1} parent=11 // pred_check
          %p441 = pneg %p165
        $region30: #{tpu_custom_call.1} parent=11 // pred_check_branch
          %443 = sbr.rel (%p441) target = $region32
        $region31: #{tpu_custom_call.1} parent=11 // pred_region
          %s445 = ssub.s32 65536, 65536
          %446 = vsyncadd [#allocation12], %s445
          %s447 = sshll.u32 [#allocation11], 4
          %s448 = int_to_ptr.vmem [resolvable:$true] %s447
          %453 = dma.hbm_to_vmem [thread:$0]  %s5, 65536, %s448, [#allocation12], 512, 512, 32
        $region32: #{tpu_custom_call.1} parent=11 // pred_fallthru
          _
        // Predicated region
        $region33: #{tpu_custom_call.1} parent=11 // pred_check
          %p454 = pneg %p186
        $region34: #{tpu_custom_call.1} parent=11 // pred_check_branch
          %456 = sbr.rel (%p454) target = $region36
        $region35: #{tpu_custom_call.1} parent=11 // pred_region
          %s458 = ssub.s32 128, 128
          %459 = vsyncadd [#allocation12], %s458
          %s461 = sshll.u32 [#allocation13], 4
          %s462 = int_to_ptr.vmem [resolvable:$true] %s461
          %464 = dma.hbm_to_vmem [thread:$0]  %s6, 128, %s462, [#allocation12]
        $region36: #{tpu_custom_call.1} parent=11 // pred_fallthru
          _
        // Predicated region
        $region37: #{tpu_custom_call.1} parent=11 // pred_check
          %p465 = pneg %p207
        $region38: #{tpu_custom_call.1} parent=11 // pred_check_branch
          %467 = sbr.rel (%p465) target = $region40
        $region39: #{tpu_custom_call.1} parent=11 // pred_region
          %s469 = ssub.s32 128, 128
          %470 = vsyncadd [#allocation15], %s469
          %s472 = sshll.u32 [#allocation14], 4
          %s473 = int_to_ptr.vmem [resolvable:$true] %s472
          %475 = dma.hbm_to_vmem [thread:$0]  %s7, 128, %s473, [#allocation15]
        $region40: #{tpu_custom_call.1} parent=11 // pred_fallthru
          _
        // Predicated region
        $region41: #{tpu_custom_call.1} parent=11 // pred_check
          %p476 = pneg %p228
        $region42: #{tpu_custom_call.1} parent=11 // pred_check_branch
          %478 = sbr.rel (%p476) target = $region44
        $region43: #{tpu_custom_call.1} parent=11 // pred_region
          %s480 = ssub.s32 128, 128
          %481 = vsyncadd [#allocation15], %s480
          %s483 = sshll.u32 [#allocation16], 4
          %s484 = int_to_ptr.vmem [resolvable:$true] %s483
          %486 = dma.hbm_to_vmem [thread:$0]  %s8, 128, %s484, [#allocation15]
        $region44: #{tpu_custom_call.1} parent=11 // pred_fallthru
          _
        // Predicated region
        $region45: #{tpu_custom_call.1} parent=11 // pred_check
          %p487 = pneg %p249
        $region46: #{tpu_custom_call.1} parent=11 // pred_check_branch
          %489 = sbr.rel (%p487) target = $region48
        $region47: #{tpu_custom_call.1} parent=11 // pred_region
          %s491 = ssub.s32 65536, 65536
          %492 = vsyncadd [#allocation18], %s491
          %s493 = sshll.u32 [#allocation17], 4
          %s494 = int_to_ptr.vmem [resolvable:$true] %s493
          %499 = dma.hbm_to_vmem [thread:$0]  %s9, 65536, %s494, [#allocation18], 512, 512, 32
        $region48: #{tpu_custom_call.1} parent=11 // pred_fallthru
          _
        // Predicated region
        $region49: #{tpu_custom_call.1} parent=11 // pred_check
          %p500 = pneg %p270
        $region50: #{tpu_custom_call.1} parent=11 // pred_check_branch
          %502 = sbr.rel (%p500) target = $region52
        $region51: #{tpu_custom_call.1} parent=11 // pred_region
          %s504 = ssub.s32 128, 128
          %505 = vsyncadd [#allocation18], %s504
          %s507 = sshll.u32 [#allocation19], 4
          %s508 = int_to_ptr.vmem [resolvable:$true] %s507
          %510 = dma.hbm_to_vmem [thread:$0]  %s10, 128, %s508, [#allocation18]
        $region52: #{tpu_custom_call.1} parent=11 // pred_fallthru
          _
        // Predicated region
        $region53: #{tpu_custom_call.1} parent=11 // pred_check
          %p511 = pneg %p291
        $region54: #{tpu_custom_call.1} parent=11 // pred_check_branch
          %513 = sbr.rel (%p511) target = $region56
        $region55: #{tpu_custom_call.1} parent=11 // pred_region
          %s515 = ssub.s32 128, 128
          %516 = vsyncadd [#allocation21], %s515
          %s518 = sshll.u32 [#allocation20], 4
          %s519 = int_to_ptr.vmem [resolvable:$true] %s518
          %521 = dma.hbm_to_vmem [thread:$0]  %s11, 128, %s519, [#allocation21]
        $region56: #{tpu_custom_call.1} parent=11 // pred_fallthru
          _
        // Predicated region
        $region57: #{tpu_custom_call.1} parent=11 // pred_check
          %p522 = pneg %p312
        $region58: #{tpu_custom_call.1} parent=11 // pred_check_branch
          %524 = sbr.rel (%p522) target = $region60
        $region59: #{tpu_custom_call.1} parent=11 // pred_region
          %s526 = ssub.s32 128, 128
          %527 = vsyncadd [#allocation21], %s526
          %s529 = sshll.u32 [#allocation22], 4
          %s530 = int_to_ptr.vmem [resolvable:$true] %s529
          %532 = dma.hbm_to_vmem [thread:$0]  %s12, 128, %s530, [#allocation21]
        $region60: #{tpu_custom_call.1} parent=11 // pred_fallthru
          _
        // Predicated region
        $region61: #{tpu_custom_call.1} parent=11 // pred_check
          %p533 = pneg %p333
        $region62: #{tpu_custom_call.1} parent=11 // pred_check_branch
          %535 = sbr.rel (%p533) target = $region64
        $region63: #{tpu_custom_call.1} parent=11 // pred_region
          %s537 = ssub.s32 8192, 8192
          %538 = vsyncadd [#allocation24], %s537
          %s539 = sshll.u32 [#allocation23], 4
          %s540 = int_to_ptr.vmem [resolvable:$true] %s539
          %545 = dma.hbm_to_vmem [thread:$0]  %s13, 8192, %s540, [#allocation24], 64, 64, 4
        $region64: #{tpu_custom_call.1} parent=11 // pred_fallthru
          _
        // Predicated region
        $region65: #{tpu_custom_call.1} parent=11 // pred_check
          %p546 = pneg %p354
        $region66: #{tpu_custom_call.1} parent=11 // pred_check_branch
          %548 = sbr.rel (%p546) target = $region68
        $region67: #{tpu_custom_call.1} parent=11 // pred_region
          %s550 = ssub.s32 16, 16
          %551 = vsyncadd [#allocation24], %s550
          %s553 = sshll.u32 [#allocation25], 4
          %s554 = int_to_ptr.vmem [resolvable:$true] %s553
          %556 = dma.hbm_to_vmem [thread:$0]  %s14, 16, %s554, [#allocation24]
        $region68: #{tpu_custom_call.1} parent=11 // pred_fallthru
          _
      $region12: #{tpu_custom_call.1} parent=5 // pred_fallthru
        _
      %p557 = scmp.lt.s32.totalorder %s34, 4
      // Predicated region
      $region69: #{tpu_custom_call.1} parent=5 // pred_check
        %p558 = pneg %p557
      $region70: #{tpu_custom_call.1} parent=5 // pred_check_branch
        %560 = sbr.rel (%p558) target = $region72
      $region71: #{tpu_custom_call.1} parent=5 // pred_region
        // Predicated region
        $region73: #{tpu_custom_call.1} parent=71 // pred_check
          %p561 = pneg %p54
        $region74: #{tpu_custom_call.1} parent=71 // pred_check_branch
          %563 = sbr.rel (%p561) target = $region76
        $region75: #{tpu_custom_call.1} parent=71 // pred_region
          %s564 = sand.u32 %s44, 1
          %s565 = scalar_lea.sflag [#allocation3], %s564
          %s566 = sand.u32 %s44, 1
          %s567 = smul.addr %s566, 16
          %s568 = scalar_lea.vmem [#allocation2], %s567
          %s570 = ssub.s32 256, 256
          %571 = vsyncadd %s565, %s570
          %s572 = smul.addr %s34, 2
          %s573 = smul.addr %s572, 128
          %s574 = scalar_lea.hbm %s0, %s573
          %s576 = sshll.u32 %s568, 4
          %s577 = int_to_ptr.vmem [resolvable:$true] %s576
          %579 = dma.hbm_to_vmem [thread:$0]  %s574, 256, %s577, %s565
        $region76: #{tpu_custom_call.1} parent=71 // pred_fallthru
          _
      $region72: #{tpu_custom_call.1} parent=5 // pred_fallthru
        _
      %p580 = scmp.le.s32.totalorder 1, %s34
      %p581 = scmp.lt.s32.totalorder %s34, 5
      %p582 = pnand %p580, %p581
      %p583 = pneg %p582
      // Predicated region
      $region77: #{tpu_custom_call.1} parent=5 // pred_check
        _
      $region78: #{tpu_custom_call.1} parent=5 // pred_check_branch
        %585 = sbr.rel (%p582) target = $region80
      $region79: #{tpu_custom_call.1} parent=5 // pred_region
        %s586 = ssub.s32 %s34, 1
        %s587 = sand.u32 %s47, 1
        %s588 = scalar_lea.sflag [#allocation3], %s587
        %s589 = sand.u32 %s47, 1
        %s590 = smul.addr %s589, 16
        %s591 = scalar_lea.vmem [#allocation2], %s590
        // Predicated region
        $region81: #{tpu_custom_call.1} parent=79 // pred_check
          %p592 = pneg %p60
        $region82: #{tpu_custom_call.1} parent=79 // pred_check_branch
          %594 = sbr.rel (%p592) target = $region84
        $region83: #{tpu_custom_call.1} parent=79 // pred_region
          %595 = dma.done %s588, 256
        $region84: #{tpu_custom_call.1} parent=79 // pred_fallthru
          _
        // Predicated region
        $region85: #{tpu_custom_call.1} parent=79 // pred_check
          %p596 = pneg %p81
        $region86: #{tpu_custom_call.1} parent=79 // pred_check_branch
          %598 = sbr.rel (%p596) target = $region88
        $region87: #{tpu_custom_call.1} parent=79 // pred_region
          %599 = dma.done [#allocation6], 16384
        $region88: #{tpu_custom_call.1} parent=79 // pred_fallthru
          _
        // Predicated region
        $region89: #{tpu_custom_call.1} parent=79 // pred_check
          %p600 = pneg %p102
        $region90: #{tpu_custom_call.1} parent=79 // pred_check_branch
          %602 = sbr.rel (%p600) target = $region92
        $region91: #{tpu_custom_call.1} parent=79 // pred_region
          %603 = dma.done [#allocation6], 128
        $region92: #{tpu_custom_call.1} parent=79 // pred_fallthru
          _
        // Predicated region
        $region93: #{tpu_custom_call.1} parent=79 // pred_check
          %p604 = pneg %p123
        $region94: #{tpu_custom_call.1} parent=79 // pred_check_branch
          %606 = sbr.rel (%p604) target = $region96
        $region95: #{tpu_custom_call.1} parent=79 // pred_region
          %607 = dma.done [#allocation9], 128
        $region96: #{tpu_custom_call.1} parent=79 // pred_fallthru
          _
        // Predicated region
        $region97: #{tpu_custom_call.1} parent=79 // pred_check
          %p608 = pneg %p144
        $region98: #{tpu_custom_call.1} parent=79 // pred_check_branch
          %610 = sbr.rel (%p608) target = $region100
        $region99: #{tpu_custom_call.1} parent=79 // pred_region
          %611 = dma.done [#allocation9], 128
        $region100: #{tpu_custom_call.1} parent=79 // pred_fallthru
          _
        // Predicated region
        $region101: #{tpu_custom_call.1} parent=79 // pred_check
          %p612 = pneg %p165
        $region102: #{tpu_custom_call.1} parent=79 // pred_check_branch
          %614 = sbr.rel (%p612) target = $region104
        $region103: #{tpu_custom_call.1} parent=79 // pred_region
          %615 = dma.done [#allocation12], 65536
        $region104: #{tpu_custom_call.1} parent=79 // pred_fallthru
          _
        // Predicated region
        $region105: #{tpu_custom_call.1} parent=79 // pred_check
          %p616 = pneg %p186
        $region106: #{tpu_custom_call.1} parent=79 // pred_check_branch
          %618 = sbr.rel (%p616) target = $region108
        $region107: #{tpu_custom_call.1} parent=79 // pred_region
          %619 = dma.done [#allocation12], 128
        $region108: #{tpu_custom_call.1} parent=79 // pred_fallthru
          _
        // Predicated region
        $region109: #{tpu_custom_call.1} parent=79 // pred_check
          %p620 = pneg %p207
        $region110: #{tpu_custom_call.1} parent=79 // pred_check_branch
          %622 = sbr.rel (%p620) target = $region112
        $region111: #{tpu_custom_call.1} parent=79 // pred_region
          %623 = dma.done [#allocation15], 128
        $region112: #{tpu_custom_call.1} parent=79 // pred_fallthru
          _
        // Predicated region
        $region113: #{tpu_custom_call.1} parent=79 // pred_check
          %p624 = pneg %p228
        $region114: #{tpu_custom_call.1} parent=79 // pred_check_branch
          %626 = sbr.rel (%p624) target = $region116
        $region115: #{tpu_custom_call.1} parent=79 // pred_region
          %627 = dma.done [#allocation15], 128
        $region116: #{tpu_custom_call.1} parent=79 // pred_fallthru
          _
        // Predicated region
        $region117: #{tpu_custom_call.1} parent=79 // pred_check
          %p628 = pneg %p249
        $region118: #{tpu_custom_call.1} parent=79 // pred_check_branch
          %630 = sbr.rel (%p628) target = $region120
        $region119: #{tpu_custom_call.1} parent=79 // pred_region
          %631 = dma.done [#allocation18], 65536
        $region120: #{tpu_custom_call.1} parent=79 // pred_fallthru
          _
        // Predicated region
        $region121: #{tpu_custom_call.1} parent=79 // pred_check
          %p632 = pneg %p270
        $region122: #{tpu_custom_call.1} parent=79 // pred_check_branch
          %634 = sbr.rel (%p632) target = $region124
        $region123: #{tpu_custom_call.1} parent=79 // pred_region
          %635 = dma.done [#allocation18], 128
        $region124: #{tpu_custom_call.1} parent=79 // pred_fallthru
          _
        // Predicated region
        $region125: #{tpu_custom_call.1} parent=79 // pred_check
          %p636 = pneg %p291
        $region126: #{tpu_custom_call.1} parent=79 // pred_check_branch
          %638 = sbr.rel (%p636) target = $region128
        $region127: #{tpu_custom_call.1} parent=79 // pred_region
          %639 = dma.done [#allocation21], 128
        $region128: #{tpu_custom_call.1} parent=79 // pred_fallthru
          _
        // Predicated region
        $region129: #{tpu_custom_call.1} parent=79 // pred_check
          %p640 = pneg %p312
        $region130: #{tpu_custom_call.1} parent=79 // pred_check_branch
          %642 = sbr.rel (%p640) target = $region132
        $region131: #{tpu_custom_call.1} parent=79 // pred_region
          %643 = dma.done [#allocation21], 128
        $region132: #{tpu_custom_call.1} parent=79 // pred_fallthru
          _
        // Predicated region
        $region133: #{tpu_custom_call.1} parent=79 // pred_check
          %p644 = pneg %p333
        $region134: #{tpu_custom_call.1} parent=79 // pred_check_branch
          %646 = sbr.rel (%p644) target = $region136
        $region135: #{tpu_custom_call.1} parent=79 // pred_region
          %647 = dma.done [#allocation24], 8192
        $region136: #{tpu_custom_call.1} parent=79 // pred_fallthru
          _
        // Predicated region
        $region137: #{tpu_custom_call.1} parent=79 // pred_check
          %p648 = pneg %p354
        $region138: #{tpu_custom_call.1} parent=79 // pred_check_branch
          %650 = sbr.rel (%p648) target = $region140
        $region139: #{tpu_custom_call.1} parent=79 // pred_region
          %651 = dma.done [#allocation24], 16
        $region140: #{tpu_custom_call.1} parent=79 // pred_fallthru
          _
        %s652 = sand.u32 %s47, 1
        %s653 = scalar_lea.sflag [#allocation3], %s652
        %s654 = sand.u32 %s47, 1
        %s655 = smul.addr %s654, 16
        %s656 = scalar_lea.vmem [#allocation2], %s655
        %p657 = pneg %p60
        %p658 = pneg %p57
        %p659 = pneg %p81
        %p660 = pneg %p78
        %p661 = pneg %p102
        %p662 = pneg %p99
        %p663 = pneg %p123
        %p664 = pneg %p120
        %p665 = pneg %p144
        %p666 = pneg %p141
        %p667 = pneg %p165
        %p668 = pneg %p162
        %p669 = pneg %p186
        %p670 = pneg %p183
        %p671 = pneg %p207
        %p672 = pneg %p204
        %p673 = pneg %p228
        %p674 = pneg %p225
        %p675 = pneg %p249
        %p676 = pneg %p246
        %p677 = pneg %p270
        %p678 = pneg %p267
        %p679 = pneg %p291
        %p680 = pneg %p288
        %p681 = pneg %p312
        %p682 = pneg %p309
        %p683 = pneg %p333
        %p684 = pneg %p330
        %p685 = pneg %p354
        %p686 = pneg %p351
        %p687 = pneg %p380
        %p688 = pneg %p377
        %s689 = sand.u32 %s367, 1
        %s690 = scalar_lea.sflag [#allocation4], %s689
        %s691 = sand.u32 %s367, 1
        %s692 = smul.addr %s691, 8
        %s693 = scalar_lea.vmem [#allocation26], %s692
        %v695 = vld [vmem:[%s591] sm:$0xff]
        %v696 = vld [vmem:[%s591 + $0x8] sm:$0xff]
        %v697 = vpack.c.bf16 %v695, %v695
        %v698 = vpack.c.bf16 %v696, %v696
        %v699 = vld [vmem:[#allocation5] sm:$0xff]
        %v700 = vld [vmem:[#allocation5 + $0x8] sm:$0xff]
        %v701 = vld [vmem:[#allocation5 + $0x10] sm:$0xff]
        %v702 = vld [vmem:[#allocation5 + $0x18] sm:$0xff]
        %v703 = vld [vmem:[#allocation5 + $0x20] sm:$0xff]
        %v704 = vld [vmem:[#allocation5 + $0x28] sm:$0xff]
        %v705 = vld [vmem:[#allocation5 + $0x30] sm:$0xff]
        %v706 = vld [vmem:[#allocation5 + $0x38] sm:$0xff]
        %v707 = vld [vmem:[#allocation5 + $0x40] sm:$0xff]
        %v708 = vld [vmem:[#allocation5 + $0x48] sm:$0xff]
        %v709 = vld [vmem:[#allocation5 + $0x50] sm:$0xff]
        %v710 = vld [vmem:[#allocation5 + $0x58] sm:$0xff]
        %v711 = vld [vmem:[#allocation5 + $0x60] sm:$0xff]
        %v712 = vld [vmem:[#allocation5 + $0x68] sm:$0xff]
        %v713 = vld [vmem:[#allocation5 + $0x70] sm:$0xff]
        %v714 = vld [vmem:[#allocation5 + $0x78] sm:$0xff]
        %v715 = vld [vmem:[#allocation5 + $0x80] sm:$0xff]
        %v716 = vld [vmem:[#allocation5 + $0x88] sm:$0xff]
        %v717 = vld [vmem:[#allocation5 + $0x90] sm:$0xff]
        %v718 = vld [vmem:[#allocation5 + $0x98] sm:$0xff]
        %v719 = vld [vmem:[#allocation5 + $0xa0] sm:$0xff]
        %v720 = vld [vmem:[#allocation5 + $0xa8] sm:$0xff]
        %v721 = vld [vmem:[#allocation5 + $0xb0] sm:$0xff]
        %v722 = vld [vmem:[#allocation5 + $0xb8] sm:$0xff]
        %v723 = vld [vmem:[#allocation5 + $0xc0] sm:$0xff]
        %v724 = vld [vmem:[#allocation5 + $0xc8] sm:$0xff]
        %v725 = vld [vmem:[#allocation5 + $0xd0] sm:$0xff]
        %v726 = vld [vmem:[#allocation5 + $0xd8] sm:$0xff]
        %v727 = vld [vmem:[#allocation5 + $0xe0] sm:$0xff]
        %v728 = vld [vmem:[#allocation5 + $0xe8] sm:$0xff]
        %v729 = vld [vmem:[#allocation5 + $0xf0] sm:$0xff]
        %v730 = vld [vmem:[#allocation5 + $0xf8] sm:$0xff]
        %v731 = vld [vmem:[#allocation5 + $0x100] sm:$0xff]
        %v732 = vld [vmem:[#allocation5 + $0x108] sm:$0xff]
        %v733 = vld [vmem:[#allocation5 + $0x110] sm:$0xff]
        %v734 = vld [vmem:[#allocation5 + $0x118] sm:$0xff]
        %v735 = vld [vmem:[#allocation5 + $0x120] sm:$0xff]
        %v736 = vld [vmem:[#allocation5 + $0x128] sm:$0xff]
        %v737 = vld [vmem:[#allocation5 + $0x130] sm:$0xff]
        %v738 = vld [vmem:[#allocation5 + $0x138] sm:$0xff]
        %v739 = vld [vmem:[#allocation5 + $0x140] sm:$0xff]
        %v740 = vld [vmem:[#allocation5 + $0x148] sm:$0xff]
        %v741 = vld [vmem:[#allocation5 + $0x150] sm:$0xff]
        %v742 = vld [vmem:[#allocation5 + $0x158] sm:$0xff]
        %v743 = vld [vmem:[#allocation5 + $0x160] sm:$0xff]
        %v744 = vld [vmem:[#allocation5 + $0x168] sm:$0xff]
        %v745 = vld [vmem:[#allocation5 + $0x170] sm:$0xff]
        %v746 = vld [vmem:[#allocation5 + $0x178] sm:$0xff]
        %v747 = vld [vmem:[#allocation5 + $0x180] sm:$0xff]
        %v748 = vld [vmem:[#allocation5 + $0x188] sm:$0xff]
        %v749 = vld [vmem:[#allocation5 + $0x190] sm:$0xff]
        %v750 = vld [vmem:[#allocation5 + $0x198] sm:$0xff]
        %v751 = vld [vmem:[#allocation5 + $0x1a0] sm:$0xff]
        %v752 = vld [vmem:[#allocation5 + $0x1a8] sm:$0xff]
        %v753 = vld [vmem:[#allocation5 + $0x1b0] sm:$0xff]
        %v754 = vld [vmem:[#allocation5 + $0x1b8] sm:$0xff]
        %v755 = vld [vmem:[#allocation5 + $0x1c0] sm:$0xff]
        %v756 = vld [vmem:[#allocation5 + $0x1c8] sm:$0xff]
        %v757 = vld [vmem:[#allocation5 + $0x1d0] sm:$0xff]
        %v758 = vld [vmem:[#allocation5 + $0x1d8] sm:$0xff]
        %v759 = vld [vmem:[#allocation5 + $0x1e0] sm:$0xff]
        %v760 = vld [vmem:[#allocation5 + $0x1e8] sm:$0xff]
        %v761 = vld [vmem:[#allocation5 + $0x1f0] sm:$0xff]
        %v762 = vld [vmem:[#allocation5 + $0x1f8] sm:$0xff]
        %v763 = vld [vmem:[#allocation5 + $0x200] sm:$0xff]
        %v764 = vld [vmem:[#allocation5 + $0x208] sm:$0xff]
        %v765 = vld [vmem:[#allocation5 + $0x210] sm:$0xff]
        %v766 = vld [vmem:[#allocation5 + $0x218] sm:$0xff]
        %v767 = vld [vmem:[#allocation5 + $0x220] sm:$0xff]
        %v768 = vld [vmem:[#allocation5 + $0x228] sm:$0xff]
        %v769 = vld [vmem:[#allocation5 + $0x230] sm:$0xff]
        %v770 = vld [vmem:[#allocation5 + $0x238] sm:$0xff]
        %v771 = vld [vmem:[#allocation5 + $0x240] sm:$0xff]
        %v772 = vld [vmem:[#allocation5 + $0x248] sm:$0xff]
        %v773 = vld [vmem:[#allocation5 + $0x250] sm:$0xff]
        %v774 = vld [vmem:[#allocation5 + $0x258] sm:$0xff]
        %v775 = vld [vmem:[#allocation5 + $0x260] sm:$0xff]
        %v776 = vld [vmem:[#allocation5 + $0x268] sm:$0xff]
        %v777 = vld [vmem:[#allocation5 + $0x270] sm:$0xff]
        %v778 = vld [vmem:[#allocation5 + $0x278] sm:$0xff]
        %v779 = vld [vmem:[#allocation5 + $0x280] sm:$0xff]
        %v780 = vld [vmem:[#allocation5 + $0x288] sm:$0xff]
        %v781 = vld [vmem:[#allocation5 + $0x290] sm:$0xff]
        %v782 = vld [vmem:[#allocation5 + $0x298] sm:$0xff]
        %v783 = vld [vmem:[#allocation5 + $0x2a0] sm:$0xff]
        %v784 = vld [vmem:[#allocation5 + $0x2a8] sm:$0xff]
        %v785 = vld [vmem:[#allocation5 + $0x2b0] sm:$0xff]
        %v786 = vld [vmem:[#allocation5 + $0x2b8] sm:$0xff]
        %v787 = vld [vmem:[#allocation5 + $0x2c0] sm:$0xff]
        %v788 = vld [vmem:[#allocation5 + $0x2c8] sm:$0xff]
        %v789 = vld [vmem:[#allocation5 + $0x2d0] sm:$0xff]
        %v790 = vld [vmem:[#allocation5 + $0x2d8] sm:$0xff]
        %v791 = vld [vmem:[#allocation5 + $0x2e0] sm:$0xff]
        %v792 = vld [vmem:[#allocation5 + $0x2e8] sm:$0xff]
        %v793 = vld [vmem:[#allocation5 + $0x2f0] sm:$0xff]
        %v794 = vld [vmem:[#allocation5 + $0x2f8] sm:$0xff]
        %v795 = vld [vmem:[#allocation5 + $0x300] sm:$0xff]
        %v796 = vld [vmem:[#allocation5 + $0x308] sm:$0xff]
        %v797 = vld [vmem:[#allocation5 + $0x310] sm:$0xff]
        %v798 = vld [vmem:[#allocation5 + $0x318] sm:$0xff]
        %v799 = vld [vmem:[#allocation5 + $0x320] sm:$0xff]
        %v800 = vld [vmem:[#allocation5 + $0x328] sm:$0xff]
        %v801 = vld [vmem:[#allocation5 + $0x330] sm:$0xff]
        %v802 = vld [vmem:[#allocation5 + $0x338] sm:$0xff]
        %v803 = vld [vmem:[#allocation5 + $0x340] sm:$0xff]
        %v804 = vld [vmem:[#allocation5 + $0x348] sm:$0xff]
        %v805 = vld [vmem:[#allocation5 + $0x350] sm:$0xff]
        %v806 = vld [vmem:[#allocation5 + $0x358] sm:$0xff]
        %v807 = vld [vmem:[#allocation5 + $0x360] sm:$0xff]
        %v808 = vld [vmem:[#allocation5 + $0x368] sm:$0xff]
        %v809 = vld [vmem:[#allocation5 + $0x370] sm:$0xff]
        %v810 = vld [vmem:[#allocation5 + $0x378] sm:$0xff]
        %v811 = vld [vmem:[#allocation5 + $0x380] sm:$0xff]
        %v812 = vld [vmem:[#allocation5 + $0x388] sm:$0xff]
        %v813 = vld [vmem:[#allocation5 + $0x390] sm:$0xff]
        %v814 = vld [vmem:[#allocation5 + $0x398] sm:$0xff]
        %v815 = vld [vmem:[#allocation5 + $0x3a0] sm:$0xff]
        %v816 = vld [vmem:[#allocation5 + $0x3a8] sm:$0xff]
        %v817 = vld [vmem:[#allocation5 + $0x3b0] sm:$0xff]
        %v818 = vld [vmem:[#allocation5 + $0x3b8] sm:$0xff]
        %v819 = vld [vmem:[#allocation5 + $0x3c0] sm:$0xff]
        %v820 = vld [vmem:[#allocation5 + $0x3c8] sm:$0xff]
        %v821 = vld [vmem:[#allocation5 + $0x3d0] sm:$0xff]
        %v822 = vld [vmem:[#allocation5 + $0x3d8] sm:$0xff]
        %v823 = vld [vmem:[#allocation5 + $0x3e0] sm:$0xff]
        %v824 = vld [vmem:[#allocation5 + $0x3e8] sm:$0xff]
        %v825 = vld [vmem:[#allocation5 + $0x3f0] sm:$0xff]
        %v826 = vld [vmem:[#allocation5 + $0x3f8] sm:$0xff]
        %v827 = vld [vmem:[#allocation7] sm:$0xff]
        %v829 = vlaneseq
        %v830 = vshrl.u32 %v829, 7
        %v831 = vsub.s32 0, %v830
        %v832 = vrot.slane %v827, %v831
        %v833 = vlaneseq
        %v834 = vshrl.u32 %v833, 7
        %v835 = vsub.s32 1, %v834
        %v836 = vrot.slane %v827, %v835
        %v837 = vlaneseq
        %v838 = vshrl.u32 %v837, 7
        %v839 = vsub.s32 2, %v838
        %v840 = vrot.slane %v827, %v839
        %v841 = vlaneseq
        %v842 = vshrl.u32 %v841, 7
        %v843 = vsub.s32 3, %v842
        %v844 = vrot.slane %v827, %v843
        %v845 = vlaneseq
        %v846 = vshrl.u32 %v845, 7
        %v847 = vsub.s32 4, %v846
        %v848 = vrot.slane %v827, %v847
        %v849 = vlaneseq
        %v850 = vshrl.u32 %v849, 7
        %v851 = vsub.s32 5, %v850
        %v852 = vrot.slane %v827, %v851
        %v853 = vlaneseq
        %v854 = vshrl.u32 %v853, 7
        %v855 = vsub.s32 6, %v854
        %v856 = vrot.slane %v827, %v855
        %v857 = vlaneseq
        %v858 = vshrl.u32 %v857, 7
        %v859 = vsub.s32 7, %v858
        %v860 = vrot.slane %v827, %v859
        %v997 = vunpack.c.l.b16 %v699
        %v998 = vunpack.c.h.b16 %v699
        %v999 = vunpack.c.l.b16 %v700
        %v1000 = vunpack.c.h.b16 %v700
        %v1001 = vunpack.c.l.b16 %v701
        %v1002 = vunpack.c.h.b16 %v701
        %v1003 = vunpack.c.l.b16 %v702
        %v1004 = vunpack.c.h.b16 %v702
        %v1005 = vunpack.c.l.b16 %v703
        %v1006 = vunpack.c.h.b16 %v703
        %v1007 = vunpack.c.l.b16 %v704
        %v1008 = vunpack.c.h.b16 %v704
        %v1009 = vunpack.c.l.b16 %v705
        %v1010 = vunpack.c.h.b16 %v705
        %v1011 = vunpack.c.l.b16 %v706
        %v1012 = vunpack.c.h.b16 %v706
        %v1013 = vunpack.c.l.b16 %v707
        %v1014 = vunpack.c.h.b16 %v707
        %v1015 = vunpack.c.l.b16 %v708
        %v1016 = vunpack.c.h.b16 %v708
        %v1017 = vunpack.c.l.b16 %v709
        %v1018 = vunpack.c.h.b16 %v709
        %v1019 = vunpack.c.l.b16 %v710
        %v1020 = vunpack.c.h.b16 %v710
        %v1021 = vunpack.c.l.b16 %v711
        %v1022 = vunpack.c.h.b16 %v711
        %v1023 = vunpack.c.l.b16 %v712
        %v1024 = vunpack.c.h.b16 %v712
        %v1025 = vunpack.c.l.b16 %v713
        %v1026 = vunpack.c.h.b16 %v713
        %v1027 = vunpack.c.l.b16 %v714
        %v1028 = vunpack.c.h.b16 %v714
        %v1029 = vunpack.c.l.b16 %v715
        %v1030 = vunpack.c.h.b16 %v715
        %v1031 = vunpack.c.l.b16 %v716
        %v1032 = vunpack.c.h.b16 %v716
        %v1033 = vunpack.c.l.b16 %v717
        %v1034 = vunpack.c.h.b16 %v717
        %v1035 = vunpack.c.l.b16 %v718
        %v1036 = vunpack.c.h.b16 %v718
        %v1037 = vunpack.c.l.b16 %v719
        %v1038 = vunpack.c.h.b16 %v719
        %v1039 = vunpack.c.l.b16 %v720
        %v1040 = vunpack.c.h.b16 %v720
        %v1041 = vunpack.c.l.b16 %v721
        %v1042 = vunpack.c.h.b16 %v721
        %v1043 = vunpack.c.l.b16 %v722
        %v1044 = vunpack.c.h.b16 %v722
        %v1045 = vunpack.c.l.b16 %v723
        %v1046 = vunpack.c.h.b16 %v723
        %v1047 = vunpack.c.l.b16 %v724
        %v1048 = vunpack.c.h.b16 %v724
        %v1049 = vunpack.c.l.b16 %v725
        %v1050 = vunpack.c.h.b16 %v725
        %v1051 = vunpack.c.l.b16 %v726
        %v1052 = vunpack.c.h.b16 %v726
        %v1053 = vunpack.c.l.b16 %v727
        %v1054 = vunpack.c.h.b16 %v727
        %v1055 = vunpack.c.l.b16 %v728
        %v1056 = vunpack.c.h.b16 %v728
        %v1057 = vunpack.c.l.b16 %v729
        %v1058 = vunpack.c.h.b16 %v729
        %v1059 = vunpack.c.l.b16 %v730
        %v1060 = vunpack.c.h.b16 %v730
        %v1061 = vunpack.c.l.b16 %v731
        %v1062 = vunpack.c.h.b16 %v731
        %v1063 = vunpack.c.l.b16 %v732
        %v1064 = vunpack.c.h.b16 %v732
        %v1065 = vunpack.c.l.b16 %v733
        %v1066 = vunpack.c.h.b16 %v733
        %v1067 = vunpack.c.l.b16 %v734
        %v1068 = vunpack.c.h.b16 %v734
        %v1069 = vunpack.c.l.b16 %v735
        %v1070 = vunpack.c.h.b16 %v735
        %v1071 = vunpack.c.l.b16 %v736
        %v1072 = vunpack.c.h.b16 %v736
        %v1073 = vunpack.c.l.b16 %v737
        %v1074 = vunpack.c.h.b16 %v737
        %v1075 = vunpack.c.l.b16 %v738
        %v1076 = vunpack.c.h.b16 %v738
        %v1077 = vunpack.c.l.b16 %v739
        %v1078 = vunpack.c.h.b16 %v739
        %v1079 = vunpack.c.l.b16 %v740
        %v1080 = vunpack.c.h.b16 %v740
        %v1081 = vunpack.c.l.b16 %v741
        %v1082 = vunpack.c.h.b16 %v741
        %v1083 = vunpack.c.l.b16 %v742
        %v1084 = vunpack.c.h.b16 %v742
        %v1085 = vunpack.c.l.b16 %v743
        %v1086 = vunpack.c.h.b16 %v743
        %v1087 = vunpack.c.l.b16 %v744
        %v1088 = vunpack.c.h.b16 %v744
        %v1089 = vunpack.c.l.b16 %v745
        %v1090 = vunpack.c.h.b16 %v745
        %v1091 = vunpack.c.l.b16 %v746
        %v1092 = vunpack.c.h.b16 %v746
        %v1093 = vunpack.c.l.b16 %v747
        %v1094 = vunpack.c.h.b16 %v747
        %v1095 = vunpack.c.l.b16 %v748
        %v1096 = vunpack.c.h.b16 %v748
        %v1097 = vunpack.c.l.b16 %v749
        %v1098 = vunpack.c.h.b16 %v749
        %v1099 = vunpack.c.l.b16 %v750
        %v1100 = vunpack.c.h.b16 %v750
        %v1101 = vunpack.c.l.b16 %v751
        %v1102 = vunpack.c.h.b16 %v751
        %v1103 = vunpack.c.l.b16 %v752
        %v1104 = vunpack.c.h.b16 %v752
        %v1105 = vunpack.c.l.b16 %v753
        %v1106 = vunpack.c.h.b16 %v753
        %v1107 = vunpack.c.l.b16 %v754
        %v1108 = vunpack.c.h.b16 %v754
        %v1109 = vunpack.c.l.b16 %v755
        %v1110 = vunpack.c.h.b16 %v755
        %v1111 = vunpack.c.l.b16 %v756
        %v1112 = vunpack.c.h.b16 %v756
        %v1113 = vunpack.c.l.b16 %v757
        %v1114 = vunpack.c.h.b16 %v757
        %v1115 = vunpack.c.l.b16 %v758
        %v1116 = vunpack.c.h.b16 %v758
        %v1117 = vunpack.c.l.b16 %v759
        %v1118 = vunpack.c.h.b16 %v759
        %v1119 = vunpack.c.l.b16 %v760
        %v1120 = vunpack.c.h.b16 %v760
        %v1121 = vunpack.c.l.b16 %v761
        %v1122 = vunpack.c.h.b16 %v761
        %v1123 = vunpack.c.l.b16 %v762
        %v1124 = vunpack.c.h.b16 %v762
        %v1125 = vunpack.c.l.b16 %v763
        %v1126 = vunpack.c.h.b16 %v763
        %v1127 = vunpack.c.l.b16 %v764
        %v1128 = vunpack.c.h.b16 %v764
        %v1129 = vunpack.c.l.b16 %v765
        %v1130 = vunpack.c.h.b16 %v765
        %v1131 = vunpack.c.l.b16 %v766
        %v1132 = vunpack.c.h.b16 %v766
        %v1133 = vunpack.c.l.b16 %v767
        %v1134 = vunpack.c.h.b16 %v767
        %v1135 = vunpack.c.l.b16 %v768
        %v1136 = vunpack.c.h.b16 %v768
        %v1137 = vunpack.c.l.b16 %v769
        %v1138 = vunpack.c.h.b16 %v769
        %v1139 = vunpack.c.l.b16 %v770
        %v1140 = vunpack.c.h.b16 %v770
        %v1141 = vunpack.c.l.b16 %v771
        %v1142 = vunpack.c.h.b16 %v771
        %v1143 = vunpack.c.l.b16 %v772
        %v1144 = vunpack.c.h.b16 %v772
        %v1145 = vunpack.c.l.b16 %v773
        %v1146 = vunpack.c.h.b16 %v773
        %v1147 = vunpack.c.l.b16 %v774
        %v1148 = vunpack.c.h.b16 %v774
        %v1149 = vunpack.c.l.b16 %v775
        %v1150 = vunpack.c.h.b16 %v775
        %v1151 = vunpack.c.l.b16 %v776
        %v1152 = vunpack.c.h.b16 %v776
        %v1153 = vunpack.c.l.b16 %v777
        %v1154 = vunpack.c.h.b16 %v777
        %v1155 = vunpack.c.l.b16 %v778
        %v1156 = vunpack.c.h.b16 %v778
        %v1157 = vunpack.c.l.b16 %v779
        %v1158 = vunpack.c.h.b16 %v779
        %v1159 = vunpack.c.l.b16 %v780
        %v1160 = vunpack.c.h.b16 %v780
        %v1161 = vunpack.c.l.b16 %v781
        %v1162 = vunpack.c.h.b16 %v781
        %v1163 = vunpack.c.l.b16 %v782
        %v1164 = vunpack.c.h.b16 %v782
        %v1165 = vunpack.c.l.b16 %v783
        %v1166 = vunpack.c.h.b16 %v783
        %v1167 = vunpack.c.l.b16 %v784
        %v1168 = vunpack.c.h.b16 %v784
        %v1169 = vunpack.c.l.b16 %v785
        %v1170 = vunpack.c.h.b16 %v785
        %v1171 = vunpack.c.l.b16 %v786
        %v1172 = vunpack.c.h.b16 %v786
        %v1173 = vunpack.c.l.b16 %v787
        %v1174 = vunpack.c.h.b16 %v787
        %v1175 = vunpack.c.l.b16 %v788
        %v1176 = vunpack.c.h.b16 %v788
        %v1177 = vunpack.c.l.b16 %v789
        %v1178 = vunpack.c.h.b16 %v789
        %v1179 = vunpack.c.l.b16 %v790
        %v1180 = vunpack.c.h.b16 %v790
        %v1181 = vunpack.c.l.b16 %v791
        %v1182 = vunpack.c.h.b16 %v791
        %v1183 = vunpack.c.l.b16 %v792
        %v1184 = vunpack.c.h.b16 %v792
        %v1185 = vunpack.c.l.b16 %v793
        %v1186 = vunpack.c.h.b16 %v793
        %v1187 = vunpack.c.l.b16 %v794
        %v1188 = vunpack.c.h.b16 %v794
        %v1189 = vunpack.c.l.b16 %v795
        %v1190 = vunpack.c.h.b16 %v795
        %v1191 = vunpack.c.l.b16 %v796
        %v1192 = vunpack.c.h.b16 %v796
        %v1193 = vunpack.c.l.b16 %v797
        %v1194 = vunpack.c.h.b16 %v797
        %v1195 = vunpack.c.l.b16 %v798
        %v1196 = vunpack.c.h.b16 %v798
        %v1197 = vunpack.c.l.b16 %v799
        %v1198 = vunpack.c.h.b16 %v799
        %v1199 = vunpack.c.l.b16 %v800
        %v1200 = vunpack.c.h.b16 %v800
        %v1201 = vunpack.c.l.b16 %v801
        %v1202 = vunpack.c.h.b16 %v801
        %v1203 = vunpack.c.l.b16 %v802
        %v1204 = vunpack.c.h.b16 %v802
        %v1205 = vunpack.c.l.b16 %v803
        %v1206 = vunpack.c.h.b16 %v803
        %v1207 = vunpack.c.l.b16 %v804
        %v1208 = vunpack.c.h.b16 %v804
        %v1209 = vunpack.c.l.b16 %v805
        %v1210 = vunpack.c.h.b16 %v805
        %v1211 = vunpack.c.l.b16 %v806
        %v1212 = vunpack.c.h.b16 %v806
        %v1213 = vunpack.c.l.b16 %v807
        %v1214 = vunpack.c.h.b16 %v807
        %v1215 = vunpack.c.l.b16 %v808
        %v1216 = vunpack.c.h.b16 %v808
        %v1217 = vunpack.c.l.b16 %v809
        %v1218 = vunpack.c.h.b16 %v809
        %v1219 = vunpack.c.l.b16 %v810
        %v1220 = vunpack.c.h.b16 %v810
        %v1221 = vunpack.c.l.b16 %v811
        %v1222 = vunpack.c.h.b16 %v811
        %v1223 = vunpack.c.l.b16 %v812
        %v1224 = vunpack.c.h.b16 %v812
        %v1225 = vunpack.c.l.b16 %v813
        %v1226 = vunpack.c.h.b16 %v813
        %v1227 = vunpack.c.l.b16 %v814
        %v1228 = vunpack.c.h.b16 %v814
        %v1229 = vunpack.c.l.b16 %v815
        %v1230 = vunpack.c.h.b16 %v815
        %v1231 = vunpack.c.l.b16 %v816
        %v1232 = vunpack.c.h.b16 %v816
        %v1233 = vunpack.c.l.b16 %v817
        %v1234 = vunpack.c.h.b16 %v817
        %v1235 = vunpack.c.l.b16 %v818
        %v1236 = vunpack.c.h.b16 %v818
        %v1237 = vunpack.c.l.b16 %v819
        %v1238 = vunpack.c.h.b16 %v819
        %v1239 = vunpack.c.l.b16 %v820
        %v1240 = vunpack.c.h.b16 %v820
        %v1241 = vunpack.c.l.b16 %v821
        %v1242 = vunpack.c.h.b16 %v821
        %v1243 = vunpack.c.l.b16 %v822
        %v1244 = vunpack.c.h.b16 %v822
        %v1245 = vunpack.c.l.b16 %v823
        %v1246 = vunpack.c.h.b16 %v823
        %v1247 = vunpack.c.l.b16 %v824
        %v1248 = vunpack.c.h.b16 %v824
        %v1249 = vunpack.c.l.b16 %v825
        %v1250 = vunpack.c.h.b16 %v825
        %v1251 = vunpack.c.l.b16 %v826
        %v1252 = vunpack.c.h.b16 %v826
        %v1253 = vpack.c.b16 %v1005, %v997
        %v1254 = vpack.c.b16 %v1006, %v998
        %v1255 = vpack.c.b16 %v1007, %v999
        %v1256 = vpack.c.b16 %v1008, %v1000
        %v1257 = vpack.c.b16 %v1009, %v1001
        %v1258 = vpack.c.b16 %v1010, %v1002
        %v1259 = vpack.c.b16 %v1011, %v1003
        %v1260 = vpack.c.b16 %v1012, %v1004
        %v1261 = vpack.c.b16 %v1021, %v1013
        %v1262 = vpack.c.b16 %v1022, %v1014
        %v1263 = vpack.c.b16 %v1023, %v1015
        %v1264 = vpack.c.b16 %v1024, %v1016
        %v1265 = vpack.c.b16 %v1025, %v1017
        %v1266 = vpack.c.b16 %v1026, %v1018
        %v1267 = vpack.c.b16 %v1027, %v1019
        %v1268 = vpack.c.b16 %v1028, %v1020
        %v1269 = vpack.c.b16 %v1037, %v1029
        %v1270 = vpack.c.b16 %v1038, %v1030
        %v1271 = vpack.c.b16 %v1039, %v1031
        %v1272 = vpack.c.b16 %v1040, %v1032
        %v1273 = vpack.c.b16 %v1041, %v1033
        %v1274 = vpack.c.b16 %v1042, %v1034
        %v1275 = vpack.c.b16 %v1043, %v1035
        %v1276 = vpack.c.b16 %v1044, %v1036
        %v1277 = vpack.c.b16 %v1053, %v1045
        %v1278 = vpack.c.b16 %v1054, %v1046
        %v1279 = vpack.c.b16 %v1055, %v1047
        %v1280 = vpack.c.b16 %v1056, %v1048
        %v1281 = vpack.c.b16 %v1057, %v1049
        %v1282 = vpack.c.b16 %v1058, %v1050
        %v1283 = vpack.c.b16 %v1059, %v1051
        %v1284 = vpack.c.b16 %v1060, %v1052
        %v1285 = vpack.c.b16 %v1069, %v1061
        %v1286 = vpack.c.b16 %v1070, %v1062
        %v1287 = vpack.c.b16 %v1071, %v1063
        %v1288 = vpack.c.b16 %v1072, %v1064
        %v1289 = vpack.c.b16 %v1073, %v1065
        %v1290 = vpack.c.b16 %v1074, %v1066
        %v1291 = vpack.c.b16 %v1075, %v1067
        %v1292 = vpack.c.b16 %v1076, %v1068
        %v1293 = vpack.c.b16 %v1085, %v1077
        %v1294 = vpack.c.b16 %v1086, %v1078
        %v1295 = vpack.c.b16 %v1087, %v1079
        %v1296 = vpack.c.b16 %v1088, %v1080
        %v1297 = vpack.c.b16 %v1089, %v1081
        %v1298 = vpack.c.b16 %v1090, %v1082
        %v1299 = vpack.c.b16 %v1091, %v1083
        %v1300 = vpack.c.b16 %v1092, %v1084
        %v1301 = vpack.c.b16 %v1101, %v1093
        %v1302 = vpack.c.b16 %v1102, %v1094
        %v1303 = vpack.c.b16 %v1103, %v1095
        %v1304 = vpack.c.b16 %v1104, %v1096
        %v1305 = vpack.c.b16 %v1105, %v1097
        %v1306 = vpack.c.b16 %v1106, %v1098
        %v1307 = vpack.c.b16 %v1107, %v1099
        %v1308 = vpack.c.b16 %v1108, %v1100
        %v1309 = vpack.c.b16 %v1117, %v1109
        %v1310 = vpack.c.b16 %v1118, %v1110
        %v1311 = vpack.c.b16 %v1119, %v1111
        %v1312 = vpack.c.b16 %v1120, %v1112
        %v1313 = vpack.c.b16 %v1121, %v1113
        %v1314 = vpack.c.b16 %v1122, %v1114
        %v1315 = vpack.c.b16 %v1123, %v1115
        %v1316 = vpack.c.b16 %v1124, %v1116
        %v1317 = vpack.c.b16 %v1133, %v1125
        %v1318 = vpack.c.b16 %v1134, %v1126
        %v1319 = vpack.c.b16 %v1135, %v1127
        %v1320 = vpack.c.b16 %v1136, %v1128
        %v1321 = vpack.c.b16 %v1137, %v1129
        %v1322 = vpack.c.b16 %v1138, %v1130
        %v1323 = vpack.c.b16 %v1139, %v1131
        %v1324 = vpack.c.b16 %v1140, %v1132
        %v1325 = vpack.c.b16 %v1149, %v1141
        %v1326 = vpack.c.b16 %v1150, %v1142
        %v1327 = vpack.c.b16 %v1151, %v1143
        %v1328 = vpack.c.b16 %v1152, %v1144
        %v1329 = vpack.c.b16 %v1153, %v1145
        %v1330 = vpack.c.b16 %v1154, %v1146
        %v1331 = vpack.c.b16 %v1155, %v1147
        %v1332 = vpack.c.b16 %v1156, %v1148
        %v1333 = vpack.c.b16 %v1165, %v1157
        %v1334 = vpack.c.b16 %v1166, %v1158
        %v1335 = vpack.c.b16 %v1167, %v1159
        %v1336 = vpack.c.b16 %v1168, %v1160
        %v1337 = vpack.c.b16 %v1169, %v1161
        %v1338 = vpack.c.b16 %v1170, %v1162
        %v1339 = vpack.c.b16 %v1171, %v1163
        %v1340 = vpack.c.b16 %v1172, %v1164
        %v1341 = vpack.c.b16 %v1181, %v1173
        %v1342 = vpack.c.b16 %v1182, %v1174
        %v1343 = vpack.c.b16 %v1183, %v1175
        %v1344 = vpack.c.b16 %v1184, %v1176
        %v1345 = vpack.c.b16 %v1185, %v1177
        %v1346 = vpack.c.b16 %v1186, %v1178
        %v1347 = vpack.c.b16 %v1187, %v1179
        %v1348 = vpack.c.b16 %v1188, %v1180
        %v1349 = vpack.c.b16 %v1197, %v1189
        %v1350 = vpack.c.b16 %v1198, %v1190
        %v1351 = vpack.c.b16 %v1199, %v1191
        %v1352 = vpack.c.b16 %v1200, %v1192
        %v1353 = vpack.c.b16 %v1201, %v1193
        %v1354 = vpack.c.b16 %v1202, %v1194
        %v1355 = vpack.c.b16 %v1203, %v1195
        %v1356 = vpack.c.b16 %v1204, %v1196
        %v1357 = vpack.c.b16 %v1213, %v1205
        %v1358 = vpack.c.b16 %v1214, %v1206
        %v1359 = vpack.c.b16 %v1215, %v1207
        %v1360 = vpack.c.b16 %v1216, %v1208
        %v1361 = vpack.c.b16 %v1217, %v1209
        %v1362 = vpack.c.b16 %v1218, %v1210
        %v1363 = vpack.c.b16 %v1219, %v1211
        %v1364 = vpack.c.b16 %v1220, %v1212
        %v1365 = vpack.c.b16 %v1229, %v1221
        %v1366 = vpack.c.b16 %v1230, %v1222
        %v1367 = vpack.c.b16 %v1231, %v1223
        %v1368 = vpack.c.b16 %v1232, %v1224
        %v1369 = vpack.c.b16 %v1233, %v1225
        %v1370 = vpack.c.b16 %v1234, %v1226
        %v1371 = vpack.c.b16 %v1235, %v1227
        %v1372 = vpack.c.b16 %v1236, %v1228
        %v1373 = vpack.c.b16 %v1245, %v1237
        %v1374 = vpack.c.b16 %v1246, %v1238
        %v1375 = vpack.c.b16 %v1247, %v1239
        %v1376 = vpack.c.b16 %v1248, %v1240
        %v1377 = vpack.c.b16 %v1249, %v1241
        %v1378 = vpack.c.b16 %v1250, %v1242
        %v1379 = vpack.c.b16 %v1251, %v1243
        %v1380 = vpack.c.b16 %v1252, %v1244
        %1509 = vmatprep.subr.bf16.mxu0 %v1254
        %1510 = vmatpush1.bf16.msra.mxu0 %v1253
        %1511 = vmatprep.subr.bf16.mxu0 %v1262
        %1512 = vmatpush1.bf16.msra.mxu0 %v1261
        %1513 = vmatprep.subr.bf16.mxu0 %v1270
        %1514 = vmatpush1.bf16.msra.mxu0 %v1269
        %1515 = vmatprep.subr.bf16.mxu0 %v1278
        %1516 = vmatpush1.bf16.msra.mxu0 %v1277
        %1517 = vmatprep.subr.bf16.mxu0 %v1286
        %1518 = vmatpush1.bf16.msra.mxu0 %v1285
        %1519 = vmatprep.subr.bf16.mxu0 %v1294
        %1520 = vmatpush1.bf16.msra.mxu0 %v1293
        %1521 = vmatprep.subr.bf16.mxu0 %v1302
        %1522 = vmatpush1.bf16.msra.mxu0 %v1301
        %1523 = vmatprep.subr.bf16.mxu0 %v1310
        %1524 = vmatpush1.bf16.msra.mxu0 %v1309
        %1525 = vmatprep.subr.bf16.mxu0 %v1318
        %1526 = vmatpush1.bf16.msra.mxu0 %v1317
        %1527 = vmatprep.subr.bf16.mxu0 %v1326
        %1528 = vmatpush1.bf16.msra.mxu0 %v1325
        %1529 = vmatprep.subr.bf16.mxu0 %v1334
        %1530 = vmatpush1.bf16.msra.mxu0 %v1333
        %1531 = vmatprep.subr.bf16.mxu0 %v1342
        %1532 = vmatpush1.bf16.msra.mxu0 %v1341
        %1533 = vmatprep.subr.bf16.mxu0 %v1350
        %1534 = vmatpush1.bf16.msra.mxu0 %v1349
        %1535 = vmatprep.subr.bf16.mxu0 %v1358
        %1536 = vmatpush1.bf16.msra.mxu0 %v1357
        %1537 = vmatprep.subr.bf16.mxu0 %v1366
        %1538 = vmatpush1.bf16.msra.mxu0 %v1365
        %1539 = vmatprep.subr.bf16.mxu0 %v1374
        %1540 = vmatpush1.bf16.msra.mxu0 %v1373
        %1541 = vmatprep.mubr.bf16.mxu0 %v698
        %1542 = vmatmul.mubr.bf16.gmra.mrb[0].mxu0 %v697
        %v1543 = vpop.f32.mrb[0].mxu0
        %v1544 = vadd.f32 %v832, %v1543
        %v1545 = vpop.f32.mrb[0].mxu0
        %v1546 = vadd.f32 %v836, %v1545
        %v1547 = vpop.f32.mrb[0].mxu0
        %v1548 = vpop.f32.mrb[0].mxu0
        %1549 = vdwg.mxu0
        %1550 = vmatprep.subr.bf16.mxu0 %v1256
        %1551 = vmatpush1.bf16.msra.mxu0 %v1255
        %1552 = vmatprep.subr.bf16.mxu0 %v1264
        %1553 = vmatpush1.bf16.msra.mxu0 %v1263
        %1554 = vmatprep.subr.bf16.mxu0 %v1272
        %1555 = vmatpush1.bf16.msra.mxu0 %v1271
        %1556 = vmatprep.subr.bf16.mxu0 %v1280
        %1557 = vmatpush1.bf16.msra.mxu0 %v1279
        %1558 = vmatprep.subr.bf16.mxu0 %v1288
        %1559 = vmatpush1.bf16.msra.mxu0 %v1287
        %1560 = vmatprep.subr.bf16.mxu0 %v1296
        %1561 = vmatpush1.bf16.msra.mxu0 %v1295
        %1562 = vmatprep.subr.bf16.mxu0 %v1304
        %1563 = vmatpush1.bf16.msra.mxu0 %v1303
        %1564 = vmatprep.subr.bf16.mxu0 %v1312
        %1565 = vmatpush1.bf16.msra.mxu0 %v1311
        %1566 = vmatprep.subr.bf16.mxu0 %v1320
        %1567 = vmatpush1.bf16.msra.mxu0 %v1319
        %1568 = vmatprep.subr.bf16.mxu0 %v1328
        %1569 = vmatpush1.bf16.msra.mxu0 %v1327
        %1570 = vmatprep.subr.bf16.mxu0 %v1336
        %1571 = vmatpush1.bf16.msra.mxu0 %v1335
        %1572 = vmatprep.subr.bf16.mxu0 %v1344
        %1573 = vmatpush1.bf16.msra.mxu0 %v1343
        %1574 = vmatprep.subr.bf16.mxu0 %v1352
        %1575 = vmatpush1.bf16.msra.mxu0 %v1351
        %1576 = vmatprep.subr.bf16.mxu0 %v1360
        %1577 = vmatpush1.bf16.msra.mxu0 %v1359
        %1578 = vmatprep.subr.bf16.mxu0 %v1368
        %1579 = vmatpush1.bf16.msra.mxu0 %v1367
        %1580 = vmatprep.subr.bf16.mxu0 %v1376
        %1581 = vmatpush1.bf16.msra.mxu0 %v1375
        %1582 = vmatprep.mubr.bf16.mxu0 %v698
        %1583 = vmatmul.mubr.bf16.gmra.mrb[0].mxu0 %v697
        %v1584 = vpop.f32.mrb[0].mxu0
        %v1585 = vadd.f32 %v840, %v1584
        %v1586 = vpop.f32.mrb[0].mxu0
        %v1587 = vadd.f32 %v844, %v1586
        %v1588 = vpop.f32.mrb[0].mxu0
        %v1589 = vpop.f32.mrb[0].mxu0
        %1590 = vdwg.mxu0
        %1591 = vmatprep.subr.bf16.mxu0 %v1258
        %1592 = vmatpush1.bf16.msra.mxu0 %v1257
        %1593 = vmatprep.subr.bf16.mxu0 %v1266
        %1594 = vmatpush1.bf16.msra.mxu0 %v1265
        %1595 = vmatprep.subr.bf16.mxu0 %v1274
        %1596 = vmatpush1.bf16.msra.mxu0 %v1273
        %1597 = vmatprep.subr.bf16.mxu0 %v1282
        %1598 = vmatpush1.bf16.msra.mxu0 %v1281
        %1599 = vmatprep.subr.bf16.mxu0 %v1290
        %1600 = vmatpush1.bf16.msra.mxu0 %v1289
        %1601 = vmatprep.subr.bf16.mxu0 %v1298
        %1602 = vmatpush1.bf16.msra.mxu0 %v1297
        %1603 = vmatprep.subr.bf16.mxu0 %v1306
        %1604 = vmatpush1.bf16.msra.mxu0 %v1305
        %1605 = vmatprep.subr.bf16.mxu0 %v1314
        %1606 = vmatpush1.bf16.msra.mxu0 %v1313
        %1607 = vmatprep.subr.bf16.mxu0 %v1322
        %1608 = vmatpush1.bf16.msra.mxu0 %v1321
        %1609 = vmatprep.subr.bf16.mxu0 %v1330
        %1610 = vmatpush1.bf16.msra.mxu0 %v1329
        %1611 = vmatprep.subr.bf16.mxu0 %v1338
        %1612 = vmatpush1.bf16.msra.mxu0 %v1337
        %1613 = vmatprep.subr.bf16.mxu0 %v1346
        %1614 = vmatpush1.bf16.msra.mxu0 %v1345
        %1615 = vmatprep.subr.bf16.mxu0 %v1354
        %1616 = vmatpush1.bf16.msra.mxu0 %v1353
        %1617 = vmatprep.subr.bf16.mxu0 %v1362
        %1618 = vmatpush1.bf16.msra.mxu0 %v1361
        %1619 = vmatprep.subr.bf16.mxu0 %v1370
        %1620 = vmatpush1.bf16.msra.mxu0 %v1369
        %1621 = vmatprep.subr.bf16.mxu0 %v1378
        %1622 = vmatpush1.bf16.msra.mxu0 %v1377
        %1623 = vmatprep.mubr.bf16.mxu0 %v698
        %1624 = vmatmul.mubr.bf16.gmra.mrb[0].mxu0 %v697
        %v1625 = vpop.f32.mrb[0].mxu0
        %v1626 = vadd.f32 %v848, %v1625
        %v1627 = vpop.f32.mrb[0].mxu0
        %v1628 = vadd.f32 %v852, %v1627
        %v1629 = vpop.f32.mrb[0].mxu0
        %v1630 = vpop.f32.mrb[0].mxu0
        %1631 = vdwg.mxu0
        %1632 = vmatprep.subr.bf16.mxu0 %v1260
        %1633 = vmatpush1.bf16.msra.mxu0 %v1259
        %1634 = vmatprep.subr.bf16.mxu0 %v1268
        %1635 = vmatpush1.bf16.msra.mxu0 %v1267
        %1636 = vmatprep.subr.bf16.mxu0 %v1276
        %1637 = vmatpush1.bf16.msra.mxu0 %v1275
        %1638 = vmatprep.subr.bf16.mxu0 %v1284
        %1639 = vmatpush1.bf16.msra.mxu0 %v1283
        %1640 = vmatprep.subr.bf16.mxu0 %v1292
        %1641 = vmatpush1.bf16.msra.mxu0 %v1291
        %1642 = vmatprep.subr.bf16.mxu0 %v1300
        %1643 = vmatpush1.bf16.msra.mxu0 %v1299
        %1644 = vmatprep.subr.bf16.mxu0 %v1308
        %1645 = vmatpush1.bf16.msra.mxu0 %v1307
        %1646 = vmatprep.subr.bf16.mxu0 %v1316
        %1647 = vmatpush1.bf16.msra.mxu0 %v1315
        %1648 = vmatprep.subr.bf16.mxu0 %v1324
        %1649 = vmatpush1.bf16.msra.mxu0 %v1323
        %1650 = vmatprep.subr.bf16.mxu0 %v1332
        %1651 = vmatpush1.bf16.msra.mxu0 %v1331
        %1652 = vmatprep.subr.bf16.mxu0 %v1340
        %1653 = vmatpush1.bf16.msra.mxu0 %v1339
        %1654 = vmatprep.subr.bf16.mxu0 %v1348
        %1655 = vmatpush1.bf16.msra.mxu0 %v1347
        %1656 = vmatprep.subr.bf16.mxu0 %v1356
        %1657 = vmatpush1.bf16.msra.mxu0 %v1355
        %1658 = vmatprep.subr.bf16.mxu0 %v1364
        %1659 = vmatpush1.bf16.msra.mxu0 %v1363
        %1660 = vmatprep.subr.bf16.mxu0 %v1372
        %1661 = vmatpush1.bf16.msra.mxu0 %v1371
        %1662 = vmatprep.subr.bf16.mxu0 %v1380
        %1663 = vmatpush1.bf16.msra.mxu0 %v1379
        %1664 = vmatprep.mubr.bf16.mxu0 %v698
        %1665 = vmatmul.mubr.bf16.gmra.mrb[0].mxu0 %v697
        %v1666 = vpop.f32.mrb[0].mxu0
        %v1667 = vadd.f32 %v856, %v1666
        %v1668 = vpop.f32.mrb[0].mxu0
        %v1669 = vadd.f32 %v860, %v1668
        %v1670 = vpop.f32.mrb[0].mxu0
        %v1671 = vpop.f32.mrb[0].mxu0
        %1672 = vdwg.mxu0
        %v1673 = vmax.f32 %v1544, 0.0
        %v1674 = vmax.f32 %v1546, 0.0
        %v1675 = vmax.f32 %v1585, 0.0
        %v1676 = vmax.f32 %v1587, 0.0
        %v1677 = vmax.f32 %v1626, 0.0
        %v1678 = vmax.f32 %v1628, 0.0
        %v1679 = vmax.f32 %v1667, 0.0
        %v1680 = vmax.f32 %v1669, 0.0
        %v1681 = vrot.slane %v1673, 4
        %v1682 = vadd.f32 %v1673, %v1681
        %v1683 = vrot.slane %v1682, 2
        %v1684 = vadd.f32 %v1682, %v1683
        %v1685 = vrot.slane %v1684, 1
        %v1686 = vadd.f32 %v1684, %v1685
        %v1687 = vrot.slane %v1674, 4
        %v1688 = vadd.f32 %v1674, %v1687
        %v1689 = vrot.slane %v1688, 2
        %v1690 = vadd.f32 %v1688, %v1689
        %v1691 = vrot.slane %v1690, 1
        %v1692 = vadd.f32 %v1690, %v1691
        %v1693 = vrot.slane %v1675, 4
        %v1694 = vadd.f32 %v1675, %v1693
        %v1695 = vrot.slane %v1694, 2
        %v1696 = vadd.f32 %v1694, %v1695
        %v1697 = vrot.slane %v1696, 1
        %v1698 = vadd.f32 %v1696, %v1697
        %v1699 = vrot.slane %v1676, 4
        %v1700 = vadd.f32 %v1676, %v1699
        %v1701 = vrot.slane %v1700, 2
        %v1702 = vadd.f32 %v1700, %v1701
        %v1703 = vrot.slane %v1702, 1
        %v1704 = vadd.f32 %v1702, %v1703
        %v1705 = vrot.slane %v1677, 4
        %v1706 = vadd.f32 %v1677, %v1705
        %v1707 = vrot.slane %v1706, 2
        %v1708 = vadd.f32 %v1706, %v1707
        %v1709 = vrot.slane %v1708, 1
        %v1710 = vadd.f32 %v1708, %v1709
        %v1711 = vrot.slane %v1678, 4
        %v1712 = vadd.f32 %v1678, %v1711
        %v1713 = vrot.slane %v1712, 2
        %v1714 = vadd.f32 %v1712, %v1713
        %v1715 = vrot.slane %v1714, 1
        %v1716 = vadd.f32 %v1714, %v1715
        %v1717 = vrot.slane %v1679, 4
        %v1718 = vadd.f32 %v1679, %v1717
        %v1719 = vrot.slane %v1718, 2
        %v1720 = vadd.f32 %v1718, %v1719
        %v1721 = vrot.slane %v1720, 1
        %v1722 = vadd.f32 %v1720, %v1721
        %v1723 = vrot.slane %v1680, 4
        %v1724 = vadd.f32 %v1680, %v1723
        %v1725 = vrot.slane %v1724, 2
        %v1726 = vadd.f32 %v1724, %v1725
        %v1727 = vrot.slane %v1726, 1
        %v1728 = vadd.f32 %v1726, %v1727
        %v1729 = vrcp.pop 8.0
        %v1730 = vmul.f32 %v1686, %v1729
        %v1731 = vmul.f32 %v1692, %v1729
        %v1732 = vmul.f32 %v1698, %v1729
        %v1733 = vmul.f32 %v1704, %v1729
        %v1734 = vmul.f32 %v1710, %v1729
        %v1735 = vmul.f32 %v1716, %v1729
        %v1736 = vmul.f32 %v1722, %v1729
        %v1737 = vmul.f32 %v1728, %v1729
        %v1738 = vmul.f32 %v1673, %v1673
        %v1739 = vmul.f32 %v1674, %v1674
        %v1740 = vmul.f32 %v1675, %v1675
        %v1741 = vmul.f32 %v1676, %v1676
        %v1742 = vmul.f32 %v1677, %v1677
        %v1743 = vmul.f32 %v1678, %v1678
        %v1744 = vmul.f32 %v1679, %v1679
        %v1745 = vmul.f32 %v1680, %v1680
        %v1746 = vrot.slane %v1738, 4
        %v1747 = vadd.f32 %v1738, %v1746
        %v1748 = vrot.slane %v1747, 2
        %v1749 = vadd.f32 %v1747, %v1748
        %v1750 = vrot.slane %v1749, 1
        %v1751 = vadd.f32 %v1749, %v1750
        %v1752 = vrot.slane %v1739, 4
        %v1753 = vadd.f32 %v1739, %v1752
        %v1754 = vrot.slane %v1753, 2
        %v1755 = vadd.f32 %v1753, %v1754
        %v1756 = vrot.slane %v1755, 1
        %v1757 = vadd.f32 %v1755, %v1756
        %v1758 = vrot.slane %v1740, 4
        %v1759 = vadd.f32 %v1740, %v1758
        %v1760 = vrot.slane %v1759, 2
        %v1761 = vadd.f32 %v1759, %v1760
        %v1762 = vrot.slane %v1761, 1
        %v1763 = vadd.f32 %v1761, %v1762
        %v1764 = vrot.slane %v1741, 4
        %v1765 = vadd.f32 %v1741, %v1764
        %v1766 = vrot.slane %v1765, 2
        %v1767 = vadd.f32 %v1765, %v1766
        %v1768 = vrot.slane %v1767, 1
        %v1769 = vadd.f32 %v1767, %v1768
        %v1770 = vrot.slane %v1742, 4
        %v1771 = vadd.f32 %v1742, %v1770
        %v1772 = vrot.slane %v1771, 2
        %v1773 = vadd.f32 %v1771, %v1772
        %v1774 = vrot.slane %v1773, 1
        %v1775 = vadd.f32 %v1773, %v1774
        %v1776 = vrot.slane %v1743, 4
        %v1777 = vadd.f32 %v1743, %v1776
        %v1778 = vrot.slane %v1777, 2
        %v1779 = vadd.f32 %v1777, %v1778
        %v1780 = vrot.slane %v1779, 1
        %v1781 = vadd.f32 %v1779, %v1780
        %v1782 = vrot.slane %v1744, 4
        %v1783 = vadd.f32 %v1744, %v1782
        %v1784 = vrot.slane %v1783, 2
        %v1785 = vadd.f32 %v1783, %v1784
        %v1786 = vrot.slane %v1785, 1
        %v1787 = vadd.f32 %v1785, %v1786
        %v1788 = vrot.slane %v1745, 4
        %v1789 = vadd.f32 %v1745, %v1788
        %v1790 = vrot.slane %v1789, 2
        %v1791 = vadd.f32 %v1789, %v1790
        %v1792 = vrot.slane %v1791, 1
        %v1793 = vadd.f32 %v1791, %v1792
        %v1794 = vmul.f32 %v1751, %v1729
        %v1795 = vmul.f32 %v1757, %v1729
        %v1796 = vmul.f32 %v1763, %v1729
        %v1797 = vmul.f32 %v1769, %v1729
        %v1798 = vmul.f32 %v1775, %v1729
        %v1799 = vmul.f32 %v1781, %v1729
        %v1800 = vmul.f32 %v1787, %v1729
        %v1801 = vmul.f32 %v1793, %v1729
        %v1802 = vmul.f32 %v1730, %v1730
        %v1803 = vmul.f32 %v1731, %v1731
        %v1804 = vmul.f32 %v1732, %v1732
        %v1805 = vmul.f32 %v1733, %v1733
        %v1806 = vmul.f32 %v1734, %v1734
        %v1807 = vmul.f32 %v1735, %v1735
        %v1808 = vmul.f32 %v1736, %v1736
        %v1809 = vmul.f32 %v1737, %v1737
        %v1810 = vsub.f32 %v1794, %v1802
        %v1811 = vsub.f32 %v1795, %v1803
        %v1812 = vsub.f32 %v1796, %v1804
        %v1813 = vsub.f32 %v1797, %v1805
        %v1814 = vsub.f32 %v1798, %v1806
        %v1815 = vsub.f32 %v1799, %v1807
        %v1816 = vsub.f32 %v1800, %v1808
        %v1817 = vsub.f32 %v1801, %v1809
        %v1818 = vmax.f32 %v1810, 0.0
        %v1819 = vmax.f32 %v1811, 0.0
        %v1820 = vmax.f32 %v1812, 0.0
        %v1821 = vmax.f32 %v1813, 0.0
        %v1822 = vmax.f32 %v1814, 0.0
        %v1823 = vmax.f32 %v1815, 0.0
        %v1824 = vmax.f32 %v1816, 0.0
        %v1825 = vmax.f32 %v1817, 0.0
        %v1826 = vld [vmem:[#allocation8] sm:$0xff]
        %v1827 = vadd.f32 %v1818, 1e-05
        %v1828 = vadd.f32 %v1819, 1e-05
        %v1829 = vadd.f32 %v1820, 1e-05
        %v1830 = vadd.f32 %v1821, 1e-05
        %v1831 = vadd.f32 %v1822, 1e-05
        %v1832 = vadd.f32 %v1823, 1e-05
        %v1833 = vadd.f32 %v1824, 1e-05
        %v1834 = vadd.f32 %v1825, 1e-05
        %v1835 = vrsqrt.pop %v1827
        %v1836 = vrsqrt.pop %v1828
        %v1837 = vrsqrt.pop %v1829
        %v1838 = vrsqrt.pop %v1830
        %v1839 = vrsqrt.pop %v1831
        %v1840 = vrsqrt.pop %v1832
        %v1841 = vrsqrt.pop %v1833
        %v1842 = vrsqrt.pop %v1834
        %v1851 = vcombine.low %v1835, %v1836
        %v1852 = vcombine.low %v1837, %v1838
        %v1853 = vcombine.low %v1839, %v1840
        %v1854 = vcombine.low %v1841, %v1842
        %v1856 = vunpack.c.l.s4 1966171168
        %v1857 = vunpack.c.0.s8 %v1856
        %v1858 = vlaneseq
        %v1859 = vshrl.u32 %v1858, 7
        %v1860 = vsub.s32 %v1857, %v1859
        %v1861 = vrot.slane %v1851, %v1860
        %v1863 = vunpack.c.l.s4 1966171168
        %v1864 = vunpack.c.0.s8 %v1863
        %v1865 = vlaneseq
        %v1866 = vshrl.u32 %v1865, 7
        %v1867 = vsub.s32 %v1864, %v1866
        %v1868 = vrot.slane %v1852, %v1867
        %v1870 = vunpack.c.l.s4 1966171168
        %v1871 = vunpack.c.0.s8 %v1870
        %v1872 = vlaneseq
        %v1873 = vshrl.u32 %v1872, 7
        %v1874 = vsub.s32 %v1871, %v1873
        %v1875 = vrot.slane %v1853, %v1874
        %v1877 = vunpack.c.l.s4 1966171168
        %v1878 = vunpack.c.0.s8 %v1877
        %v1879 = vlaneseq
        %v1880 = vshrl.u32 %v1879, 7
        %v1881 = vsub.s32 %v1878, %v1880
        %v1882 = vrot.slane %v1854, %v1881
        %v1883 = vcombine.low %v1861, %v1868
        %v1884 = vcombine.low %v1875, %v1882
        %v1886 = vunpack.c.l.s4 1966171168
        %v1887 = vunpack.c.0.s8 %v1886
        %v1888 = vlaneseq
        %v1889 = vshrl.u32 %v1888, 7
        %v1890 = vsub.s32 %v1887, %v1889
        %v1891 = vrot.slane %v1883, %v1890
        %v1893 = vunpack.c.l.s4 1966171168
        %v1894 = vunpack.c.0.s8 %v1893
        %v1895 = vlaneseq
        %v1896 = vshrl.u32 %v1895, 7
        %v1897 = vsub.s32 %v1894, %v1896
        %v1898 = vrot.slane %v1884, %v1897
        %v1899 = vcombine.low %v1891, %v1898
        %v1901 = vmul.f32 %v1826, %v1899
        %v1902 = vld [vmem:[#allocation10] sm:$0xff]
        %v1904 = vlaneseq
        %v1905 = vshrl.u32 %v1904, 7
        %v1906 = vsub.s32 0, %v1905
        %v1907 = vrot.slane %v1901, %v1906
        %v1908 = vlaneseq
        %v1909 = vshrl.u32 %v1908, 7
        %v1910 = vsub.s32 1, %v1909
        %v1911 = vrot.slane %v1901, %v1910
        %v1912 = vlaneseq
        %v1913 = vshrl.u32 %v1912, 7
        %v1914 = vsub.s32 2, %v1913
        %v1915 = vrot.slane %v1901, %v1914
        %v1916 = vlaneseq
        %v1917 = vshrl.u32 %v1916, 7
        %v1918 = vsub.s32 3, %v1917
        %v1919 = vrot.slane %v1901, %v1918
        %v1920 = vlaneseq
        %v1921 = vshrl.u32 %v1920, 7
        %v1922 = vsub.s32 4, %v1921
        %v1923 = vrot.slane %v1901, %v1922
        %v1924 = vlaneseq
        %v1925 = vshrl.u32 %v1924, 7
        %v1926 = vsub.s32 5, %v1925
        %v1927 = vrot.slane %v1901, %v1926
        %v1928 = vlaneseq
        %v1929 = vshrl.u32 %v1928, 7
        %v1930 = vsub.s32 6, %v1929
        %v1931 = vrot.slane %v1901, %v1930
        %v1932 = vlaneseq
        %v1933 = vshrl.u32 %v1932, 7
        %v1934 = vsub.s32 7, %v1933
        %v1935 = vrot.slane %v1901, %v1934
        %v1944 = vmul.f32 %v1730, %v1907
        %v1945 = vmul.f32 %v1731, %v1911
        %v1946 = vmul.f32 %v1732, %v1915
        %v1947 = vmul.f32 %v1733, %v1919
        %v1948 = vmul.f32 %v1734, %v1923
        %v1949 = vmul.f32 %v1735, %v1927
        %v1950 = vmul.f32 %v1736, %v1931
        %v1951 = vmul.f32 %v1737, %v1935
        %v1960 = vcombine.low %v1944, %v1945
        %v1961 = vcombine.low %v1946, %v1947
        %v1962 = vcombine.low %v1948, %v1949
        %v1963 = vcombine.low %v1950, %v1951
        %v1965 = vunpack.c.l.s4 1966171168
        %v1966 = vunpack.c.0.s8 %v1965
        %v1967 = vlaneseq
        %v1968 = vshrl.u32 %v1967, 7
        %v1969 = vsub.s32 %v1966, %v1968
        %v1970 = vrot.slane %v1960, %v1969
        %v1972 = vunpack.c.l.s4 1966171168
        %v1973 = vunpack.c.0.s8 %v1972
        %v1974 = vlaneseq
        %v1975 = vshrl.u32 %v1974, 7
        %v1976 = vsub.s32 %v1973, %v1975
        %v1977 = vrot.slane %v1961, %v1976
        %v1979 = vunpack.c.l.s4 1966171168
        %v1980 = vunpack.c.0.s8 %v1979
        %v1981 = vlaneseq
        %v1982 = vshrl.u32 %v1981, 7
        %v1983 = vsub.s32 %v1980, %v1982
        %v1984 = vrot.slane %v1962, %v1983
        %v1986 = vunpack.c.l.s4 1966171168
        %v1987 = vunpack.c.0.s8 %v1986
        %v1988 = vlaneseq
        %v1989 = vshrl.u32 %v1988, 7
        %v1990 = vsub.s32 %v1987, %v1989
        %v1991 = vrot.slane %v1963, %v1990
        %v1992 = vcombine.low %v1970, %v1977
        %v1993 = vcombine.low %v1984, %v1991
        %v1995 = vunpack.c.l.s4 1966171168
        %v1996 = vunpack.c.0.s8 %v1995
        %v1997 = vlaneseq
        %v1998 = vshrl.u32 %v1997, 7
        %v1999 = vsub.s32 %v1996, %v1998
        %v2000 = vrot.slane %v1992, %v1999
        %v2002 = vunpack.c.l.s4 1966171168
        %v2003 = vunpack.c.0.s8 %v2002
        %v2004 = vlaneseq
        %v2005 = vshrl.u32 %v2004, 7
        %v2006 = vsub.s32 %v2003, %v2005
        %v2007 = vrot.slane %v1993, %v2006
        %v2008 = vcombine.low %v2000, %v2007
        %v2010 = vsub.f32 %v1902, %v2008
        %v2011 = vmul.f32 %v1673, %v1907
        %v2012 = vmul.f32 %v1674, %v1911
        %v2013 = vmul.f32 %v1675, %v1915
        %v2014 = vmul.f32 %v1676, %v1919
        %v2015 = vmul.f32 %v1677, %v1923
        %v2016 = vmul.f32 %v1678, %v1927
        %v2017 = vmul.f32 %v1679, %v1931
        %v2018 = vmul.f32 %v1680, %v1935
        %v2020 = vlaneseq
        %v2021 = vshrl.u32 %v2020, 7
        %v2022 = vsub.s32 0, %v2021
        %v2023 = vrot.slane %v2010, %v2022
        %v2024 = vlaneseq
        %v2025 = vshrl.u32 %v2024, 7
        %v2026 = vsub.s32 1, %v2025
        %v2027 = vrot.slane %v2010, %v2026
        %v2028 = vlaneseq
        %v2029 = vshrl.u32 %v2028, 7
        %v2030 = vsub.s32 2, %v2029
        %v2031 = vrot.slane %v2010, %v2030
        %v2032 = vlaneseq
        %v2033 = vshrl.u32 %v2032, 7
        %v2034 = vsub.s32 3, %v2033
        %v2035 = vrot.slane %v2010, %v2034
        %v2036 = vlaneseq
        %v2037 = vshrl.u32 %v2036, 7
        %v2038 = vsub.s32 4, %v2037
        %v2039 = vrot.slane %v2010, %v2038
        %v2040 = vlaneseq
        %v2041 = vshrl.u32 %v2040, 7
        %v2042 = vsub.s32 5, %v2041
        %v2043 = vrot.slane %v2010, %v2042
        %v2044 = vlaneseq
        %v2045 = vshrl.u32 %v2044, 7
        %v2046 = vsub.s32 6, %v2045
        %v2047 = vrot.slane %v2010, %v2046
        %v2048 = vlaneseq
        %v2049 = vshrl.u32 %v2048, 7
        %v2050 = vsub.s32 7, %v2049
        %v2051 = vrot.slane %v2010, %v2050
        %v2060 = vadd.f32 %v2011, %v2023
        %v2061 = vadd.f32 %v2012, %v2027
        %v2062 = vadd.f32 %v2013, %v2031
        %v2063 = vadd.f32 %v2014, %v2035
        %v2064 = vadd.f32 %v2015, %v2039
        %v2065 = vadd.f32 %v2016, %v2043
        %v2066 = vadd.f32 %v2017, %v2047
        %v2067 = vadd.f32 %v2018, %v2051
        %v2068 = vpack.c.bf16 %v2060, %v2060
        %v2069 = vpack.c.bf16 %v2061, %v2061
        %v2070 = vpack.c.bf16 %v2062, %v2062
        %v2071 = vpack.c.bf16 %v2063, %v2063
        %v2072 = vpack.c.bf16 %v2064, %v2064
        %v2073 = vpack.c.bf16 %v2065, %v2065
        %v2074 = vpack.c.bf16 %v2066, %v2066
        %v2075 = vpack.c.bf16 %v2067, %v2067
        %v2076 = vld [vmem:[#allocation11] sm:$0xff]
        %v2077 = vld [vmem:[#allocation11 + $0x8] sm:$0xff]
        %v2078 = vld [vmem:[#allocation11 + $0x10] sm:$0xff]
        %v2079 = vld [vmem:[#allocation11 + $0x18] sm:$0xff]
        %v2080 = vld [vmem:[#allocation11 + $0x20] sm:$0xff]
        %v2081 = vld [vmem:[#allocation11 + $0x28] sm:$0xff]
        %v2082 = vld [vmem:[#allocation11 + $0x30] sm:$0xff]
        %v2083 = vld [vmem:[#allocation11 + $0x38] sm:$0xff]
        %v2084 = vld [vmem:[#allocation11 + $0x40] sm:$0xff]
        %v2085 = vld [vmem:[#allocation11 + $0x48] sm:$0xff]
        %v2086 = vld [vmem:[#allocation11 + $0x50] sm:$0xff]
        %v2087 = vld [vmem:[#allocation11 + $0x58] sm:$0xff]
        %v2088 = vld [vmem:[#allocation11 + $0x60] sm:$0xff]
        %v2089 = vld [vmem:[#allocation11 + $0x68] sm:$0xff]
        %v2090 = vld [vmem:[#allocation11 + $0x70] sm:$0xff]
        %v2091 = vld [vmem:[#allocation11 + $0x78] sm:$0xff]
        %v2092 = vld [vmem:[#allocation11 + $0x80] sm:$0xff]
        %v2093 = vld [vmem:[#allocation11 + $0x88] sm:$0xff]
        %v2094 = vld [vmem:[#allocation11 + $0x90] sm:$0xff]
        %v2095 = vld [vmem:[#allocation11 + $0x98] sm:$0xff]
        %v2096 = vld [vmem:[#allocation11 + $0xa0] sm:$0xff]
        %v2097 = vld [vmem:[#allocation11 + $0xa8] sm:$0xff]
        %v2098 = vld [vmem:[#allocation11 + $0xb0] sm:$0xff]
        %v2099 = vld [vmem:[#allocation11 + $0xb8] sm:$0xff]
        %v2100 = vld [vmem:[#allocation11 + $0xc0] sm:$0xff]
        %v2101 = vld [vmem:[#allocation11 + $0xc8] sm:$0xff]
        %v2102 = vld [vmem:[#allocation11 + $0xd0] sm:$0xff]
        %v2103 = vld [vmem:[#allocation11 + $0xd8] sm:$0xff]
        %v2104 = vld [vmem:[#allocation11 + $0xe0] sm:$0xff]
        %v2105 = vld [vmem:[#allocation11 + $0xe8] sm:$0xff]
        %v2106 = vld [vmem:[#allocation11 + $0xf0] sm:$0xff]
        %v2107 = vld [vmem:[#allocation11 + $0xf8] sm:$0xff]
        %v2108 = vld [vmem:[#allocation11 + $0x100] sm:$0xff]
        %v2109 = vld [vmem:[#allocation11 + $0x108] sm:$0xff]
        %v2110 = vld [vmem:[#allocation11 + $0x110] sm:$0xff]
        %v2111 = vld [vmem:[#allocation11 + $0x118] sm:$0xff]
        %v2112 = vld [vmem:[#allocation11 + $0x120] sm:$0xff]
        %v2113 = vld [vmem:[#allocation11 + $0x128] sm:$0xff]
        %v2114 = vld [vmem:[#allocation11 + $0x130] sm:$0xff]
        %v2115 = vld [vmem:[#allocation11 + $0x138] sm:$0xff]
        %v2116 = vld [vmem:[#allocation11 + $0x140] sm:$0xff]
        %v2117 = vld [vmem:[#allocation11 + $0x148] sm:$0xff]
        %v2118 = vld [vmem:[#allocation11 + $0x150] sm:$0xff]
        %v2119 = vld [vmem:[#allocation11 + $0x158] sm:$0xff]
        %v2120 = vld [vmem:[#allocation11 + $0x160] sm:$0xff]
        %v2121 = vld [vmem:[#allocation11 + $0x168] sm:$0xff]
        %v2122 = vld [vmem:[#allocation11 + $0x170] sm:$0xff]
        %v2123 = vld [vmem:[#allocation11 + $0x178] sm:$0xff]
        %v2124 = vld [vmem:[#allocation11 + $0x180] sm:$0xff]
        %v2125 = vld [vmem:[#allocation11 + $0x188] sm:$0xff]
        %v2126 = vld [vmem:[#allocation11 + $0x190] sm:$0xff]
        %v2127 = vld [vmem:[#allocation11 + $0x198] sm:$0xff]
        %v2128 = vld [vmem:[#allocation11 + $0x1a0] sm:$0xff]
        %v2129 = vld [vmem:[#allocation11 + $0x1a8] sm:$0xff]
        %v2130 = vld [vmem:[#allocation11 + $0x1b0] sm:$0xff]
        %v2131 = vld [vmem:[#allocation11 + $0x1b8] sm:$0xff]
        %v2132 = vld [vmem:[#allocation11 + $0x1c0] sm:$0xff]
        %v2133 = vld [vmem:[#allocation11 + $0x1c8] sm:$0xff]
        %v2134 = vld [vmem:[#allocation11 + $0x1d0] sm:$0xff]
        %v2135 = vld [vmem:[#allocation11 + $0x1d8] sm:$0xff]
        %v2136 = vld [vmem:[#allocation11 + $0x1e0] sm:$0xff]
        %v2137 = vld [vmem:[#allocation11 + $0x1e8] sm:$0xff]
        %v2138 = vld [vmem:[#allocation11 + $0x1f0] sm:$0xff]
        %v2139 = vld [vmem:[#allocation11 + $0x1f8] sm:$0xff]
        %v2140 = vld [vmem:[#allocation11 + $0x200] sm:$0xff]
        %v2141 = vld [vmem:[#allocation11 + $0x208] sm:$0xff]
        %v2142 = vld [vmem:[#allocation11 + $0x210] sm:$0xff]
        %v2143 = vld [vmem:[#allocation11 + $0x218] sm:$0xff]
        %v2144 = vld [vmem:[#allocation11 + $0x220] sm:$0xff]
        %v2145 = vld [vmem:[#allocation11 + $0x228] sm:$0xff]
        %v2146 = vld [vmem:[#allocation11 + $0x230] sm:$0xff]
        %v2147 = vld [vmem:[#allocation11 + $0x238] sm:$0xff]
        %v2148 = vld [vmem:[#allocation11 + $0x240] sm:$0xff]
        %v2149 = vld [vmem:[#allocation11 + $0x248] sm:$0xff]
        %v2150 = vld [vmem:[#allocation11 + $0x250] sm:$0xff]
        %v2151 = vld [vmem:[#allocation11 + $0x258] sm:$0xff]
        %v2152 = vld [vmem:[#allocation11 + $0x260] sm:$0xff]
        %v2153 = vld [vmem:[#allocation11 + $0x268] sm:$0xff]
        %v2154 = vld [vmem:[#allocation11 + $0x270] sm:$0xff]
        %v2155 = vld [vmem:[#allocation11 + $0x278] sm:$0xff]
        %v2156 = vld [vmem:[#allocation11 + $0x280] sm:$0xff]
        %v2157 = vld [vmem:[#allocation11 + $0x288] sm:$0xff]
        %v2158 = vld [vmem:[#allocation11 + $0x290] sm:$0xff]
        %v2159 = vld [vmem:[#allocation11 + $0x298] sm:$0xff]
        %v2160 = vld [vmem:[#allocation11 + $0x2a0] sm:$0xff]
        %v2161 = vld [vmem:[#allocation11 + $0x2a8] sm:$0xff]
        %v2162 = vld [vmem:[#allocation11 + $0x2b0] sm:$0xff]
        %v2163 = vld [vmem:[#allocation11 + $0x2b8] sm:$0xff]
        %v2164 = vld [vmem:[#allocation11 + $0x2c0] sm:$0xff]
        %v2165 = vld [vmem:[#allocation11 + $0x2c8] sm:$0xff]
        %v2166 = vld [vmem:[#allocation11 + $0x2d0] sm:$0xff]
        %v2167 = vld [vmem:[#allocation11 + $0x2d8] sm:$0xff]
        %v2168 = vld [vmem:[#allocation11 + $0x2e0] sm:$0xff]
        %v2169 = vld [vmem:[#allocation11 + $0x2e8] sm:$0xff]
        %v2170 = vld [vmem:[#allocation11 + $0x2f0] sm:$0xff]
        %v2171 = vld [vmem:[#allocation11 + $0x2f8] sm:$0xff]
        %v2172 = vld [vmem:[#allocation11 + $0x300] sm:$0xff]
        %v2173 = vld [vmem:[#allocation11 + $0x308] sm:$0xff]
        %v2174 = vld [vmem:[#allocation11 + $0x310] sm:$0xff]
        %v2175 = vld [vmem:[#allocation11 + $0x318] sm:$0xff]
        %v2176 = vld [vmem:[#allocation11 + $0x320] sm:$0xff]
        %v2177 = vld [vmem:[#allocation11 + $0x328] sm:$0xff]
        %v2178 = vld [vmem:[#allocation11 + $0x330] sm:$0xff]
        %v2179 = vld [vmem:[#allocation11 + $0x338] sm:$0xff]
        %v2180 = vld [vmem:[#allocation11 + $0x340] sm:$0xff]
        %v2181 = vld [vmem:[#allocation11 + $0x348] sm:$0xff]
        %v2182 = vld [vmem:[#allocation11 + $0x350] sm:$0xff]
        %v2183 = vld [vmem:[#allocation11 + $0x358] sm:$0xff]
        %v2184 = vld [vmem:[#allocation11 + $0x360] sm:$0xff]
        %v2185 = vld [vmem:[#allocation11 + $0x368] sm:$0xff]
        %v2186 = vld [vmem:[#allocation11 + $0x370] sm:$0xff]
        %v2187 = vld [vmem:[#allocation11 + $0x378] sm:$0xff]
        %v2188 = vld [vmem:[#allocation11 + $0x380] sm:$0xff]
        %v2189 = vld [vmem:[#allocation11 + $0x388] sm:$0xff]
        %v2190 = vld [vmem:[#allocation11 + $0x390] sm:$0xff]
        %v2191 = vld [vmem:[#allocation11 + $0x398] sm:$0xff]
        %v2192 = vld [vmem:[#allocation11 + $0x3a0] sm:$0xff]
        %v2193 = vld [vmem:[#allocation11 + $0x3a8] sm:$0xff]
        %v2194 = vld [vmem:[#allocation11 + $0x3b0] sm:$0xff]
        %v2195 = vld [vmem:[#allocation11 + $0x3b8] sm:$0xff]
        %v2196 = vld [vmem:[#allocation11 + $0x3c0] sm:$0xff]
        %v2197 = vld [vmem:[#allocation11 + $0x3c8] sm:$0xff]
        %v2198 = vld [vmem:[#allocation11 + $0x3d0] sm:$0xff]
        %v2199 = vld [vmem:[#allocation11 + $0x3d8] sm:$0xff]
        %v2200 = vld [vmem:[#allocation11 + $0x3e0] sm:$0xff]
        %v2201 = vld [vmem:[#allocation11 + $0x3e8] sm:$0xff]
        %v2202 = vld [vmem:[#allocation11 + $0x3f0] sm:$0xff]
        %v2203 = vld [vmem:[#allocation11 + $0x3f8] sm:$0xff]
        %v2204 = vld [vmem:[#allocation11 + $0x400] sm:$0xff]
        %v2205 = vld [vmem:[#allocation11 + $0x408] sm:$0xff]
        %v2206 = vld [vmem:[#allocation11 + $0x410] sm:$0xff]
        %v2207 = vld [vmem:[#allocation11 + $0x418] sm:$0xff]
        %v2208 = vld [vmem:[#allocation11 + $0x420] sm:$0xff]
        %v2209 = vld [vmem:[#allocation11 + $0x428] sm:$0xff]
        %v2210 = vld [vmem:[#allocation11 + $0x430] sm:$0xff]
        %v2211 = vld [vmem:[#allocation11 + $0x438] sm:$0xff]
        %v2212 = vld [vmem:[#allocation11 + $0x440] sm:$0xff]
        %v2213 = vld [vmem:[#allocation11 + $0x448] sm:$0xff]
        %v2214 = vld [vmem:[#allocation11 + $0x450] sm:$0xff]
        %v2215 = vld [vmem:[#allocation11 + $0x458] sm:$0xff]
        %v2216 = vld [vmem:[#allocation11 + $0x460] sm:$0xff]
        %v2217 = vld [vmem:[#allocation11 + $0x468] sm:$0xff]
        %v2218 = vld [vmem:[#allocation11 + $0x470] sm:$0xff]
        %v2219 = vld [vmem:[#allocation11 + $0x478] sm:$0xff]
        %v2220 = vld [vmem:[#allocation11 + $0x480] sm:$0xff]
        %v2221 = vld [vmem:[#allocation11 + $0x488] sm:$0xff]
        %v2222 = vld [vmem:[#allocation11 + $0x490] sm:$0xff]
        %v2223 = vld [vmem:[#allocation11 + $0x498] sm:$0xff]
        %v2224 = vld [vmem:[#allocation11 + $0x4a0] sm:$0xff]
        %v2225 = vld [vmem:[#allocation11 + $0x4a8] sm:$0xff]
        %v2226 = vld [vmem:[#allocation11 + $0x4b0] sm:$0xff]
        %v2227 = vld [vmem:[#allocation11 + $0x4b8] sm:$0xff]
        %v2228 = vld [vmem:[#allocation11 + $0x4c0] sm:$0xff]
        %v2229 = vld [vmem:[#allocation11 + $0x4c8] sm:$0xff]
        %v2230 = vld [vmem:[#allocation11 + $0x4d0] sm:$0xff]
        %v2231 = vld [vmem:[#allocation11 + $0x4d8] sm:$0xff]
        %v2232 = vld [vmem:[#allocation11 + $0x4e0] sm:$0xff]
        %v2233 = vld [vmem:[#allocation11 + $0x4e8] sm:$0xff]
        %v2234 = vld [vmem:[#allocation11 + $0x4f0] sm:$0xff]
        %v2235 = vld [vmem:[#allocation11 + $0x4f8] sm:$0xff]
        %v2236 = vld [vmem:[#allocation11 + $0x500] sm:$0xff]
        %v2237 = vld [vmem:[#allocation11 + $0x508] sm:$0xff]
        %v2238 = vld [vmem:[#allocation11 + $0x510] sm:$0xff]
        %v2239 = vld [vmem:[#allocation11 + $0x518] sm:$0xff]
        %v2240 = vld [vmem:[#allocation11 + $0x520] sm:$0xff]
        %v2241 = vld [vmem:[#allocation11 + $0x528] sm:$0xff]
        %v2242 = vld [vmem:[#allocation11 + $0x530] sm:$0xff]
        %v2243 = vld [vmem:[#allocation11 + $0x538] sm:$0xff]
        %v2244 = vld [vmem:[#allocation11 + $0x540] sm:$0xff]
        %v2245 = vld [vmem:[#allocation11 + $0x548] sm:$0xff]
        %v2246 = vld [vmem:[#allocation11 + $0x550] sm:$0xff]
        %v2247 = vld [vmem:[#allocation11 + $0x558] sm:$0xff]
        %v2248 = vld [vmem:[#allocation11 + $0x560] sm:$0xff]
        %v2249 = vld [vmem:[#allocation11 + $0x568] sm:$0xff]
        %v2250 = vld [vmem:[#allocation11 + $0x570] sm:$0xff]
        %v2251 = vld [vmem:[#allocation11 + $0x578] sm:$0xff]
        %v2252 = vld [vmem:[#allocation11 + $0x580] sm:$0xff]
        %v2253 = vld [vmem:[#allocation11 + $0x588] sm:$0xff]
        %v2254 = vld [vmem:[#allocation11 + $0x590] sm:$0xff]
        %v2255 = vld [vmem:[#allocation11 + $0x598] sm:$0xff]
        %v2256 = vld [vmem:[#allocation11 + $0x5a0] sm:$0xff]
        %v2257 = vld [vmem:[#allocation11 + $0x5a8] sm:$0xff]
        %v2258 = vld [vmem:[#allocation11 + $0x5b0] sm:$0xff]
        %v2259 = vld [vmem:[#allocation11 + $0x5b8] sm:$0xff]
        %v2260 = vld [vmem:[#allocation11 + $0x5c0] sm:$0xff]
        %v2261 = vld [vmem:[#allocation11 + $0x5c8] sm:$0xff]
        %v2262 = vld [vmem:[#allocation11 + $0x5d0] sm:$0xff]
        %v2263 = vld [vmem:[#allocation11 + $0x5d8] sm:$0xff]
        %v2264 = vld [vmem:[#allocation11 + $0x5e0] sm:$0xff]
        %v2265 = vld [vmem:[#allocation11 + $0x5e8] sm:$0xff]
        %v2266 = vld [vmem:[#allocation11 + $0x5f0] sm:$0xff]
        %v2267 = vld [vmem:[#allocation11 + $0x5f8] sm:$0xff]
        %v2268 = vld [vmem:[#allocation11 + $0x600] sm:$0xff]
        %v2269 = vld [vmem:[#allocation11 + $0x608] sm:$0xff]
        %v2270 = vld [vmem:[#allocation11 + $0x610] sm:$0xff]
        %v2271 = vld [vmem:[#allocation11 + $0x618] sm:$0xff]
        %v2272 = vld [vmem:[#allocation11 + $0x620] sm:$0xff]
        %v2273 = vld [vmem:[#allocation11 + $0x628] sm:$0xff]
        %v2274 = vld [vmem:[#allocation11 + $0x630] sm:$0xff]
        %v2275 = vld [vmem:[#allocation11 + $0x638] sm:$0xff]
        %v2276 = vld [vmem:[#allocation11 + $0x640] sm:$0xff]
        %v2277 = vld [vmem:[#allocation11 + $0x648] sm:$0xff]
        %v2278 = vld [vmem:[#allocation11 + $0x650] sm:$0xff]
        %v2279 = vld [vmem:[#allocation11 + $0x658] sm:$0xff]
        %v2280 = vld [vmem:[#allocation11 + $0x660] sm:$0xff]
        %v2281 = vld [vmem:[#allocation11 + $0x668] sm:$0xff]
        %v2282 = vld [vmem:[#allocation11 + $0x670] sm:$0xff]
        %v2283 = vld [vmem:[#allocation11 + $0x678] sm:$0xff]
        %v2284 = vld [vmem:[#allocation11 + $0x680] sm:$0xff]
        %v2285 = vld [vmem:[#allocation11 + $0x688] sm:$0xff]
        %v2286 = vld [vmem:[#allocation11 + $0x690] sm:$0xff]
        %v2287 = vld [vmem:[#allocation11 + $0x698] sm:$0xff]
        %v2288 = vld [vmem:[#allocation11 + $0x6a0] sm:$0xff]
        %v2289 = vld [vmem:[#allocation11 + $0x6a8] sm:$0xff]
        %v2290 = vld [vmem:[#allocation11 + $0x6b0] sm:$0xff]
        %v2291 = vld [vmem:[#allocation11 + $0x6b8] sm:$0xff]
        %v2292 = vld [vmem:[#allocation11 + $0x6c0] sm:$0xff]
        %v2293 = vld [vmem:[#allocation11 + $0x6c8] sm:$0xff]
        %v2294 = vld [vmem:[#allocation11 + $0x6d0] sm:$0xff]
        %v2295 = vld [vmem:[#allocation11 + $0x6d8] sm:$0xff]
        %v2296 = vld [vmem:[#allocation11 + $0x6e0] sm:$0xff]
        %v2297 = vld [vmem:[#allocation11 + $0x6e8] sm:$0xff]
        %v2298 = vld [vmem:[#allocation11 + $0x6f0] sm:$0xff]
        %v2299 = vld [vmem:[#allocation11 + $0x6f8] sm:$0xff]
        %v2300 = vld [vmem:[#allocation11 + $0x700] sm:$0xff]
        %v2301 = vld [vmem:[#allocation11 + $0x708] sm:$0xff]
        %v2302 = vld [vmem:[#allocation11 + $0x710] sm:$0xff]
        %v2303 = vld [vmem:[#allocation11 + $0x718] sm:$0xff]
        %v2304 = vld [vmem:[#allocation11 + $0x720] sm:$0xff]
        %v2305 = vld [vmem:[#allocation11 + $0x728] sm:$0xff]
        %v2306 = vld [vmem:[#allocation11 + $0x730] sm:$0xff]
        %v2307 = vld [vmem:[#allocation11 + $0x738] sm:$0xff]
        %v2308 = vld [vmem:[#allocation11 + $0x740] sm:$0xff]
        %v2309 = vld [vmem:[#allocation11 + $0x748] sm:$0xff]
        %v2310 = vld [vmem:[#allocation11 + $0x750] sm:$0xff]
        %v2311 = vld [vmem:[#allocation11 + $0x758] sm:$0xff]
        %v2312 = vld [vmem:[#allocation11 + $0x760] sm:$0xff]
        %v2313 = vld [vmem:[#allocation11 + $0x768] sm:$0xff]
        %v2314 = vld [vmem:[#allocation11 + $0x770] sm:$0xff]
        %v2315 = vld [vmem:[#allocation11 + $0x778] sm:$0xff]
        %v2316 = vld [vmem:[#allocation11 + $0x780] sm:$0xff]
        %v2317 = vld [vmem:[#allocation11 + $0x788] sm:$0xff]
        %v2318 = vld [vmem:[#allocation11 + $0x790] sm:$0xff]
        %v2319 = vld [vmem:[#allocation11 + $0x798] sm:$0xff]
        %v2320 = vld [vmem:[#allocation11 + $0x7a0] sm:$0xff]
        %v2321 = vld [vmem:[#allocation11 + $0x7a8] sm:$0xff]
        %v2322 = vld [vmem:[#allocation11 + $0x7b0] sm:$0xff]
        %v2323 = vld [vmem:[#allocation11 + $0x7b8] sm:$0xff]
        %v2324 = vld [vmem:[#allocation11 + $0x7c0] sm:$0xff]
        %v2325 = vld [vmem:[#allocation11 + $0x7c8] sm:$0xff]
        %v2326 = vld [vmem:[#allocation11 + $0x7d0] sm:$0xff]
        %v2327 = vld [vmem:[#allocation11 + $0x7d8] sm:$0xff]
        %v2328 = vld [vmem:[#allocation11 + $0x7e0] sm:$0xff]
        %v2329 = vld [vmem:[#allocation11 + $0x7e8] sm:$0xff]
        %v2330 = vld [vmem:[#allocation11 + $0x7f0] sm:$0xff]
        %v2331 = vld [vmem:[#allocation11 + $0x7f8] sm:$0xff]
        %v2332 = vld [vmem:[#allocation11 + $0x800] sm:$0xff]
        %v2333 = vld [vmem:[#allocation11 + $0x808] sm:$0xff]
        %v2334 = vld [vmem:[#allocation11 + $0x810] sm:$0xff]
        %v2335 = vld [vmem:[#allocation11 + $0x818] sm:$0xff]
        %v2336 = vld [vmem:[#allocation11 + $0x820] sm:$0xff]
        %v2337 = vld [vmem:[#allocation11 + $0x828] sm:$0xff]
        %v2338 = vld [vmem:[#allocation11 + $0x830] sm:$0xff]
        %v2339 = vld [vmem:[#allocation11 + $0x838] sm:$0xff]
        %v2340 = vld [vmem:[#allocation11 + $0x840] sm:$0xff]
        %v2341 = vld [vmem:[#allocation11 + $0x848] sm:$0xff]
        %v2342 = vld [vmem:[#allocation11 + $0x850] sm:$0xff]
        %v2343 = vld [vmem:[#allocation11 + $0x858] sm:$0xff]
        %v2344 = vld [vmem:[#allocation11 + $0x860] sm:$0xff]
        %v2345 = vld [vmem:[#allocation11 + $0x868] sm:$0xff]
        %v2346 = vld [vmem:[#allocation11 + $0x870] sm:$0xff]
        %v2347 = vld [vmem:[#allocation11 + $0x878] sm:$0xff]
        %v2348 = vld [vmem:[#allocation11 + $0x880] sm:$0xff]
        %v2349 = vld [vmem:[#allocation11 + $0x888] sm:$0xff]
        %v2350 = vld [vmem:[#allocation11 + $0x890] sm:$0xff]
        %v2351 = vld [vmem:[#allocation11 + $0x898] sm:$0xff]
        %v2352 = vld [vmem:[#allocation11 + $0x8a0] sm:$0xff]
        %v2353 = vld [vmem:[#allocation11 + $0x8a8] sm:$0xff]
        %v2354 = vld [vmem:[#allocation11 + $0x8b0] sm:$0xff]
        %v2355 = vld [vmem:[#allocation11 + $0x8b8] sm:$0xff]
        %v2356 = vld [vmem:[#allocation11 + $0x8c0] sm:$0xff]
        %v2357 = vld [vmem:[#allocation11 + $0x8c8] sm:$0xff]
        %v2358 = vld [vmem:[#allocation11 + $0x8d0] sm:$0xff]
        %v2359 = vld [vmem:[#allocation11 + $0x8d8] sm:$0xff]
        %v2360 = vld [vmem:[#allocation11 + $0x8e0] sm:$0xff]
        %v2361 = vld [vmem:[#allocation11 + $0x8e8] sm:$0xff]
        %v2362 = vld [vmem:[#allocation11 + $0x8f0] sm:$0xff]
        %v2363 = vld [vmem:[#allocation11 + $0x8f8] sm:$0xff]
        %v2364 = vld [vmem:[#allocation11 + $0x900] sm:$0xff]
        %v2365 = vld [vmem:[#allocation11 + $0x908] sm:$0xff]
        %v2366 = vld [vmem:[#allocation11 + $0x910] sm:$0xff]
        %v2367 = vld [vmem:[#allocation11 + $0x918] sm:$0xff]
        %v2368 = vld [vmem:[#allocation11 + $0x920] sm:$0xff]
        %v2369 = vld [vmem:[#allocation11 + $0x928] sm:$0xff]
        %v2370 = vld [vmem:[#allocation11 + $0x930] sm:$0xff]
        %v2371 = vld [vmem:[#allocation11 + $0x938] sm:$0xff]
        %v2372 = vld [vmem:[#allocation11 + $0x940] sm:$0xff]
        %v2373 = vld [vmem:[#allocation11 + $0x948] sm:$0xff]
        %v2374 = vld [vmem:[#allocation11 + $0x950] sm:$0xff]
        %v2375 = vld [vmem:[#allocation11 + $0x958] sm:$0xff]
        %v2376 = vld [vmem:[#allocation11 + $0x960] sm:$0xff]
        %v2377 = vld [vmem:[#allocation11 + $0x968] sm:$0xff]
        %v2378 = vld [vmem:[#allocation11 + $0x970] sm:$0xff]
        %v2379 = vld [vmem:[#allocation11 + $0x978] sm:$0xff]
        %v2380 = vld [vmem:[#allocation11 + $0x980] sm:$0xff]
        %v2381 = vld [vmem:[#allocation11 + $0x988] sm:$0xff]
        %v2382 = vld [vmem:[#allocation11 + $0x990] sm:$0xff]
        %v2383 = vld [vmem:[#allocation11 + $0x998] sm:$0xff]
        %v2384 = vld [vmem:[#allocation11 + $0x9a0] sm:$0xff]
        %v2385 = vld [vmem:[#allocation11 + $0x9a8] sm:$0xff]
        %v2386 = vld [vmem:[#allocation11 + $0x9b0] sm:$0xff]
        %v2387 = vld [vmem:[#allocation11 + $0x9b8] sm:$0xff]
        %v2388 = vld [vmem:[#allocation11 + $0x9c0] sm:$0xff]
        %v2389 = vld [vmem:[#allocation11 + $0x9c8] sm:$0xff]
        %v2390 = vld [vmem:[#allocation11 + $0x9d0] sm:$0xff]
        %v2391 = vld [vmem:[#allocation11 + $0x9d8] sm:$0xff]
        %v2392 = vld [vmem:[#allocation11 + $0x9e0] sm:$0xff]
        %v2393 = vld [vmem:[#allocation11 + $0x9e8] sm:$0xff]
        %v2394 = vld [vmem:[#allocation11 + $0x9f0] sm:$0xff]
        %v2395 = vld [vmem:[#allocation11 + $0x9f8] sm:$0xff]
        %v2396 = vld [vmem:[#allocation11 + $0xa00] sm:$0xff]
        %v2397 = vld [vmem:[#allocation11 + $0xa08] sm:$0xff]
        %v2398 = vld [vmem:[#allocation11 + $0xa10] sm:$0xff]
        %v2399 = vld [vmem:[#allocation11 + $0xa18] sm:$0xff]
        %v2400 = vld [vmem:[#allocation11 + $0xa20] sm:$0xff]
        %v2401 = vld [vmem:[#allocation11 + $0xa28] sm:$0xff]
        %v2402 = vld [vmem:[#allocation11 + $0xa30] sm:$0xff]
        %v2403 = vld [vmem:[#allocation11 + $0xa38] sm:$0xff]
        %v2404 = vld [vmem:[#allocation11 + $0xa40] sm:$0xff]
        %v2405 = vld [vmem:[#allocation11 + $0xa48] sm:$0xff]
        %v2406 = vld [vmem:[#allocation11 + $0xa50] sm:$0xff]
        %v2407 = vld [vmem:[#allocation11 + $0xa58] sm:$0xff]
        %v2408 = vld [vmem:[#allocation11 + $0xa60] sm:$0xff]
        %v2409 = vld [vmem:[#allocation11 + $0xa68] sm:$0xff]
        %v2410 = vld [vmem:[#allocation11 + $0xa70] sm:$0xff]
        %v2411 = vld [vmem:[#allocation11 + $0xa78] sm:$0xff]
        %v2412 = vld [vmem:[#allocation11 + $0xa80] sm:$0xff]
        %v2413 = vld [vmem:[#allocation11 + $0xa88] sm:$0xff]
        %v2414 = vld [vmem:[#allocation11 + $0xa90] sm:$0xff]
        %v2415 = vld [vmem:[#allocation11 + $0xa98] sm:$0xff]
        %v2416 = vld [vmem:[#allocation11 + $0xaa0] sm:$0xff]
        %v2417 = vld [vmem:[#allocation11 + $0xaa8] sm:$0xff]
        %v2418 = vld [vmem:[#allocation11 + $0xab0] sm:$0xff]
        %v2419 = vld [vmem:[#allocation11 + $0xab8] sm:$0xff]
        %v2420 = vld [vmem:[#allocation11 + $0xac0] sm:$0xff]
        %v2421 = vld [vmem:[#allocation11 + $0xac8] sm:$0xff]
        %v2422 = vld [vmem:[#allocation11 + $0xad0] sm:$0xff]
        %v2423 = vld [vmem:[#allocation11 + $0xad8] sm:$0xff]
        %v2424 = vld [vmem:[#allocation11 + $0xae0] sm:$0xff]
        %v2425 = vld [vmem:[#allocation11 + $0xae8] sm:$0xff]
        %v2426 = vld [vmem:[#allocation11 + $0xaf0] sm:$0xff]
        %v2427 = vld [vmem:[#allocation11 + $0xaf8] sm:$0xff]
        %v2428 = vld [vmem:[#allocation11 + $0xb00] sm:$0xff]
        %v2429 = vld [vmem:[#allocation11 + $0xb08] sm:$0xff]
        %v2430 = vld [vmem:[#allocation11 + $0xb10] sm:$0xff]
        %v2431 = vld [vmem:[#allocation11 + $0xb18] sm:$0xff]
        %v2432 = vld [vmem:[#allocation11 + $0xb20] sm:$0xff]
        %v2433 = vld [vmem:[#allocation11 + $0xb28] sm:$0xff]
        %v2434 = vld [vmem:[#allocation11 + $0xb30] sm:$0xff]
        %v2435 = vld [vmem:[#allocation11 + $0xb38] sm:$0xff]
        %v2436 = vld [vmem:[#allocation11 + $0xb40] sm:$0xff]
        %v2437 = vld [vmem:[#allocation11 + $0xb48] sm:$0xff]
        %v2438 = vld [vmem:[#allocation11 + $0xb50] sm:$0xff]
        %v2439 = vld [vmem:[#allocation11 + $0xb58] sm:$0xff]
        %v2440 = vld [vmem:[#allocation11 + $0xb60] sm:$0xff]
        %v2441 = vld [vmem:[#allocation11 + $0xb68] sm:$0xff]
        %v2442 = vld [vmem:[#allocation11 + $0xb70] sm:$0xff]
        %v2443 = vld [vmem:[#allocation11 + $0xb78] sm:$0xff]
        %v2444 = vld [vmem:[#allocation11 + $0xb80] sm:$0xff]
        %v2445 = vld [vmem:[#allocation11 + $0xb88] sm:$0xff]
        %v2446 = vld [vmem:[#allocation11 + $0xb90] sm:$0xff]
        %v2447 = vld [vmem:[#allocation11 + $0xb98] sm:$0xff]
        %v2448 = vld [vmem:[#allocation11 + $0xba0] sm:$0xff]
        %v2449 = vld [vmem:[#allocation11 + $0xba8] sm:$0xff]
        %v2450 = vld [vmem:[#allocation11 + $0xbb0] sm:$0xff]
        %v2451 = vld [vmem:[#allocation11 + $0xbb8] sm:$0xff]
        %v2452 = vld [vmem:[#allocation11 + $0xbc0] sm:$0xff]
        %v2453 = vld [vmem:[#allocation11 + $0xbc8] sm:$0xff]
        %v2454 = vld [vmem:[#allocation11 + $0xbd0] sm:$0xff]
        %v2455 = vld [vmem:[#allocation11 + $0xbd8] sm:$0xff]
        %v2456 = vld [vmem:[#allocation11 + $0xbe0] sm:$0xff]
        %v2457 = vld [vmem:[#allocation11 + $0xbe8] sm:$0xff]
        %v2458 = vld [vmem:[#allocation11 + $0xbf0] sm:$0xff]
        %v2459 = vld [vmem:[#allocation11 + $0xbf8] sm:$0xff]
        %v2460 = vld [vmem:[#allocation11 + $0xc00] sm:$0xff]
        %v2461 = vld [vmem:[#allocation11 + $0xc08] sm:$0xff]
        %v2462 = vld [vmem:[#allocation11 + $0xc10] sm:$0xff]
        %v2463 = vld [vmem:[#allocation11 + $0xc18] sm:$0xff]
        %v2464 = vld [vmem:[#allocation11 + $0xc20] sm:$0xff]
        %v2465 = vld [vmem:[#allocation11 + $0xc28] sm:$0xff]
        %v2466 = vld [vmem:[#allocation11 + $0xc30] sm:$0xff]
        %v2467 = vld [vmem:[#allocation11 + $0xc38] sm:$0xff]
        %v2468 = vld [vmem:[#allocation11 + $0xc40] sm:$0xff]
        %v2469 = vld [vmem:[#allocation11 + $0xc48] sm:$0xff]
        %v2470 = vld [vmem:[#allocation11 + $0xc50] sm:$0xff]
        %v2471 = vld [vmem:[#allocation11 + $0xc58] sm:$0xff]
        %v2472 = vld [vmem:[#allocation11 + $0xc60] sm:$0xff]
        %v2473 = vld [vmem:[#allocation11 + $0xc68] sm:$0xff]
        %v2474 = vld [vmem:[#allocation11 + $0xc70] sm:$0xff]
        %v2475 = vld [vmem:[#allocation11 + $0xc78] sm:$0xff]
        %v2476 = vld [vmem:[#allocation11 + $0xc80] sm:$0xff]
        %v2477 = vld [vmem:[#allocation11 + $0xc88] sm:$0xff]
        %v2478 = vld [vmem:[#allocation11 + $0xc90] sm:$0xff]
        %v2479 = vld [vmem:[#allocation11 + $0xc98] sm:$0xff]
        %v2480 = vld [vmem:[#allocation11 + $0xca0] sm:$0xff]
        %v2481 = vld [vmem:[#allocation11 + $0xca8] sm:$0xff]
        %v2482 = vld [vmem:[#allocation11 + $0xcb0] sm:$0xff]
        %v2483 = vld [vmem:[#allocation11 + $0xcb8] sm:$0xff]
        %v2484 = vld [vmem:[#allocation11 + $0xcc0] sm:$0xff]
        %v2485 = vld [vmem:[#allocation11 + $0xcc8] sm:$0xff]
        %v2486 = vld [vmem:[#allocation11 + $0xcd0] sm:$0xff]
        %v2487 = vld [vmem:[#allocation11 + $0xcd8] sm:$0xff]
        %v2488 = vld [vmem:[#allocation11 + $0xce0] sm:$0xff]
        %v2489 = vld [vmem:[#allocation11 + $0xce8] sm:$0xff]
        %v2490 = vld [vmem:[#allocation11 + $0xcf0] sm:$0xff]
        %v2491 = vld [vmem:[#allocation11 + $0xcf8] sm:$0xff]
        %v2492 = vld [vmem:[#allocation11 + $0xd00] sm:$0xff]
        %v2493 = vld [vmem:[#allocation11 + $0xd08] sm:$0xff]
        %v2494 = vld [vmem:[#allocation11 + $0xd10] sm:$0xff]
        %v2495 = vld [vmem:[#allocation11 + $0xd18] sm:$0xff]
        %v2496 = vld [vmem:[#allocation11 + $0xd20] sm:$0xff]
        %v2497 = vld [vmem:[#allocation11 + $0xd28] sm:$0xff]
        %v2498 = vld [vmem:[#allocation11 + $0xd30] sm:$0xff]
        %v2499 = vld [vmem:[#allocation11 + $0xd38] sm:$0xff]
        %v2500 = vld [vmem:[#allocation11 + $0xd40] sm:$0xff]
        %v2501 = vld [vmem:[#allocation11 + $0xd48] sm:$0xff]
        %v2502 = vld [vmem:[#allocation11 + $0xd50] sm:$0xff]
        %v2503 = vld [vmem:[#allocation11 + $0xd58] sm:$0xff]
        %v2504 = vld [vmem:[#allocation11 + $0xd60] sm:$0xff]
        %v2505 = vld [vmem:[#allocation11 + $0xd68] sm:$0xff]
        %v2506 = vld [vmem:[#allocation11 + $0xd70] sm:$0xff]
        %v2507 = vld [vmem:[#allocation11 + $0xd78] sm:$0xff]
        %v2508 = vld [vmem:[#allocation11 + $0xd80] sm:$0xff]
        %v2509 = vld [vmem:[#allocation11 + $0xd88] sm:$0xff]
        %v2510 = vld [vmem:[#allocation11 + $0xd90] sm:$0xff]
        %v2511 = vld [vmem:[#allocation11 + $0xd98] sm:$0xff]
        %v2512 = vld [vmem:[#allocation11 + $0xda0] sm:$0xff]
        %v2513 = vld [vmem:[#allocation11 + $0xda8] sm:$0xff]
        %v2514 = vld [vmem:[#allocation11 + $0xdb0] sm:$0xff]
        %v2515 = vld [vmem:[#allocation11 + $0xdb8] sm:$0xff]
        %v2516 = vld [vmem:[#allocation11 + $0xdc0] sm:$0xff]
        %v2517 = vld [vmem:[#allocation11 + $0xdc8] sm:$0xff]
        %v2518 = vld [vmem:[#allocation11 + $0xdd0] sm:$0xff]
        %v2519 = vld [vmem:[#allocation11 + $0xdd8] sm:$0xff]
        %v2520 = vld [vmem:[#allocation11 + $0xde0] sm:$0xff]
        %v2521 = vld [vmem:[#allocation11 + $0xde8] sm:$0xff]
        %v2522 = vld [vmem:[#allocation11 + $0xdf0] sm:$0xff]
        %v2523 = vld [vmem:[#allocation11 + $0xdf8] sm:$0xff]
        %v2524 = vld [vmem:[#allocation11 + $0xe00] sm:$0xff]
        %v2525 = vld [vmem:[#allocation11 + $0xe08] sm:$0xff]
        %v2526 = vld [vmem:[#allocation11 + $0xe10] sm:$0xff]
        %v2527 = vld [vmem:[#allocation11 + $0xe18] sm:$0xff]
        %v2528 = vld [vmem:[#allocation11 + $0xe20] sm:$0xff]
        %v2529 = vld [vmem:[#allocation11 + $0xe28] sm:$0xff]
        %v2530 = vld [vmem:[#allocation11 + $0xe30] sm:$0xff]
        %v2531 = vld [vmem:[#allocation11 + $0xe38] sm:$0xff]
        %v2532 = vld [vmem:[#allocation11 + $0xe40] sm:$0xff]
        %v2533 = vld [vmem:[#allocation11 + $0xe48] sm:$0xff]
        %v2534 = vld [vmem:[#allocation11 + $0xe50] sm:$0xff]
        %v2535 = vld [vmem:[#allocation11 + $0xe58] sm:$0xff]
        %v2536 = vld [vmem:[#allocation11 + $0xe60] sm:$0xff]
        %v2537 = vld [vmem:[#allocation11 + $0xe68] sm:$0xff]
        %v2538 = vld [vmem:[#allocation11 + $0xe70] sm:$0xff]
        %v2539 = vld [vmem:[#allocation11 + $0xe78] sm:$0xff]
        %v2540 = vld [vmem:[#allocation11 + $0xe80] sm:$0xff]
        %v2541 = vld [vmem:[#allocation11 + $0xe88] sm:$0xff]
        %v2542 = vld [vmem:[#allocation11 + $0xe90] sm:$0xff]
        %v2543 = vld [vmem:[#allocation11 + $0xe98] sm:$0xff]
        %v2544 = vld [vmem:[#allocation11 + $0xea0] sm:$0xff]
        %v2545 = vld [vmem:[#allocation11 + $0xea8] sm:$0xff]
        %v2546 = vld [vmem:[#allocation11 + $0xeb0] sm:$0xff]
        %v2547 = vld [vmem:[#allocation11 + $0xeb8] sm:$0xff]
        %v2548 = vld [vmem:[#allocation11 + $0xec0] sm:$0xff]
        %v2549 = vld [vmem:[#allocation11 + $0xec8] sm:$0xff]
        %v2550 = vld [vmem:[#allocation11 + $0xed0] sm:$0xff]
        %v2551 = vld [vmem:[#allocation11 + $0xed8] sm:$0xff]
        %v2552 = vld [vmem:[#allocation11 + $0xee0] sm:$0xff]
        %v2553 = vld [vmem:[#allocation11 + $0xee8] sm:$0xff]
        %v2554 = vld [vmem:[#allocation11 + $0xef0] sm:$0xff]
        %v2555 = vld [vmem:[#allocation11 + $0xef8] sm:$0xff]
        %v2556 = vld [vmem:[#allocation11 + $0xf00] sm:$0xff]
        %v2557 = vld [vmem:[#allocation11 + $0xf08] sm:$0xff]
        %v2558 = vld [vmem:[#allocation11 + $0xf10] sm:$0xff]
        %v2559 = vld [vmem:[#allocation11 + $0xf18] sm:$0xff]
        %v2560 = vld [vmem:[#allocation11 + $0xf20] sm:$0xff]
        %v2561 = vld [vmem:[#allocation11 + $0xf28] sm:$0xff]
        %v2562 = vld [vmem:[#allocation11 + $0xf30] sm:$0xff]
        %v2563 = vld [vmem:[#allocation11 + $0xf38] sm:$0xff]
        %v2564 = vld [vmem:[#allocation11 + $0xf40] sm:$0xff]
        %v2565 = vld [vmem:[#allocation11 + $0xf48] sm:$0xff]
        %v2566 = vld [vmem:[#allocation11 + $0xf50] sm:$0xff]
        %v2567 = vld [vmem:[#allocation11 + $0xf58] sm:$0xff]
        %v2568 = vld [vmem:[#allocation11 + $0xf60] sm:$0xff]
        %v2569 = vld [vmem:[#allocation11 + $0xf68] sm:$0xff]
        %v2570 = vld [vmem:[#allocation11 + $0xf70] sm:$0xff]
        %v2571 = vld [vmem:[#allocation11 + $0xf78] sm:$0xff]
        %v2572 = vld [vmem:[#allocation11 + $0xf80] sm:$0xff]
        %v2573 = vld [vmem:[#allocation11 + $0xf88] sm:$0xff]
        %v2574 = vld [vmem:[#allocation11 + $0xf90] sm:$0xff]
        %v2575 = vld [vmem:[#allocation11 + $0xf98] sm:$0xff]
        %v2576 = vld [vmem:[#allocation11 + $0xfa0] sm:$0xff]
        %v2577 = vld [vmem:[#allocation11 + $0xfa8] sm:$0xff]
        %v2578 = vld [vmem:[#allocation11 + $0xfb0] sm:$0xff]
        %v2579 = vld [vmem:[#allocation11 + $0xfb8] sm:$0xff]
        %v2580 = vld [vmem:[#allocation11 + $0xfc0] sm:$0xff]
        %v2581 = vld [vmem:[#allocation11 + $0xfc8] sm:$0xff]
        %v2582 = vld [vmem:[#allocation11 + $0xfd0] sm:$0xff]
        %v2583 = vld [vmem:[#allocation11 + $0xfd8] sm:$0xff]
        %v2584 = vld [vmem:[#allocation11 + $0xfe0] sm:$0xff]
        %v2585 = vld [vmem:[#allocation11 + $0xfe8] sm:$0xff]
        %v2586 = vld [vmem:[#allocation11 + $0xff0] sm:$0xff]
        %v2587 = vld [vmem:[#allocation11 + $0xff8] sm:$0xff]
        %v2588 = vld [vmem:[#allocation13] sm:$0xff]
        %v2590 = vlaneseq
        %v2591 = vshrl.u32 %v2590, 7
        %v2592 = vsub.s32 0, %v2591
        %v2593 = vrot.slane %v2588, %v2592
        %v2594 = vlaneseq
        %v2595 = vshrl.u32 %v2594, 7
        %v2596 = vsub.s32 1, %v2595
        %v2597 = vrot.slane %v2588, %v2596
        %v2598 = vlaneseq
        %v2599 = vshrl.u32 %v2598, 7
        %v2600 = vsub.s32 2, %v2599
        %v2601 = vrot.slane %v2588, %v2600
        %v2602 = vlaneseq
        %v2603 = vshrl.u32 %v2602, 7
        %v2604 = vsub.s32 3, %v2603
        %v2605 = vrot.slane %v2588, %v2604
        %v2606 = vlaneseq
        %v2607 = vshrl.u32 %v2606, 7
        %v2608 = vsub.s32 4, %v2607
        %v2609 = vrot.slane %v2588, %v2608
        %v2610 = vlaneseq
        %v2611 = vshrl.u32 %v2610, 7
        %v2612 = vsub.s32 5, %v2611
        %v2613 = vrot.slane %v2588, %v2612
        %v2614 = vlaneseq
        %v2615 = vshrl.u32 %v2614, 7
        %v2616 = vsub.s32 6, %v2615
        %v2617 = vrot.slane %v2588, %v2616
        %v2618 = vlaneseq
        %v2619 = vshrl.u32 %v2618, 7
        %v2620 = vsub.s32 7, %v2619
        %v2621 = vrot.slane %v2588, %v2620
        %v3142 = vunpack.c.l.b16 %v2076
        %v3143 = vunpack.c.h.b16 %v2076
        %v3144 = vunpack.c.l.b16 %v2077
        %v3145 = vunpack.c.h.b16 %v2077
        %v3146 = vunpack.c.l.b16 %v2078
        %v3147 = vunpack.c.h.b16 %v2078
        %v3148 = vunpack.c.l.b16 %v2079
        %v3149 = vunpack.c.h.b16 %v2079
        %v3150 = vunpack.c.l.b16 %v2080
        %v3151 = vunpack.c.h.b16 %v2080
        %v3152 = vunpack.c.l.b16 %v2081
        %v3153 = vunpack.c.h.b16 %v2081
        %v3154 = vunpack.c.l.b16 %v2082
        %v3155 = vunpack.c.h.b16 %v2082
        %v3156 = vunpack.c.l.b16 %v2083
        %v3157 = vunpack.c.h.b16 %v2083
        %v3158 = vunpack.c.l.b16 %v2084
        %v3159 = vunpack.c.h.b16 %v2084
        %v3160 = vunpack.c.l.b16 %v2085
        %v3161 = vunpack.c.h.b16 %v2085
        %v3162 = vunpack.c.l.b16 %v2086
        %v3163 = vunpack.c.h.b16 %v2086
        %v3164 = vunpack.c.l.b16 %v2087
        %v3165 = vunpack.c.h.b16 %v2087
        %v3166 = vunpack.c.l.b16 %v2088
        %v3167 = vunpack.c.h.b16 %v2088
        %v3168 = vunpack.c.l.b16 %v2089
        %v3169 = vunpack.c.h.b16 %v2089
        %v3170 = vunpack.c.l.b16 %v2090
        %v3171 = vunpack.c.h.b16 %v2090
        %v3172 = vunpack.c.l.b16 %v2091
        %v3173 = vunpack.c.h.b16 %v2091
        %v3174 = vunpack.c.l.b16 %v2092
        %v3175 = vunpack.c.h.b16 %v2092
        %v3176 = vunpack.c.l.b16 %v2093
        %v3177 = vunpack.c.h.b16 %v2093
        %v3178 = vunpack.c.l.b16 %v2094
        %v3179 = vunpack.c.h.b16 %v2094
        %v3180 = vunpack.c.l.b16 %v2095
        %v3181 = vunpack.c.h.b16 %v2095
        %v3182 = vunpack.c.l.b16 %v2096
        %v3183 = vunpack.c.h.b16 %v2096
        %v3184 = vunpack.c.l.b16 %v2097
        %v3185 = vunpack.c.h.b16 %v2097
        %v3186 = vunpack.c.l.b16 %v2098
        %v3187 = vunpack.c.h.b16 %v2098
        %v3188 = vunpack.c.l.b16 %v2099
        %v3189 = vunpack.c.h.b16 %v2099
        %v3190 = vunpack.c.l.b16 %v2100
        %v3191 = vunpack.c.h.b16 %v2100
        %v3192 = vunpack.c.l.b16 %v2101
        %v3193 = vunpack.c.h.b16 %v2101
        %v3194 = vunpack.c.l.b16 %v2102
        %v3195 = vunpack.c.h.b16 %v2102
        %v3196 = vunpack.c.l.b16 %v2103
        %v3197 = vunpack.c.h.b16 %v2103
        %v3198 = vunpack.c.l.b16 %v2104
        %v3199 = vunpack.c.h.b16 %v2104
        %v3200 = vunpack.c.l.b16 %v2105
        %v3201 = vunpack.c.h.b16 %v2105
        %v3202 = vunpack.c.l.b16 %v2106
        %v3203 = vunpack.c.h.b16 %v2106
        %v3204 = vunpack.c.l.b16 %v2107
        %v3205 = vunpack.c.h.b16 %v2107
        %v3206 = vunpack.c.l.b16 %v2108
        %v3207 = vunpack.c.h.b16 %v2108
        %v3208 = vunpack.c.l.b16 %v2109
        %v3209 = vunpack.c.h.b16 %v2109
        %v3210 = vunpack.c.l.b16 %v2110
        %v3211 = vunpack.c.h.b16 %v2110
        %v3212 = vunpack.c.l.b16 %v2111
        %v3213 = vunpack.c.h.b16 %v2111
        %v3214 = vunpack.c.l.b16 %v2112
        %v3215 = vunpack.c.h.b16 %v2112
        %v3216 = vunpack.c.l.b16 %v2113
        %v3217 = vunpack.c.h.b16 %v2113
        %v3218 = vunpack.c.l.b16 %v2114
        %v3219 = vunpack.c.h.b16 %v2114
        %v3220 = vunpack.c.l.b16 %v2115
        %v3221 = vunpack.c.h.b16 %v2115
        %v3222 = vunpack.c.l.b16 %v2116
        %v3223 = vunpack.c.h.b16 %v2116
        %v3224 = vunpack.c.l.b16 %v2117
        %v3225 = vunpack.c.h.b16 %v2117
        %v3226 = vunpack.c.l.b16 %v2118
        %v3227 = vunpack.c.h.b16 %v2118
        %v3228 = vunpack.c.l.b16 %v2119
        %v3229 = vunpack.c.h.b16 %v2119
        %v3230 = vunpack.c.l.b16 %v2120
        %v3231 = vunpack.c.h.b16 %v2120
        %v3232 = vunpack.c.l.b16 %v2121
        %v3233 = vunpack.c.h.b16 %v2121
        %v3234 = vunpack.c.l.b16 %v2122
        %v3235 = vunpack.c.h.b16 %v2122
        %v3236 = vunpack.c.l.b16 %v2123
        %v3237 = vunpack.c.h.b16 %v2123
        %v3238 = vunpack.c.l.b16 %v2124
        %v3239 = vunpack.c.h.b16 %v2124
        %v3240 = vunpack.c.l.b16 %v2125
        %v3241 = vunpack.c.h.b16 %v2125
        %v3242 = vunpack.c.l.b16 %v2126
        %v3243 = vunpack.c.h.b16 %v2126
        %v3244 = vunpack.c.l.b16 %v2127
        %v3245 = vunpack.c.h.b16 %v2127
        %v3246 = vunpack.c.l.b16 %v2128
        %v3247 = vunpack.c.h.b16 %v2128
        %v3248 = vunpack.c.l.b16 %v2129
        %v3249 = vunpack.c.h.b16 %v2129
        %v3250 = vunpack.c.l.b16 %v2130
        %v3251 = vunpack.c.h.b16 %v2130
        %v3252 = vunpack.c.l.b16 %v2131
        %v3253 = vunpack.c.h.b16 %v2131
        %v3254 = vunpack.c.l.b16 %v2132
        %v3255 = vunpack.c.h.b16 %v2132
        %v3256 = vunpack.c.l.b16 %v2133
        %v3257 = vunpack.c.h.b16 %v2133
        %v3258 = vunpack.c.l.b16 %v2134
        %v3259 = vunpack.c.h.b16 %v2134
        %v3260 = vunpack.c.l.b16 %v2135
        %v3261 = vunpack.c.h.b16 %v2135
        %v3262 = vunpack.c.l.b16 %v2136
        %v3263 = vunpack.c.h.b16 %v2136
        %v3264 = vunpack.c.l.b16 %v2137
        %v3265 = vunpack.c.h.b16 %v2137
        %v3266 = vunpack.c.l.b16 %v2138
        %v3267 = vunpack.c.h.b16 %v2138
        %v3268 = vunpack.c.l.b16 %v2139
        %v3269 = vunpack.c.h.b16 %v2139
        %v3270 = vunpack.c.l.b16 %v2140
        %v3271 = vunpack.c.h.b16 %v2140
        %v3272 = vunpack.c.l.b16 %v2141
        %v3273 = vunpack.c.h.b16 %v2141
        %v3274 = vunpack.c.l.b16 %v2142
        %v3275 = vunpack.c.h.b16 %v2142
        %v3276 = vunpack.c.l.b16 %v2143
        %v3277 = vunpack.c.h.b16 %v2143
        %v3278 = vunpack.c.l.b16 %v2144
        %v3279 = vunpack.c.h.b16 %v2144
        %v3280 = vunpack.c.l.b16 %v2145
        %v3281 = vunpack.c.h.b16 %v2145
        %v3282 = vunpack.c.l.b16 %v2146
        %v3283 = vunpack.c.h.b16 %v2146
        %v3284 = vunpack.c.l.b16 %v2147
        %v3285 = vunpack.c.h.b16 %v2147
        %v3286 = vunpack.c.l.b16 %v2148
        %v3287 = vunpack.c.h.b16 %v2148
        %v3288 = vunpack.c.l.b16 %v2149
        %v3289 = vunpack.c.h.b16 %v2149
        %v3290 = vunpack.c.l.b16 %v2150
        %v3291 = vunpack.c.h.b16 %v2150
        %v3292 = vunpack.c.l.b16 %v2151
        %v3293 = vunpack.c.h.b16 %v2151
        %v3294 = vunpack.c.l.b16 %v2152
        %v3295 = vunpack.c.h.b16 %v2152
        %v3296 = vunpack.c.l.b16 %v2153
        %v3297 = vunpack.c.h.b16 %v2153
        %v3298 = vunpack.c.l.b16 %v2154
        %v3299 = vunpack.c.h.b16 %v2154
        %v3300 = vunpack.c.l.b16 %v2155
        %v3301 = vunpack.c.h.b16 %v2155
        %v3302 = vunpack.c.l.b16 %v2156
        %v3303 = vunpack.c.h.b16 %v2156
        %v3304 = vunpack.c.l.b16 %v2157
        %v3305 = vunpack.c.h.b16 %v2157
        %v3306 = vunpack.c.l.b16 %v2158
        %v3307 = vunpack.c.h.b16 %v2158
        %v3308 = vunpack.c.l.b16 %v2159
        %v3309 = vunpack.c.h.b16 %v2159
        %v3310 = vunpack.c.l.b16 %v2160
        %v3311 = vunpack.c.h.b16 %v2160
        %v3312 = vunpack.c.l.b16 %v2161
        %v3313 = vunpack.c.h.b16 %v2161
        %v3314 = vunpack.c.l.b16 %v2162
        %v3315 = vunpack.c.h.b16 %v2162
        %v3316 = vunpack.c.l.b16 %v2163
        %v3317 = vunpack.c.h.b16 %v2163
        %v3318 = vunpack.c.l.b16 %v2164
        %v3319 = vunpack.c.h.b16 %v2164
        %v3320 = vunpack.c.l.b16 %v2165
        %v3321 = vunpack.c.h.b16 %v2165
        %v3322 = vunpack.c.l.b16 %v2166
        %v3323 = vunpack.c.h.b16 %v2166
        %v3324 = vunpack.c.l.b16 %v2167
        %v3325 = vunpack.c.h.b16 %v2167
        %v3326 = vunpack.c.l.b16 %v2168
        %v3327 = vunpack.c.h.b16 %v2168
        %v3328 = vunpack.c.l.b16 %v2169
        %v3329 = vunpack.c.h.b16 %v2169
        %v3330 = vunpack.c.l.b16 %v2170
        %v3331 = vunpack.c.h.b16 %v2170
        %v3332 = vunpack.c.l.b16 %v2171
        %v3333 = vunpack.c.h.b16 %v2171
        %v3334 = vunpack.c.l.b16 %v2172
        %v3335 = vunpack.c.h.b16 %v2172
        %v3336 = vunpack.c.l.b16 %v2173
        %v3337 = vunpack.c.h.b16 %v2173
        %v3338 = vunpack.c.l.b16 %v2174
        %v3339 = vunpack.c.h.b16 %v2174
        %v3340 = vunpack.c.l.b16 %v2175
        %v3341 = vunpack.c.h.b16 %v2175
        %v3342 = vunpack.c.l.b16 %v2176
        %v3343 = vunpack.c.h.b16 %v2176
        %v3344 = vunpack.c.l.b16 %v2177
        %v3345 = vunpack.c.h.b16 %v2177
        %v3346 = vunpack.c.l.b16 %v2178
        %v3347 = vunpack.c.h.b16 %v2178
        %v3348 = vunpack.c.l.b16 %v2179
        %v3349 = vunpack.c.h.b16 %v2179
        %v3350 = vunpack.c.l.b16 %v2180
        %v3351 = vunpack.c.h.b16 %v2180
        %v3352 = vunpack.c.l.b16 %v2181
        %v3353 = vunpack.c.h.b16 %v2181
        %v3354 = vunpack.c.l.b16 %v2182
        %v3355 = vunpack.c.h.b16 %v2182
        %v3356 = vunpack.c.l.b16 %v2183
        %v3357 = vunpack.c.h.b16 %v2183
        %v3358 = vunpack.c.l.b16 %v2184
        %v3359 = vunpack.c.h.b16 %v2184
        %v3360 = vunpack.c.l.b16 %v2185
        %v3361 = vunpack.c.h.b16 %v2185
        %v3362 = vunpack.c.l.b16 %v2186
        %v3363 = vunpack.c.h.b16 %v2186
        %v3364 = vunpack.c.l.b16 %v2187
        %v3365 = vunpack.c.h.b16 %v2187
        %v3366 = vunpack.c.l.b16 %v2188
        %v3367 = vunpack.c.h.b16 %v2188
        %v3368 = vunpack.c.l.b16 %v2189
        %v3369 = vunpack.c.h.b16 %v2189
        %v3370 = vunpack.c.l.b16 %v2190
        %v3371 = vunpack.c.h.b16 %v2190
        %v3372 = vunpack.c.l.b16 %v2191
        %v3373 = vunpack.c.h.b16 %v2191
        %v3374 = vunpack.c.l.b16 %v2192
        %v3375 = vunpack.c.h.b16 %v2192
        %v3376 = vunpack.c.l.b16 %v2193
        %v3377 = vunpack.c.h.b16 %v2193
        %v3378 = vunpack.c.l.b16 %v2194
        %v3379 = vunpack.c.h.b16 %v2194
        %v3380 = vunpack.c.l.b16 %v2195
        %v3381 = vunpack.c.h.b16 %v2195
        %v3382 = vunpack.c.l.b16 %v2196
        %v3383 = vunpack.c.h.b16 %v2196
        %v3384 = vunpack.c.l.b16 %v2197
        %v3385 = vunpack.c.h.b16 %v2197
        %v3386 = vunpack.c.l.b16 %v2198
        %v3387 = vunpack.c.h.b16 %v2198
        %v3388 = vunpack.c.l.b16 %v2199
        %v3389 = vunpack.c.h.b16 %v2199
        %v3390 = vunpack.c.l.b16 %v2200
        %v3391 = vunpack.c.h.b16 %v2200
        %v3392 = vunpack.c.l.b16 %v2201
        %v3393 = vunpack.c.h.b16 %v2201
        %v3394 = vunpack.c.l.b16 %v2202
        %v3395 = vunpack.c.h.b16 %v2202
        %v3396 = vunpack.c.l.b16 %v2203
        %v3397 = vunpack.c.h.b16 %v2203
        %v3398 = vunpack.c.l.b16 %v2204
        %v3399 = vunpack.c.h.b16 %v2204
        %v3400 = vunpack.c.l.b16 %v2205
        %v3401 = vunpack.c.h.b16 %v2205
        %v3402 = vunpack.c.l.b16 %v2206
        %v3403 = vunpack.c.h.b16 %v2206
        %v3404 = vunpack.c.l.b16 %v2207
        %v3405 = vunpack.c.h.b16 %v2207
        %v3406 = vunpack.c.l.b16 %v2208
        %v3407 = vunpack.c.h.b16 %v2208
        %v3408 = vunpack.c.l.b16 %v2209
        %v3409 = vunpack.c.h.b16 %v2209
        %v3410 = vunpack.c.l.b16 %v2210
        %v3411 = vunpack.c.h.b16 %v2210
        %v3412 = vunpack.c.l.b16 %v2211
        %v3413 = vunpack.c.h.b16 %v2211
        %v3414 = vunpack.c.l.b16 %v2212
        %v3415 = vunpack.c.h.b16 %v2212
        %v3416 = vunpack.c.l.b16 %v2213
        %v3417 = vunpack.c.h.b16 %v2213
        %v3418 = vunpack.c.l.b16 %v2214
        %v3419 = vunpack.c.h.b16 %v2214
        %v3420 = vunpack.c.l.b16 %v2215
        %v3421 = vunpack.c.h.b16 %v2215
        %v3422 = vunpack.c.l.b16 %v2216
        %v3423 = vunpack.c.h.b16 %v2216
        %v3424 = vunpack.c.l.b16 %v2217
        %v3425 = vunpack.c.h.b16 %v2217
        %v3426 = vunpack.c.l.b16 %v2218
        %v3427 = vunpack.c.h.b16 %v2218
        %v3428 = vunpack.c.l.b16 %v2219
        %v3429 = vunpack.c.h.b16 %v2219
        %v3430 = vunpack.c.l.b16 %v2220
        %v3431 = vunpack.c.h.b16 %v2220
        %v3432 = vunpack.c.l.b16 %v2221
        %v3433 = vunpack.c.h.b16 %v2221
        %v3434 = vunpack.c.l.b16 %v2222
        %v3435 = vunpack.c.h.b16 %v2222
        %v3436 = vunpack.c.l.b16 %v2223
        %v3437 = vunpack.c.h.b16 %v2223
        %v3438 = vunpack.c.l.b16 %v2224
        %v3439 = vunpack.c.h.b16 %v2224
        %v3440 = vunpack.c.l.b16 %v2225
        %v3441 = vunpack.c.h.b16 %v2225
        %v3442 = vunpack.c.l.b16 %v2226
        %v3443 = vunpack.c.h.b16 %v2226
        %v3444 = vunpack.c.l.b16 %v2227
        %v3445 = vunpack.c.h.b16 %v2227
        %v3446 = vunpack.c.l.b16 %v2228
        %v3447 = vunpack.c.h.b16 %v2228
        %v3448 = vunpack.c.l.b16 %v2229
        %v3449 = vunpack.c.h.b16 %v2229
        %v3450 = vunpack.c.l.b16 %v2230
        %v3451 = vunpack.c.h.b16 %v2230
        %v3452 = vunpack.c.l.b16 %v2231
        %v3453 = vunpack.c.h.b16 %v2231
        %v3454 = vunpack.c.l.b16 %v2232
        %v3455 = vunpack.c.h.b16 %v2232
        %v3456 = vunpack.c.l.b16 %v2233
        %v3457 = vunpack.c.h.b16 %v2233
        %v3458 = vunpack.c.l.b16 %v2234
        %v3459 = vunpack.c.h.b16 %v2234
        %v3460 = vunpack.c.l.b16 %v2235
        %v3461 = vunpack.c.h.b16 %v2235
        %v3462 = vunpack.c.l.b16 %v2236
        %v3463 = vunpack.c.h.b16 %v2236
        %v3464 = vunpack.c.l.b16 %v2237
        %v3465 = vunpack.c.h.b16 %v2237
        %v3466 = vunpack.c.l.b16 %v2238
        %v3467 = vunpack.c.h.b16 %v2238
        %v3468 = vunpack.c.l.b16 %v2239
        %v3469 = vunpack.c.h.b16 %v2239
        %v3470 = vunpack.c.l.b16 %v2240
        %v3471 = vunpack.c.h.b16 %v2240
        %v3472 = vunpack.c.l.b16 %v2241
        %v3473 = vunpack.c.h.b16 %v2241
        %v3474 = vunpack.c.l.b16 %v2242
        %v3475 = vunpack.c.h.b16 %v2242
        %v3476 = vunpack.c.l.b16 %v2243
        %v3477 = vunpack.c.h.b16 %v2243
        %v3478 = vunpack.c.l.b16 %v2244
        %v3479 = vunpack.c.h.b16 %v2244
        %v3480 = vunpack.c.l.b16 %v2245
        %v3481 = vunpack.c.h.b16 %v2245
        %v3482 = vunpack.c.l.b16 %v2246
        %v3483 = vunpack.c.h.b16 %v2246
        %v3484 = vunpack.c.l.b16 %v2247
        %v3485 = vunpack.c.h.b16 %v2247
        %v3486 = vunpack.c.l.b16 %v2248
        %v3487 = vunpack.c.h.b16 %v2248
        %v3488 = vunpack.c.l.b16 %v2249
        %v3489 = vunpack.c.h.b16 %v2249
        %v3490 = vunpack.c.l.b16 %v2250
        %v3491 = vunpack.c.h.b16 %v2250
        %v3492 = vunpack.c.l.b16 %v2251
        %v3493 = vunpack.c.h.b16 %v2251
        %v3494 = vunpack.c.l.b16 %v2252
        %v3495 = vunpack.c.h.b16 %v2252
        %v3496 = vunpack.c.l.b16 %v2253
        %v3497 = vunpack.c.h.b16 %v2253
        %v3498 = vunpack.c.l.b16 %v2254
        %v3499 = vunpack.c.h.b16 %v2254
        %v3500 = vunpack.c.l.b16 %v2255
        %v3501 = vunpack.c.h.b16 %v2255
        %v3502 = vunpack.c.l.b16 %v2256
        %v3503 = vunpack.c.h.b16 %v2256
        %v3504 = vunpack.c.l.b16 %v2257
        %v3505 = vunpack.c.h.b16 %v2257
        %v3506 = vunpack.c.l.b16 %v2258
        %v3507 = vunpack.c.h.b16 %v2258
        %v3508 = vunpack.c.l.b16 %v2259
        %v3509 = vunpack.c.h.b16 %v2259
        %v3510 = vunpack.c.l.b16 %v2260
        %v3511 = vunpack.c.h.b16 %v2260
        %v3512 = vunpack.c.l.b16 %v2261
        %v3513 = vunpack.c.h.b16 %v2261
        %v3514 = vunpack.c.l.b16 %v2262
        %v3515 = vunpack.c.h.b16 %v2262
        %v3516 = vunpack.c.l.b16 %v2263
        %v3517 = vunpack.c.h.b16 %v2263
        %v3518 = vunpack.c.l.b16 %v2264
        %v3519 = vunpack.c.h.b16 %v2264
        %v3520 = vunpack.c.l.b16 %v2265
        %v3521 = vunpack.c.h.b16 %v2265
        %v3522 = vunpack.c.l.b16 %v2266
        %v3523 = vunpack.c.h.b16 %v2266
        %v3524 = vunpack.c.l.b16 %v2267
        %v3525 = vunpack.c.h.b16 %v2267
        %v3526 = vunpack.c.l.b16 %v2268
        %v3527 = vunpack.c.h.b16 %v2268
        %v3528 = vunpack.c.l.b16 %v2269
        %v3529 = vunpack.c.h.b16 %v2269
        %v3530 = vunpack.c.l.b16 %v2270
        %v3531 = vunpack.c.h.b16 %v2270
        %v3532 = vunpack.c.l.b16 %v2271
        %v3533 = vunpack.c.h.b16 %v2271
        %v3534 = vunpack.c.l.b16 %v2272
        %v3535 = vunpack.c.h.b16 %v2272
        %v3536 = vunpack.c.l.b16 %v2273
        %v3537 = vunpack.c.h.b16 %v2273
        %v3538 = vunpack.c.l.b16 %v2274
        %v3539 = vunpack.c.h.b16 %v2274
        %v3540 = vunpack.c.l.b16 %v2275
        %v3541 = vunpack.c.h.b16 %v2275
        %v3542 = vunpack.c.l.b16 %v2276
        %v3543 = vunpack.c.h.b16 %v2276
        %v3544 = vunpack.c.l.b16 %v2277
        %v3545 = vunpack.c.h.b16 %v2277
        %v3546 = vunpack.c.l.b16 %v2278
        %v3547 = vunpack.c.h.b16 %v2278
        %v3548 = vunpack.c.l.b16 %v2279
        %v3549 = vunpack.c.h.b16 %v2279
        %v3550 = vunpack.c.l.b16 %v2280
        %v3551 = vunpack.c.h.b16 %v2280
        %v3552 = vunpack.c.l.b16 %v2281
        %v3553 = vunpack.c.h.b16 %v2281
        %v3554 = vunpack.c.l.b16 %v2282
        %v3555 = vunpack.c.h.b16 %v2282
        %v3556 = vunpack.c.l.b16 %v2283
        %v3557 = vunpack.c.h.b16 %v2283
        %v3558 = vunpack.c.l.b16 %v2284
        %v3559 = vunpack.c.h.b16 %v2284
        %v3560 = vunpack.c.l.b16 %v2285
        %v3561 = vunpack.c.h.b16 %v2285
        %v3562 = vunpack.c.l.b16 %v2286
        %v3563 = vunpack.c.h.b16 %v2286
        %v3564 = vunpack.c.l.b16 %v2287
        %v3565 = vunpack.c.h.b16 %v2287
        %v3566 = vunpack.c.l.b16 %v2288
        %v3567 = vunpack.c.h.b16 %v2288
        %v3568 = vunpack.c.l.b16 %v2289
        %v3569 = vunpack.c.h.b16 %v2289
        %v3570 = vunpack.c.l.b16 %v2290
        %v3571 = vunpack.c.h.b16 %v2290
        %v3572 = vunpack.c.l.b16 %v2291
        %v3573 = vunpack.c.h.b16 %v2291
        %v3574 = vunpack.c.l.b16 %v2292
        %v3575 = vunpack.c.h.b16 %v2292
        %v3576 = vunpack.c.l.b16 %v2293
        %v3577 = vunpack.c.h.b16 %v2293
        %v3578 = vunpack.c.l.b16 %v2294
        %v3579 = vunpack.c.h.b16 %v2294
        %v3580 = vunpack.c.l.b16 %v2295
        %v3581 = vunpack.c.h.b16 %v2295
        %v3582 = vunpack.c.l.b16 %v2296
        %v3583 = vunpack.c.h.b16 %v2296
        %v3584 = vunpack.c.l.b16 %v2297
        %v3585 = vunpack.c.h.b16 %v2297
        %v3586 = vunpack.c.l.b16 %v2298
        %v3587 = vunpack.c.h.b16 %v2298
        %v3588 = vunpack.c.l.b16 %v2299
        %v3589 = vunpack.c.h.b16 %v2299
        %v3590 = vunpack.c.l.b16 %v2300
        %v3591 = vunpack.c.h.b16 %v2300
        %v3592 = vunpack.c.l.b16 %v2301
        %v3593 = vunpack.c.h.b16 %v2301
        %v3594 = vunpack.c.l.b16 %v2302
        %v3595 = vunpack.c.h.b16 %v2302
        %v3596 = vunpack.c.l.b16 %v2303
        %v3597 = vunpack.c.h.b16 %v2303
        %v3598 = vunpack.c.l.b16 %v2304
        %v3599 = vunpack.c.h.b16 %v2304
        %v3600 = vunpack.c.l.b16 %v2305
        %v3601 = vunpack.c.h.b16 %v2305
        %v3602 = vunpack.c.l.b16 %v2306
        %v3603 = vunpack.c.h.b16 %v2306
        %v3604 = vunpack.c.l.b16 %v2307
        %v3605 = vunpack.c.h.b16 %v2307
        %v3606 = vunpack.c.l.b16 %v2308
        %v3607 = vunpack.c.h.b16 %v2308
        %v3608 = vunpack.c.l.b16 %v2309
        %v3609 = vunpack.c.h.b16 %v2309
        %v3610 = vunpack.c.l.b16 %v2310
        %v3611 = vunpack.c.h.b16 %v2310
        %v3612 = vunpack.c.l.b16 %v2311
        %v3613 = vunpack.c.h.b16 %v2311
        %v3614 = vunpack.c.l.b16 %v2312
        %v3615 = vunpack.c.h.b16 %v2312
        %v3616 = vunpack.c.l.b16 %v2313
        %v3617 = vunpack.c.h.b16 %v2313
        %v3618 = vunpack.c.l.b16 %v2314
        %v3619 = vunpack.c.h.b16 %v2314
        %v3620 = vunpack.c.l.b16 %v2315
        %v3621 = vunpack.c.h.b16 %v2315
        %v3622 = vunpack.c.l.b16 %v2316
        %v3623 = vunpack.c.h.b16 %v2316
        %v3624 = vunpack.c.l.b16 %v2317
        %v3625 = vunpack.c.h.b16 %v2317
        %v3626 = vunpack.c.l.b16 %v2318
        %v3627 = vunpack.c.h.b16 %v2318
        %v3628 = vunpack.c.l.b16 %v2319
        %v3629 = vunpack.c.h.b16 %v2319
        %v3630 = vunpack.c.l.b16 %v2320
        %v3631 = vunpack.c.h.b16 %v2320
        %v3632 = vunpack.c.l.b16 %v2321
        %v3633 = vunpack.c.h.b16 %v2321
        %v3634 = vunpack.c.l.b16 %v2322
        %v3635 = vunpack.c.h.b16 %v2322
        %v3636 = vunpack.c.l.b16 %v2323
        %v3637 = vunpack.c.h.b16 %v2323
        %v3638 = vunpack.c.l.b16 %v2324
        %v3639 = vunpack.c.h.b16 %v2324
        %v3640 = vunpack.c.l.b16 %v2325
        %v3641 = vunpack.c.h.b16 %v2325
        %v3642 = vunpack.c.l.b16 %v2326
        %v3643 = vunpack.c.h.b16 %v2326
        %v3644 = vunpack.c.l.b16 %v2327
        %v3645 = vunpack.c.h.b16 %v2327
        %v3646 = vunpack.c.l.b16 %v2328
        %v3647 = vunpack.c.h.b16 %v2328
        %v3648 = vunpack.c.l.b16 %v2329
        %v3649 = vunpack.c.h.b16 %v2329
        %v3650 = vunpack.c.l.b16 %v2330
        %v3651 = vunpack.c.h.b16 %v2330
        %v3652 = vunpack.c.l.b16 %v2331
        %v3653 = vunpack.c.h.b16 %v2331
        %v3654 = vunpack.c.l.b16 %v2332
        %v3655 = vunpack.c.h.b16 %v2332
        %v3656 = vunpack.c.l.b16 %v2333
        %v3657 = vunpack.c.h.b16 %v2333
        %v3658 = vunpack.c.l.b16 %v2334
        %v3659 = vunpack.c.h.b16 %v2334
        %v3660 = vunpack.c.l.b16 %v2335
        %v3661 = vunpack.c.h.b16 %v2335
        %v3662 = vunpack.c.l.b16 %v2336
        %v3663 = vunpack.c.h.b16 %v2336
        %v3664 = vunpack.c.l.b16 %v2337
        %v3665 = vunpack.c.h.b16 %v2337
        %v3666 = vunpack.c.l.b16 %v2338
        %v3667 = vunpack.c.h.b16 %v2338
        %v3668 = vunpack.c.l.b16 %v2339
        %v3669 = vunpack.c.h.b16 %v2339
        %v3670 = vunpack.c.l.b16 %v2340
        %v3671 = vunpack.c.h.b16 %v2340
        %v3672 = vunpack.c.l.b16 %v2341
        %v3673 = vunpack.c.h.b16 %v2341
        %v3674 = vunpack.c.l.b16 %v2342
        %v3675 = vunpack.c.h.b16 %v2342
        %v3676 = vunpack.c.l.b16 %v2343
        %v3677 = vunpack.c.h.b16 %v2343
        %v3678 = vunpack.c.l.b16 %v2344
        %v3679 = vunpack.c.h.b16 %v2344
        %v3680 = vunpack.c.l.b16 %v2345
        %v3681 = vunpack.c.h.b16 %v2345
        %v3682 = vunpack.c.l.b16 %v2346
        %v3683 = vunpack.c.h.b16 %v2346
        %v3684 = vunpack.c.l.b16 %v2347
        %v3685 = vunpack.c.h.b16 %v2347
        %v3686 = vunpack.c.l.b16 %v2348
        %v3687 = vunpack.c.h.b16 %v2348
        %v3688 = vunpack.c.l.b16 %v2349
        %v3689 = vunpack.c.h.b16 %v2349
        %v3690 = vunpack.c.l.b16 %v2350
        %v3691 = vunpack.c.h.b16 %v2350
        %v3692 = vunpack.c.l.b16 %v2351
        %v3693 = vunpack.c.h.b16 %v2351
        %v3694 = vunpack.c.l.b16 %v2352
        %v3695 = vunpack.c.h.b16 %v2352
        %v3696 = vunpack.c.l.b16 %v2353
        %v3697 = vunpack.c.h.b16 %v2353
        %v3698 = vunpack.c.l.b16 %v2354
        %v3699 = vunpack.c.h.b16 %v2354
        %v3700 = vunpack.c.l.b16 %v2355
        %v3701 = vunpack.c.h.b16 %v2355
        %v3702 = vunpack.c.l.b16 %v2356
        %v3703 = vunpack.c.h.b16 %v2356
        %v3704 = vunpack.c.l.b16 %v2357
        %v3705 = vunpack.c.h.b16 %v2357
        %v3706 = vunpack.c.l.b16 %v2358
        %v3707 = vunpack.c.h.b16 %v2358
        %v3708 = vunpack.c.l.b16 %v2359
        %v3709 = vunpack.c.h.b16 %v2359
        %v3710 = vunpack.c.l.b16 %v2360
        %v3711 = vunpack.c.h.b16 %v2360
        %v3712 = vunpack.c.l.b16 %v2361
        %v3713 = vunpack.c.h.b16 %v2361
        %v3714 = vunpack.c.l.b16 %v2362
        %v3715 = vunpack.c.h.b16 %v2362
        %v3716 = vunpack.c.l.b16 %v2363
        %v3717 = vunpack.c.h.b16 %v2363
        %v3718 = vunpack.c.l.b16 %v2364
        %v3719 = vunpack.c.h.b16 %v2364
        %v3720 = vunpack.c.l.b16 %v2365
        %v3721 = vunpack.c.h.b16 %v2365
        %v3722 = vunpack.c.l.b16 %v2366
        %v3723 = vunpack.c.h.b16 %v2366
        %v3724 = vunpack.c.l.b16 %v2367
        %v3725 = vunpack.c.h.b16 %v2367
        %v3726 = vunpack.c.l.b16 %v2368
        %v3727 = vunpack.c.h.b16 %v2368
        %v3728 = vunpack.c.l.b16 %v2369
        %v3729 = vunpack.c.h.b16 %v2369
        %v3730 = vunpack.c.l.b16 %v2370
        %v3731 = vunpack.c.h.b16 %v2370
        %v3732 = vunpack.c.l.b16 %v2371
        %v3733 = vunpack.c.h.b16 %v2371
        %v3734 = vunpack.c.l.b16 %v2372
        %v3735 = vunpack.c.h.b16 %v2372
        %v3736 = vunpack.c.l.b16 %v2373
        %v3737 = vunpack.c.h.b16 %v2373
        %v3738 = vunpack.c.l.b16 %v2374
        %v3739 = vunpack.c.h.b16 %v2374
        %v3740 = vunpack.c.l.b16 %v2375
        %v3741 = vunpack.c.h.b16 %v2375
        %v3742 = vunpack.c.l.b16 %v2376
        %v3743 = vunpack.c.h.b16 %v2376
        %v3744 = vunpack.c.l.b16 %v2377
        %v3745 = vunpack.c.h.b16 %v2377
        %v3746 = vunpack.c.l.b16 %v2378
        %v3747 = vunpack.c.h.b16 %v2378
        %v3748 = vunpack.c.l.b16 %v2379
        %v3749 = vunpack.c.h.b16 %v2379
        %v3750 = vunpack.c.l.b16 %v2380
        %v3751 = vunpack.c.h.b16 %v2380
        %v3752 = vunpack.c.l.b16 %v2381
        %v3753 = vunpack.c.h.b16 %v2381
        %v3754 = vunpack.c.l.b16 %v2382
        %v3755 = vunpack.c.h.b16 %v2382
        %v3756 = vunpack.c.l.b16 %v2383
        %v3757 = vunpack.c.h.b16 %v2383
        %v3758 = vunpack.c.l.b16 %v2384
        %v3759 = vunpack.c.h.b16 %v2384
        %v3760 = vunpack.c.l.b16 %v2385
        %v3761 = vunpack.c.h.b16 %v2385
        %v3762 = vunpack.c.l.b16 %v2386
        %v3763 = vunpack.c.h.b16 %v2386
        %v3764 = vunpack.c.l.b16 %v2387
        %v3765 = vunpack.c.h.b16 %v2387
        %v3766 = vunpack.c.l.b16 %v2388
        %v3767 = vunpack.c.h.b16 %v2388
        %v3768 = vunpack.c.l.b16 %v2389
        %v3769 = vunpack.c.h.b16 %v2389
        %v3770 = vunpack.c.l.b16 %v2390
        %v3771 = vunpack.c.h.b16 %v2390
        %v3772 = vunpack.c.l.b16 %v2391
        %v3773 = vunpack.c.h.b16 %v2391
        %v3774 = vunpack.c.l.b16 %v2392
        %v3775 = vunpack.c.h.b16 %v2392
        %v3776 = vunpack.c.l.b16 %v2393
        %v3777 = vunpack.c.h.b16 %v2393
        %v3778 = vunpack.c.l.b16 %v2394
        %v3779 = vunpack.c.h.b16 %v2394
        %v3780 = vunpack.c.l.b16 %v2395
        %v3781 = vunpack.c.h.b16 %v2395
        %v3782 = vunpack.c.l.b16 %v2396
        %v3783 = vunpack.c.h.b16 %v2396
        %v3784 = vunpack.c.l.b16 %v2397
        %v3785 = vunpack.c.h.b16 %v2397
        %v3786 = vunpack.c.l.b16 %v2398
        %v3787 = vunpack.c.h.b16 %v2398
        %v3788 = vunpack.c.l.b16 %v2399
        %v3789 = vunpack.c.h.b16 %v2399
        %v3790 = vunpack.c.l.b16 %v2400
        %v3791 = vunpack.c.h.b16 %v2400
        %v3792 = vunpack.c.l.b16 %v2401
        %v3793 = vunpack.c.h.b16 %v2401
        %v3794 = vunpack.c.l.b16 %v2402
        %v3795 = vunpack.c.h.b16 %v2402
        %v3796 = vunpack.c.l.b16 %v2403
        %v3797 = vunpack.c.h.b16 %v2403
        %v3798 = vunpack.c.l.b16 %v2404
        %v3799 = vunpack.c.h.b16 %v2404
        %v3800 = vunpack.c.l.b16 %v2405
        %v3801 = vunpack.c.h.b16 %v2405
        %v3802 = vunpack.c.l.b16 %v2406
        %v3803 = vunpack.c.h.b16 %v2406
        %v3804 = vunpack.c.l.b16 %v2407
        %v3805 = vunpack.c.h.b16 %v2407
        %v3806 = vunpack.c.l.b16 %v2408
        %v3807 = vunpack.c.h.b16 %v2408
        %v3808 = vunpack.c.l.b16 %v2409
        %v3809 = vunpack.c.h.b16 %v2409
        %v3810 = vunpack.c.l.b16 %v2410
        %v3811 = vunpack.c.h.b16 %v2410
        %v3812 = vunpack.c.l.b16 %v2411
        %v3813 = vunpack.c.h.b16 %v2411
        %v3814 = vunpack.c.l.b16 %v2412
        %v3815 = vunpack.c.h.b16 %v2412
        %v3816 = vunpack.c.l.b16 %v2413
        %v3817 = vunpack.c.h.b16 %v2413
        %v3818 = vunpack.c.l.b16 %v2414
        %v3819 = vunpack.c.h.b16 %v2414
        %v3820 = vunpack.c.l.b16 %v2415
        %v3821 = vunpack.c.h.b16 %v2415
        %v3822 = vunpack.c.l.b16 %v2416
        %v3823 = vunpack.c.h.b16 %v2416
        %v3824 = vunpack.c.l.b16 %v2417
        %v3825 = vunpack.c.h.b16 %v2417
        %v3826 = vunpack.c.l.b16 %v2418
        %v3827 = vunpack.c.h.b16 %v2418
        %v3828 = vunpack.c.l.b16 %v2419
        %v3829 = vunpack.c.h.b16 %v2419
        %v3830 = vunpack.c.l.b16 %v2420
        %v3831 = vunpack.c.h.b16 %v2420
        %v3832 = vunpack.c.l.b16 %v2421
        %v3833 = vunpack.c.h.b16 %v2421
        %v3834 = vunpack.c.l.b16 %v2422
        %v3835 = vunpack.c.h.b16 %v2422
        %v3836 = vunpack.c.l.b16 %v2423
        %v3837 = vunpack.c.h.b16 %v2423
        %v3838 = vunpack.c.l.b16 %v2424
        %v3839 = vunpack.c.h.b16 %v2424
        %v3840 = vunpack.c.l.b16 %v2425
        %v3841 = vunpack.c.h.b16 %v2425
        %v3842 = vunpack.c.l.b16 %v2426
        %v3843 = vunpack.c.h.b16 %v2426
        %v3844 = vunpack.c.l.b16 %v2427
        %v3845 = vunpack.c.h.b16 %v2427
        %v3846 = vunpack.c.l.b16 %v2428
        %v3847 = vunpack.c.h.b16 %v2428
        %v3848 = vunpack.c.l.b16 %v2429
        %v3849 = vunpack.c.h.b16 %v2429
        %v3850 = vunpack.c.l.b16 %v2430
        %v3851 = vunpack.c.h.b16 %v2430
        %v3852 = vunpack.c.l.b16 %v2431
        %v3853 = vunpack.c.h.b16 %v2431
        %v3854 = vunpack.c.l.b16 %v2432
        %v3855 = vunpack.c.h.b16 %v2432
        %v3856 = vunpack.c.l.b16 %v2433
        %v3857 = vunpack.c.h.b16 %v2433
        %v3858 = vunpack.c.l.b16 %v2434
        %v3859 = vunpack.c.h.b16 %v2434
        %v3860 = vunpack.c.l.b16 %v2435
        %v3861 = vunpack.c.h.b16 %v2435
        %v3862 = vunpack.c.l.b16 %v2436
        %v3863 = vunpack.c.h.b16 %v2436
        %v3864 = vunpack.c.l.b16 %v2437
        %v3865 = vunpack.c.h.b16 %v2437
        %v3866 = vunpack.c.l.b16 %v2438
        %v3867 = vunpack.c.h.b16 %v2438
        %v3868 = vunpack.c.l.b16 %v2439
        %v3869 = vunpack.c.h.b16 %v2439
        %v3870 = vunpack.c.l.b16 %v2440
        %v3871 = vunpack.c.h.b16 %v2440
        %v3872 = vunpack.c.l.b16 %v2441
        %v3873 = vunpack.c.h.b16 %v2441
        %v3874 = vunpack.c.l.b16 %v2442
        %v3875 = vunpack.c.h.b16 %v2442
        %v3876 = vunpack.c.l.b16 %v2443
        %v3877 = vunpack.c.h.b16 %v2443
        %v3878 = vunpack.c.l.b16 %v2444
        %v3879 = vunpack.c.h.b16 %v2444
        %v3880 = vunpack.c.l.b16 %v2445
        %v3881 = vunpack.c.h.b16 %v2445
        %v3882 = vunpack.c.l.b16 %v2446
        %v3883 = vunpack.c.h.b16 %v2446
        %v3884 = vunpack.c.l.b16 %v2447
        %v3885 = vunpack.c.h.b16 %v2447
        %v3886 = vunpack.c.l.b16 %v2448
        %v3887 = vunpack.c.h.b16 %v2448
        %v3888 = vunpack.c.l.b16 %v2449
        %v3889 = vunpack.c.h.b16 %v2449
        %v3890 = vunpack.c.l.b16 %v2450
        %v3891 = vunpack.c.h.b16 %v2450
        %v3892 = vunpack.c.l.b16 %v2451
        %v3893 = vunpack.c.h.b16 %v2451
        %v3894 = vunpack.c.l.b16 %v2452
        %v3895 = vunpack.c.h.b16 %v2452
        %v3896 = vunpack.c.l.b16 %v2453
        %v3897 = vunpack.c.h.b16 %v2453
        %v3898 = vunpack.c.l.b16 %v2454
        %v3899 = vunpack.c.h.b16 %v2454
        %v3900 = vunpack.c.l.b16 %v2455
        %v3901 = vunpack.c.h.b16 %v2455
        %v3902 = vunpack.c.l.b16 %v2456
        %v3903 = vunpack.c.h.b16 %v2456
        %v3904 = vunpack.c.l.b16 %v2457
        %v3905 = vunpack.c.h.b16 %v2457
        %v3906 = vunpack.c.l.b16 %v2458
        %v3907 = vunpack.c.h.b16 %v2458
        %v3908 = vunpack.c.l.b16 %v2459
        %v3909 = vunpack.c.h.b16 %v2459
        %v3910 = vunpack.c.l.b16 %v2460
        %v3911 = vunpack.c.h.b16 %v2460
        %v3912 = vunpack.c.l.b16 %v2461
        %v3913 = vunpack.c.h.b16 %v2461
        %v3914 = vunpack.c.l.b16 %v2462
        %v3915 = vunpack.c.h.b16 %v2462
        %v3916 = vunpack.c.l.b16 %v2463
        %v3917 = vunpack.c.h.b16 %v2463
        %v3918 = vunpack.c.l.b16 %v2464
        %v3919 = vunpack.c.h.b16 %v2464
        %v3920 = vunpack.c.l.b16 %v2465
        %v3921 = vunpack.c.h.b16 %v2465
        %v3922 = vunpack.c.l.b16 %v2466
        %v3923 = vunpack.c.h.b16 %v2466
        %v3924 = vunpack.c.l.b16 %v2467
        %v3925 = vunpack.c.h.b16 %v2467
        %v3926 = vunpack.c.l.b16 %v2468
        %v3927 = vunpack.c.h.b16 %v2468
        %v3928 = vunpack.c.l.b16 %v2469
        %v3929 = vunpack.c.h.b16 %v2469
        %v3930 = vunpack.c.l.b16 %v2470
        %v3931 = vunpack.c.h.b16 %v2470
        %v3932 = vunpack.c.l.b16 %v2471
        %v3933 = vunpack.c.h.b16 %v2471
        %v3934 = vunpack.c.l.b16 %v2472
        %v3935 = vunpack.c.h.b16 %v2472
        %v3936 = vunpack.c.l.b16 %v2473
        %v3937 = vunpack.c.h.b16 %v2473
        %v3938 = vunpack.c.l.b16 %v2474
        %v3939 = vunpack.c.h.b16 %v2474
        %v3940 = vunpack.c.l.b16 %v2475
        %v3941 = vunpack.c.h.b16 %v2475
        %v3942 = vunpack.c.l.b16 %v2476
        %v3943 = vunpack.c.h.b16 %v2476
        %v3944 = vunpack.c.l.b16 %v2477
        %v3945 = vunpack.c.h.b16 %v2477
        %v3946 = vunpack.c.l.b16 %v2478
        %v3947 = vunpack.c.h.b16 %v2478
        %v3948 = vunpack.c.l.b16 %v2479
        %v3949 = vunpack.c.h.b16 %v2479
        %v3950 = vunpack.c.l.b16 %v2480
        %v3951 = vunpack.c.h.b16 %v2480
        %v3952 = vunpack.c.l.b16 %v2481
        %v3953 = vunpack.c.h.b16 %v2481
        %v3954 = vunpack.c.l.b16 %v2482
        %v3955 = vunpack.c.h.b16 %v2482
        %v3956 = vunpack.c.l.b16 %v2483
        %v3957 = vunpack.c.h.b16 %v2483
        %v3958 = vunpack.c.l.b16 %v2484
        %v3959 = vunpack.c.h.b16 %v2484
        %v3960 = vunpack.c.l.b16 %v2485
        %v3961 = vunpack.c.h.b16 %v2485
        %v3962 = vunpack.c.l.b16 %v2486
        %v3963 = vunpack.c.h.b16 %v2486
        %v3964 = vunpack.c.l.b16 %v2487
        %v3965 = vunpack.c.h.b16 %v2487
        %v3966 = vunpack.c.l.b16 %v2488
        %v3967 = vunpack.c.h.b16 %v2488
        %v3968 = vunpack.c.l.b16 %v2489
        %v3969 = vunpack.c.h.b16 %v2489
        %v3970 = vunpack.c.l.b16 %v2490
        %v3971 = vunpack.c.h.b16 %v2490
        %v3972 = vunpack.c.l.b16 %v2491
        %v3973 = vunpack.c.h.b16 %v2491
        %v3974 = vunpack.c.l.b16 %v2492
        %v3975 = vunpack.c.h.b16 %v2492
        %v3976 = vunpack.c.l.b16 %v2493
        %v3977 = vunpack.c.h.b16 %v2493
        %v3978 = vunpack.c.l.b16 %v2494
        %v3979 = vunpack.c.h.b16 %v2494
        %v3980 = vunpack.c.l.b16 %v2495
        %v3981 = vunpack.c.h.b16 %v2495
        %v3982 = vunpack.c.l.b16 %v2496
        %v3983 = vunpack.c.h.b16 %v2496
        %v3984 = vunpack.c.l.b16 %v2497
        %v3985 = vunpack.c.h.b16 %v2497
        %v3986 = vunpack.c.l.b16 %v2498
        %v3987 = vunpack.c.h.b16 %v2498
        %v3988 = vunpack.c.l.b16 %v2499
        %v3989 = vunpack.c.h.b16 %v2499
        %v3990 = vunpack.c.l.b16 %v2500
        %v3991 = vunpack.c.h.b16 %v2500
        %v3992 = vunpack.c.l.b16 %v2501
        %v3993 = vunpack.c.h.b16 %v2501
        %v3994 = vunpack.c.l.b16 %v2502
        %v3995 = vunpack.c.h.b16 %v2502
        %v3996 = vunpack.c.l.b16 %v2503
        %v3997 = vunpack.c.h.b16 %v2503
        %v3998 = vunpack.c.l.b16 %v2504
        %v3999 = vunpack.c.h.b16 %v2504
        %v4000 = vunpack.c.l.b16 %v2505
        %v4001 = vunpack.c.h.b16 %v2505
        %v4002 = vunpack.c.l.b16 %v2506
        %v4003 = vunpack.c.h.b16 %v2506
        %v4004 = vunpack.c.l.b16 %v2507
        %v4005 = vunpack.c.h.b16 %v2507
        %v4006 = vunpack.c.l.b16 %v2508
        %v4007 = vunpack.c.h.b16 %v2508
        %v4008 = vunpack.c.l.b16 %v2509
        %v4009 = vunpack.c.h.b16 %v2509
        %v4010 = vunpack.c.l.b16 %v2510
        %v4011 = vunpack.c.h.b16 %v2510
        %v4012 = vunpack.c.l.b16 %v2511
        %v4013 = vunpack.c.h.b16 %v2511
        %v4014 = vunpack.c.l.b16 %v2512
        %v4015 = vunpack.c.h.b16 %v2512
        %v4016 = vunpack.c.l.b16 %v2513
        %v4017 = vunpack.c.h.b16 %v2513
        %v4018 = vunpack.c.l.b16 %v2514
        %v4019 = vunpack.c.h.b16 %v2514
        %v4020 = vunpack.c.l.b16 %v2515
        %v4021 = vunpack.c.h.b16 %v2515
        %v4022 = vunpack.c.l.b16 %v2516
        %v4023 = vunpack.c.h.b16 %v2516
        %v4024 = vunpack.c.l.b16 %v2517
        %v4025 = vunpack.c.h.b16 %v2517
        %v4026 = vunpack.c.l.b16 %v2518
        %v4027 = vunpack.c.h.b16 %v2518
        %v4028 = vunpack.c.l.b16 %v2519
        %v4029 = vunpack.c.h.b16 %v2519
        %v4030 = vunpack.c.l.b16 %v2520
        %v4031 = vunpack.c.h.b16 %v2520
        %v4032 = vunpack.c.l.b16 %v2521
        %v4033 = vunpack.c.h.b16 %v2521
        %v4034 = vunpack.c.l.b16 %v2522
        %v4035 = vunpack.c.h.b16 %v2522
        %v4036 = vunpack.c.l.b16 %v2523
        %v4037 = vunpack.c.h.b16 %v2523
        %v4038 = vunpack.c.l.b16 %v2524
        %v4039 = vunpack.c.h.b16 %v2524
        %v4040 = vunpack.c.l.b16 %v2525
        %v4041 = vunpack.c.h.b16 %v2525
        %v4042 = vunpack.c.l.b16 %v2526
        %v4043 = vunpack.c.h.b16 %v2526
        %v4044 = vunpack.c.l.b16 %v2527
        %v4045 = vunpack.c.h.b16 %v2527
        %v4046 = vunpack.c.l.b16 %v2528
        %v4047 = vunpack.c.h.b16 %v2528
        %v4048 = vunpack.c.l.b16 %v2529
        %v4049 = vunpack.c.h.b16 %v2529
        %v4050 = vunpack.c.l.b16 %v2530
        %v4051 = vunpack.c.h.b16 %v2530
        %v4052 = vunpack.c.l.b16 %v2531
        %v4053 = vunpack.c.h.b16 %v2531
        %v4054 = vunpack.c.l.b16 %v2532
        %v4055 = vunpack.c.h.b16 %v2532
        %v4056 = vunpack.c.l.b16 %v2533
        %v4057 = vunpack.c.h.b16 %v2533
        %v4058 = vunpack.c.l.b16 %v2534
        %v4059 = vunpack.c.h.b16 %v2534
        %v4060 = vunpack.c.l.b16 %v2535
        %v4061 = vunpack.c.h.b16 %v2535
        %v4062 = vunpack.c.l.b16 %v2536
        %v4063 = vunpack.c.h.b16 %v2536
        %v4064 = vunpack.c.l.b16 %v2537
        %v4065 = vunpack.c.h.b16 %v2537
        %v4066 = vunpack.c.l.b16 %v2538
        %v4067 = vunpack.c.h.b16 %v2538
        %v4068 = vunpack.c.l.b16 %v2539
        %v4069 = vunpack.c.h.b16 %v2539
        %v4070 = vunpack.c.l.b16 %v2540
        %v4071 = vunpack.c.h.b16 %v2540
        %v4072 = vunpack.c.l.b16 %v2541
        %v4073 = vunpack.c.h.b16 %v2541
        %v4074 = vunpack.c.l.b16 %v2542
        %v4075 = vunpack.c.h.b16 %v2542
        %v4076 = vunpack.c.l.b16 %v2543
        %v4077 = vunpack.c.h.b16 %v2543
        %v4078 = vunpack.c.l.b16 %v2544
        %v4079 = vunpack.c.h.b16 %v2544
        %v4080 = vunpack.c.l.b16 %v2545
        %v4081 = vunpack.c.h.b16 %v2545
        %v4082 = vunpack.c.l.b16 %v2546
        %v4083 = vunpack.c.h.b16 %v2546
        %v4084 = vunpack.c.l.b16 %v2547
        %v4085 = vunpack.c.h.b16 %v2547
        %v4086 = vunpack.c.l.b16 %v2548
        %v4087 = vunpack.c.h.b16 %v2548
        %v4088 = vunpack.c.l.b16 %v2549
        %v4089 = vunpack.c.h.b16 %v2549
        %v4090 = vunpack.c.l.b16 %v2550
        %v4091 = vunpack.c.h.b16 %v2550
        %v4092 = vunpack.c.l.b16 %v2551
        %v4093 = vunpack.c.h.b16 %v2551
        %v4094 = vunpack.c.l.b16 %v2552
        %v4095 = vunpack.c.h.b16 %v2552
        %v4096 = vunpack.c.l.b16 %v2553
        %v4097 = vunpack.c.h.b16 %v2553
        %v4098 = vunpack.c.l.b16 %v2554
        %v4099 = vunpack.c.h.b16 %v2554
        %v4100 = vunpack.c.l.b16 %v2555
        %v4101 = vunpack.c.h.b16 %v2555
        %v4102 = vunpack.c.l.b16 %v2556
        %v4103 = vunpack.c.h.b16 %v2556
        %v4104 = vunpack.c.l.b16 %v2557
        %v4105 = vunpack.c.h.b16 %v2557
        %v4106 = vunpack.c.l.b16 %v2558
        %v4107 = vunpack.c.h.b16 %v2558
        %v4108 = vunpack.c.l.b16 %v2559
        %v4109 = vunpack.c.h.b16 %v2559
        %v4110 = vunpack.c.l.b16 %v2560
        %v4111 = vunpack.c.h.b16 %v2560
        %v4112 = vunpack.c.l.b16 %v2561
        %v4113 = vunpack.c.h.b16 %v2561
        %v4114 = vunpack.c.l.b16 %v2562
        %v4115 = vunpack.c.h.b16 %v2562
        %v4116 = vunpack.c.l.b16 %v2563
        %v4117 = vunpack.c.h.b16 %v2563
        %v4118 = vunpack.c.l.b16 %v2564
        %v4119 = vunpack.c.h.b16 %v2564
        %v4120 = vunpack.c.l.b16 %v2565
        %v4121 = vunpack.c.h.b16 %v2565
        %v4122 = vunpack.c.l.b16 %v2566
        %v4123 = vunpack.c.h.b16 %v2566
        %v4124 = vunpack.c.l.b16 %v2567
        %v4125 = vunpack.c.h.b16 %v2567
        %v4126 = vunpack.c.l.b16 %v2568
        %v4127 = vunpack.c.h.b16 %v2568
        %v4128 = vunpack.c.l.b16 %v2569
        %v4129 = vunpack.c.h.b16 %v2569
        %v4130 = vunpack.c.l.b16 %v2570
        %v4131 = vunpack.c.h.b16 %v2570
        %v4132 = vunpack.c.l.b16 %v2571
        %v4133 = vunpack.c.h.b16 %v2571
        %v4134 = vunpack.c.l.b16 %v2572
        %v4135 = vunpack.c.h.b16 %v2572
        %v4136 = vunpack.c.l.b16 %v2573
        %v4137 = vunpack.c.h.b16 %v2573
        %v4138 = vunpack.c.l.b16 %v2574
        %v4139 = vunpack.c.h.b16 %v2574
        %v4140 = vunpack.c.l.b16 %v2575
        %v4141 = vunpack.c.h.b16 %v2575
        %v4142 = vunpack.c.l.b16 %v2576
        %v4143 = vunpack.c.h.b16 %v2576
        %v4144 = vunpack.c.l.b16 %v2577
        %v4145 = vunpack.c.h.b16 %v2577
        %v4146 = vunpack.c.l.b16 %v2578
        %v4147 = vunpack.c.h.b16 %v2578
        %v4148 = vunpack.c.l.b16 %v2579
        %v4149 = vunpack.c.h.b16 %v2579
        %v4150 = vunpack.c.l.b16 %v2580
        %v4151 = vunpack.c.h.b16 %v2580
        %v4152 = vunpack.c.l.b16 %v2581
        %v4153 = vunpack.c.h.b16 %v2581
        %v4154 = vunpack.c.l.b16 %v2582
        %v4155 = vunpack.c.h.b16 %v2582
        %v4156 = vunpack.c.l.b16 %v2583
        %v4157 = vunpack.c.h.b16 %v2583
        %v4158 = vunpack.c.l.b16 %v2584
        %v4159 = vunpack.c.h.b16 %v2584
        %v4160 = vunpack.c.l.b16 %v2585
        %v4161 = vunpack.c.h.b16 %v2585
        %v4162 = vunpack.c.l.b16 %v2586
        %v4163 = vunpack.c.h.b16 %v2586
        %v4164 = vunpack.c.l.b16 %v2587
        %v4165 = vunpack.c.h.b16 %v2587
        %v4166 = vpack.c.b16 %v3150, %v3142
        %v4167 = vpack.c.b16 %v3151, %v3143
        %v4168 = vpack.c.b16 %v3152, %v3144
        %v4169 = vpack.c.b16 %v3153, %v3145
        %v4170 = vpack.c.b16 %v3154, %v3146
        %v4171 = vpack.c.b16 %v3155, %v3147
        %v4172 = vpack.c.b16 %v3156, %v3148
        %v4173 = vpack.c.b16 %v3157, %v3149
        %v4174 = vpack.c.b16 %v3166, %v3158
        %v4175 = vpack.c.b16 %v3167, %v3159
        %v4176 = vpack.c.b16 %v3168, %v3160
        %v4177 = vpack.c.b16 %v3169, %v3161
        %v4178 = vpack.c.b16 %v3170, %v3162
        %v4179 = vpack.c.b16 %v3171, %v3163
        %v4180 = vpack.c.b16 %v3172, %v3164
        %v4181 = vpack.c.b16 %v3173, %v3165
        %v4182 = vpack.c.b16 %v3182, %v3174
        %v4183 = vpack.c.b16 %v3183, %v3175
        %v4184 = vpack.c.b16 %v3184, %v3176
        %v4185 = vpack.c.b16 %v3185, %v3177
        %v4186 = vpack.c.b16 %v3186, %v3178
        %v4187 = vpack.c.b16 %v3187, %v3179
        %v4188 = vpack.c.b16 %v3188, %v3180
        %v4189 = vpack.c.b16 %v3189, %v3181
        %v4190 = vpack.c.b16 %v3198, %v3190
        %v4191 = vpack.c.b16 %v3199, %v3191
        %v4192 = vpack.c.b16 %v3200, %v3192
        %v4193 = vpack.c.b16 %v3201, %v3193
        %v4194 = vpack.c.b16 %v3202, %v3194
        %v4195 = vpack.c.b16 %v3203, %v3195
        %v4196 = vpack.c.b16 %v3204, %v3196
        %v4197 = vpack.c.b16 %v3205, %v3197
        %v4198 = vpack.c.b16 %v3214, %v3206
        %v4199 = vpack.c.b16 %v3215, %v3207
        %v4200 = vpack.c.b16 %v3216, %v3208
        %v4201 = vpack.c.b16 %v3217, %v3209
        %v4202 = vpack.c.b16 %v3218, %v3210
        %v4203 = vpack.c.b16 %v3219, %v3211
        %v4204 = vpack.c.b16 %v3220, %v3212
        %v4205 = vpack.c.b16 %v3221, %v3213
        %v4206 = vpack.c.b16 %v3230, %v3222
        %v4207 = vpack.c.b16 %v3231, %v3223
        %v4208 = vpack.c.b16 %v3232, %v3224
        %v4209 = vpack.c.b16 %v3233, %v3225
        %v4210 = vpack.c.b16 %v3234, %v3226
        %v4211 = vpack.c.b16 %v3235, %v3227
        %v4212 = vpack.c.b16 %v3236, %v3228
        %v4213 = vpack.c.b16 %v3237, %v3229
        %v4214 = vpack.c.b16 %v3246, %v3238
        %v4215 = vpack.c.b16 %v3247, %v3239
        %v4216 = vpack.c.b16 %v3248, %v3240
        %v4217 = vpack.c.b16 %v3249, %v3241
        %v4218 = vpack.c.b16 %v3250, %v3242
        %v4219 = vpack.c.b16 %v3251, %v3243
        %v4220 = vpack.c.b16 %v3252, %v3244
        %v4221 = vpack.c.b16 %v3253, %v3245
        %v4222 = vpack.c.b16 %v3262, %v3254
        %v4223 = vpack.c.b16 %v3263, %v3255
        %v4224 = vpack.c.b16 %v3264, %v3256
        %v4225 = vpack.c.b16 %v3265, %v3257
        %v4226 = vpack.c.b16 %v3266, %v3258
        %v4227 = vpack.c.b16 %v3267, %v3259
        %v4228 = vpack.c.b16 %v3268, %v3260
        %v4229 = vpack.c.b16 %v3269, %v3261
        %v4230 = vpack.c.b16 %v3278, %v3270
        %v4231 = vpack.c.b16 %v3279, %v3271
        %v4232 = vpack.c.b16 %v3280, %v3272
        %v4233 = vpack.c.b16 %v3281, %v3273
        %v4234 = vpack.c.b16 %v3282, %v3274
        %v4235 = vpack.c.b16 %v3283, %v3275
        %v4236 = vpack.c.b16 %v3284, %v3276
        %v4237 = vpack.c.b16 %v3285, %v3277
        %v4238 = vpack.c.b16 %v3294, %v3286
        %v4239 = vpack.c.b16 %v3295, %v3287
        %v4240 = vpack.c.b16 %v3296, %v3288
        %v4241 = vpack.c.b16 %v3297, %v3289
        %v4242 = vpack.c.b16 %v3298, %v3290
        %v4243 = vpack.c.b16 %v3299, %v3291
        %v4244 = vpack.c.b16 %v3300, %v3292
        %v4245 = vpack.c.b16 %v3301, %v3293
        %v4246 = vpack.c.b16 %v3310, %v3302
        %v4247 = vpack.c.b16 %v3311, %v3303
        %v4248 = vpack.c.b16 %v3312, %v3304
        %v4249 = vpack.c.b16 %v3313, %v3305
        %v4250 = vpack.c.b16 %v3314, %v3306
        %v4251 = vpack.c.b16 %v3315, %v3307
        %v4252 = vpack.c.b16 %v3316, %v3308
        %v4253 = vpack.c.b16 %v3317, %v3309
        %v4254 = vpack.c.b16 %v3326, %v3318
        %v4255 = vpack.c.b16 %v3327, %v3319
        %v4256 = vpack.c.b16 %v3328, %v3320
        %v4257 = vpack.c.b16 %v3329, %v3321
        %v4258 = vpack.c.b16 %v3330, %v3322
        %v4259 = vpack.c.b16 %v3331, %v3323
        %v4260 = vpack.c.b16 %v3332, %v3324
        %v4261 = vpack.c.b16 %v3333, %v3325
        %v4262 = vpack.c.b16 %v3342, %v3334
        %v4263 = vpack.c.b16 %v3343, %v3335
        %v4264 = vpack.c.b16 %v3344, %v3336
        %v4265 = vpack.c.b16 %v3345, %v3337
        %v4266 = vpack.c.b16 %v3346, %v3338
        %v4267 = vpack.c.b16 %v3347, %v3339
        %v4268 = vpack.c.b16 %v3348, %v3340
        %v4269 = vpack.c.b16 %v3349, %v3341
        %v4270 = vpack.c.b16 %v3358, %v3350
        %v4271 = vpack.c.b16 %v3359, %v3351
        %v4272 = vpack.c.b16 %v3360, %v3352
        %v4273 = vpack.c.b16 %v3361, %v3353
        %v4274 = vpack.c.b16 %v3362, %v3354
        %v4275 = vpack.c.b16 %v3363, %v3355
        %v4276 = vpack.c.b16 %v3364, %v3356
        %v4277 = vpack.c.b16 %v3365, %v3357
        %v4278 = vpack.c.b16 %v3374, %v3366
        %v4279 = vpack.c.b16 %v3375, %v3367
        %v4280 = vpack.c.b16 %v3376, %v3368
        %v4281 = vpack.c.b16 %v3377, %v3369
        %v4282 = vpack.c.b16 %v3378, %v3370
        %v4283 = vpack.c.b16 %v3379, %v3371
        %v4284 = vpack.c.b16 %v3380, %v3372
        %v4285 = vpack.c.b16 %v3381, %v3373
        %v4286 = vpack.c.b16 %v3390, %v3382
        %v4287 = vpack.c.b16 %v3391, %v3383
        %v4288 = vpack.c.b16 %v3392, %v3384
        %v4289 = vpack.c.b16 %v3393, %v3385
        %v4290 = vpack.c.b16 %v3394, %v3386
        %v4291 = vpack.c.b16 %v3395, %v3387
        %v4292 = vpack.c.b16 %v3396, %v3388
        %v4293 = vpack.c.b16 %v3397, %v3389
        %v4294 = vpack.c.b16 %v3406, %v3398
        %v4295 = vpack.c.b16 %v3407, %v3399
        %v4296 = vpack.c.b16 %v3408, %v3400
        %v4297 = vpack.c.b16 %v3409, %v3401
        %v4298 = vpack.c.b16 %v3410, %v3402
        %v4299 = vpack.c.b16 %v3411, %v3403
        %v4300 = vpack.c.b16 %v3412, %v3404
        %v4301 = vpack.c.b16 %v3413, %v3405
        %v4302 = vpack.c.b16 %v3422, %v3414
        %v4303 = vpack.c.b16 %v3423, %v3415
        %v4304 = vpack.c.b16 %v3424, %v3416
        %v4305 = vpack.c.b16 %v3425, %v3417
        %v4306 = vpack.c.b16 %v3426, %v3418
        %v4307 = vpack.c.b16 %v3427, %v3419
        %v4308 = vpack.c.b16 %v3428, %v3420
        %v4309 = vpack.c.b16 %v3429, %v3421
        %v4310 = vpack.c.b16 %v3438, %v3430
        %v4311 = vpack.c.b16 %v3439, %v3431
        %v4312 = vpack.c.b16 %v3440, %v3432
        %v4313 = vpack.c.b16 %v3441, %v3433
        %v4314 = vpack.c.b16 %v3442, %v3434
        %v4315 = vpack.c.b16 %v3443, %v3435
        %v4316 = vpack.c.b16 %v3444, %v3436
        %v4317 = vpack.c.b16 %v3445, %v3437
        %v4318 = vpack.c.b16 %v3454, %v3446
        %v4319 = vpack.c.b16 %v3455, %v3447
        %v4320 = vpack.c.b16 %v3456, %v3448
        %v4321 = vpack.c.b16 %v3457, %v3449
        %v4322 = vpack.c.b16 %v3458, %v3450
        %v4323 = vpack.c.b16 %v3459, %v3451
        %v4324 = vpack.c.b16 %v3460, %v3452
        %v4325 = vpack.c.b16 %v3461, %v3453
        %v4326 = vpack.c.b16 %v3470, %v3462
        %v4327 = vpack.c.b16 %v3471, %v3463
        %v4328 = vpack.c.b16 %v3472, %v3464
        %v4329 = vpack.c.b16 %v3473, %v3465
        %v4330 = vpack.c.b16 %v3474, %v3466
        %v4331 = vpack.c.b16 %v3475, %v3467
        %v4332 = vpack.c.b16 %v3476, %v3468
        %v4333 = vpack.c.b16 %v3477, %v3469
        %v4334 = vpack.c.b16 %v3486, %v3478
        %v4335 = vpack.c.b16 %v3487, %v3479
        %v4336 = vpack.c.b16 %v3488, %v3480
        %v4337 = vpack.c.b16 %v3489, %v3481
        %v4338 = vpack.c.b16 %v3490, %v3482
        %v4339 = vpack.c.b16 %v3491, %v3483
        %v4340 = vpack.c.b16 %v3492, %v3484
        %v4341 = vpack.c.b16 %v3493, %v3485
        %v4342 = vpack.c.b16 %v3502, %v3494
        %v4343 = vpack.c.b16 %v3503, %v3495
        %v4344 = vpack.c.b16 %v3504, %v3496
        %v4345 = vpack.c.b16 %v3505, %v3497
        %v4346 = vpack.c.b16 %v3506, %v3498
        %v4347 = vpack.c.b16 %v3507, %v3499
        %v4348 = vpack.c.b16 %v3508, %v3500
        %v4349 = vpack.c.b16 %v3509, %v3501
        %v4350 = vpack.c.b16 %v3518, %v3510
        %v4351 = vpack.c.b16 %v3519, %v3511
        %v4352 = vpack.c.b16 %v3520, %v3512
        %v4353 = vpack.c.b16 %v3521, %v3513
        %v4354 = vpack.c.b16 %v3522, %v3514
        %v4355 = vpack.c.b16 %v3523, %v3515
        %v4356 = vpack.c.b16 %v3524, %v3516
        %v4357 = vpack.c.b16 %v3525, %v3517
        %v4358 = vpack.c.b16 %v3534, %v3526
        %v4359 = vpack.c.b16 %v3535, %v3527
        %v4360 = vpack.c.b16 %v3536, %v3528
        %v4361 = vpack.c.b16 %v3537, %v3529
        %v4362 = vpack.c.b16 %v3538, %v3530
        %v4363 = vpack.c.b16 %v3539, %v3531
        %v4364 = vpack.c.b16 %v3540, %v3532
        %v4365 = vpack.c.b16 %v3541, %v3533
        %v4366 = vpack.c.b16 %v3550, %v3542
        %v4367 = vpack.c.b16 %v3551, %v3543
        %v4368 = vpack.c.b16 %v3552, %v3544
        %v4369 = vpack.c.b16 %v3553, %v3545
        %v4370 = vpack.c.b16 %v3554, %v3546
        %v4371 = vpack.c.b16 %v3555, %v3547
        %v4372 = vpack.c.b16 %v3556, %v3548
        %v4373 = vpack.c.b16 %v3557, %v3549
        %v4374 = vpack.c.b16 %v3566, %v3558
        %v4375 = vpack.c.b16 %v3567, %v3559
        %v4376 = vpack.c.b16 %v3568, %v3560
        %v4377 = vpack.c.b16 %v3569, %v3561
        %v4378 = vpack.c.b16 %v3570, %v3562
        %v4379 = vpack.c.b16 %v3571, %v3563
        %v4380 = vpack.c.b16 %v3572, %v3564
        %v4381 = vpack.c.b16 %v3573, %v3565
        %v4382 = vpack.c.b16 %v3582, %v3574
        %v4383 = vpack.c.b16 %v3583, %v3575
        %v4384 = vpack.c.b16 %v3584, %v3576
        %v4385 = vpack.c.b16 %v3585, %v3577
        %v4386 = vpack.c.b16 %v3586, %v3578
        %v4387 = vpack.c.b16 %v3587, %v3579
        %v4388 = vpack.c.b16 %v3588, %v3580
        %v4389 = vpack.c.b16 %v3589, %v3581
        %v4390 = vpack.c.b16 %v3598, %v3590
        %v4391 = vpack.c.b16 %v3599, %v3591
        %v4392 = vpack.c.b16 %v3600, %v3592
        %v4393 = vpack.c.b16 %v3601, %v3593
        %v4394 = vpack.c.b16 %v3602, %v3594
        %v4395 = vpack.c.b16 %v3603, %v3595
        %v4396 = vpack.c.b16 %v3604, %v3596
        %v4397 = vpack.c.b16 %v3605, %v3597
        %v4398 = vpack.c.b16 %v3614, %v3606
        %v4399 = vpack.c.b16 %v3615, %v3607
        %v4400 = vpack.c.b16 %v3616, %v3608
        %v4401 = vpack.c.b16 %v3617, %v3609
        %v4402 = vpack.c.b16 %v3618, %v3610
        %v4403 = vpack.c.b16 %v3619, %v3611
        %v4404 = vpack.c.b16 %v3620, %v3612
        %v4405 = vpack.c.b16 %v3621, %v3613
        %v4406 = vpack.c.b16 %v3630, %v3622
        %v4407 = vpack.c.b16 %v3631, %v3623
        %v4408 = vpack.c.b16 %v3632, %v3624
        %v4409 = vpack.c.b16 %v3633, %v3625
        %v4410 = vpack.c.b16 %v3634, %v3626
        %v4411 = vpack.c.b16 %v3635, %v3627
        %v4412 = vpack.c.b16 %v3636, %v3628
        %v4413 = vpack.c.b16 %v3637, %v3629
        %v4414 = vpack.c.b16 %v3646, %v3638
        %v4415 = vpack.c.b16 %v3647, %v3639
        %v4416 = vpack.c.b16 %v3648, %v3640
        %v4417 = vpack.c.b16 %v3649, %v3641
        %v4418 = vpack.c.b16 %v3650, %v3642
        %v4419 = vpack.c.b16 %v3651, %v3643
        %v4420 = vpack.c.b16 %v3652, %v3644
        %v4421 = vpack.c.b16 %v3653, %v3645
        %v4422 = vpack.c.b16 %v3662, %v3654
        %v4423 = vpack.c.b16 %v3663, %v3655
        %v4424 = vpack.c.b16 %v3664, %v3656
        %v4425 = vpack.c.b16 %v3665, %v3657
        %v4426 = vpack.c.b16 %v3666, %v3658
        %v4427 = vpack.c.b16 %v3667, %v3659
        %v4428 = vpack.c.b16 %v3668, %v3660
        %v4429 = vpack.c.b16 %v3669, %v3661
        %v4430 = vpack.c.b16 %v3678, %v3670
        %v4431 = vpack.c.b16 %v3679, %v3671
        %v4432 = vpack.c.b16 %v3680, %v3672
        %v4433 = vpack.c.b16 %v3681, %v3673
        %v4434 = vpack.c.b16 %v3682, %v3674
        %v4435 = vpack.c.b16 %v3683, %v3675
        %v4436 = vpack.c.b16 %v3684, %v3676
        %v4437 = vpack.c.b16 %v3685, %v3677
        %v4438 = vpack.c.b16 %v3694, %v3686
        %v4439 = vpack.c.b16 %v3695, %v3687
        %v4440 = vpack.c.b16 %v3696, %v3688
        %v4441 = vpack.c.b16 %v3697, %v3689
        %v4442 = vpack.c.b16 %v3698, %v3690
        %v4443 = vpack.c.b16 %v3699, %v3691
        %v4444 = vpack.c.b16 %v3700, %v3692
        %v4445 = vpack.c.b16 %v3701, %v3693
        %v4446 = vpack.c.b16 %v3710, %v3702
        %v4447 = vpack.c.b16 %v3711, %v3703
        %v4448 = vpack.c.b16 %v3712, %v3704
        %v4449 = vpack.c.b16 %v3713, %v3705
        %v4450 = vpack.c.b16 %v3714, %v3706
        %v4451 = vpack.c.b16 %v3715, %v3707
        %v4452 = vpack.c.b16 %v3716, %v3708
        %v4453 = vpack.c.b16 %v3717, %v3709
        %v4454 = vpack.c.b16 %v3726, %v3718
        %v4455 = vpack.c.b16 %v3727, %v3719
        %v4456 = vpack.c.b16 %v3728, %v3720
        %v4457 = vpack.c.b16 %v3729, %v3721
        %v4458 = vpack.c.b16 %v3730, %v3722
        %v4459 = vpack.c.b16 %v3731, %v3723
        %v4460 = vpack.c.b16 %v3732, %v3724
        %v4461 = vpack.c.b16 %v3733, %v3725
        %v4462 = vpack.c.b16 %v3742, %v3734
        %v4463 = vpack.c.b16 %v3743, %v3735
        %v4464 = vpack.c.b16 %v3744, %v3736
        %v4465 = vpack.c.b16 %v3745, %v3737
        %v4466 = vpack.c.b16 %v3746, %v3738
        %v4467 = vpack.c.b16 %v3747, %v3739
        %v4468 = vpack.c.b16 %v3748, %v3740
        %v4469 = vpack.c.b16 %v3749, %v3741
        %v4470 = vpack.c.b16 %v3758, %v3750
        %v4471 = vpack.c.b16 %v3759, %v3751
        %v4472 = vpack.c.b16 %v3760, %v3752
        %v4473 = vpack.c.b16 %v3761, %v3753
        %v4474 = vpack.c.b16 %v3762, %v3754
        %v4475 = vpack.c.b16 %v3763, %v3755
        %v4476 = vpack.c.b16 %v3764, %v3756
        %v4477 = vpack.c.b16 %v3765, %v3757
        %v4478 = vpack.c.b16 %v3774, %v3766
        %v4479 = vpack.c.b16 %v3775, %v3767
        %v4480 = vpack.c.b16 %v3776, %v3768
        %v4481 = vpack.c.b16 %v3777, %v3769
        %v4482 = vpack.c.b16 %v3778, %v3770
        %v4483 = vpack.c.b16 %v3779, %v3771
        %v4484 = vpack.c.b16 %v3780, %v3772
        %v4485 = vpack.c.b16 %v3781, %v3773
        %v4486 = vpack.c.b16 %v3790, %v3782
        %v4487 = vpack.c.b16 %v3791, %v3783
        %v4488 = vpack.c.b16 %v3792, %v3784
        %v4489 = vpack.c.b16 %v3793, %v3785
        %v4490 = vpack.c.b16 %v3794, %v3786
        %v4491 = vpack.c.b16 %v3795, %v3787
        %v4492 = vpack.c.b16 %v3796, %v3788
        %v4493 = vpack.c.b16 %v3797, %v3789
        %v4494 = vpack.c.b16 %v3806, %v3798
        %v4495 = vpack.c.b16 %v3807, %v3799
        %v4496 = vpack.c.b16 %v3808, %v3800
        %v4497 = vpack.c.b16 %v3809, %v3801
        %v4498 = vpack.c.b16 %v3810, %v3802
        %v4499 = vpack.c.b16 %v3811, %v3803
        %v4500 = vpack.c.b16 %v3812, %v3804
        %v4501 = vpack.c.b16 %v3813, %v3805
        %v4502 = vpack.c.b16 %v3822, %v3814
        %v4503 = vpack.c.b16 %v3823, %v3815
        %v4504 = vpack.c.b16 %v3824, %v3816
        %v4505 = vpack.c.b16 %v3825, %v3817
        %v4506 = vpack.c.b16 %v3826, %v3818
        %v4507 = vpack.c.b16 %v3827, %v3819
        %v4508 = vpack.c.b16 %v3828, %v3820
        %v4509 = vpack.c.b16 %v3829, %v3821
        %v4510 = vpack.c.b16 %v3838, %v3830
        %v4511 = vpack.c.b16 %v3839, %v3831
        %v4512 = vpack.c.b16 %v3840, %v3832
        %v4513 = vpack.c.b16 %v3841, %v3833
        %v4514 = vpack.c.b16 %v3842, %v3834
        %v4515 = vpack.c.b16 %v3843, %v3835
        %v4516 = vpack.c.b16 %v3844, %v3836
        %v4517 = vpack.c.b16 %v3845, %v3837
        %v4518 = vpack.c.b16 %v3854, %v3846
        %v4519 = vpack.c.b16 %v3855, %v3847
        %v4520 = vpack.c.b16 %v3856, %v3848
        %v4521 = vpack.c.b16 %v3857, %v3849
        %v4522 = vpack.c.b16 %v3858, %v3850
        %v4523 = vpack.c.b16 %v3859, %v3851
        %v4524 = vpack.c.b16 %v3860, %v3852
        %v4525 = vpack.c.b16 %v3861, %v3853
        %v4526 = vpack.c.b16 %v3870, %v3862
        %v4527 = vpack.c.b16 %v3871, %v3863
        %v4528 = vpack.c.b16 %v3872, %v3864
        %v4529 = vpack.c.b16 %v3873, %v3865
        %v4530 = vpack.c.b16 %v3874, %v3866
        %v4531 = vpack.c.b16 %v3875, %v3867
        %v4532 = vpack.c.b16 %v3876, %v3868
        %v4533 = vpack.c.b16 %v3877, %v3869
        %v4534 = vpack.c.b16 %v3886, %v3878
        %v4535 = vpack.c.b16 %v3887, %v3879
        %v4536 = vpack.c.b16 %v3888, %v3880
        %v4537 = vpack.c.b16 %v3889, %v3881
        %v4538 = vpack.c.b16 %v3890, %v3882
        %v4539 = vpack.c.b16 %v3891, %v3883
        %v4540 = vpack.c.b16 %v3892, %v3884
        %v4541 = vpack.c.b16 %v3893, %v3885
        %v4542 = vpack.c.b16 %v3902, %v3894
        %v4543 = vpack.c.b16 %v3903, %v3895
        %v4544 = vpack.c.b16 %v3904, %v3896
        %v4545 = vpack.c.b16 %v3905, %v3897
        %v4546 = vpack.c.b16 %v3906, %v3898
        %v4547 = vpack.c.b16 %v3907, %v3899
        %v4548 = vpack.c.b16 %v3908, %v3900
        %v4549 = vpack.c.b16 %v3909, %v3901
        %v4550 = vpack.c.b16 %v3918, %v3910
        %v4551 = vpack.c.b16 %v3919, %v3911
        %v4552 = vpack.c.b16 %v3920, %v3912
        %v4553 = vpack.c.b16 %v3921, %v3913
        %v4554 = vpack.c.b16 %v3922, %v3914
        %v4555 = vpack.c.b16 %v3923, %v3915
        %v4556 = vpack.c.b16 %v3924, %v3916
        %v4557 = vpack.c.b16 %v3925, %v3917
        %v4558 = vpack.c.b16 %v3934, %v3926
        %v4559 = vpack.c.b16 %v3935, %v3927
        %v4560 = vpack.c.b16 %v3936, %v3928
        %v4561 = vpack.c.b16 %v3937, %v3929
        %v4562 = vpack.c.b16 %v3938, %v3930
        %v4563 = vpack.c.b16 %v3939, %v3931
        %v4564 = vpack.c.b16 %v3940, %v3932
        %v4565 = vpack.c.b16 %v3941, %v3933
        %v4566 = vpack.c.b16 %v3950, %v3942
        %v4567 = vpack.c.b16 %v3951, %v3943
        %v4568 = vpack.c.b16 %v3952, %v3944
        %v4569 = vpack.c.b16 %v3953, %v3945
        %v4570 = vpack.c.b16 %v3954, %v3946
        %v4571 = vpack.c.b16 %v3955, %v3947
        %v4572 = vpack.c.b16 %v3956, %v3948
        %v4573 = vpack.c.b16 %v3957, %v3949
        %v4574 = vpack.c.b16 %v3966, %v3958
        %v4575 = vpack.c.b16 %v3967, %v3959
        %v4576 = vpack.c.b16 %v3968, %v3960
        %v4577 = vpack.c.b16 %v3969, %v3961
        %v4578 = vpack.c.b16 %v3970, %v3962
        %v4579 = vpack.c.b16 %v3971, %v3963
        %v4580 = vpack.c.b16 %v3972, %v3964
        %v4581 = vpack.c.b16 %v3973, %v3965
        %v4582 = vpack.c.b16 %v3982, %v3974
        %v4583 = vpack.c.b16 %v3983, %v3975
        %v4584 = vpack.c.b16 %v3984, %v3976
        %v4585 = vpack.c.b16 %v3985, %v3977
        %v4586 = vpack.c.b16 %v3986, %v3978
        %v4587 = vpack.c.b16 %v3987, %v3979
        %v4588 = vpack.c.b16 %v3988, %v3980
        %v4589 = vpack.c.b16 %v3989, %v3981
        %v4590 = vpack.c.b16 %v3998, %v3990
        %v4591 = vpack.c.b16 %v3999, %v3991
        %v4592 = vpack.c.b16 %v4000, %v3992
        %v4593 = vpack.c.b16 %v4001, %v3993
        %v4594 = vpack.c.b16 %v4002, %v3994
        %v4595 = vpack.c.b16 %v4003, %v3995
        %v4596 = vpack.c.b16 %v4004, %v3996
        %v4597 = vpack.c.b16 %v4005, %v3997
        %v4598 = vpack.c.b16 %v4014, %v4006
        %v4599 = vpack.c.b16 %v4015, %v4007
        %v4600 = vpack.c.b16 %v4016, %v4008
        %v4601 = vpack.c.b16 %v4017, %v4009
        %v4602 = vpack.c.b16 %v4018, %v4010
        %v4603 = vpack.c.b16 %v4019, %v4011
        %v4604 = vpack.c.b16 %v4020, %v4012
        %v4605 = vpack.c.b16 %v4021, %v4013
        %v4606 = vpack.c.b16 %v4030, %v4022
        %v4607 = vpack.c.b16 %v4031, %v4023
        %v4608 = vpack.c.b16 %v4032, %v4024
        %v4609 = vpack.c.b16 %v4033, %v4025
        %v4610 = vpack.c.b16 %v4034, %v4026
        %v4611 = vpack.c.b16 %v4035, %v4027
        %v4612 = vpack.c.b16 %v4036, %v4028
        %v4613 = vpack.c.b16 %v4037, %v4029
        %v4614 = vpack.c.b16 %v4046, %v4038
        %v4615 = vpack.c.b16 %v4047, %v4039
        %v4616 = vpack.c.b16 %v4048, %v4040
        %v4617 = vpack.c.b16 %v4049, %v4041
        %v4618 = vpack.c.b16 %v4050, %v4042
        %v4619 = vpack.c.b16 %v4051, %v4043
        %v4620 = vpack.c.b16 %v4052, %v4044
        %v4621 = vpack.c.b16 %v4053, %v4045
        %v4622 = vpack.c.b16 %v4062, %v4054
        %v4623 = vpack.c.b16 %v4063, %v4055
        %v4624 = vpack.c.b16 %v4064, %v4056
        %v4625 = vpack.c.b16 %v4065, %v4057
        %v4626 = vpack.c.b16 %v4066, %v4058
        %v4627 = vpack.c.b16 %v4067, %v4059
        %v4628 = vpack.c.b16 %v4068, %v4060
        %v4629 = vpack.c.b16 %v4069, %v4061
        %v4630 = vpack.c.b16 %v4078, %v4070
        %v4631 = vpack.c.b16 %v4079, %v4071
        %v4632 = vpack.c.b16 %v4080, %v4072
        %v4633 = vpack.c.b16 %v4081, %v4073
        %v4634 = vpack.c.b16 %v4082, %v4074
        %v4635 = vpack.c.b16 %v4083, %v4075
        %v4636 = vpack.c.b16 %v4084, %v4076
        %v4637 = vpack.c.b16 %v4085, %v4077
        %v4638 = vpack.c.b16 %v4094, %v4086
        %v4639 = vpack.c.b16 %v4095, %v4087
        %v4640 = vpack.c.b16 %v4096, %v4088
        %v4641 = vpack.c.b16 %v4097, %v4089
        %v4642 = vpack.c.b16 %v4098, %v4090
        %v4643 = vpack.c.b16 %v4099, %v4091
        %v4644 = vpack.c.b16 %v4100, %v4092
        %v4645 = vpack.c.b16 %v4101, %v4093
        %v4646 = vpack.c.b16 %v4110, %v4102
        %v4647 = vpack.c.b16 %v4111, %v4103
        %v4648 = vpack.c.b16 %v4112, %v4104
        %v4649 = vpack.c.b16 %v4113, %v4105
        %v4650 = vpack.c.b16 %v4114, %v4106
        %v4651 = vpack.c.b16 %v4115, %v4107
        %v4652 = vpack.c.b16 %v4116, %v4108
        %v4653 = vpack.c.b16 %v4117, %v4109
        %v4654 = vpack.c.b16 %v4126, %v4118
        %v4655 = vpack.c.b16 %v4127, %v4119
        %v4656 = vpack.c.b16 %v4128, %v4120
        %v4657 = vpack.c.b16 %v4129, %v4121
        %v4658 = vpack.c.b16 %v4130, %v4122
        %v4659 = vpack.c.b16 %v4131, %v4123
        %v4660 = vpack.c.b16 %v4132, %v4124
        %v4661 = vpack.c.b16 %v4133, %v4125
        %v4662 = vpack.c.b16 %v4142, %v4134
        %v4663 = vpack.c.b16 %v4143, %v4135
        %v4664 = vpack.c.b16 %v4144, %v4136
        %v4665 = vpack.c.b16 %v4145, %v4137
        %v4666 = vpack.c.b16 %v4146, %v4138
        %v4667 = vpack.c.b16 %v4147, %v4139
        %v4668 = vpack.c.b16 %v4148, %v4140
        %v4669 = vpack.c.b16 %v4149, %v4141
        %v4670 = vpack.c.b16 %v4158, %v4150
        %v4671 = vpack.c.b16 %v4159, %v4151
        %v4672 = vpack.c.b16 %v4160, %v4152
        %v4673 = vpack.c.b16 %v4161, %v4153
        %v4674 = vpack.c.b16 %v4162, %v4154
        %v4675 = vpack.c.b16 %v4163, %v4155
        %v4676 = vpack.c.b16 %v4164, %v4156
        %v4677 = vpack.c.b16 %v4165, %v4157
        %5190 = vmatprep.subr.bf16.mxu0 %v4167
        %5191 = vmatpush1.bf16.msra.mxu0 %v4166
        %5192 = vmatprep.subr.bf16.mxu0 %v4175
        %5193 = vmatpush1.bf16.msra.mxu0 %v4174
        %5194 = vmatprep.subr.bf16.mxu0 %v4183
        %5195 = vmatpush1.bf16.msra.mxu0 %v4182
        %5196 = vmatprep.subr.bf16.mxu0 %v4191
        %5197 = vmatpush1.bf16.msra.mxu0 %v4190
        %5198 = vmatprep.subr.bf16.mxu0 %v4199
        %5199 = vmatpush1.bf16.msra.mxu0 %v4198
        %5200 = vmatprep.subr.bf16.mxu0 %v4207
        %5201 = vmatpush1.bf16.msra.mxu0 %v4206
        %5202 = vmatprep.subr.bf16.mxu0 %v4215
        %5203 = vmatpush1.bf16.msra.mxu0 %v4214
        %5204 = vmatprep.subr.bf16.mxu0 %v4223
        %5205 = vmatpush1.bf16.msra.mxu0 %v4222
        %5206 = vmatprep.subr.bf16.mxu0 %v4231
        %5207 = vmatpush1.bf16.msra.mxu0 %v4230
        %5208 = vmatprep.subr.bf16.mxu0 %v4239
        %5209 = vmatpush1.bf16.msra.mxu0 %v4238
        %5210 = vmatprep.subr.bf16.mxu0 %v4247
        %5211 = vmatpush1.bf16.msra.mxu0 %v4246
        %5212 = vmatprep.subr.bf16.mxu0 %v4255
        %5213 = vmatpush1.bf16.msra.mxu0 %v4254
        %5214 = vmatprep.subr.bf16.mxu0 %v4263
        %5215 = vmatpush1.bf16.msra.mxu0 %v4262
        %5216 = vmatprep.subr.bf16.mxu0 %v4271
        %5217 = vmatpush1.bf16.msra.mxu0 %v4270
        %5218 = vmatprep.subr.bf16.mxu0 %v4279
        %5219 = vmatpush1.bf16.msra.mxu0 %v4278
        %5220 = vmatprep.subr.bf16.mxu0 %v4287
        %5221 = vmatpush1.bf16.msra.mxu0 %v4286
        %5222 = vmatprep.mubr.bf16.mxu0 %v2069
        %5223 = vmatmul.mubr.bf16.gmra.mrb[0].mxu0 %v2068
        %v5224 = vpop.f32.mrb[0].mxu0
        %v5225 = vadd.f32 %v2593, %v5224
        %v5226 = vpop.f32.mrb[0].mxu0
        %v5227 = vadd.f32 %v2597, %v5226
        %v5228 = vpop.f32.mrb[0].mxu0
        %v5229 = vpop.f32.mrb[0].mxu0
        %5230 = vdwg.mxu0
        %5231 = vmatprep.subr.bf16.mxu0 %v4295
        %5232 = vmatpush1.bf16.msra.mxu0 %v4294
        %5233 = vmatprep.subr.bf16.mxu0 %v4303
        %5234 = vmatpush1.bf16.msra.mxu0 %v4302
        %5235 = vmatprep.subr.bf16.mxu0 %v4311
        %5236 = vmatpush1.bf16.msra.mxu0 %v4310
        %5237 = vmatprep.subr.bf16.mxu0 %v4319
        %5238 = vmatpush1.bf16.msra.mxu0 %v4318
        %5239 = vmatprep.subr.bf16.mxu0 %v4327
        %5240 = vmatpush1.bf16.msra.mxu0 %v4326
        %5241 = vmatprep.subr.bf16.mxu0 %v4335
        %5242 = vmatpush1.bf16.msra.mxu0 %v4334
        %5243 = vmatprep.subr.bf16.mxu0 %v4343
        %5244 = vmatpush1.bf16.msra.mxu0 %v4342
        %5245 = vmatprep.subr.bf16.mxu0 %v4351
        %5246 = vmatpush1.bf16.msra.mxu0 %v4350
        %5247 = vmatprep.subr.bf16.mxu0 %v4359
        %5248 = vmatpush1.bf16.msra.mxu0 %v4358
        %5249 = vmatprep.subr.bf16.mxu0 %v4367
        %5250 = vmatpush1.bf16.msra.mxu0 %v4366
        %5251 = vmatprep.subr.bf16.mxu0 %v4375
        %5252 = vmatpush1.bf16.msra.mxu0 %v4374
        %5253 = vmatprep.subr.bf16.mxu0 %v4383
        %5254 = vmatpush1.bf16.msra.mxu0 %v4382
        %5255 = vmatprep.subr.bf16.mxu0 %v4391
        %5256 = vmatpush1.bf16.msra.mxu0 %v4390
        %5257 = vmatprep.subr.bf16.mxu0 %v4399
        %5258 = vmatpush1.bf16.msra.mxu0 %v4398
        %5259 = vmatprep.subr.bf16.mxu0 %v4407
        %5260 = vmatpush1.bf16.msra.mxu0 %v4406
        %5261 = vmatprep.subr.bf16.mxu0 %v4415
        %5262 = vmatpush1.bf16.msra.mxu0 %v4414
        %5263 = vmatprep.mubr.bf16.mxu0 %v2071
        %5264 = vmatmul.mubr.bf16.gmra.mrb[0].mxu0 %v2070
        %v5265 = vpop.f32.mrb[0].mxu0
        %v5266 = vadd.f32 %v5225, %v5265
        %v5267 = vpop.f32.mrb[0].mxu0
        %v5268 = vadd.f32 %v5227, %v5267
        %v5269 = vpop.f32.mrb[0].mxu0
        %v5270 = vpop.f32.mrb[0].mxu0
        %5271 = vdwg.mxu0
        %5272 = vmatprep.subr.bf16.mxu0 %v4423
        %5273 = vmatpush1.bf16.msra.mxu0 %v4422
        %5274 = vmatprep.subr.bf16.mxu0 %v4431
        %5275 = vmatpush1.bf16.msra.mxu0 %v4430
        %5276 = vmatprep.subr.bf16.mxu0 %v4439
        %5277 = vmatpush1.bf16.msra.mxu0 %v4438
        %5278 = vmatprep.subr.bf16.mxu0 %v4447
        %5279 = vmatpush1.bf16.msra.mxu0 %v4446
        %5280 = vmatprep.subr.bf16.mxu0 %v4455
        %5281 = vmatpush1.bf16.msra.mxu0 %v4454
        %5282 = vmatprep.subr.bf16.mxu0 %v4463
        %5283 = vmatpush1.bf16.msra.mxu0 %v4462
        %5284 = vmatprep.subr.bf16.mxu0 %v4471
        %5285 = vmatpush1.bf16.msra.mxu0 %v4470
        %5286 = vmatprep.subr.bf16.mxu0 %v4479
        %5287 = vmatpush1.bf16.msra.mxu0 %v4478
        %5288 = vmatprep.subr.bf16.mxu0 %v4487
        %5289 = vmatpush1.bf16.msra.mxu0 %v4486
        %5290 = vmatprep.subr.bf16.mxu0 %v4495
        %5291 = vmatpush1.bf16.msra.mxu0 %v4494
        %5292 = vmatprep.subr.bf16.mxu0 %v4503
        %5293 = vmatpush1.bf16.msra.mxu0 %v4502
        %5294 = vmatprep.subr.bf16.mxu0 %v4511
        %5295 = vmatpush1.bf16.msra.mxu0 %v4510
        %5296 = vmatprep.subr.bf16.mxu0 %v4519
        %5297 = vmatpush1.bf16.msra.mxu0 %v4518
        %5298 = vmatprep.subr.bf16.mxu0 %v4527
        %5299 = vmatpush1.bf16.msra.mxu0 %v4526
        %5300 = vmatprep.subr.bf16.mxu0 %v4535
        %5301 = vmatpush1.bf16.msra.mxu0 %v4534
        %5302 = vmatprep.subr.bf16.mxu0 %v4543
        %5303 = vmatpush1.bf16.msra.mxu0 %v4542
        %5304 = vmatprep.mubr.bf16.mxu0 %v2073
        %5305 = vmatmul.mubr.bf16.gmra.mrb[0].mxu0 %v2072
        %v5306 = vpop.f32.mrb[0].mxu0
        %v5307 = vadd.f32 %v5266, %v5306
        %v5308 = vpop.f32.mrb[0].mxu0
        %v5309 = vadd.f32 %v5268, %v5308
        %v5310 = vpop.f32.mrb[0].mxu0
        %v5311 = vpop.f32.mrb[0].mxu0
        %5312 = vdwg.mxu0
        %5313 = vmatprep.subr.bf16.mxu0 %v4551
        %5314 = vmatpush1.bf16.msra.mxu0 %v4550
        %5315 = vmatprep.subr.bf16.mxu0 %v4559
        %5316 = vmatpush1.bf16.msra.mxu0 %v4558
        %5317 = vmatprep.subr.bf16.mxu0 %v4567
        %5318 = vmatpush1.bf16.msra.mxu0 %v4566
        %5319 = vmatprep.subr.bf16.mxu0 %v4575
        %5320 = vmatpush1.bf16.msra.mxu0 %v4574
        %5321 = vmatprep.subr.bf16.mxu0 %v4583
        %5322 = vmatpush1.bf16.msra.mxu0 %v4582
        %5323 = vmatprep.subr.bf16.mxu0 %v4591
        %5324 = vmatpush1.bf16.msra.mxu0 %v4590
        %5325 = vmatprep.subr.bf16.mxu0 %v4599
        %5326 = vmatpush1.bf16.msra.mxu0 %v4598
        %5327 = vmatprep.subr.bf16.mxu0 %v4607
        %5328 = vmatpush1.bf16.msra.mxu0 %v4606
        %5329 = vmatprep.subr.bf16.mxu0 %v4615
        %5330 = vmatpush1.bf16.msra.mxu0 %v4614
        %5331 = vmatprep.subr.bf16.mxu0 %v4623
        %5332 = vmatpush1.bf16.msra.mxu0 %v4622
        %5333 = vmatprep.subr.bf16.mxu0 %v4631
        %5334 = vmatpush1.bf16.msra.mxu0 %v4630
        %5335 = vmatprep.subr.bf16.mxu0 %v4639
        %5336 = vmatpush1.bf16.msra.mxu0 %v4638
        %5337 = vmatprep.subr.bf16.mxu0 %v4647
        %5338 = vmatpush1.bf16.msra.mxu0 %v4646
        %5339 = vmatprep.subr.bf16.mxu0 %v4655
        %5340 = vmatpush1.bf16.msra.mxu0 %v4654
        %5341 = vmatprep.subr.bf16.mxu0 %v4663
        %5342 = vmatpush1.bf16.msra.mxu0 %v4662
        %5343 = vmatprep.subr.bf16.mxu0 %v4671
        %5344 = vmatpush1.bf16.msra.mxu0 %v4670
        %5345 = vmatprep.mubr.bf16.mxu0 %v2075
        %5346 = vmatmul.mubr.bf16.gmra.mrb[0].mxu0 %v2074
        %v5347 = vpop.f32.mrb[0].mxu0
        %v5348 = vadd.f32 %v5307, %v5347
        %v5349 = vpop.f32.mrb[0].mxu0
        %v5350 = vadd.f32 %v5309, %v5349
        %v5351 = vpop.f32.mrb[0].mxu0
        %v5352 = vpop.f32.mrb[0].mxu0
        %5353 = vdwg.mxu0
        %5354 = vmatprep.subr.bf16.mxu0 %v4169
        %5355 = vmatpush1.bf16.msra.mxu0 %v4168
        %5356 = vmatprep.subr.bf16.mxu0 %v4177
        %5357 = vmatpush1.bf16.msra.mxu0 %v4176
        %5358 = vmatprep.subr.bf16.mxu0 %v4185
        %5359 = vmatpush1.bf16.msra.mxu0 %v4184
        %5360 = vmatprep.subr.bf16.mxu0 %v4193
        %5361 = vmatpush1.bf16.msra.mxu0 %v4192
        %5362 = vmatprep.subr.bf16.mxu0 %v4201
        %5363 = vmatpush1.bf16.msra.mxu0 %v4200
        %5364 = vmatprep.subr.bf16.mxu0 %v4209
        %5365 = vmatpush1.bf16.msra.mxu0 %v4208
        %5366 = vmatprep.subr.bf16.mxu0 %v4217
        %5367 = vmatpush1.bf16.msra.mxu0 %v4216
        %5368 = vmatprep.subr.bf16.mxu0 %v4225
        %5369 = vmatpush1.bf16.msra.mxu0 %v4224
        %5370 = vmatprep.subr.bf16.mxu0 %v4233
        %5371 = vmatpush1.bf16.msra.mxu0 %v4232
        %5372 = vmatprep.subr.bf16.mxu0 %v4241
        %5373 = vmatpush1.bf16.msra.mxu0 %v4240
        %5374 = vmatprep.subr.bf16.mxu0 %v4249
        %5375 = vmatpush1.bf16.msra.mxu0 %v4248
        %5376 = vmatprep.subr.bf16.mxu0 %v4257
        %5377 = vmatpush1.bf16.msra.mxu0 %v4256
        %5378 = vmatprep.subr.bf16.mxu0 %v4265
        %5379 = vmatpush1.bf16.msra.mxu0 %v4264
        %5380 = vmatprep.subr.bf16.mxu0 %v4273
        %5381 = vmatpush1.bf16.msra.mxu0 %v4272
        %5382 = vmatprep.subr.bf16.mxu0 %v4281
        %5383 = vmatpush1.bf16.msra.mxu0 %v4280
        %5384 = vmatprep.subr.bf16.mxu0 %v4289
        %5385 = vmatpush1.bf16.msra.mxu0 %v4288
        %5386 = vmatprep.mubr.bf16.mxu0 %v2069
        %5387 = vmatmul.mubr.bf16.gmra.mrb[0].mxu0 %v2068
        %v5388 = vpop.f32.mrb[0].mxu0
        %v5389 = vadd.f32 %v2601, %v5388
        %v5390 = vpop.f32.mrb[0].mxu0
        %v5391 = vadd.f32 %v2605, %v5390
        %v5392 = vpop.f32.mrb[0].mxu0
        %v5393 = vpop.f32.mrb[0].mxu0
        %5394 = vdwg.mxu0
        %5395 = vmatprep.subr.bf16.mxu0 %v4297
        %5396 = vmatpush1.bf16.msra.mxu0 %v4296
        %5397 = vmatprep.subr.bf16.mxu0 %v4305
        %5398 = vmatpush1.bf16.msra.mxu0 %v4304
        %5399 = vmatprep.subr.bf16.mxu0 %v4313
        %5400 = vmatpush1.bf16.msra.mxu0 %v4312
        %5401 = vmatprep.subr.bf16.mxu0 %v4321
        %5402 = vmatpush1.bf16.msra.mxu0 %v4320
        %5403 = vmatprep.subr.bf16.mxu0 %v4329
        %5404 = vmatpush1.bf16.msra.mxu0 %v4328
        %5405 = vmatprep.subr.bf16.mxu0 %v4337
        %5406 = vmatpush1.bf16.msra.mxu0 %v4336
        %5407 = vmatprep.subr.bf16.mxu0 %v4345
        %5408 = vmatpush1.bf16.msra.mxu0 %v4344
        %5409 = vmatprep.subr.bf16.mxu0 %v4353
        %5410 = vmatpush1.bf16.msra.mxu0 %v4352
        %5411 = vmatprep.subr.bf16.mxu0 %v4361
        %5412 = vmatpush1.bf16.msra.mxu0 %v4360
        %5413 = vmatprep.subr.bf16.mxu0 %v4369
        %5414 = vmatpush1.bf16.msra.mxu0 %v4368
        %5415 = vmatprep.subr.bf16.mxu0 %v4377
        %5416 = vmatpush1.bf16.msra.mxu0 %v4376
        %5417 = vmatprep.subr.bf16.mxu0 %v4385
        %5418 = vmatpush1.bf16.msra.mxu0 %v4384
        %5419 = vmatprep.subr.bf16.mxu0 %v4393
        %5420 = vmatpush1.bf16.msra.mxu0 %v4392
        %5421 = vmatprep.subr.bf16.mxu0 %v4401
        %5422 = vmatpush1.bf16.msra.mxu0 %v4400
        %5423 = vmatprep.subr.bf16.mxu0 %v4409
        %5424 = vmatpush1.bf16.msra.mxu0 %v4408
        %5425 = vmatprep.subr.bf16.mxu0 %v4417
        %5426 = vmatpush1.bf16.msra.mxu0 %v4416
        %5427 = vmatprep.mubr.bf16.mxu0 %v2071
        %5428 = vmatmul.mubr.bf16.gmra.mrb[0].mxu0 %v2070
        %v5429 = vpop.f32.mrb[0].mxu0
        %v5430 = vadd.f32 %v5389, %v5429
        %v5431 = vpop.f32.mrb[0].mxu0
        %v5432 = vadd.f32 %v5391, %v5431
        %v5433 = vpop.f32.mrb[0].mxu0
        %v5434 = vpop.f32.mrb[0].mxu0
        %5435 = vdwg.mxu0
        %5436 = vmatprep.subr.bf16.mxu0 %v4425
        %5437 = vmatpush1.bf16.msra.mxu0 %v4424
        %5438 = vmatprep.subr.bf16.mxu0 %v4433
        %5439 = vmatpush1.bf16.msra.mxu0 %v4432
        %5440 = vmatprep.subr.bf16.mxu0 %v4441
        %5441 = vmatpush1.bf16.msra.mxu0 %v4440
        %5442 = vmatprep.subr.bf16.mxu0 %v4449
        %5443 = vmatpush1.bf16.msra.mxu0 %v4448
        %5444 = vmatprep.subr.bf16.mxu0 %v4457
        %5445 = vmatpush1.bf16.msra.mxu0 %v4456
        %5446 = vmatprep.subr.bf16.mxu0 %v4465
        %5447 = vmatpush1.bf16.msra.mxu0 %v4464
        %5448 = vmatprep.subr.bf16.mxu0 %v4473
        %5449 = vmatpush1.bf16.msra.mxu0 %v4472
        %5450 = vmatprep.subr.bf16.mxu0 %v4481
        %5451 = vmatpush1.bf16.msra.mxu0 %v4480
        %5452 = vmatprep.subr.bf16.mxu0 %v4489
        %5453 = vmatpush1.bf16.msra.mxu0 %v4488
        %5454 = vmatprep.subr.bf16.mxu0 %v4497
        %5455 = vmatpush1.bf16.msra.mxu0 %v4496
        %5456 = vmatprep.subr.bf16.mxu0 %v4505
        %5457 = vmatpush1.bf16.msra.mxu0 %v4504
        %5458 = vmatprep.subr.bf16.mxu0 %v4513
        %5459 = vmatpush1.bf16.msra.mxu0 %v4512
        %5460 = vmatprep.subr.bf16.mxu0 %v4521
        %5461 = vmatpush1.bf16.msra.mxu0 %v4520
        %5462 = vmatprep.subr.bf16.mxu0 %v4529
        %5463 = vmatpush1.bf16.msra.mxu0 %v4528
        %5464 = vmatprep.subr.bf16.mxu0 %v4537
        %5465 = vmatpush1.bf16.msra.mxu0 %v4536
        %5466 = vmatprep.subr.bf16.mxu0 %v4545
        %5467 = vmatpush1.bf16.msra.mxu0 %v4544
        %5468 = vmatprep.mubr.bf16.mxu0 %v2073
        %5469 = vmatmul.mubr.bf16.gmra.mrb[0].mxu0 %v2072
        %v5470 = vpop.f32.mrb[0].mxu0
        %v5471 = vadd.f32 %v5430, %v5470
        %v5472 = vpop.f32.mrb[0].mxu0
        %v5473 = vadd.f32 %v5432, %v5472
        %v5474 = vpop.f32.mrb[0].mxu0
        %v5475 = vpop.f32.mrb[0].mxu0
        %5476 = vdwg.mxu0
        %5477 = vmatprep.subr.bf16.mxu0 %v4553
        %5478 = vmatpush1.bf16.msra.mxu0 %v4552
        %5479 = vmatprep.subr.bf16.mxu0 %v4561
        %5480 = vmatpush1.bf16.msra.mxu0 %v4560
        %5481 = vmatprep.subr.bf16.mxu0 %v4569
        %5482 = vmatpush1.bf16.msra.mxu0 %v4568
        %5483 = vmatprep.subr.bf16.mxu0 %v4577
        %5484 = vmatpush1.bf16.msra.mxu0 %v4576
        %5485 = vmatprep.subr.bf16.mxu0 %v4585
        %5486 = vmatpush1.bf16.msra.mxu0 %v4584
        %5487 = vmatprep.subr.bf16.mxu0 %v4593
        %5488 = vmatpush1.bf16.msra.mxu0 %v4592
        %5489 = vmatprep.subr.bf16.mxu0 %v4601
        %5490 = vmatpush1.bf16.msra.mxu0 %v4600
        %5491 = vmatprep.subr.bf16.mxu0 %v4609
        %5492 = vmatpush1.bf16.msra.mxu0 %v4608
        %5493 = vmatprep.subr.bf16.mxu0 %v4617
        %5494 = vmatpush1.bf16.msra.mxu0 %v4616
        %5495 = vmatprep.subr.bf16.mxu0 %v4625
        %5496 = vmatpush1.bf16.msra.mxu0 %v4624
        %5497 = vmatprep.subr.bf16.mxu0 %v4633
        %5498 = vmatpush1.bf16.msra.mxu0 %v4632
        %5499 = vmatprep.subr.bf16.mxu0 %v4641
        %5500 = vmatpush1.bf16.msra.mxu0 %v4640
        %5501 = vmatprep.subr.bf16.mxu0 %v4649
        %5502 = vmatpush1.bf16.msra.mxu0 %v4648
        %5503 = vmatprep.subr.bf16.mxu0 %v4657
        %5504 = vmatpush1.bf16.msra.mxu0 %v4656
        %5505 = vmatprep.subr.bf16.mxu0 %v4665
        %5506 = vmatpush1.bf16.msra.mxu0 %v4664
        %5507 = vmatprep.subr.bf16.mxu0 %v4673
        %5508 = vmatpush1.bf16.msra.mxu0 %v4672
        %5509 = vmatprep.mubr.bf16.mxu0 %v2075
        %5510 = vmatmul.mubr.bf16.gmra.mrb[0].mxu0 %v2074
        %v5511 = vpop.f32.mrb[0].mxu0
        %v5512 = vadd.f32 %v5471, %v5511
        %v5513 = vpop.f32.mrb[0].mxu0
        %v5514 = vadd.f32 %v5473, %v5513
        %v5515 = vpop.f32.mrb[0].mxu0
        %v5516 = vpop.f32.mrb[0].mxu0
        %5517 = vdwg.mxu0
        %5518 = vmatprep.subr.bf16.mxu0 %v4171
        %5519 = vmatpush1.bf16.msra.mxu0 %v4170
        %5520 = vmatprep.subr.bf16.mxu0 %v4179
        %5521 = vmatpush1.bf16.msra.mxu0 %v4178
        %5522 = vmatprep.subr.bf16.mxu0 %v4187
        %5523 = vmatpush1.bf16.msra.mxu0 %v4186
        %5524 = vmatprep.subr.bf16.mxu0 %v4195
        %5525 = vmatpush1.bf16.msra.mxu0 %v4194
        %5526 = vmatprep.subr.bf16.mxu0 %v4203
        %5527 = vmatpush1.bf16.msra.mxu0 %v4202
        %5528 = vmatprep.subr.bf16.mxu0 %v4211
        %5529 = vmatpush1.bf16.msra.mxu0 %v4210
        %5530 = vmatprep.subr.bf16.mxu0 %v4219
        %5531 = vmatpush1.bf16.msra.mxu0 %v4218
        %5532 = vmatprep.subr.bf16.mxu0 %v4227
        %5533 = vmatpush1.bf16.msra.mxu0 %v4226
        %5534 = vmatprep.subr.bf16.mxu0 %v4235
        %5535 = vmatpush1.bf16.msra.mxu0 %v4234
        %5536 = vmatprep.subr.bf16.mxu0 %v4243
        %5537 = vmatpush1.bf16.msra.mxu0 %v4242
        %5538 = vmatprep.subr.bf16.mxu0 %v4251
        %5539 = vmatpush1.bf16.msra.mxu0 %v4250
        %5540 = vmatprep.subr.bf16.mxu0 %v4259
        %5541 = vmatpush1.bf16.msra.mxu0 %v4258
        %5542 = vmatprep.subr.bf16.mxu0 %v4267
        %5543 = vmatpush1.bf16.msra.mxu0 %v4266
        %5544 = vmatprep.subr.bf16.mxu0 %v4275
        %5545 = vmatpush1.bf16.msra.mxu0 %v4274
        %5546 = vmatprep.subr.bf16.mxu0 %v4283
        %5547 = vmatpush1.bf16.msra.mxu0 %v4282
        %5548 = vmatprep.subr.bf16.mxu0 %v4291
        %5549 = vmatpush1.bf16.msra.mxu0 %v4290
        %5550 = vmatprep.mubr.bf16.mxu0 %v2069
        %5551 = vmatmul.mubr.bf16.gmra.mrb[0].mxu0 %v2068
        %v5552 = vpop.f32.mrb[0].mxu0
        %v5553 = vadd.f32 %v2609, %v5552
        %v5554 = vpop.f32.mrb[0].mxu0
        %v5555 = vadd.f32 %v2613, %v5554
        %v5556 = vpop.f32.mrb[0].mxu0
        %v5557 = vpop.f32.mrb[0].mxu0
        %5558 = vdwg.mxu0
        %5559 = vmatprep.subr.bf16.mxu0 %v4299
        %5560 = vmatpush1.bf16.msra.mxu0 %v4298
        %5561 = vmatprep.subr.bf16.mxu0 %v4307
        %5562 = vmatpush1.bf16.msra.mxu0 %v4306
        %5563 = vmatprep.subr.bf16.mxu0 %v4315
        %5564 = vmatpush1.bf16.msra.mxu0 %v4314
        %5565 = vmatprep.subr.bf16.mxu0 %v4323
        %5566 = vmatpush1.bf16.msra.mxu0 %v4322
        %5567 = vmatprep.subr.bf16.mxu0 %v4331
        %5568 = vmatpush1.bf16.msra.mxu0 %v4330
        %5569 = vmatprep.subr.bf16.mxu0 %v4339
        %5570 = vmatpush1.bf16.msra.mxu0 %v4338
        %5571 = vmatprep.subr.bf16.mxu0 %v4347
        %5572 = vmatpush1.bf16.msra.mxu0 %v4346
        %5573 = vmatprep.subr.bf16.mxu0 %v4355
        %5574 = vmatpush1.bf16.msra.mxu0 %v4354
        %5575 = vmatprep.subr.bf16.mxu0 %v4363
        %5576 = vmatpush1.bf16.msra.mxu0 %v4362
        %5577 = vmatprep.subr.bf16.mxu0 %v4371
        %5578 = vmatpush1.bf16.msra.mxu0 %v4370
        %5579 = vmatprep.subr.bf16.mxu0 %v4379
        %5580 = vmatpush1.bf16.msra.mxu0 %v4378
        %5581 = vmatprep.subr.bf16.mxu0 %v4387
        %5582 = vmatpush1.bf16.msra.mxu0 %v4386
        %5583 = vmatprep.subr.bf16.mxu0 %v4395
        %5584 = vmatpush1.bf16.msra.mxu0 %v4394
        %5585 = vmatprep.subr.bf16.mxu0 %v4403
        %5586 = vmatpush1.bf16.msra.mxu0 %v4402
        %5587 = vmatprep.subr.bf16.mxu0 %v4411
        %5588 = vmatpush1.bf16.msra.mxu0 %v4410
        %5589 = vmatprep.subr.bf16.mxu0 %v4419
        %5590 = vmatpush1.bf16.msra.mxu0 %v4418
        %5591 = vmatprep.mubr.bf16.mxu0 %v2071
        %5592 = vmatmul.mubr.bf16.gmra.mrb[0].mxu0 %v2070
        %v5593 = vpop.f32.mrb[0].mxu0
        %v5594 = vadd.f32 %v5553, %v5593
        %v5595 = vpop.f32.mrb[0].mxu0
        %v5596 = vadd.f32 %v5555, %v5595
        %v5597 = vpop.f32.mrb[0].mxu0
        %v5598 = vpop.f32.mrb[0].mxu0
        %5599 = vdwg.mxu0
        %5600 = vmatprep.subr.bf16.mxu0 %v4427
        %5601 = vmatpush1.bf16.msra.mxu0 %v4426
        %5602 = vmatprep.subr.bf16.mxu0 %v4435
        %5603 = vmatpush1.bf16.msra.mxu0 %v4434
        %5604 = vmatprep.subr.bf16.mxu0 %v4443
        %5605 = vmatpush1.bf16.msra.mxu0 %v4442
        %5606 = vmatprep.subr.bf16.mxu0 %v4451
        %5607 = vmatpush1.bf16.msra.mxu0 %v4450
        %5608 = vmatprep.subr.bf16.mxu0 %v4459
        %5609 = vmatpush1.bf16.msra.mxu0 %v4458
        %5610 = vmatprep.subr.bf16.mxu0 %v4467
        %5611 = vmatpush1.bf16.msra.mxu0 %v4466
        %5612 = vmatprep.subr.bf16.mxu0 %v4475
        %5613 = vmatpush1.bf16.msra.mxu0 %v4474
        %5614 = vmatprep.subr.bf16.mxu0 %v4483
        %5615 = vmatpush1.bf16.msra.mxu0 %v4482
        %5616 = vmatprep.subr.bf16.mxu0 %v4491
        %5617 = vmatpush1.bf16.msra.mxu0 %v4490
        %5618 = vmatprep.subr.bf16.mxu0 %v4499
        %5619 = vmatpush1.bf16.msra.mxu0 %v4498
        %5620 = vmatprep.subr.bf16.mxu0 %v4507
        %5621 = vmatpush1.bf16.msra.mxu0 %v4506
        %5622 = vmatprep.subr.bf16.mxu0 %v4515
        %5623 = vmatpush1.bf16.msra.mxu0 %v4514
        %5624 = vmatprep.subr.bf16.mxu0 %v4523
        %5625 = vmatpush1.bf16.msra.mxu0 %v4522
        %5626 = vmatprep.subr.bf16.mxu0 %v4531
        %5627 = vmatpush1.bf16.msra.mxu0 %v4530
        %5628 = vmatprep.subr.bf16.mxu0 %v4539
        %5629 = vmatpush1.bf16.msra.mxu0 %v4538
        %5630 = vmatprep.subr.bf16.mxu0 %v4547
        %5631 = vmatpush1.bf16.msra.mxu0 %v4546
        %5632 = vmatprep.mubr.bf16.mxu0 %v2073
        %5633 = vmatmul.mubr.bf16.gmra.mrb[0].mxu0 %v2072
        %v5634 = vpop.f32.mrb[0].mxu0
        %v5635 = vadd.f32 %v5594, %v5634
        %v5636 = vpop.f32.mrb[0].mxu0
        %v5637 = vadd.f32 %v5596, %v5636
        %v5638 = vpop.f32.mrb[0].mxu0
        %v5639 = vpop.f32.mrb[0].mxu0
        %5640 = vdwg.mxu0
        %5641 = vmatprep.subr.bf16.mxu0 %v4555
        %5642 = vmatpush1.bf16.msra.mxu0 %v4554
        %5643 = vmatprep.subr.bf16.mxu0 %v4563
        %5644 = vmatpush1.bf16.msra.mxu0 %v4562
        %5645 = vmatprep.subr.bf16.mxu0 %v4571
        %5646 = vmatpush1.bf16.msra.mxu0 %v4570
        %5647 = vmatprep.subr.bf16.mxu0 %v4579
        %5648 = vmatpush1.bf16.msra.mxu0 %v4578
        %5649 = vmatprep.subr.bf16.mxu0 %v4587
        %5650 = vmatpush1.bf16.msra.mxu0 %v4586
        %5651 = vmatprep.subr.bf16.mxu0 %v4595
        %5652 = vmatpush1.bf16.msra.mxu0 %v4594
        %5653 = vmatprep.subr.bf16.mxu0 %v4603
        %5654 = vmatpush1.bf16.msra.mxu0 %v4602
        %5655 = vmatprep.subr.bf16.mxu0 %v4611
        %5656 = vmatpush1.bf16.msra.mxu0 %v4610
        %5657 = vmatprep.subr.bf16.mxu0 %v4619
        %5658 = vmatpush1.bf16.msra.mxu0 %v4618
        %5659 = vmatprep.subr.bf16.mxu0 %v4627
        %5660 = vmatpush1.bf16.msra.mxu0 %v4626
        %5661 = vmatprep.subr.bf16.mxu0 %v4635
        %5662 = vmatpush1.bf16.msra.mxu0 %v4634
        %5663 = vmatprep.subr.bf16.mxu0 %v4643
        %5664 = vmatpush1.bf16.msra.mxu0 %v4642
        %5665 = vmatprep.subr.bf16.mxu0 %v4651
        %5666 = vmatpush1.bf16.msra.mxu0 %v4650
        %5667 = vmatprep.subr.bf16.mxu0 %v4659
        %5668 = vmatpush1.bf16.msra.mxu0 %v4658
        %5669 = vmatprep.subr.bf16.mxu0 %v4667
        %5670 = vmatpush1.bf16.msra.mxu0 %v4666
        %5671 = vmatprep.subr.bf16.mxu0 %v4675
        %5672 = vmatpush1.bf16.msra.mxu0 %v4674
        %5673 = vmatprep.mubr.bf16.mxu0 %v2075
        %5674 = vmatmul.mubr.bf16.gmra.mrb[0].mxu0 %v2074
        %v5675 = vpop.f32.mrb[0].mxu0
        %v5676 = vadd.f32 %v5635, %v5675
        %v5677 = vpop.f32.mrb[0].mxu0
        %v5678 = vadd.f32 %v5637, %v5677
        %v5679 = vpop.f32.mrb[0].mxu0
        %v5680 = vpop.f32.mrb[0].mxu0
        %5681 = vdwg.mxu0
        %5682 = vmatprep.subr.bf16.mxu0 %v4173
        %5683 = vmatpush1.bf16.msra.mxu0 %v4172
        %5684 = vmatprep.subr.bf16.mxu0 %v4181
        %5685 = vmatpush1.bf16.msra.mxu0 %v4180
        %5686 = vmatprep.subr.bf16.mxu0 %v4189
        %5687 = vmatpush1.bf16.msra.mxu0 %v4188
        %5688 = vmatprep.subr.bf16.mxu0 %v4197
        %5689 = vmatpush1.bf16.msra.mxu0 %v4196
        %5690 = vmatprep.subr.bf16.mxu0 %v4205
        %5691 = vmatpush1.bf16.msra.mxu0 %v4204
        %5692 = vmatprep.subr.bf16.mxu0 %v4213
        %5693 = vmatpush1.bf16.msra.mxu0 %v4212
        %5694 = vmatprep.subr.bf16.mxu0 %v4221
        %5695 = vmatpush1.bf16.msra.mxu0 %v4220
        %5696 = vmatprep.subr.bf16.mxu0 %v4229
        %5697 = vmatpush1.bf16.msra.mxu0 %v4228
        %5698 = vmatprep.subr.bf16.mxu0 %v4237
        %5699 = vmatpush1.bf16.msra.mxu0 %v4236
        %5700 = vmatprep.subr.bf16.mxu0 %v4245
        %5701 = vmatpush1.bf16.msra.mxu0 %v4244
        %5702 = vmatprep.subr.bf16.mxu0 %v4253
        %5703 = vmatpush1.bf16.msra.mxu0 %v4252
        %5704 = vmatprep.subr.bf16.mxu0 %v4261
        %5705 = vmatpush1.bf16.msra.mxu0 %v4260
        %5706 = vmatprep.subr.bf16.mxu0 %v4269
        %5707 = vmatpush1.bf16.msra.mxu0 %v4268
        %5708 = vmatprep.subr.bf16.mxu0 %v4277
        %5709 = vmatpush1.bf16.msra.mxu0 %v4276
        %5710 = vmatprep.subr.bf16.mxu0 %v4285
        %5711 = vmatpush1.bf16.msra.mxu0 %v4284
        %5712 = vmatprep.subr.bf16.mxu0 %v4293
        %5713 = vmatpush1.bf16.msra.mxu0 %v4292
        %5714 = vmatprep.mubr.bf16.mxu0 %v2069
        %5715 = vmatmul.mubr.bf16.gmra.mrb[0].mxu0 %v2068
        %v5716 = vpop.f32.mrb[0].mxu0
        %v5717 = vadd.f32 %v2617, %v5716
        %v5718 = vpop.f32.mrb[0].mxu0
        %v5719 = vadd.f32 %v2621, %v5718
        %v5720 = vpop.f32.mrb[0].mxu0
        %v5721 = vpop.f32.mrb[0].mxu0
        %5722 = vdwg.mxu0
        %5723 = vmatprep.subr.bf16.mxu0 %v4301
        %5724 = vmatpush1.bf16.msra.mxu0 %v4300
        %5725 = vmatprep.subr.bf16.mxu0 %v4309
        %5726 = vmatpush1.bf16.msra.mxu0 %v4308
        %5727 = vmatprep.subr.bf16.mxu0 %v4317
        %5728 = vmatpush1.bf16.msra.mxu0 %v4316
        %5729 = vmatprep.subr.bf16.mxu0 %v4325
        %5730 = vmatpush1.bf16.msra.mxu0 %v4324
        %5731 = vmatprep.subr.bf16.mxu0 %v4333
        %5732 = vmatpush1.bf16.msra.mxu0 %v4332
        %5733 = vmatprep.subr.bf16.mxu0 %v4341
        %5734 = vmatpush1.bf16.msra.mxu0 %v4340
        %5735 = vmatprep.subr.bf16.mxu0 %v4349
        %5736 = vmatpush1.bf16.msra.mxu0 %v4348
        %5737 = vmatprep.subr.bf16.mxu0 %v4357
        %5738 = vmatpush1.bf16.msra.mxu0 %v4356
        %5739 = vmatprep.subr.bf16.mxu0 %v4365
        %5740 = vmatpush1.bf16.msra.mxu0 %v4364
        %5741 = vmatprep.subr.bf16.mxu0 %v4373
        %5742 = vmatpush1.bf16.msra.mxu0 %v4372
        %5743 = vmatprep.subr.bf16.mxu0 %v4381
        %5744 = vmatpush1.bf16.msra.mxu0 %v4380
        %5745 = vmatprep.subr.bf16.mxu0 %v4389
        %5746 = vmatpush1.bf16.msra.mxu0 %v4388
        %5747 = vmatprep.subr.bf16.mxu0 %v4397
        %5748 = vmatpush1.bf16.msra.mxu0 %v4396
        %5749 = vmatprep.subr.bf16.mxu0 %v4405
        %5750 = vmatpush1.bf16.msra.mxu0 %v4404
        %5751 = vmatprep.subr.bf16.mxu0 %v4413
        %5752 = vmatpush1.bf16.msra.mxu0 %v4412
        %5753 = vmatprep.subr.bf16.mxu0 %v4421
        %5754 = vmatpush1.bf16.msra.mxu0 %v4420
        %5755 = vmatprep.mubr.bf16.mxu0 %v2071
        %5756 = vmatmul.mubr.bf16.gmra.mrb[0].mxu0 %v2070
        %v5757 = vpop.f32.mrb[0].mxu0
        %v5758 = vadd.f32 %v5717, %v5757
        %v5759 = vpop.f32.mrb[0].mxu0
        %v5760 = vadd.f32 %v5719, %v5759
        %v5761 = vpop.f32.mrb[0].mxu0
        %v5762 = vpop.f32.mrb[0].mxu0
        %5763 = vdwg.mxu0
        %5764 = vmatprep.subr.bf16.mxu0 %v4429
        %5765 = vmatpush1.bf16.msra.mxu0 %v4428
        %5766 = vmatprep.subr.bf16.mxu0 %v4437
        %5767 = vmatpush1.bf16.msra.mxu0 %v4436
        %5768 = vmatprep.subr.bf16.mxu0 %v4445
        %5769 = vmatpush1.bf16.msra.mxu0 %v4444
        %5770 = vmatprep.subr.bf16.mxu0 %v4453
        %5771 = vmatpush1.bf16.msra.mxu0 %v4452
        %5772 = vmatprep.subr.bf16.mxu0 %v4461
        %5773 = vmatpush1.bf16.msra.mxu0 %v4460
        %5774 = vmatprep.subr.bf16.mxu0 %v4469
        %5775 = vmatpush1.bf16.msra.mxu0 %v4468
        %5776 = vmatprep.subr.bf16.mxu0 %v4477
        %5777 = vmatpush1.bf16.msra.mxu0 %v4476
        %5778 = vmatprep.subr.bf16.mxu0 %v4485
        %5779 = vmatpush1.bf16.msra.mxu0 %v4484
        %5780 = vmatprep.subr.bf16.mxu0 %v4493
        %5781 = vmatpush1.bf16.msra.mxu0 %v4492
        %5782 = vmatprep.subr.bf16.mxu0 %v4501
        %5783 = vmatpush1.bf16.msra.mxu0 %v4500
        %5784 = vmatprep.subr.bf16.mxu0 %v4509
        %5785 = vmatpush1.bf16.msra.mxu0 %v4508
        %5786 = vmatprep.subr.bf16.mxu0 %v4517
        %5787 = vmatpush1.bf16.msra.mxu0 %v4516
        %5788 = vmatprep.subr.bf16.mxu0 %v4525
        %5789 = vmatpush1.bf16.msra.mxu0 %v4524
        %5790 = vmatprep.subr.bf16.mxu0 %v4533
        %5791 = vmatpush1.bf16.msra.mxu0 %v4532
        %5792 = vmatprep.subr.bf16.mxu0 %v4541
        %5793 = vmatpush1.bf16.msra.mxu0 %v4540
        %5794 = vmatprep.subr.bf16.mxu0 %v4549
        %5795 = vmatpush1.bf16.msra.mxu0 %v4548
        %5796 = vmatprep.mubr.bf16.mxu0 %v2073
        %5797 = vmatmul.mubr.bf16.gmra.mrb[0].mxu0 %v2072
        %v5798 = vpop.f32.mrb[0].mxu0
        %v5799 = vadd.f32 %v5758, %v5798
        %v5800 = vpop.f32.mrb[0].mxu0
        %v5801 = vadd.f32 %v5760, %v5800
        %v5802 = vpop.f32.mrb[0].mxu0
        %v5803 = vpop.f32.mrb[0].mxu0
        %5804 = vdwg.mxu0
        %5805 = vmatprep.subr.bf16.mxu0 %v4557
        %5806 = vmatpush1.bf16.msra.mxu0 %v4556
        %5807 = vmatprep.subr.bf16.mxu0 %v4565
        %5808 = vmatpush1.bf16.msra.mxu0 %v4564
        %5809 = vmatprep.subr.bf16.mxu0 %v4573
        %5810 = vmatpush1.bf16.msra.mxu0 %v4572
        %5811 = vmatprep.subr.bf16.mxu0 %v4581
        %5812 = vmatpush1.bf16.msra.mxu0 %v4580
        %5813 = vmatprep.subr.bf16.mxu0 %v4589
        %5814 = vmatpush1.bf16.msra.mxu0 %v4588
        %5815 = vmatprep.subr.bf16.mxu0 %v4597
        %5816 = vmatpush1.bf16.msra.mxu0 %v4596
        %5817 = vmatprep.subr.bf16.mxu0 %v4605
        %5818 = vmatpush1.bf16.msra.mxu0 %v4604
        %5819 = vmatprep.subr.bf16.mxu0 %v4613
        %5820 = vmatpush1.bf16.msra.mxu0 %v4612
        %5821 = vmatprep.subr.bf16.mxu0 %v4621
        %5822 = vmatpush1.bf16.msra.mxu0 %v4620
        %5823 = vmatprep.subr.bf16.mxu0 %v4629
        %5824 = vmatpush1.bf16.msra.mxu0 %v4628
        %5825 = vmatprep.subr.bf16.mxu0 %v4637
        %5826 = vmatpush1.bf16.msra.mxu0 %v4636
        %5827 = vmatprep.subr.bf16.mxu0 %v4645
        %5828 = vmatpush1.bf16.msra.mxu0 %v4644
        %5829 = vmatprep.subr.bf16.mxu0 %v4653
        %5830 = vmatpush1.bf16.msra.mxu0 %v4652
        %5831 = vmatprep.subr.bf16.mxu0 %v4661
        %5832 = vmatpush1.bf16.msra.mxu0 %v4660
        %5833 = vmatprep.subr.bf16.mxu0 %v4669
        %5834 = vmatpush1.bf16.msra.mxu0 %v4668
        %5835 = vmatprep.subr.bf16.mxu0 %v4677
        %5836 = vmatpush1.bf16.msra.mxu0 %v4676
        %5837 = vmatprep.mubr.bf16.mxu0 %v2075
        %5838 = vmatmul.mubr.bf16.gmra.mrb[0].mxu0 %v2074
        %v5839 = vpop.f32.mrb[0].mxu0
        %v5840 = vadd.f32 %v5799, %v5839
        %v5841 = vpop.f32.mrb[0].mxu0
        %v5842 = vadd.f32 %v5801, %v5841
        %v5843 = vpop.f32.mrb[0].mxu0
        %v5844 = vpop.f32.mrb[0].mxu0
        %5845 = vdwg.mxu0
        %v5846 = vmax.f32 %v5348, 0.0
        %v5847 = vmax.f32 %v5350, 0.0
        %v5848 = vmax.f32 %v5512, 0.0
        %v5849 = vmax.f32 %v5514, 0.0
        %v5850 = vmax.f32 %v5676, 0.0
        %v5851 = vmax.f32 %v5678, 0.0
        %v5852 = vmax.f32 %v5840, 0.0
        %v5853 = vmax.f32 %v5842, 0.0
        %v5854 = vrot.slane %v5846, 4
        %v5855 = vadd.f32 %v5846, %v5854
        %v5856 = vrot.slane %v5855, 2
        %v5857 = vadd.f32 %v5855, %v5856
        %v5858 = vrot.slane %v5857, 1
        %v5859 = vadd.f32 %v5857, %v5858
        %v5860 = vrot.slane %v5847, 4
        %v5861 = vadd.f32 %v5847, %v5860
        %v5862 = vrot.slane %v5861, 2
        %v5863 = vadd.f32 %v5861, %v5862
        %v5864 = vrot.slane %v5863, 1
        %v5865 = vadd.f32 %v5863, %v5864
        %v5866 = vrot.slane %v5848, 4
        %v5867 = vadd.f32 %v5848, %v5866
        %v5868 = vrot.slane %v5867, 2
        %v5869 = vadd.f32 %v5867, %v5868
        %v5870 = vrot.slane %v5869, 1
        %v5871 = vadd.f32 %v5869, %v5870
        %v5872 = vrot.slane %v5849, 4
        %v5873 = vadd.f32 %v5849, %v5872
        %v5874 = vrot.slane %v5873, 2
        %v5875 = vadd.f32 %v5873, %v5874
        %v5876 = vrot.slane %v5875, 1
        %v5877 = vadd.f32 %v5875, %v5876
        %v5878 = vrot.slane %v5850, 4
        %v5879 = vadd.f32 %v5850, %v5878
        %v5880 = vrot.slane %v5879, 2
        %v5881 = vadd.f32 %v5879, %v5880
        %v5882 = vrot.slane %v5881, 1
        %v5883 = vadd.f32 %v5881, %v5882
        %v5884 = vrot.slane %v5851, 4
        %v5885 = vadd.f32 %v5851, %v5884
        %v5886 = vrot.slane %v5885, 2
        %v5887 = vadd.f32 %v5885, %v5886
        %v5888 = vrot.slane %v5887, 1
        %v5889 = vadd.f32 %v5887, %v5888
        %v5890 = vrot.slane %v5852, 4
        %v5891 = vadd.f32 %v5852, %v5890
        %v5892 = vrot.slane %v5891, 2
        %v5893 = vadd.f32 %v5891, %v5892
        %v5894 = vrot.slane %v5893, 1
        %v5895 = vadd.f32 %v5893, %v5894
        %v5896 = vrot.slane %v5853, 4
        %v5897 = vadd.f32 %v5853, %v5896
        %v5898 = vrot.slane %v5897, 2
        %v5899 = vadd.f32 %v5897, %v5898
        %v5900 = vrot.slane %v5899, 1
        %v5901 = vadd.f32 %v5899, %v5900
        %v5902 = vmul.f32 %v5859, %v1729
        %v5903 = vmul.f32 %v5865, %v1729
        %v5904 = vmul.f32 %v5871, %v1729
        %v5905 = vmul.f32 %v5877, %v1729
        %v5906 = vmul.f32 %v5883, %v1729
        %v5907 = vmul.f32 %v5889, %v1729
        %v5908 = vmul.f32 %v5895, %v1729
        %v5909 = vmul.f32 %v5901, %v1729
        %v5910 = vmul.f32 %v5846, %v5846
        %v5911 = vmul.f32 %v5847, %v5847
        %v5912 = vmul.f32 %v5848, %v5848
        %v5913 = vmul.f32 %v5849, %v5849
        %v5914 = vmul.f32 %v5850, %v5850
        %v5915 = vmul.f32 %v5851, %v5851
        %v5916 = vmul.f32 %v5852, %v5852
        %v5917 = vmul.f32 %v5853, %v5853
        %v5918 = vrot.slane %v5910, 4
        %v5919 = vadd.f32 %v5910, %v5918
        %v5920 = vrot.slane %v5919, 2
        %v5921 = vadd.f32 %v5919, %v5920
        %v5922 = vrot.slane %v5921, 1
        %v5923 = vadd.f32 %v5921, %v5922
        %v5924 = vrot.slane %v5911, 4
        %v5925 = vadd.f32 %v5911, %v5924
        %v5926 = vrot.slane %v5925, 2
        %v5927 = vadd.f32 %v5925, %v5926
        %v5928 = vrot.slane %v5927, 1
        %v5929 = vadd.f32 %v5927, %v5928
        %v5930 = vrot.slane %v5912, 4
        %v5931 = vadd.f32 %v5912, %v5930
        %v5932 = vrot.slane %v5931, 2
        %v5933 = vadd.f32 %v5931, %v5932
        %v5934 = vrot.slane %v5933, 1
        %v5935 = vadd.f32 %v5933, %v5934
        %v5936 = vrot.slane %v5913, 4
        %v5937 = vadd.f32 %v5913, %v5936
        %v5938 = vrot.slane %v5937, 2
        %v5939 = vadd.f32 %v5937, %v5938
        %v5940 = vrot.slane %v5939, 1
        %v5941 = vadd.f32 %v5939, %v5940
        %v5942 = vrot.slane %v5914, 4
        %v5943 = vadd.f32 %v5914, %v5942
        %v5944 = vrot.slane %v5943, 2
        %v5945 = vadd.f32 %v5943, %v5944
        %v5946 = vrot.slane %v5945, 1
        %v5947 = vadd.f32 %v5945, %v5946
        %v5948 = vrot.slane %v5915, 4
        %v5949 = vadd.f32 %v5915, %v5948
        %v5950 = vrot.slane %v5949, 2
        %v5951 = vadd.f32 %v5949, %v5950
        %v5952 = vrot.slane %v5951, 1
        %v5953 = vadd.f32 %v5951, %v5952
        %v5954 = vrot.slane %v5916, 4
        %v5955 = vadd.f32 %v5916, %v5954
        %v5956 = vrot.slane %v5955, 2
        %v5957 = vadd.f32 %v5955, %v5956
        %v5958 = vrot.slane %v5957, 1
        %v5959 = vadd.f32 %v5957, %v5958
        %v5960 = vrot.slane %v5917, 4
        %v5961 = vadd.f32 %v5917, %v5960
        %v5962 = vrot.slane %v5961, 2
        %v5963 = vadd.f32 %v5961, %v5962
        %v5964 = vrot.slane %v5963, 1
        %v5965 = vadd.f32 %v5963, %v5964
        %v5966 = vmul.f32 %v5923, %v1729
        %v5967 = vmul.f32 %v5929, %v1729
        %v5968 = vmul.f32 %v5935, %v1729
        %v5969 = vmul.f32 %v5941, %v1729
        %v5970 = vmul.f32 %v5947, %v1729
        %v5971 = vmul.f32 %v5953, %v1729
        %v5972 = vmul.f32 %v5959, %v1729
        %v5973 = vmul.f32 %v5965, %v1729
        %v5974 = vmul.f32 %v5902, %v5902
        %v5975 = vmul.f32 %v5903, %v5903
        %v5976 = vmul.f32 %v5904, %v5904
        %v5977 = vmul.f32 %v5905, %v5905
        %v5978 = vmul.f32 %v5906, %v5906
        %v5979 = vmul.f32 %v5907, %v5907
        %v5980 = vmul.f32 %v5908, %v5908
        %v5981 = vmul.f32 %v5909, %v5909
        %v5982 = vsub.f32 %v5966, %v5974
        %v5983 = vsub.f32 %v5967, %v5975
        %v5984 = vsub.f32 %v5968, %v5976
        %v5985 = vsub.f32 %v5969, %v5977
        %v5986 = vsub.f32 %v5970, %v5978
        %v5987 = vsub.f32 %v5971, %v5979
        %v5988 = vsub.f32 %v5972, %v5980
        %v5989 = vsub.f32 %v5973, %v5981
        %v5990 = vmax.f32 %v5982, 0.0
        %v5991 = vmax.f32 %v5983, 0.0
        %v5992 = vmax.f32 %v5984, 0.0
        %v5993 = vmax.f32 %v5985, 0.0
        %v5994 = vmax.f32 %v5986, 0.0
        %v5995 = vmax.f32 %v5987, 0.0
        %v5996 = vmax.f32 %v5988, 0.0
        %v5997 = vmax.f32 %v5989, 0.0
        %v5998 = vld [vmem:[#allocation14] sm:$0xff]
        %v5999 = vadd.f32 %v5990, 1e-05
        %v6000 = vadd.f32 %v5991, 1e-05
        %v6001 = vadd.f32 %v5992, 1e-05
        %v6002 = vadd.f32 %v5993, 1e-05
        %v6003 = vadd.f32 %v5994, 1e-05
        %v6004 = vadd.f32 %v5995, 1e-05
        %v6005 = vadd.f32 %v5996, 1e-05
        %v6006 = vadd.f32 %v5997, 1e-05
        %v6007 = vrsqrt.pop %v5999
        %v6008 = vrsqrt.pop %v6000
        %v6009 = vrsqrt.pop %v6001
        %v6010 = vrsqrt.pop %v6002
        %v6011 = vrsqrt.pop %v6003
        %v6012 = vrsqrt.pop %v6004
        %v6013 = vrsqrt.pop %v6005
        %v6014 = vrsqrt.pop %v6006
        %v6023 = vcombine.low %v6007, %v6008
        %v6024 = vcombine.low %v6009, %v6010
        %v6025 = vcombine.low %v6011, %v6012
        %v6026 = vcombine.low %v6013, %v6014
        %v6028 = vunpack.c.l.s4 1966171168
        %v6029 = vunpack.c.0.s8 %v6028
        %v6030 = vlaneseq
        %v6031 = vshrl.u32 %v6030, 7
        %v6032 = vsub.s32 %v6029, %v6031
        %v6033 = vrot.slane %v6023, %v6032
        %v6035 = vunpack.c.l.s4 1966171168
        %v6036 = vunpack.c.0.s8 %v6035
        %v6037 = vlaneseq
        %v6038 = vshrl.u32 %v6037, 7
        %v6039 = vsub.s32 %v6036, %v6038
        %v6040 = vrot.slane %v6024, %v6039
        %v6042 = vunpack.c.l.s4 1966171168
        %v6043 = vunpack.c.0.s8 %v6042
        %v6044 = vlaneseq
        %v6045 = vshrl.u32 %v6044, 7
        %v6046 = vsub.s32 %v6043, %v6045
        %v6047 = vrot.slane %v6025, %v6046
        %v6049 = vunpack.c.l.s4 1966171168
        %v6050 = vunpack.c.0.s8 %v6049
        %v6051 = vlaneseq
        %v6052 = vshrl.u32 %v6051, 7
        %v6053 = vsub.s32 %v6050, %v6052
        %v6054 = vrot.slane %v6026, %v6053
        %v6055 = vcombine.low %v6033, %v6040
        %v6056 = vcombine.low %v6047, %v6054
        %v6058 = vunpack.c.l.s4 1966171168
        %v6059 = vunpack.c.0.s8 %v6058
        %v6060 = vlaneseq
        %v6061 = vshrl.u32 %v6060, 7
        %v6062 = vsub.s32 %v6059, %v6061
        %v6063 = vrot.slane %v6055, %v6062
        %v6065 = vunpack.c.l.s4 1966171168
        %v6066 = vunpack.c.0.s8 %v6065
        %v6067 = vlaneseq
        %v6068 = vshrl.u32 %v6067, 7
        %v6069 = vsub.s32 %v6066, %v6068
        %v6070 = vrot.slane %v6056, %v6069
        %v6071 = vcombine.low %v6063, %v6070
        %v6073 = vmul.f32 %v5998, %v6071
        %v6074 = vld [vmem:[#allocation16] sm:$0xff]
        %v6076 = vlaneseq
        %v6077 = vshrl.u32 %v6076, 7
        %v6078 = vsub.s32 0, %v6077
        %v6079 = vrot.slane %v6073, %v6078
        %v6080 = vlaneseq
        %v6081 = vshrl.u32 %v6080, 7
        %v6082 = vsub.s32 1, %v6081
        %v6083 = vrot.slane %v6073, %v6082
        %v6084 = vlaneseq
        %v6085 = vshrl.u32 %v6084, 7
        %v6086 = vsub.s32 2, %v6085
        %v6087 = vrot.slane %v6073, %v6086
        %v6088 = vlaneseq
        %v6089 = vshrl.u32 %v6088, 7
        %v6090 = vsub.s32 3, %v6089
        %v6091 = vrot.slane %v6073, %v6090
        %v6092 = vlaneseq
        %v6093 = vshrl.u32 %v6092, 7
        %v6094 = vsub.s32 4, %v6093
        %v6095 = vrot.slane %v6073, %v6094
        %v6096 = vlaneseq
        %v6097 = vshrl.u32 %v6096, 7
        %v6098 = vsub.s32 5, %v6097
        %v6099 = vrot.slane %v6073, %v6098
        %v6100 = vlaneseq
        %v6101 = vshrl.u32 %v6100, 7
        %v6102 = vsub.s32 6, %v6101
        %v6103 = vrot.slane %v6073, %v6102
        %v6104 = vlaneseq
        %v6105 = vshrl.u32 %v6104, 7
        %v6106 = vsub.s32 7, %v6105
        %v6107 = vrot.slane %v6073, %v6106
        %v6116 = vmul.f32 %v5902, %v6079
        %v6117 = vmul.f32 %v5903, %v6083
        %v6118 = vmul.f32 %v5904, %v6087
        %v6119 = vmul.f32 %v5905, %v6091
        %v6120 = vmul.f32 %v5906, %v6095
        %v6121 = vmul.f32 %v5907, %v6099
        %v6122 = vmul.f32 %v5908, %v6103
        %v6123 = vmul.f32 %v5909, %v6107
        %v6132 = vcombine.low %v6116, %v6117
        %v6133 = vcombine.low %v6118, %v6119
        %v6134 = vcombine.low %v6120, %v6121
        %v6135 = vcombine.low %v6122, %v6123
        %v6137 = vunpack.c.l.s4 1966171168
        %v6138 = vunpack.c.0.s8 %v6137
        %v6139 = vlaneseq
        %v6140 = vshrl.u32 %v6139, 7
        %v6141 = vsub.s32 %v6138, %v6140
        %v6142 = vrot.slane %v6132, %v6141
        %v6144 = vunpack.c.l.s4 1966171168
        %v6145 = vunpack.c.0.s8 %v6144
        %v6146 = vlaneseq
        %v6147 = vshrl.u32 %v6146, 7
        %v6148 = vsub.s32 %v6145, %v6147
        %v6149 = vrot.slane %v6133, %v6148
        %v6151 = vunpack.c.l.s4 1966171168
        %v6152 = vunpack.c.0.s8 %v6151
        %v6153 = vlaneseq
        %v6154 = vshrl.u32 %v6153, 7
        %v6155 = vsub.s32 %v6152, %v6154
        %v6156 = vrot.slane %v6134, %v6155
        %v6158 = vunpack.c.l.s4 1966171168
        %v6159 = vunpack.c.0.s8 %v6158
        %v6160 = vlaneseq
        %v6161 = vshrl.u32 %v6160, 7
        %v6162 = vsub.s32 %v6159, %v6161
        %v6163 = vrot.slane %v6135, %v6162
        %v6164 = vcombine.low %v6142, %v6149
        %v6165 = vcombine.low %v6156, %v6163
        %v6167 = vunpack.c.l.s4 1966171168
        %v6168 = vunpack.c.0.s8 %v6167
        %v6169 = vlaneseq
        %v6170 = vshrl.u32 %v6169, 7
        %v6171 = vsub.s32 %v6168, %v6170
        %v6172 = vrot.slane %v6164, %v6171
        %v6174 = vunpack.c.l.s4 1966171168
        %v6175 = vunpack.c.0.s8 %v6174
        %v6176 = vlaneseq
        %v6177 = vshrl.u32 %v6176, 7
        %v6178 = vsub.s32 %v6175, %v6177
        %v6179 = vrot.slane %v6165, %v6178
        %v6180 = vcombine.low %v6172, %v6179
        %v6182 = vsub.f32 %v6074, %v6180
        %v6183 = vmul.f32 %v5846, %v6079
        %v6184 = vmul.f32 %v5847, %v6083
        %v6185 = vmul.f32 %v5848, %v6087
        %v6186 = vmul.f32 %v5849, %v6091
        %v6187 = vmul.f32 %v5850, %v6095
        %v6188 = vmul.f32 %v5851, %v6099
        %v6189 = vmul.f32 %v5852, %v6103
        %v6190 = vmul.f32 %v5853, %v6107
        %v6192 = vlaneseq
        %v6193 = vshrl.u32 %v6192, 7
        %v6194 = vsub.s32 0, %v6193
        %v6195 = vrot.slane %v6182, %v6194
        %v6196 = vlaneseq
        %v6197 = vshrl.u32 %v6196, 7
        %v6198 = vsub.s32 1, %v6197
        %v6199 = vrot.slane %v6182, %v6198
        %v6200 = vlaneseq
        %v6201 = vshrl.u32 %v6200, 7
        %v6202 = vsub.s32 2, %v6201
        %v6203 = vrot.slane %v6182, %v6202
        %v6204 = vlaneseq
        %v6205 = vshrl.u32 %v6204, 7
        %v6206 = vsub.s32 3, %v6205
        %v6207 = vrot.slane %v6182, %v6206
        %v6208 = vlaneseq
        %v6209 = vshrl.u32 %v6208, 7
        %v6210 = vsub.s32 4, %v6209
        %v6211 = vrot.slane %v6182, %v6210
        %v6212 = vlaneseq
        %v6213 = vshrl.u32 %v6212, 7
        %v6214 = vsub.s32 5, %v6213
        %v6215 = vrot.slane %v6182, %v6214
        %v6216 = vlaneseq
        %v6217 = vshrl.u32 %v6216, 7
        %v6218 = vsub.s32 6, %v6217
        %v6219 = vrot.slane %v6182, %v6218
        %v6220 = vlaneseq
        %v6221 = vshrl.u32 %v6220, 7
        %v6222 = vsub.s32 7, %v6221
        %v6223 = vrot.slane %v6182, %v6222
        %v6232 = vadd.f32 %v6183, %v6195
        %v6233 = vadd.f32 %v6184, %v6199
        %v6234 = vadd.f32 %v6185, %v6203
        %v6235 = vadd.f32 %v6186, %v6207
        %v6236 = vadd.f32 %v6187, %v6211
        %v6237 = vadd.f32 %v6188, %v6215
        %v6238 = vadd.f32 %v6189, %v6219
        %v6239 = vadd.f32 %v6190, %v6223
        %v6240 = vpack.c.bf16 %v6232, %v6232
        %v6241 = vpack.c.bf16 %v6233, %v6233
        %v6242 = vpack.c.bf16 %v6234, %v6234
        %v6243 = vpack.c.bf16 %v6235, %v6235
        %v6244 = vpack.c.bf16 %v6236, %v6236
        %v6245 = vpack.c.bf16 %v6237, %v6237
        %v6246 = vpack.c.bf16 %v6238, %v6238
        %v6247 = vpack.c.bf16 %v6239, %v6239
        %v6248 = vld [vmem:[#allocation17] sm:$0xff]
        %v6249 = vld [vmem:[#allocation17 + $0x8] sm:$0xff]
        %v6250 = vld [vmem:[#allocation17 + $0x10] sm:$0xff]
        %v6251 = vld [vmem:[#allocation17 + $0x18] sm:$0xff]
        %v6252 = vld [vmem:[#allocation17 + $0x20] sm:$0xff]
        %v6253 = vld [vmem:[#allocation17 + $0x28] sm:$0xff]
        %v6254 = vld [vmem:[#allocation17 + $0x30] sm:$0xff]
        %v6255 = vld [vmem:[#allocation17 + $0x38] sm:$0xff]
        %v6256 = vld [vmem:[#allocation17 + $0x40] sm:$0xff]
        %v6257 = vld [vmem:[#allocation17 + $0x48] sm:$0xff]
        %v6258 = vld [vmem:[#allocation17 + $0x50] sm:$0xff]
        %v6259 = vld [vmem:[#allocation17 + $0x58] sm:$0xff]
        %v6260 = vld [vmem:[#allocation17 + $0x60] sm:$0xff]
        %v6261 = vld [vmem:[#allocation17 + $0x68] sm:$0xff]
        %v6262 = vld [vmem:[#allocation17 + $0x70] sm:$0xff]
        %v6263 = vld [vmem:[#allocation17 + $0x78] sm:$0xff]
        %v6264 = vld [vmem:[#allocation17 + $0x80] sm:$0xff]
        %v6265 = vld [vmem:[#allocation17 + $0x88] sm:$0xff]
        %v6266 = vld [vmem:[#allocation17 + $0x90] sm:$0xff]
        %v6267 = vld [vmem:[#allocation17 + $0x98] sm:$0xff]
        %v6268 = vld [vmem:[#allocation17 + $0xa0] sm:$0xff]
        %v6269 = vld [vmem:[#allocation17 + $0xa8] sm:$0xff]
        %v6270 = vld [vmem:[#allocation17 + $0xb0] sm:$0xff]
        %v6271 = vld [vmem:[#allocation17 + $0xb8] sm:$0xff]
        %v6272 = vld [vmem:[#allocation17 + $0xc0] sm:$0xff]
        %v6273 = vld [vmem:[#allocation17 + $0xc8] sm:$0xff]
        %v6274 = vld [vmem:[#allocation17 + $0xd0] sm:$0xff]
        %v6275 = vld [vmem:[#allocation17 + $0xd8] sm:$0xff]
        %v6276 = vld [vmem:[#allocation17 + $0xe0] sm:$0xff]
        %v6277 = vld [vmem:[#allocation17 + $0xe8] sm:$0xff]
        %v6278 = vld [vmem:[#allocation17 + $0xf0] sm:$0xff]
        %v6279 = vld [vmem:[#allocation17 + $0xf8] sm:$0xff]
        %v6280 = vld [vmem:[#allocation17 + $0x100] sm:$0xff]
        %v6281 = vld [vmem:[#allocation17 + $0x108] sm:$0xff]
        %v6282 = vld [vmem:[#allocation17 + $0x110] sm:$0xff]
        %v6283 = vld [vmem:[#allocation17 + $0x118] sm:$0xff]
        %v6284 = vld [vmem:[#allocation17 + $0x120] sm:$0xff]
        %v6285 = vld [vmem:[#allocation17 + $0x128] sm:$0xff]
        %v6286 = vld [vmem:[#allocation17 + $0x130] sm:$0xff]
        %v6287 = vld [vmem:[#allocation17 + $0x138] sm:$0xff]
        %v6288 = vld [vmem:[#allocation17 + $0x140] sm:$0xff]
        %v6289 = vld [vmem:[#allocation17 + $0x148] sm:$0xff]
        %v6290 = vld [vmem:[#allocation17 + $0x150] sm:$0xff]
        %v6291 = vld [vmem:[#allocation17 + $0x158] sm:$0xff]
        %v6292 = vld [vmem:[#allocation17 + $0x160] sm:$0xff]
        %v6293 = vld [vmem:[#allocation17 + $0x168] sm:$0xff]
        %v6294 = vld [vmem:[#allocation17 + $0x170] sm:$0xff]
        %v6295 = vld [vmem:[#allocation17 + $0x178] sm:$0xff]
        %v6296 = vld [vmem:[#allocation17 + $0x180] sm:$0xff]
        %v6297 = vld [vmem:[#allocation17 + $0x188] sm:$0xff]
        %v6298 = vld [vmem:[#allocation17 + $0x190] sm:$0xff]
        %v6299 = vld [vmem:[#allocation17 + $0x198] sm:$0xff]
        %v6300 = vld [vmem:[#allocation17 + $0x1a0] sm:$0xff]
        %v6301 = vld [vmem:[#allocation17 + $0x1a8] sm:$0xff]
        %v6302 = vld [vmem:[#allocation17 + $0x1b0] sm:$0xff]
        %v6303 = vld [vmem:[#allocation17 + $0x1b8] sm:$0xff]
        %v6304 = vld [vmem:[#allocation17 + $0x1c0] sm:$0xff]
        %v6305 = vld [vmem:[#allocation17 + $0x1c8] sm:$0xff]
        %v6306 = vld [vmem:[#allocation17 + $0x1d0] sm:$0xff]
        %v6307 = vld [vmem:[#allocation17 + $0x1d8] sm:$0xff]
        %v6308 = vld [vmem:[#allocation17 + $0x1e0] sm:$0xff]
        %v6309 = vld [vmem:[#allocation17 + $0x1e8] sm:$0xff]
        %v6310 = vld [vmem:[#allocation17 + $0x1f0] sm:$0xff]
        %v6311 = vld [vmem:[#allocation17 + $0x1f8] sm:$0xff]
        %v6312 = vld [vmem:[#allocation17 + $0x200] sm:$0xff]
        %v6313 = vld [vmem:[#allocation17 + $0x208] sm:$0xff]
        %v6314 = vld [vmem:[#allocation17 + $0x210] sm:$0xff]
        %v6315 = vld [vmem:[#allocation17 + $0x218] sm:$0xff]
        %v6316 = vld [vmem:[#allocation17 + $0x220] sm:$0xff]
        %v6317 = vld [vmem:[#allocation17 + $0x228] sm:$0xff]
        %v6318 = vld [vmem:[#allocation17 + $0x230] sm:$0xff]
        %v6319 = vld [vmem:[#allocation17 + $0x238] sm:$0xff]
        %v6320 = vld [vmem:[#allocation17 + $0x240] sm:$0xff]
        %v6321 = vld [vmem:[#allocation17 + $0x248] sm:$0xff]
        %v6322 = vld [vmem:[#allocation17 + $0x250] sm:$0xff]
        %v6323 = vld [vmem:[#allocation17 + $0x258] sm:$0xff]
        %v6324 = vld [vmem:[#allocation17 + $0x260] sm:$0xff]
        %v6325 = vld [vmem:[#allocation17 + $0x268] sm:$0xff]
        %v6326 = vld [vmem:[#allocation17 + $0x270] sm:$0xff]
        %v6327 = vld [vmem:[#allocation17 + $0x278] sm:$0xff]
        %v6328 = vld [vmem:[#allocation17 + $0x280] sm:$0xff]
        %v6329 = vld [vmem:[#allocation17 + $0x288] sm:$0xff]
        %v6330 = vld [vmem:[#allocation17 + $0x290] sm:$0xff]
        %v6331 = vld [vmem:[#allocation17 + $0x298] sm:$0xff]
        %v6332 = vld [vmem:[#allocation17 + $0x2a0] sm:$0xff]
        %v6333 = vld [vmem:[#allocation17 + $0x2a8] sm:$0xff]
        %v6334 = vld [vmem:[#allocation17 + $0x2b0] sm:$0xff]
        %v6335 = vld [vmem:[#allocation17 + $0x2b8] sm:$0xff]
        %v6336 = vld [vmem:[#allocation17 + $0x2c0] sm:$0xff]
        %v6337 = vld [vmem:[#allocation17 + $0x2c8] sm:$0xff]
        %v6338 = vld [vmem:[#allocation17 + $0x2d0] sm:$0xff]
        %v6339 = vld [vmem:[#allocation17 + $0x2d8] sm:$0xff]
        %v6340 = vld [vmem:[#allocation17 + $0x2e0] sm:$0xff]
        %v6341 = vld [vmem:[#allocation17 + $0x2e8] sm:$0xff]
        %v6342 = vld [vmem:[#allocation17 + $0x2f0] sm:$0xff]
        %v6343 = vld [vmem:[#allocation17 + $0x2f8] sm:$0xff]
        %v6344 = vld [vmem:[#allocation17 + $0x300] sm:$0xff]
        %v6345 = vld [vmem:[#allocation17 + $0x308] sm:$0xff]
        %v6346 = vld [vmem:[#allocation17 + $0x310] sm:$0xff]
        %v6347 = vld [vmem:[#allocation17 + $0x318] sm:$0xff]
        %v6348 = vld [vmem:[#allocation17 + $0x320] sm:$0xff]
        %v6349 = vld [vmem:[#allocation17 + $0x328] sm:$0xff]
        %v6350 = vld [vmem:[#allocation17 + $0x330] sm:$0xff]
        %v6351 = vld [vmem:[#allocation17 + $0x338] sm:$0xff]
        %v6352 = vld [vmem:[#allocation17 + $0x340] sm:$0xff]
        %v6353 = vld [vmem:[#allocation17 + $0x348] sm:$0xff]
        %v6354 = vld [vmem:[#allocation17 + $0x350] sm:$0xff]
        %v6355 = vld [vmem:[#allocation17 + $0x358] sm:$0xff]
        %v6356 = vld [vmem:[#allocation17 + $0x360] sm:$0xff]
        %v6357 = vld [vmem:[#allocation17 + $0x368] sm:$0xff]
        %v6358 = vld [vmem:[#allocation17 + $0x370] sm:$0xff]
        %v6359 = vld [vmem:[#allocation17 + $0x378] sm:$0xff]
        %v6360 = vld [vmem:[#allocation17 + $0x380] sm:$0xff]
        %v6361 = vld [vmem:[#allocation17 + $0x388] sm:$0xff]
        %v6362 = vld [vmem:[#allocation17 + $0x390] sm:$0xff]
        %v6363 = vld [vmem:[#allocation17 + $0x398] sm:$0xff]
        %v6364 = vld [vmem:[#allocation17 + $0x3a0] sm:$0xff]
        %v6365 = vld [vmem:[#allocation17 + $0x3a8] sm:$0xff]
        %v6366 = vld [vmem:[#allocation17 + $0x3b0] sm:$0xff]
        %v6367 = vld [vmem:[#allocation17 + $0x3b8] sm:$0xff]
        %v6368 = vld [vmem:[#allocation17 + $0x3c0] sm:$0xff]
        %v6369 = vld [vmem:[#allocation17 + $0x3c8] sm:$0xff]
        %v6370 = vld [vmem:[#allocation17 + $0x3d0] sm:$0xff]
        %v6371 = vld [vmem:[#allocation17 + $0x3d8] sm:$0xff]
        %v6372 = vld [vmem:[#allocation17 + $0x3e0] sm:$0xff]
        %v6373 = vld [vmem:[#allocation17 + $0x3e8] sm:$0xff]
        %v6374 = vld [vmem:[#allocation17 + $0x3f0] sm:$0xff]
        %v6375 = vld [vmem:[#allocation17 + $0x3f8] sm:$0xff]
        %v6376 = vld [vmem:[#allocation17 + $0x400] sm:$0xff]
        %v6377 = vld [vmem:[#allocation17 + $0x408] sm:$0xff]
        %v6378 = vld [vmem:[#allocation17 + $0x410] sm:$0xff]
        %v6379 = vld [vmem:[#allocation17 + $0x418] sm:$0xff]
        %v6380 = vld [vmem:[#allocation17 + $0x420] sm:$0xff]
        %v6381 = vld [vmem:[#allocation17 + $0x428] sm:$0xff]
        %v6382 = vld [vmem:[#allocation17 + $0x430] sm:$0xff]
        %v6383 = vld [vmem:[#allocation17 + $0x438] sm:$0xff]
        %v6384 = vld [vmem:[#allocation17 + $0x440] sm:$0xff]
        %v6385 = vld [vmem:[#allocation17 + $0x448] sm:$0xff]
        %v6386 = vld [vmem:[#allocation17 + $0x450] sm:$0xff]
        %v6387 = vld [vmem:[#allocation17 + $0x458] sm:$0xff]
        %v6388 = vld [vmem:[#allocation17 + $0x460] sm:$0xff]
        %v6389 = vld [vmem:[#allocation17 + $0x468] sm:$0xff]
        %v6390 = vld [vmem:[#allocation17 + $0x470] sm:$0xff]
        %v6391 = vld [vmem:[#allocation17 + $0x478] sm:$0xff]
        %v6392 = vld [vmem:[#allocation17 + $0x480] sm:$0xff]
        %v6393 = vld [vmem:[#allocation17 + $0x488] sm:$0xff]
        %v6394 = vld [vmem:[#allocation17 + $0x490] sm:$0xff]
        %v6395 = vld [vmem:[#allocation17 + $0x498] sm:$0xff]
        %v6396 = vld [vmem:[#allocation17 + $0x4a0] sm:$0xff]
        %v6397 = vld [vmem:[#allocation17 + $0x4a8] sm:$0xff]
        %v6398 = vld [vmem:[#allocation17 + $0x4b0] sm:$0xff]
        %v6399 = vld [vmem:[#allocation17 + $0x4b8] sm:$0xff]
        %v6400 = vld [vmem:[#allocation17 + $0x4c0] sm:$0xff]
        %v6401 = vld [vmem:[#allocation17 + $0x4c8] sm:$0xff]
        %v6402 = vld [vmem:[#allocation17 + $0x4d0] sm:$0xff]
        %v6403 = vld [vmem:[#allocation17 + $0x4d8] sm:$0xff]
        %v6404 = vld [vmem:[#allocation17 + $0x4e0] sm:$0xff]
        %v6405 = vld [vmem:[#allocation17 + $0x4e8] sm:$0xff]
        %v6406 = vld [vmem:[#allocation17 + $0x4f0] sm:$0xff]
        %v6407 = vld [vmem:[#allocation17 + $0x4f8] sm:$0xff]
        %v6408 = vld [vmem:[#allocation17 + $0x500] sm:$0xff]
        %v6409 = vld [vmem:[#allocation17 + $0x508] sm:$0xff]
        %v6410 = vld [vmem:[#allocation17 + $0x510] sm:$0xff]
        %v6411 = vld [vmem:[#allocation17 + $0x518] sm:$0xff]
        %v6412 = vld [vmem:[#allocation17 + $0x520] sm:$0xff]
        %v6413 = vld [vmem:[#allocation17 + $0x528] sm:$0xff]
        %v6414 = vld [vmem:[#allocation17 + $0x530] sm:$0xff]
        %v6415 = vld [vmem:[#allocation17 + $0x538] sm:$0xff]
        %v6416 = vld [vmem:[#allocation17 + $0x540] sm:$0xff]
        %v6417 = vld [vmem:[#allocation17 + $0x548] sm:$0xff]
        %v6418 = vld [vmem:[#allocation17 + $0x550] sm:$0xff]
        %v6419 = vld [vmem:[#allocation17 + $0x558] sm:$0xff]
        %v6420 = vld [vmem:[#allocation17 + $0x560] sm:$0xff]
        %v6421 = vld [vmem:[#allocation17 + $0x568] sm:$0xff]
        %v6422 = vld [vmem:[#allocation17 + $0x570] sm:$0xff]
        %v6423 = vld [vmem:[#allocation17 + $0x578] sm:$0xff]
        %v6424 = vld [vmem:[#allocation17 + $0x580] sm:$0xff]
        %v6425 = vld [vmem:[#allocation17 + $0x588] sm:$0xff]
        %v6426 = vld [vmem:[#allocation17 + $0x590] sm:$0xff]
        %v6427 = vld [vmem:[#allocation17 + $0x598] sm:$0xff]
        %v6428 = vld [vmem:[#allocation17 + $0x5a0] sm:$0xff]
        %v6429 = vld [vmem:[#allocation17 + $0x5a8] sm:$0xff]
        %v6430 = vld [vmem:[#allocation17 + $0x5b0] sm:$0xff]
        %v6431 = vld [vmem:[#allocation17 + $0x5b8] sm:$0xff]
        %v6432 = vld [vmem:[#allocation17 + $0x5c0] sm:$0xff]
        %v6433 = vld [vmem:[#allocation17 + $0x5c8] sm:$0xff]
        %v6434 = vld [vmem:[#allocation17 + $0x5d0] sm:$0xff]
        %v6435 = vld [vmem:[#allocation17 + $0x5d8] sm:$0xff]
        %v6436 = vld [vmem:[#allocation17 + $0x5e0] sm:$0xff]
        %v6437 = vld [vmem:[#allocation17 + $0x5e8] sm:$0xff]
        %v6438 = vld [vmem:[#allocation17 + $0x5f0] sm:$0xff]
        %v6439 = vld [vmem:[#allocation17 + $0x5f8] sm:$0xff]
        %v6440 = vld [vmem:[#allocation17 + $0x600] sm:$0xff]
        %v6441 = vld [vmem:[#allocation17 + $0x608] sm:$0xff]
        %v6442 = vld [vmem:[#allocation17 + $0x610] sm:$0xff]
        %v6443 = vld [vmem:[#allocation17 + $0x618] sm:$0xff]
        %v6444 = vld [vmem:[#allocation17 + $0x620] sm:$0xff]
        %v6445 = vld [vmem:[#allocation17 + $0x628] sm:$0xff]
        %v6446 = vld [vmem:[#allocation17 + $0x630] sm:$0xff]
        %v6447 = vld [vmem:[#allocation17 + $0x638] sm:$0xff]
        %v6448 = vld [vmem:[#allocation17 + $0x640] sm:$0xff]
        %v6449 = vld [vmem:[#allocation17 + $0x648] sm:$0xff]
        %v6450 = vld [vmem:[#allocation17 + $0x650] sm:$0xff]
        %v6451 = vld [vmem:[#allocation17 + $0x658] sm:$0xff]
        %v6452 = vld [vmem:[#allocation17 + $0x660] sm:$0xff]
        %v6453 = vld [vmem:[#allocation17 + $0x668] sm:$0xff]
        %v6454 = vld [vmem:[#allocation17 + $0x670] sm:$0xff]
        %v6455 = vld [vmem:[#allocation17 + $0x678] sm:$0xff]
        %v6456 = vld [vmem:[#allocation17 + $0x680] sm:$0xff]
        %v6457 = vld [vmem:[#allocation17 + $0x688] sm:$0xff]
        %v6458 = vld [vmem:[#allocation17 + $0x690] sm:$0xff]
        %v6459 = vld [vmem:[#allocation17 + $0x698] sm:$0xff]
        %v6460 = vld [vmem:[#allocation17 + $0x6a0] sm:$0xff]
        %v6461 = vld [vmem:[#allocation17 + $0x6a8] sm:$0xff]
        %v6462 = vld [vmem:[#allocation17 + $0x6b0] sm:$0xff]
        %v6463 = vld [vmem:[#allocation17 + $0x6b8] sm:$0xff]
        %v6464 = vld [vmem:[#allocation17 + $0x6c0] sm:$0xff]
        %v6465 = vld [vmem:[#allocation17 + $0x6c8] sm:$0xff]
        %v6466 = vld [vmem:[#allocation17 + $0x6d0] sm:$0xff]
        %v6467 = vld [vmem:[#allocation17 + $0x6d8] sm:$0xff]
        %v6468 = vld [vmem:[#allocation17 + $0x6e0] sm:$0xff]
        %v6469 = vld [vmem:[#allocation17 + $0x6e8] sm:$0xff]
        %v6470 = vld [vmem:[#allocation17 + $0x6f0] sm:$0xff]
        %v6471 = vld [vmem:[#allocation17 + $0x6f8] sm:$0xff]
        %v6472 = vld [vmem:[#allocation17 + $0x700] sm:$0xff]
        %v6473 = vld [vmem:[#allocation17 + $0x708] sm:$0xff]
        %v6474 = vld [vmem:[#allocation17 + $0x710] sm:$0xff]
        %v6475 = vld [vmem:[#allocation17 + $0x718] sm:$0xff]
        %v6476 = vld [vmem:[#allocation17 + $0x720] sm:$0xff]
        %v6477 = vld [vmem:[#allocation17 + $0x728] sm:$0xff]
        %v6478 = vld [vmem:[#allocation17 + $0x730] sm:$0xff]
        %v6479 = vld [vmem:[#allocation17 + $0x738] sm:$0xff]
        %v6480 = vld [vmem:[#allocation17 + $0x740] sm:$0xff]
        %v6481 = vld [vmem:[#allocation17 + $0x748] sm:$0xff]
        %v6482 = vld [vmem:[#allocation17 + $0x750] sm:$0xff]
        %v6483 = vld [vmem:[#allocation17 + $0x758] sm:$0xff]
        %v6484 = vld [vmem:[#allocation17 + $0x760] sm:$0xff]
        %v6485 = vld [vmem:[#allocation17 + $0x768] sm:$0xff]
        %v6486 = vld [vmem:[#allocation17 + $0x770] sm:$0xff]
        %v6487 = vld [vmem:[#allocation17 + $0x778] sm:$0xff]
        %v6488 = vld [vmem:[#allocation17 + $0x780] sm:$0xff]
        %v6489 = vld [vmem:[#allocation17 + $0x788] sm:$0xff]
        %v6490 = vld [vmem:[#allocation17 + $0x790] sm:$0xff]
        %v6491 = vld [vmem:[#allocation17 + $0x798] sm:$0xff]
        %v6492 = vld [vmem:[#allocation17 + $0x7a0] sm:$0xff]
        %v6493 = vld [vmem:[#allocation17 + $0x7a8] sm:$0xff]
        %v6494 = vld [vmem:[#allocation17 + $0x7b0] sm:$0xff]
        %v6495 = vld [vmem:[#allocation17 + $0x7b8] sm:$0xff]
        %v6496 = vld [vmem:[#allocation17 + $0x7c0] sm:$0xff]
        %v6497 = vld [vmem:[#allocation17 + $0x7c8] sm:$0xff]
        %v6498 = vld [vmem:[#allocation17 + $0x7d0] sm:$0xff]
        %v6499 = vld [vmem:[#allocation17 + $0x7d8] sm:$0xff]
        %v6500 = vld [vmem:[#allocation17 + $0x7e0] sm:$0xff]
        %v6501 = vld [vmem:[#allocation17 + $0x7e8] sm:$0xff]
        %v6502 = vld [vmem:[#allocation17 + $0x7f0] sm:$0xff]
        %v6503 = vld [vmem:[#allocation17 + $0x7f8] sm:$0xff]
        %v6504 = vld [vmem:[#allocation17 + $0x800] sm:$0xff]
        %v6505 = vld [vmem:[#allocation17 + $0x808] sm:$0xff]
        %v6506 = vld [vmem:[#allocation17 + $0x810] sm:$0xff]
        %v6507 = vld [vmem:[#allocation17 + $0x818] sm:$0xff]
        %v6508 = vld [vmem:[#allocation17 + $0x820] sm:$0xff]
        %v6509 = vld [vmem:[#allocation17 + $0x828] sm:$0xff]
        %v6510 = vld [vmem:[#allocation17 + $0x830] sm:$0xff]
        %v6511 = vld [vmem:[#allocation17 + $0x838] sm:$0xff]
        %v6512 = vld [vmem:[#allocation17 + $0x840] sm:$0xff]
        %v6513 = vld [vmem:[#allocation17 + $0x848] sm:$0xff]
        %v6514 = vld [vmem:[#allocation17 + $0x850] sm:$0xff]
        %v6515 = vld [vmem:[#allocation17 + $0x858] sm:$0xff]
        %v6516 = vld [vmem:[#allocation17 + $0x860] sm:$0xff]
        %v6517 = vld [vmem:[#allocation17 + $0x868] sm:$0xff]
        %v6518 = vld [vmem:[#allocation17 + $0x870] sm:$0xff]
        %v6519 = vld [vmem:[#allocation17 + $0x878] sm:$0xff]
        %v6520 = vld [vmem:[#allocation17 + $0x880] sm:$0xff]
        %v6521 = vld [vmem:[#allocation17 + $0x888] sm:$0xff]
        %v6522 = vld [vmem:[#allocation17 + $0x890] sm:$0xff]
        %v6523 = vld [vmem:[#allocation17 + $0x898] sm:$0xff]
        %v6524 = vld [vmem:[#allocation17 + $0x8a0] sm:$0xff]
        %v6525 = vld [vmem:[#allocation17 + $0x8a8] sm:$0xff]
        %v6526 = vld [vmem:[#allocation17 + $0x8b0] sm:$0xff]
        %v6527 = vld [vmem:[#allocation17 + $0x8b8] sm:$0xff]
        %v6528 = vld [vmem:[#allocation17 + $0x8c0] sm:$0xff]
        %v6529 = vld [vmem:[#allocation17 + $0x8c8] sm:$0xff]
        %v6530 = vld [vmem:[#allocation17 + $0x8d0] sm:$0xff]
        %v6531 = vld [vmem:[#allocation17 + $0x8d8] sm:$0xff]
        %v6532 = vld [vmem:[#allocation17 + $0x8e0] sm:$0xff]
        %v6533 = vld [vmem:[#allocation17 + $0x8e8] sm:$0xff]
        %v6534 = vld [vmem:[#allocation17 + $0x8f0] sm:$0xff]
        %v6535 = vld [vmem:[#allocation17 + $0x8f8] sm:$0xff]
        %v6536 = vld [vmem:[#allocation17 + $0x900] sm:$0xff]
        %v6537 = vld [vmem:[#allocation17 + $0x908] sm:$0xff]
        %v6538 = vld [vmem:[#allocation17 + $0x910] sm:$0xff]
        %v6539 = vld [vmem:[#allocation17 + $0x918] sm:$0xff]
        %v6540 = vld [vmem:[#allocation17 + $0x920] sm:$0xff]
        %v6541 = vld [vmem:[#allocation17 + $0x928] sm:$0xff]
        %v6542 = vld [vmem:[#allocation17 + $0x930] sm:$0xff]
        %v6543 = vld [vmem:[#allocation17 + $0x938] sm:$0xff]
        %v6544 = vld [vmem:[#allocation17 + $0x940] sm:$0xff]
        %v6545 = vld [vmem:[#allocation17 + $0x948] sm:$0xff]
        %v6546 = vld [vmem:[#allocation17 + $0x950] sm:$0xff]
        %v6547 = vld [vmem:[#allocation17 + $0x958] sm:$0xff]
        %v6548 = vld [vmem:[#allocation17 + $0x960] sm:$0xff]
        %v6549 = vld [vmem:[#allocation17 + $0x968] sm:$0xff]
        %v6550 = vld [vmem:[#allocation17 + $0x970] sm:$0xff]
        %v6551 = vld [vmem:[#allocation17 + $0x978] sm:$0xff]
        %v6552 = vld [vmem:[#allocation17 + $0x980] sm:$0xff]
        %v6553 = vld [vmem:[#allocation17 + $0x988] sm:$0xff]
        %v6554 = vld [vmem:[#allocation17 + $0x990] sm:$0xff]
        %v6555 = vld [vmem:[#allocation17 + $0x998] sm:$0xff]
        %v6556 = vld [vmem:[#allocation17 + $0x9a0] sm:$0xff]
        %v6557 = vld [vmem:[#allocation17 + $0x9a8] sm:$0xff]
        %v6558 = vld [vmem:[#allocation17 + $0x9b0] sm:$0xff]
        %v6559 = vld [vmem:[#allocation17 + $0x9b8] sm:$0xff]
        %v6560 = vld [vmem:[#allocation17 + $0x9c0] sm:$0xff]
        %v6561 = vld [vmem:[#allocation17 + $0x9c8] sm:$0xff]
        %v6562 = vld [vmem:[#allocation17 + $0x9d0] sm:$0xff]
        %v6563 = vld [vmem:[#allocation17 + $0x9d8] sm:$0xff]
        %v6564 = vld [vmem:[#allocation17 + $0x9e0] sm:$0xff]
        %v6565 = vld [vmem:[#allocation17 + $0x9e8] sm:$0xff]
        %v6566 = vld [vmem:[#allocation17 + $0x9f0] sm:$0xff]
        %v6567 = vld [vmem:[#allocation17 + $0x9f8] sm:$0xff]
        %v6568 = vld [vmem:[#allocation17 + $0xa00] sm:$0xff]
        %v6569 = vld [vmem:[#allocation17 + $0xa08] sm:$0xff]
        %v6570 = vld [vmem:[#allocation17 + $0xa10] sm:$0xff]
        %v6571 = vld [vmem:[#allocation17 + $0xa18] sm:$0xff]
        %v6572 = vld [vmem:[#allocation17 + $0xa20] sm:$0xff]
        %v6573 = vld [vmem:[#allocation17 + $0xa28] sm:$0xff]
        %v6574 = vld [vmem:[#allocation17 + $0xa30] sm:$0xff]
        %v6575 = vld [vmem:[#allocation17 + $0xa38] sm:$0xff]
        %v6576 = vld [vmem:[#allocation17 + $0xa40] sm:$0xff]
        %v6577 = vld [vmem:[#allocation17 + $0xa48] sm:$0xff]
        %v6578 = vld [vmem:[#allocation17 + $0xa50] sm:$0xff]
        %v6579 = vld [vmem:[#allocation17 + $0xa58] sm:$0xff]
        %v6580 = vld [vmem:[#allocation17 + $0xa60] sm:$0xff]
        %v6581 = vld [vmem:[#allocation17 + $0xa68] sm:$0xff]
        %v6582 = vld [vmem:[#allocation17 + $0xa70] sm:$0xff]
        %v6583 = vld [vmem:[#allocation17 + $0xa78] sm:$0xff]
        %v6584 = vld [vmem:[#allocation17 + $0xa80] sm:$0xff]
        %v6585 = vld [vmem:[#allocation17 + $0xa88] sm:$0xff]
        %v6586 = vld [vmem:[#allocation17 + $0xa90] sm:$0xff]
        %v6587 = vld [vmem:[#allocation17 + $0xa98] sm:$0xff]
        %v6588 = vld [vmem:[#allocation17 + $0xaa0] sm:$0xff]
        %v6589 = vld [vmem:[#allocation17 + $0xaa8] sm:$0xff]
        %v6590 = vld [vmem:[#allocation17 + $0xab0] sm:$0xff]
        %v6591 = vld [vmem:[#allocation17 + $0xab8] sm:$0xff]
        %v6592 = vld [vmem:[#allocation17 + $0xac0] sm:$0xff]
        %v6593 = vld [vmem:[#allocation17 + $0xac8] sm:$0xff]
        %v6594 = vld [vmem:[#allocation17 + $0xad0] sm:$0xff]
        %v6595 = vld [vmem:[#allocation17 + $0xad8] sm:$0xff]
        %v6596 = vld [vmem:[#allocation17 + $0xae0] sm:$0xff]
        %v6597 = vld [vmem:[#allocation17 + $0xae8] sm:$0xff]
        %v6598 = vld [vmem:[#allocation17 + $0xaf0] sm:$0xff]
        %v6599 = vld [vmem:[#allocation17 + $0xaf8] sm:$0xff]
        %v6600 = vld [vmem:[#allocation17 + $0xb00] sm:$0xff]
        %v6601 = vld [vmem:[#allocation17 + $0xb08] sm:$0xff]
        %v6602 = vld [vmem:[#allocation17 + $0xb10] sm:$0xff]
        %v6603 = vld [vmem:[#allocation17 + $0xb18] sm:$0xff]
        %v6604 = vld [vmem:[#allocation17 + $0xb20] sm:$0xff]
        %v6605 = vld [vmem:[#allocation17 + $0xb28] sm:$0xff]
        %v6606 = vld [vmem:[#allocation17 + $0xb30] sm:$0xff]
        %v6607 = vld [vmem:[#allocation17 + $0xb38] sm:$0xff]
        %v6608 = vld [vmem:[#allocation17 + $0xb40] sm:$0xff]
        %v6609 = vld [vmem:[#allocation17 + $0xb48] sm:$0xff]
        %v6610 = vld [vmem:[#allocation17 + $0xb50] sm:$0xff]
        %v6611 = vld [vmem:[#allocation17 + $0xb58] sm:$0xff]
        %v6612 = vld [vmem:[#allocation17 + $0xb60] sm:$0xff]
        %v6613 = vld [vmem:[#allocation17 + $0xb68] sm:$0xff]
        %v6614 = vld [vmem:[#allocation17 + $0xb70] sm:$0xff]
        %v6615 = vld [vmem:[#allocation17 + $0xb78] sm:$0xff]
        %v6616 = vld [vmem:[#allocation17 + $0xb80] sm:$0xff]
        %v6617 = vld [vmem:[#allocation17 + $0xb88] sm:$0xff]
        %v6618 = vld [vmem:[#allocation17 + $0xb90] sm:$0xff]
        %v6619 = vld [vmem:[#allocation17 + $0xb98] sm:$0xff]
        %v6620 = vld [vmem:[#allocation17 + $0xba0] sm:$0xff]
        %v6621 = vld [vmem:[#allocation17 + $0xba8] sm:$0xff]
        %v6622 = vld [vmem:[#allocation17 + $0xbb0] sm:$0xff]
        %v6623 = vld [vmem:[#allocation17 + $0xbb8] sm:$0xff]
        %v6624 = vld [vmem:[#allocation17 + $0xbc0] sm:$0xff]
        %v6625 = vld [vmem:[#allocation17 + $0xbc8] sm:$0xff]
        %v6626 = vld [vmem:[#allocation17 + $0xbd0] sm:$0xff]
        %v6627 = vld [vmem:[#allocation17 + $0xbd8] sm:$0xff]
        %v6628 = vld [vmem:[#allocation17 + $0xbe0] sm:$0xff]
        %v6629 = vld [vmem:[#allocation17 + $0xbe8] sm:$0xff]
        %v6630 = vld [vmem:[#allocation17 + $0xbf0] sm:$0xff]
        %v6631 = vld [vmem:[#allocation17 + $0xbf8] sm:$0xff]
        %v6632 = vld [vmem:[#allocation17 + $0xc00] sm:$0xff]
        %v6633 = vld [vmem:[#allocation17 + $0xc08] sm:$0xff]
        %v6634 = vld [vmem:[#allocation17 + $0xc10] sm:$0xff]
        %v6635 = vld [vmem:[#allocation17 + $0xc18] sm:$0xff]
        %v6636 = vld [vmem:[#allocation17 + $0xc20] sm:$0xff]
        %v6637 = vld [vmem:[#allocation17 + $0xc28] sm:$0xff]
        %v6638 = vld [vmem:[#allocation17 + $0xc30] sm:$0xff]
        %v6639 = vld [vmem:[#allocation17 + $0xc38] sm:$0xff]
        %v6640 = vld [vmem:[#allocation17 + $0xc40] sm:$0xff]
        %v6641 = vld [vmem:[#allocation17 + $0xc48] sm:$0xff]
        %v6642 = vld [vmem:[#allocation17 + $0xc50] sm:$0xff]
        %v6643 = vld [vmem:[#allocation17 + $0xc58] sm:$0xff]
        %v6644 = vld [vmem:[#allocation17 + $0xc60] sm:$0xff]
        %v6645 = vld [vmem:[#allocation17 + $0xc68] sm:$0xff]
        %v6646 = vld [vmem:[#allocation17 + $0xc70] sm:$0xff]
        %v6647 = vld [vmem:[#allocation17 + $0xc78] sm:$0xff]
        %v6648 = vld [vmem:[#allocation17 + $0xc80] sm:$0xff]
        %v6649 = vld [vmem:[#allocation17 + $0xc88] sm:$0xff]
        %v6650 = vld [vmem:[#allocation17 + $0xc90] sm:$0xff]
        %v6651 = vld [vmem:[#allocation17 + $0xc98] sm:$0xff]
        %v6652 = vld [vmem:[#allocation17 + $0xca0] sm:$0xff]
        %v6653 = vld [vmem:[#allocation17 + $0xca8] sm:$0xff]
        %v6654 = vld [vmem:[#allocation17 + $0xcb0] sm:$0xff]
        %v6655 = vld [vmem:[#allocation17 + $0xcb8] sm:$0xff]
        %v6656 = vld [vmem:[#allocation17 + $0xcc0] sm:$0xff]
        %v6657 = vld [vmem:[#allocation17 + $0xcc8] sm:$0xff]
        %v6658 = vld [vmem:[#allocation17 + $0xcd0] sm:$0xff]
        %v6659 = vld [vmem:[#allocation17 + $0xcd8] sm:$0xff]
        %v6660 = vld [vmem:[#allocation17 + $0xce0] sm:$0xff]
        %v6661 = vld [vmem:[#allocation17 + $0xce8] sm:$0xff]
        %v6662 = vld [vmem:[#allocation17 + $0xcf0] sm:$0xff]
        %v6663 = vld [vmem:[#allocation17 + $0xcf8] sm:$0xff]
        %v6664 = vld [vmem:[#allocation17 + $0xd00] sm:$0xff]
        %v6665 = vld [vmem:[#allocation17 + $0xd08] sm:$0xff]
        %v6666 = vld [vmem:[#allocation17 + $0xd10] sm:$0xff]
        %v6667 = vld [vmem:[#allocation17 + $0xd18] sm:$0xff]
        %v6668 = vld [vmem:[#allocation17 + $0xd20] sm:$0xff]
        %v6669 = vld [vmem:[#allocation17 + $0xd28] sm:$0xff]
        %v6670 = vld [vmem:[#allocation17 + $0xd30] sm:$0xff]
        %v6671 = vld [vmem:[#allocation17 + $0xd38] sm:$0xff]
        %v6672 = vld [vmem:[#allocation17 + $0xd40] sm:$0xff]
        %v6673 = vld [vmem:[#allocation17 + $0xd48] sm:$0xff]
        %v6674 = vld [vmem:[#allocation17 + $0xd50] sm:$0xff]
        %v6675 = vld [vmem:[#allocation17 + $0xd58] sm:$0xff]
        %v6676 = vld [vmem:[#allocation17 + $0xd60] sm:$0xff]
        %v6677 = vld [vmem:[#allocation17 + $0xd68] sm:$0xff]
        %v6678 = vld [vmem:[#allocation17 + $0xd70] sm:$0xff]
        %v6679 = vld [vmem:[#allocation17 + $0xd78] sm:$0xff]
        %v6680 = vld [vmem:[#allocation17 + $0xd80] sm:$0xff]
        %v6681 = vld [vmem:[#allocation17 + $0xd88] sm:$0xff]
        %v6682 = vld [vmem:[#allocation17 + $0xd90] sm:$0xff]
        %v6683 = vld [vmem:[#allocation17 + $0xd98] sm:$0xff]
        %v6684 = vld [vmem:[#allocation17 + $0xda0] sm:$0xff]
        %v6685 = vld [vmem:[#allocation17 + $0xda8] sm:$0xff]
        %v6686 = vld [vmem:[#allocation17 + $0xdb0] sm:$0xff]
        %v6687 = vld [vmem:[#allocation17 + $0xdb8] sm:$0xff]
        %v6688 = vld [vmem:[#allocation17 + $0xdc0] sm:$0xff]
        %v6689 = vld [vmem:[#allocation17 + $0xdc8] sm:$0xff]
        %v6690 = vld [vmem:[#allocation17 + $0xdd0] sm:$0xff]
        %v6691 = vld [vmem:[#allocation17 + $0xdd8] sm:$0xff]
        %v6692 = vld [vmem:[#allocation17 + $0xde0] sm:$0xff]
        %v6693 = vld [vmem:[#allocation17 + $0xde8] sm:$0xff]
        %v6694 = vld [vmem:[#allocation17 + $0xdf0] sm:$0xff]
        %v6695 = vld [vmem:[#allocation17 + $0xdf8] sm:$0xff]
        %v6696 = vld [vmem:[#allocation17 + $0xe00] sm:$0xff]
        %v6697 = vld [vmem:[#allocation17 + $0xe08] sm:$0xff]
        %v6698 = vld [vmem:[#allocation17 + $0xe10] sm:$0xff]
        %v6699 = vld [vmem:[#allocation17 + $0xe18] sm:$0xff]
        %v6700 = vld [vmem:[#allocation17 + $0xe20] sm:$0xff]
        %v6701 = vld [vmem:[#allocation17 + $0xe28] sm:$0xff]
        %v6702 = vld [vmem:[#allocation17 + $0xe30] sm:$0xff]
        %v6703 = vld [vmem:[#allocation17 + $0xe38] sm:$0xff]
        %v6704 = vld [vmem:[#allocation17 + $0xe40] sm:$0xff]
        %v6705 = vld [vmem:[#allocation17 + $0xe48] sm:$0xff]
        %v6706 = vld [vmem:[#allocation17 + $0xe50] sm:$0xff]
        %v6707 = vld [vmem:[#allocation17 + $0xe58] sm:$0xff]
        %v6708 = vld [vmem:[#allocation17 + $0xe60] sm:$0xff]
        %v6709 = vld [vmem:[#allocation17 + $0xe68] sm:$0xff]
        %v6710 = vld [vmem:[#allocation17 + $0xe70] sm:$0xff]
        %v6711 = vld [vmem:[#allocation17 + $0xe78] sm:$0xff]
        %v6712 = vld [vmem:[#allocation17 + $0xe80] sm:$0xff]
        %v6713 = vld [vmem:[#allocation17 + $0xe88] sm:$0xff]
        %v6714 = vld [vmem:[#allocation17 + $0xe90] sm:$0xff]
        %v6715 = vld [vmem:[#allocation17 + $0xe98] sm:$0xff]
        %v6716 = vld [vmem:[#allocation17 + $0xea0] sm:$0xff]
        %v6717 = vld [vmem:[#allocation17 + $0xea8] sm:$0xff]
        %v6718 = vld [vmem:[#allocation17 + $0xeb0] sm:$0xff]
        %v6719 = vld [vmem:[#allocation17 + $0xeb8] sm:$0xff]
        %v6720 = vld [vmem:[#allocation17 + $0xec0] sm:$0xff]
        %v6721 = vld [vmem:[#allocation17 + $0xec8] sm:$0xff]
        %v6722 = vld [vmem:[#allocation17 + $0xed0] sm:$0xff]
        %v6723 = vld [vmem:[#allocation17 + $0xed8] sm:$0xff]
        %v6724 = vld [vmem:[#allocation17 + $0xee0] sm:$0xff]
        %v6725 = vld [vmem:[#allocation17 + $0xee8] sm:$0xff]
        %v6726 = vld [vmem:[#allocation17 + $0xef0] sm:$0xff]
        %v6727 = vld [vmem:[#allocation17 + $0xef8] sm:$0xff]
        %v6728 = vld [vmem:[#allocation17 + $0xf00] sm:$0xff]
        %v6729 = vld [vmem:[#allocation17 + $0xf08] sm:$0xff]
        %v6730 = vld [vmem:[#allocation17 + $0xf10] sm:$0xff]
        %v6731 = vld [vmem:[#allocation17 + $0xf18] sm:$0xff]
        %v6732 = vld [vmem:[#allocation17 + $0xf20] sm:$0xff]
        %v6733 = vld [vmem:[#allocation17 + $0xf28] sm:$0xff]
        %v6734 = vld [vmem:[#allocation17 + $0xf30] sm:$0xff]
        %v6735 = vld [vmem:[#allocation17 + $0xf38] sm:$0xff]
        %v6736 = vld [vmem:[#allocation17 + $0xf40] sm:$0xff]
        %v6737 = vld [vmem:[#allocation17 + $0xf48] sm:$0xff]
        %v6738 = vld [vmem:[#allocation17 + $0xf50] sm:$0xff]
        %v6739 = vld [vmem:[#allocation17 + $0xf58] sm:$0xff]
        %v6740 = vld [vmem:[#allocation17 + $0xf60] sm:$0xff]
        %v6741 = vld [vmem:[#allocation17 + $0xf68] sm:$0xff]
        %v6742 = vld [vmem:[#allocation17 + $0xf70] sm:$0xff]
        %v6743 = vld [vmem:[#allocation17 + $0xf78] sm:$0xff]
        %v6744 = vld [vmem:[#allocation17 + $0xf80] sm:$0xff]
        %v6745 = vld [vmem:[#allocation17 + $0xf88] sm:$0xff]
        %v6746 = vld [vmem:[#allocation17 + $0xf90] sm:$0xff]
        %v6747 = vld [vmem:[#allocation17 + $0xf98] sm:$0xff]
        %v6748 = vld [vmem:[#allocation17 + $0xfa0] sm:$0xff]
        %v6749 = vld [vmem:[#allocation17 + $0xfa8] sm:$0xff]
        %v6750 = vld [vmem:[#allocation17 + $0xfb0] sm:$0xff]
        %v6751 = vld [vmem:[#allocation17 + $0xfb8] sm:$0xff]
        %v6752 = vld [vmem:[#allocation17 + $0xfc0] sm:$0xff]
        %v6753 = vld [vmem:[#allocation17 + $0xfc8] sm:$0xff]
        %v6754 = vld [vmem:[#allocation17 + $0xfd0] sm:$0xff]
        %v6755 = vld [vmem:[#allocation17 + $0xfd8] sm:$0xff]
        %v6756 = vld [vmem:[#allocation17 + $0xfe0] sm:$0xff]
        %v6757 = vld [vmem:[#allocation17 + $0xfe8] sm:$0xff]
        %v6758 = vld [vmem:[#allocation17 + $0xff0] sm:$0xff]
        %v6759 = vld [vmem:[#allocation17 + $0xff8] sm:$0xff]
        %v6760 = vld [vmem:[#allocation19] sm:$0xff]
        %v6762 = vlaneseq
        %v6763 = vshrl.u32 %v6762, 7
        %v6764 = vsub.s32 0, %v6763
        %v6765 = vrot.slane %v6760, %v6764
        %v6766 = vlaneseq
        %v6767 = vshrl.u32 %v6766, 7
        %v6768 = vsub.s32 1, %v6767
        %v6769 = vrot.slane %v6760, %v6768
        %v6770 = vlaneseq
        %v6771 = vshrl.u32 %v6770, 7
        %v6772 = vsub.s32 2, %v6771
        %v6773 = vrot.slane %v6760, %v6772
        %v6774 = vlaneseq
        %v6775 = vshrl.u32 %v6774, 7
        %v6776 = vsub.s32 3, %v6775
        %v6777 = vrot.slane %v6760, %v6776
        %v6778 = vlaneseq
        %v6779 = vshrl.u32 %v6778, 7
        %v6780 = vsub.s32 4, %v6779
        %v6781 = vrot.slane %v6760, %v6780
        %v6782 = vlaneseq
        %v6783 = vshrl.u32 %v6782, 7
        %v6784 = vsub.s32 5, %v6783
        %v6785 = vrot.slane %v6760, %v6784
        %v6786 = vlaneseq
        %v6787 = vshrl.u32 %v6786, 7
        %v6788 = vsub.s32 6, %v6787
        %v6789 = vrot.slane %v6760, %v6788
        %v6790 = vlaneseq
        %v6791 = vshrl.u32 %v6790, 7
        %v6792 = vsub.s32 7, %v6791
        %v6793 = vrot.slane %v6760, %v6792
        %v7314 = vunpack.c.l.b16 %v6248
        %v7315 = vunpack.c.h.b16 %v6248
        %v7316 = vunpack.c.l.b16 %v6249
        %v7317 = vunpack.c.h.b16 %v6249
        %v7318 = vunpack.c.l.b16 %v6250
        %v7319 = vunpack.c.h.b16 %v6250
        %v7320 = vunpack.c.l.b16 %v6251
        %v7321 = vunpack.c.h.b16 %v6251
        %v7322 = vunpack.c.l.b16 %v6252
        %v7323 = vunpack.c.h.b16 %v6252
        %v7324 = vunpack.c.l.b16 %v6253
        %v7325 = vunpack.c.h.b16 %v6253
        %v7326 = vunpack.c.l.b16 %v6254
        %v7327 = vunpack.c.h.b16 %v6254
        %v7328 = vunpack.c.l.b16 %v6255
        %v7329 = vunpack.c.h.b16 %v6255
        %v7330 = vunpack.c.l.b16 %v6256
        %v7331 = vunpack.c.h.b16 %v6256
        %v7332 = vunpack.c.l.b16 %v6257
        %v7333 = vunpack.c.h.b16 %v6257
        %v7334 = vunpack.c.l.b16 %v6258
        %v7335 = vunpack.c.h.b16 %v6258
        %v7336 = vunpack.c.l.b16 %v6259
        %v7337 = vunpack.c.h.b16 %v6259
        %v7338 = vunpack.c.l.b16 %v6260
        %v7339 = vunpack.c.h.b16 %v6260
        %v7340 = vunpack.c.l.b16 %v6261
        %v7341 = vunpack.c.h.b16 %v6261
        %v7342 = vunpack.c.l.b16 %v6262
        %v7343 = vunpack.c.h.b16 %v6262
        %v7344 = vunpack.c.l.b16 %v6263
        %v7345 = vunpack.c.h.b16 %v6263
        %v7346 = vunpack.c.l.b16 %v6264
        %v7347 = vunpack.c.h.b16 %v6264
        %v7348 = vunpack.c.l.b16 %v6265
        %v7349 = vunpack.c.h.b16 %v6265
        %v7350 = vunpack.c.l.b16 %v6266
        %v7351 = vunpack.c.h.b16 %v6266
        %v7352 = vunpack.c.l.b16 %v6267
        %v7353 = vunpack.c.h.b16 %v6267
        %v7354 = vunpack.c.l.b16 %v6268
        %v7355 = vunpack.c.h.b16 %v6268
        %v7356 = vunpack.c.l.b16 %v6269
        %v7357 = vunpack.c.h.b16 %v6269
        %v7358 = vunpack.c.l.b16 %v6270
        %v7359 = vunpack.c.h.b16 %v6270
        %v7360 = vunpack.c.l.b16 %v6271
        %v7361 = vunpack.c.h.b16 %v6271
        %v7362 = vunpack.c.l.b16 %v6272
        %v7363 = vunpack.c.h.b16 %v6272
        %v7364 = vunpack.c.l.b16 %v6273
        %v7365 = vunpack.c.h.b16 %v6273
        %v7366 = vunpack.c.l.b16 %v6274
        %v7367 = vunpack.c.h.b16 %v6274
        %v7368 = vunpack.c.l.b16 %v6275
        %v7369 = vunpack.c.h.b16 %v6275
        %v7370 = vunpack.c.l.b16 %v6276
        %v7371 = vunpack.c.h.b16 %v6276
        %v7372 = vunpack.c.l.b16 %v6277
        %v7373 = vunpack.c.h.b16 %v6277
        %v7374 = vunpack.c.l.b16 %v6278
        %v7375 = vunpack.c.h.b16 %v6278
        %v7376 = vunpack.c.l.b16 %v6279
        %v7377 = vunpack.c.h.b16 %v6279
        %v7378 = vunpack.c.l.b16 %v6280
        %v7379 = vunpack.c.h.b16 %v6280
        %v7380 = vunpack.c.l.b16 %v6281
        %v7381 = vunpack.c.h.b16 %v6281
        %v7382 = vunpack.c.l.b16 %v6282
        %v7383 = vunpack.c.h.b16 %v6282
        %v7384 = vunpack.c.l.b16 %v6283
        %v7385 = vunpack.c.h.b16 %v6283
        %v7386 = vunpack.c.l.b16 %v6284
        %v7387 = vunpack.c.h.b16 %v6284
        %v7388 = vunpack.c.l.b16 %v6285
        %v7389 = vunpack.c.h.b16 %v6285
        %v7390 = vunpack.c.l.b16 %v6286
        %v7391 = vunpack.c.h.b16 %v6286
        %v7392 = vunpack.c.l.b16 %v6287
        %v7393 = vunpack.c.h.b16 %v6287
        %v7394 = vunpack.c.l.b16 %v6288
        %v7395 = vunpack.c.h.b16 %v6288
        %v7396 = vunpack.c.l.b16 %v6289
        %v7397 = vunpack.c.h.b16 %v6289
        %v7398 = vunpack.c.l.b16 %v6290
        %v7399 = vunpack.c.h.b16 %v6290
        %v7400 = vunpack.c.l.b16 %v6291
        %v7401 = vunpack.c.h.b16 %v6291
        %v7402 = vunpack.c.l.b16 %v6292
        %v7403 = vunpack.c.h.b16 %v6292
        %v7404 = vunpack.c.l.b16 %v6293
        %v7405 = vunpack.c.h.b16 %v6293
        %v7406 = vunpack.c.l.b16 %v6294
        %v7407 = vunpack.c.h.b16 %v6294
        %v7408 = vunpack.c.l.b16 %v6295
        %v7409 = vunpack.c.h.b16 %v6295
        %v7410 = vunpack.c.l.b16 %v6296
        %v7411 = vunpack.c.h.b16 %v6296
        %v7412 = vunpack.c.l.b16 %v6297
        %v7413 = vunpack.c.h.b16 %v6297
        %v7414 = vunpack.c.l.b16 %v6298
        %v7415 = vunpack.c.h.b16 %v6298
        %v7416 = vunpack.c.l.b16 %v6299
        %v7417 = vunpack.c.h.b16 %v6299
        %v7418 = vunpack.c.l.b16 %v6300
        %v7419 = vunpack.c.h.b16 %v6300
        %v7420 = vunpack.c.l.b16 %v6301
        %v7421 = vunpack.c.h.b16 %v6301
        %v7422 = vunpack.c.l.b16 %v6302
        %v7423 = vunpack.c.h.b16 %v6302
        %v7424 = vunpack.c.l.b16 %v6303
        %v7425 = vunpack.c.h.b16 %v6303
        %v7426 = vunpack.c.l.b16 %v6304
        %v7427 = vunpack.c.h.b16 %v6304
        %v7428 = vunpack.c.l.b16 %v6305
        %v7429 = vunpack.c.h.b16 %v6305
        %v7430 = vunpack.c.l.b16 %v6306
        %v7431 = vunpack.c.h.b16 %v6306
        %v7432 = vunpack.c.l.b16 %v6307
        %v7433 = vunpack.c.h.b16 %v6307
        %v7434 = vunpack.c.l.b16 %v6308
        %v7435 = vunpack.c.h.b16 %v6308
        %v7436 = vunpack.c.l.b16 %v6309
        %v7437 = vunpack.c.h.b16 %v6309
        %v7438 = vunpack.c.l.b16 %v6310
        %v7439 = vunpack.c.h.b16 %v6310
        %v7440 = vunpack.c.l.b16 %v6311
        %v7441 = vunpack.c.h.b16 %v6311
        %v7442 = vunpack.c.l.b16 %v6312
        %v7443 = vunpack.c.h.b16 %v6312
        %v7444 = vunpack.c.l.b16 %v6313
        %v7445 = vunpack.c.h.b16 %v6313
        %v7446 = vunpack.c.l.b16 %v6314
        %v7447 = vunpack.c.h.b16 %v6314
        %v7448 = vunpack.c.l.b16 %v6315
        %v7449 = vunpack.c.h.b16 %v6315
        %v7450 = vunpack.c.l.b16 %v6316
        %v7451 = vunpack.c.h.b16 %v6316
        %v7452 = vunpack.c.l.b16 %v6317
        %v7453 = vunpack.c.h.b16 %v6317
        %v7454 = vunpack.c.l.b16 %v6318
        %v7455 = vunpack.c.h.b16 %v6318
        %v7456 = vunpack.c.l.b16 %v6319
        %v7457 = vunpack.c.h.b16 %v6319
        %v7458 = vunpack.c.l.b16 %v6320
        %v7459 = vunpack.c.h.b16 %v6320
        %v7460 = vunpack.c.l.b16 %v6321
        %v7461 = vunpack.c.h.b16 %v6321
        %v7462 = vunpack.c.l.b16 %v6322
        %v7463 = vunpack.c.h.b16 %v6322
        %v7464 = vunpack.c.l.b16 %v6323
        %v7465 = vunpack.c.h.b16 %v6323
        %v7466 = vunpack.c.l.b16 %v6324
        %v7467 = vunpack.c.h.b16 %v6324
        %v7468 = vunpack.c.l.b16 %v6325
        %v7469 = vunpack.c.h.b16 %v6325
        %v7470 = vunpack.c.l.b16 %v6326
        %v7471 = vunpack.c.h.b16 %v6326
        %v7472 = vunpack.c.l.b16 %v6327
        %v7473 = vunpack.c.h.b16 %v6327
        %v7474 = vunpack.c.l.b16 %v6328
        %v7475 = vunpack.c.h.b16 %v6328
        %v7476 = vunpack.c.l.b16 %v6329
        %v7477 = vunpack.c.h.b16 %v6329
        %v7478 = vunpack.c.l.b16 %v6330
        %v7479 = vunpack.c.h.b16 %v6330
        %v7480 = vunpack.c.l.b16 %v6331
        %v7481 = vunpack.c.h.b16 %v6331
        %v7482 = vunpack.c.l.b16 %v6332
        %v7483 = vunpack.c.h.b16 %v6332
        %v7484 = vunpack.c.l.b16 %v6333
        %v7485 = vunpack.c.h.b16 %v6333
        %v7486 = vunpack.c.l.b16 %v6334
        %v7487 = vunpack.c.h.b16 %v6334
        %v7488 = vunpack.c.l.b16 %v6335
        %v7489 = vunpack.c.h.b16 %v6335
        %v7490 = vunpack.c.l.b16 %v6336
        %v7491 = vunpack.c.h.b16 %v6336
        %v7492 = vunpack.c.l.b16 %v6337
        %v7493 = vunpack.c.h.b16 %v6337
        %v7494 = vunpack.c.l.b16 %v6338
        %v7495 = vunpack.c.h.b16 %v6338
        %v7496 = vunpack.c.l.b16 %v6339
        %v7497 = vunpack.c.h.b16 %v6339
        %v7498 = vunpack.c.l.b16 %v6340
        %v7499 = vunpack.c.h.b16 %v6340
        %v7500 = vunpack.c.l.b16 %v6341
        %v7501 = vunpack.c.h.b16 %v6341
        %v7502 = vunpack.c.l.b16 %v6342
        %v7503 = vunpack.c.h.b16 %v6342
        %v7504 = vunpack.c.l.b16 %v6343
        %v7505 = vunpack.c.h.b16 %v6343
        %v7506 = vunpack.c.l.b16 %v6344
        %v7507 = vunpack.c.h.b16 %v6344
        %v7508 = vunpack.c.l.b16 %v6345
        %v7509 = vunpack.c.h.b16 %v6345
        %v7510 = vunpack.c.l.b16 %v6346
        %v7511 = vunpack.c.h.b16 %v6346
        %v7512 = vunpack.c.l.b16 %v6347
        %v7513 = vunpack.c.h.b16 %v6347
        %v7514 = vunpack.c.l.b16 %v6348
        %v7515 = vunpack.c.h.b16 %v6348
        %v7516 = vunpack.c.l.b16 %v6349
        %v7517 = vunpack.c.h.b16 %v6349
        %v7518 = vunpack.c.l.b16 %v6350
        %v7519 = vunpack.c.h.b16 %v6350
        %v7520 = vunpack.c.l.b16 %v6351
        %v7521 = vunpack.c.h.b16 %v6351
        %v7522 = vunpack.c.l.b16 %v6352
        %v7523 = vunpack.c.h.b16 %v6352
        %v7524 = vunpack.c.l.b16 %v6353
        %v7525 = vunpack.c.h.b16 %v6353
        %v7526 = vunpack.c.l.b16 %v6354
        %v7527 = vunpack.c.h.b16 %v6354
        %v7528 = vunpack.c.l.b16 %v6355
        %v7529 = vunpack.c.h.b16 %v6355
        %v7530 = vunpack.c.l.b16 %v6356
        %v7531 = vunpack.c.h.b16 %v6356
        %v7532 = vunpack.c.l.b16 %v6357
        %v7533 = vunpack.c.h.b16 %v6357
        %v7534 = vunpack.c.l.b16 %v6358
        %v7535 = vunpack.c.h.b16 %v6358
        %v7536 = vunpack.c.l.b16 %v6359
        %v7537 = vunpack.c.h.b16 %v6359
        %v7538 = vunpack.c.l.b16 %v6360
        %v7539 = vunpack.c.h.b16 %v6360
        %v7540 = vunpack.c.l.b16 %v6361
        %v7541 = vunpack.c.h.b16 %v6361
        %v7542 = vunpack.c.l.b16 %v6362
        %v7543 = vunpack.c.h.b16 %v6362
        %v7544 = vunpack.c.l.b16 %v6363
        %v7545 = vunpack.c.h.b16 %v6363
        %v7546 = vunpack.c.l.b16 %v6364
        %v7547 = vunpack.c.h.b16 %v6364
        %v7548 = vunpack.c.l.b16 %v6365
        %v7549 = vunpack.c.h.b16 %v6365
        %v7550 = vunpack.c.l.b16 %v6366
        %v7551 = vunpack.c.h.b16 %v6366
        %v7552 = vunpack.c.l.b16 %v6367
        %v7553 = vunpack.c.h.b16 %v6367
        %v7554 = vunpack.c.l.b16 %v6368
        %v7555 = vunpack.c.h.b16 %v6368
        %v7556 = vunpack.c.l.b16 %v6369
        %v7557 = vunpack.c.h.b16 %v6369
        %v7558 = vunpack.c.l.b16 %v6370
        %v7559 = vunpack.c.h.b16 %v6370
        %v7560 = vunpack.c.l.b16 %v6371
        %v7561 = vunpack.c.h.b16 %v6371
        %v7562 = vunpack.c.l.b16 %v6372
        %v7563 = vunpack.c.h.b16 %v6372
        %v7564 = vunpack.c.l.b16 %v6373
        %v7565 = vunpack.c.h.b16 %v6373
        %v7566 = vunpack.c.l.b16 %v6374
        %v7567 = vunpack.c.h.b16 %v6374
        %v7568 = vunpack.c.l.b16 %v6375
        %v7569 = vunpack.c.h.b16 %v6375
        %v7570 = vunpack.c.l.b16 %v6376
        %v7571 = vunpack.c.h.b16 %v6376
        %v7572 = vunpack.c.l.b16 %v6377
        %v7573 = vunpack.c.h.b16 %v6377
        %v7574 = vunpack.c.l.b16 %v6378
        %v7575 = vunpack.c.h.b16 %v6378
        %v7576 = vunpack.c.l.b16 %v6379
        %v7577 = vunpack.c.h.b16 %v6379
        %v7578 = vunpack.c.l.b16 %v6380
        %v7579 = vunpack.c.h.b16 %v6380
        %v7580 = vunpack.c.l.b16 %v6381
        %v7581 = vunpack.c.h.b16 %v6381
        %v7582 = vunpack.c.l.b16 %v6382
        %v7583 = vunpack.c.h.b16 %v6382
        %v7584 = vunpack.c.l.b16 %v6383
        %v7585 = vunpack.c.h.b16 %v6383
        %v7586 = vunpack.c.l.b16 %v6384
        %v7587 = vunpack.c.h.b16 %v6384
        %v7588 = vunpack.c.l.b16 %v6385
        %v7589 = vunpack.c.h.b16 %v6385
        %v7590 = vunpack.c.l.b16 %v6386
        %v7591 = vunpack.c.h.b16 %v6386
        %v7592 = vunpack.c.l.b16 %v6387
        %v7593 = vunpack.c.h.b16 %v6387
        %v7594 = vunpack.c.l.b16 %v6388
        %v7595 = vunpack.c.h.b16 %v6388
        %v7596 = vunpack.c.l.b16 %v6389
        %v7597 = vunpack.c.h.b16 %v6389
        %v7598 = vunpack.c.l.b16 %v6390
        %v7599 = vunpack.c.h.b16 %v6390
        %v7600 = vunpack.c.l.b16 %v6391
        %v7601 = vunpack.c.h.b16 %v6391
        %v7602 = vunpack.c.l.b16 %v6392
        %v7603 = vunpack.c.h.b16 %v6392
        %v7604 = vunpack.c.l.b16 %v6393
        %v7605 = vunpack.c.h.b16 %v6393
        %v7606 = vunpack.c.l.b16 %v6394
        %v7607 = vunpack.c.h.b16 %v6394
        %v7608 = vunpack.c.l.b16 %v6395
        %v7609 = vunpack.c.h.b16 %v6395
        %v7610 = vunpack.c.l.b16 %v6396
        %v7611 = vunpack.c.h.b16 %v6396
        %v7612 = vunpack.c.l.b16 %v6397
        %v7613 = vunpack.c.h.b16 %v6397
        %v7614 = vunpack.c.l.b16 %v6398
        %v7615 = vunpack.c.h.b16 %v6398
        %v7616 = vunpack.c.l.b16 %v6399
        %v7617 = vunpack.c.h.b16 %v6399
        %v7618 = vunpack.c.l.b16 %v6400
        %v7619 = vunpack.c.h.b16 %v6400
        %v7620 = vunpack.c.l.b16 %v6401
        %v7621 = vunpack.c.h.b16 %v6401
        %v7622 = vunpack.c.l.b16 %v6402
        %v7623 = vunpack.c.h.b16 %v6402
        %v7624 = vunpack.c.l.b16 %v6403
        %v7625 = vunpack.c.h.b16 %v6403
        %v7626 = vunpack.c.l.b16 %v6404
        %v7627 = vunpack.c.h.b16 %v6404
        %v7628 = vunpack.c.l.b16 %v6405
        %v7629 = vunpack.c.h.b16 %v6405
        %v7630 = vunpack.c.l.b16 %v6406
        %v7631 = vunpack.c.h.b16 %v6406
        %v7632 = vunpack.c.l.b16 %v6407
        %v7633 = vunpack.c.h.b16 %v6407
        %v7634 = vunpack.c.l.b16 %v6408
        %v7635 = vunpack.c.h.b16 %v6408
        %v7636 = vunpack.c.l.b16 %v6409
        %v7637 = vunpack.c.h.b16 %v6409
        %v7638 = vunpack.c.l.b16 %v6410
        %v7639 = vunpack.c.h.b16 %v6410
        %v7640 = vunpack.c.l.b16 %v6411
        %v7641 = vunpack.c.h.b16 %v6411
        %v7642 = vunpack.c.l.b16 %v6412
        %v7643 = vunpack.c.h.b16 %v6412
        %v7644 = vunpack.c.l.b16 %v6413
        %v7645 = vunpack.c.h.b16 %v6413
        %v7646 = vunpack.c.l.b16 %v6414
        %v7647 = vunpack.c.h.b16 %v6414
        %v7648 = vunpack.c.l.b16 %v6415
        %v7649 = vunpack.c.h.b16 %v6415
        %v7650 = vunpack.c.l.b16 %v6416
        %v7651 = vunpack.c.h.b16 %v6416
        %v7652 = vunpack.c.l.b16 %v6417
        %v7653 = vunpack.c.h.b16 %v6417
        %v7654 = vunpack.c.l.b16 %v6418
        %v7655 = vunpack.c.h.b16 %v6418
        %v7656 = vunpack.c.l.b16 %v6419
        %v7657 = vunpack.c.h.b16 %v6419
        %v7658 = vunpack.c.l.b16 %v6420
        %v7659 = vunpack.c.h.b16 %v6420
        %v7660 = vunpack.c.l.b16 %v6421
        %v7661 = vunpack.c.h.b16 %v6421
        %v7662 = vunpack.c.l.b16 %v6422
        %v7663 = vunpack.c.h.b16 %v6422
        %v7664 = vunpack.c.l.b16 %v6423
        %v7665 = vunpack.c.h.b16 %v6423
        %v7666 = vunpack.c.l.b16 %v6424
        %v7667 = vunpack.c.h.b16 %v6424
        %v7668 = vunpack.c.l.b16 %v6425
        %v7669 = vunpack.c.h.b16 %v6425
        %v7670 = vunpack.c.l.b16 %v6426
        %v7671 = vunpack.c.h.b16 %v6426
        %v7672 = vunpack.c.l.b16 %v6427
        %v7673 = vunpack.c.h.b16 %v6427
        %v7674 = vunpack.c.l.b16 %v6428
        %v7675 = vunpack.c.h.b16 %v6428
        %v7676 = vunpack.c.l.b16 %v6429
        %v7677 = vunpack.c.h.b16 %v6429
        %v7678 = vunpack.c.l.b16 %v6430
        %v7679 = vunpack.c.h.b16 %v6430
        %v7680 = vunpack.c.l.b16 %v6431
        %v7681 = vunpack.c.h.b16 %v6431
        %v7682 = vunpack.c.l.b16 %v6432
        %v7683 = vunpack.c.h.b16 %v6432
        %v7684 = vunpack.c.l.b16 %v6433
        %v7685 = vunpack.c.h.b16 %v6433
        %v7686 = vunpack.c.l.b16 %v6434
        %v7687 = vunpack.c.h.b16 %v6434
        %v7688 = vunpack.c.l.b16 %v6435
        %v7689 = vunpack.c.h.b16 %v6435
        %v7690 = vunpack.c.l.b16 %v6436
        %v7691 = vunpack.c.h.b16 %v6436
        %v7692 = vunpack.c.l.b16 %v6437
        %v7693 = vunpack.c.h.b16 %v6437
        %v7694 = vunpack.c.l.b16 %v6438
        %v7695 = vunpack.c.h.b16 %v6438
        %v7696 = vunpack.c.l.b16 %v6439
        %v7697 = vunpack.c.h.b16 %v6439
        %v7698 = vunpack.c.l.b16 %v6440
        %v7699 = vunpack.c.h.b16 %v6440
        %v7700 = vunpack.c.l.b16 %v6441
        %v7701 = vunpack.c.h.b16 %v6441
        %v7702 = vunpack.c.l.b16 %v6442
        %v7703 = vunpack.c.h.b16 %v6442
        %v7704 = vunpack.c.l.b16 %v6443
        %v7705 = vunpack.c.h.b16 %v6443
        %v7706 = vunpack.c.l.b16 %v6444
        %v7707 = vunpack.c.h.b16 %v6444
        %v7708 = vunpack.c.l.b16 %v6445
        %v7709 = vunpack.c.h.b16 %v6445
        %v7710 = vunpack.c.l.b16 %v6446
        %v7711 = vunpack.c.h.b16 %v6446
        %v7712 = vunpack.c.l.b16 %v6447
        %v7713 = vunpack.c.h.b16 %v6447
        %v7714 = vunpack.c.l.b16 %v6448
        %v7715 = vunpack.c.h.b16 %v6448
        %v7716 = vunpack.c.l.b16 %v6449
        %v7717 = vunpack.c.h.b16 %v6449
        %v7718 = vunpack.c.l.b16 %v6450
        %v7719 = vunpack.c.h.b16 %v6450
        %v7720 = vunpack.c.l.b16 %v6451
        %v7721 = vunpack.c.h.b16 %v6451
        %v7722 = vunpack.c.l.b16 %v6452
        %v7723 = vunpack.c.h.b16 %v6452
        %v7724 = vunpack.c.l.b16 %v6453
        %v7725 = vunpack.c.h.b16 %v6453
        %v7726 = vunpack.c.l.b16 %v6454
        %v7727 = vunpack.c.h.b16 %v6454
        %v7728 = vunpack.c.l.b16 %v6455
        %v7729 = vunpack.c.h.b16 %v6455
        %v7730 = vunpack.c.l.b16 %v6456
        %v7731 = vunpack.c.h.b16 %v6456
        %v7732 = vunpack.c.l.b16 %v6457
        %v7733 = vunpack.c.h.b16 %v6457
        %v7734 = vunpack.c.l.b16 %v6458
        %v7735 = vunpack.c.h.b16 %v6458
        %v7736 = vunpack.c.l.b16 %v6459
        %v7737 = vunpack.c.h.b16 %v6459
        %v7738 = vunpack.c.l.b16 %v6460
        %v7739 = vunpack.c.h.b16 %v6460
        %v7740 = vunpack.c.l.b16 %v6461
        %v7741 = vunpack.c.h.b16 %v6461
        %v7742 = vunpack.c.l.b16 %v6462
        %v7743 = vunpack.c.h.b16 %v6462
        %v7744 = vunpack.c.l.b16 %v6463
        %v7745 = vunpack.c.h.b16 %v6463
        %v7746 = vunpack.c.l.b16 %v6464
        %v7747 = vunpack.c.h.b16 %v6464
        %v7748 = vunpack.c.l.b16 %v6465
        %v7749 = vunpack.c.h.b16 %v6465
        %v7750 = vunpack.c.l.b16 %v6466
        %v7751 = vunpack.c.h.b16 %v6466
        %v7752 = vunpack.c.l.b16 %v6467
        %v7753 = vunpack.c.h.b16 %v6467
        %v7754 = vunpack.c.l.b16 %v6468
        %v7755 = vunpack.c.h.b16 %v6468
        %v7756 = vunpack.c.l.b16 %v6469
        %v7757 = vunpack.c.h.b16 %v6469
        %v7758 = vunpack.c.l.b16 %v6470
        %v7759 = vunpack.c.h.b16 %v6470
        %v7760 = vunpack.c.l.b16 %v6471
        %v7761 = vunpack.c.h.b16 %v6471
        %v7762 = vunpack.c.l.b16 %v6472
        %v7763 = vunpack.c.h.b16 %v6472
        %v7764 = vunpack.c.l.b16 %v6473
        %v7765 = vunpack.c.h.b16 %v6473
        %v7766 = vunpack.c.l.b16 %v6474
        %v7767 = vunpack.c.h.b16 %v6474
        %v7768 = vunpack.c.l.b16 %v6475
        %v7769 = vunpack.c.h.b16 %v6475
        %v7770 = vunpack.c.l.b16 %v6476
        %v7771 = vunpack.c.h.b16 %v6476
        %v7772 = vunpack.c.l.b16 %v6477
        %v7773 = vunpack.c.h.b16 %v6477
        %v7774 = vunpack.c.l.b16 %v6478
        %v7775 = vunpack.c.h.b16 %v6478
        %v7776 = vunpack.c.l.b16 %v6479
        %v7777 = vunpack.c.h.b16 %v6479
        %v7778 = vunpack.c.l.b16 %v6480
        %v7779 = vunpack.c.h.b16 %v6480
        %v7780 = vunpack.c.l.b16 %v6481
        %v7781 = vunpack.c.h.b16 %v6481
        %v7782 = vunpack.c.l.b16 %v6482
        %v7783 = vunpack.c.h.b16 %v6482
        %v7784 = vunpack.c.l.b16 %v6483
        %v7785 = vunpack.c.h.b16 %v6483
        %v7786 = vunpack.c.l.b16 %v6484
        %v7787 = vunpack.c.h.b16 %v6484
        %v7788 = vunpack.c.l.b16 %v6485
        %v7789 = vunpack.c.h.b16 %v6485
        %v7790 = vunpack.c.l.b16 %v6486
        %v7791 = vunpack.c.h.b16 %v6486
        %v7792 = vunpack.c.l.b16 %v6487
        %v7793 = vunpack.c.h.b16 %v6487
        %v7794 = vunpack.c.l.b16 %v6488
        %v7795 = vunpack.c.h.b16 %v6488
        %v7796 = vunpack.c.l.b16 %v6489
        %v7797 = vunpack.c.h.b16 %v6489
        %v7798 = vunpack.c.l.b16 %v6490
        %v7799 = vunpack.c.h.b16 %v6490
        %v7800 = vunpack.c.l.b16 %v6491
        %v7801 = vunpack.c.h.b16 %v6491
        %v7802 = vunpack.c.l.b16 %v6492
        %v7803 = vunpack.c.h.b16 %v6492
        %v7804 = vunpack.c.l.b16 %v6493
        %v7805 = vunpack.c.h.b16 %v6493
        %v7806 = vunpack.c.l.b16 %v6494
        %v7807 = vunpack.c.h.b16 %v6494
        %v7808 = vunpack.c.l.b16 %v6495
        %v7809 = vunpack.c.h.b16 %v6495
        %v7810 = vunpack.c.l.b16 %v6496
        %v7811 = vunpack.c.h.b16 %v6496
        %v7812 = vunpack.c.l.b16 %v6497
        %v7813 = vunpack.c.h.b16 %v6497
        %v7814 = vunpack.c.l.b16 %v6498
        %v7815 = vunpack.c.h.b16 %v6498
        %v7816 = vunpack.c.l.b16 %v6499
        %v7817 = vunpack.c.h.b16 %v6499
        %v7818 = vunpack.c.l.b16 %v6500
        %v7819 = vunpack.c.h.b16 %v6500
        %v7820 = vunpack.c.l.b16 %v6501
        %v7821 = vunpack.c.h.b16 %v6501
        %v7822 = vunpack.c.l.b16 %v6502
        %v7823 = vunpack.c.h.b16 %v6502
        %v7824 = vunpack.c.l.b16 %v6503
        %v7825 = vunpack.c.h.b16 %v6503
        %v7826 = vunpack.c.l.b16 %v6504
        %v7827 = vunpack.c.h.b16 %v6504
        %v7828 = vunpack.c.l.b16 %v6505
        %v7829 = vunpack.c.h.b16 %v6505
        %v7830 = vunpack.c.l.b16 %v6506
        %v7831 = vunpack.c.h.b16 %v6506
        %v7832 = vunpack.c.l.b16 %v6507
        %v7833 = vunpack.c.h.b16 %v6507
        %v7834 = vunpack.c.l.b16 %v6508
        %v7835 = vunpack.c.h.b16 %v6508
        %v7836 = vunpack.c.l.b16 %v6509
        %v7837 = vunpack.c.h.b16 %v6509
        %v7838 = vunpack.c.l.b16 %v6510
        %v7839 = vunpack.c.h.b16 %v6510
        %v7840 = vunpack.c.l.b16 %v6511
        %v7841 = vunpack.c.h.b16 %v6511
        %v7842 = vunpack.c.l.b16 %v6512
        %v7843 = vunpack.c.h.b16 %v6512
        %v7844 = vunpack.c.l.b16 %v6513
        %v7845 = vunpack.c.h.b16 %v6513
        %v7846 = vunpack.c.l.b16 %v6514
        %v7847 = vunpack.c.h.b16 %v6514
        %v7848 = vunpack.c.l.b16 %v6515
        %v7849 = vunpack.c.h.b16 %v6515
        %v7850 = vunpack.c.l.b16 %v6516
        %v7851 = vunpack.c.h.b16 %v6516
        %v7852 = vunpack.c.l.b16 %v6517
        %v7853 = vunpack.c.h.b16 %v6517
        %v7854 = vunpack.c.l.b16 %v6518
        %v7855 = vunpack.c.h.b16 %v6518
        %v7856 = vunpack.c.l.b16 %v6519
        %v7857 = vunpack.c.h.b16 %v6519
        %v7858 = vunpack.c.l.b16 %v6520
        %v7859 = vunpack.c.h.b16 %v6520
        %v7860 = vunpack.c.l.b16 %v6521
        %v7861 = vunpack.c.h.b16 %v6521
        %v7862 = vunpack.c.l.b16 %v6522
        %v7863 = vunpack.c.h.b16 %v6522
        %v7864 = vunpack.c.l.b16 %v6523
        %v7865 = vunpack.c.h.b16 %v6523
        %v7866 = vunpack.c.l.b16 %v6524
        %v7867 = vunpack.c.h.b16 %v6524
        %v7868 = vunpack.c.l.b16 %v6525
        %v7869 = vunpack.c.h.b16 %v6525
        %v7870 = vunpack.c.l.b16 %v6526
        %v7871 = vunpack.c.h.b16 %v6526
        %v7872 = vunpack.c.l.b16 %v6527
        %v7873 = vunpack.c.h.b16 %v6527
        %v7874 = vunpack.c.l.b16 %v6528
        %v7875 = vunpack.c.h.b16 %v6528
        %v7876 = vunpack.c.l.b16 %v6529
        %v7877 = vunpack.c.h.b16 %v6529
        %v7878 = vunpack.c.l.b16 %v6530
        %v7879 = vunpack.c.h.b16 %v6530
        %v7880 = vunpack.c.l.b16 %v6531
        %v7881 = vunpack.c.h.b16 %v6531
        %v7882 = vunpack.c.l.b16 %v6532
        %v7883 = vunpack.c.h.b16 %v6532
        %v7884 = vunpack.c.l.b16 %v6533
        %v7885 = vunpack.c.h.b16 %v6533
        %v7886 = vunpack.c.l.b16 %v6534
        %v7887 = vunpack.c.h.b16 %v6534
        %v7888 = vunpack.c.l.b16 %v6535
        %v7889 = vunpack.c.h.b16 %v6535
        %v7890 = vunpack.c.l.b16 %v6536
        %v7891 = vunpack.c.h.b16 %v6536
        %v7892 = vunpack.c.l.b16 %v6537
        %v7893 = vunpack.c.h.b16 %v6537
        %v7894 = vunpack.c.l.b16 %v6538
        %v7895 = vunpack.c.h.b16 %v6538
        %v7896 = vunpack.c.l.b16 %v6539
        %v7897 = vunpack.c.h.b16 %v6539
        %v7898 = vunpack.c.l.b16 %v6540
        %v7899 = vunpack.c.h.b16 %v6540
        %v7900 = vunpack.c.l.b16 %v6541
        %v7901 = vunpack.c.h.b16 %v6541
        %v7902 = vunpack.c.l.b16 %v6542
        %v7903 = vunpack.c.h.b16 %v6542
        %v7904 = vunpack.c.l.b16 %v6543
        %v7905 = vunpack.c.h.b16 %v6543
        %v7906 = vunpack.c.l.b16 %v6544
        %v7907 = vunpack.c.h.b16 %v6544
        %v7908 = vunpack.c.l.b16 %v6545
        %v7909 = vunpack.c.h.b16 %v6545
        %v7910 = vunpack.c.l.b16 %v6546
        %v7911 = vunpack.c.h.b16 %v6546
        %v7912 = vunpack.c.l.b16 %v6547
        %v7913 = vunpack.c.h.b16 %v6547
        %v7914 = vunpack.c.l.b16 %v6548
        %v7915 = vunpack.c.h.b16 %v6548
        %v7916 = vunpack.c.l.b16 %v6549
        %v7917 = vunpack.c.h.b16 %v6549
        %v7918 = vunpack.c.l.b16 %v6550
        %v7919 = vunpack.c.h.b16 %v6550
        %v7920 = vunpack.c.l.b16 %v6551
        %v7921 = vunpack.c.h.b16 %v6551
        %v7922 = vunpack.c.l.b16 %v6552
        %v7923 = vunpack.c.h.b16 %v6552
        %v7924 = vunpack.c.l.b16 %v6553
        %v7925 = vunpack.c.h.b16 %v6553
        %v7926 = vunpack.c.l.b16 %v6554
        %v7927 = vunpack.c.h.b16 %v6554
        %v7928 = vunpack.c.l.b16 %v6555
        %v7929 = vunpack.c.h.b16 %v6555
        %v7930 = vunpack.c.l.b16 %v6556
        %v7931 = vunpack.c.h.b16 %v6556
        %v7932 = vunpack.c.l.b16 %v6557
        %v7933 = vunpack.c.h.b16 %v6557
        %v7934 = vunpack.c.l.b16 %v6558
        %v7935 = vunpack.c.h.b16 %v6558
        %v7936 = vunpack.c.l.b16 %v6559
        %v7937 = vunpack.c.h.b16 %v6559
        %v7938 = vunpack.c.l.b16 %v6560
        %v7939 = vunpack.c.h.b16 %v6560
        %v7940 = vunpack.c.l.b16 %v6561
        %v7941 = vunpack.c.h.b16 %v6561
        %v7942 = vunpack.c.l.b16 %v6562
        %v7943 = vunpack.c.h.b16 %v6562
        %v7944 = vunpack.c.l.b16 %v6563
        %v7945 = vunpack.c.h.b16 %v6563
        %v7946 = vunpack.c.l.b16 %v6564
        %v7947 = vunpack.c.h.b16 %v6564
        %v7948 = vunpack.c.l.b16 %v6565
        %v7949 = vunpack.c.h.b16 %v6565
        %v7950 = vunpack.c.l.b16 %v6566
        %v7951 = vunpack.c.h.b16 %v6566
        %v7952 = vunpack.c.l.b16 %v6567
        %v7953 = vunpack.c.h.b16 %v6567
        %v7954 = vunpack.c.l.b16 %v6568
        %v7955 = vunpack.c.h.b16 %v6568
        %v7956 = vunpack.c.l.b16 %v6569
        %v7957 = vunpack.c.h.b16 %v6569
        %v7958 = vunpack.c.l.b16 %v6570
        %v7959 = vunpack.c.h.b16 %v6570
        %v7960 = vunpack.c.l.b16 %v6571
        %v7961 = vunpack.c.h.b16 %v6571
        %v7962 = vunpack.c.l.b16 %v6572
        %v7963 = vunpack.c.h.b16 %v6572
        %v7964 = vunpack.c.l.b16 %v6573
        %v7965 = vunpack.c.h.b16 %v6573
        %v7966 = vunpack.c.l.b16 %v6574
        %v7967 = vunpack.c.h.b16 %v6574
        %v7968 = vunpack.c.l.b16 %v6575
        %v7969 = vunpack.c.h.b16 %v6575
        %v7970 = vunpack.c.l.b16 %v6576
        %v7971 = vunpack.c.h.b16 %v6576
        %v7972 = vunpack.c.l.b16 %v6577
        %v7973 = vunpack.c.h.b16 %v6577
        %v7974 = vunpack.c.l.b16 %v6578
        %v7975 = vunpack.c.h.b16 %v6578
        %v7976 = vunpack.c.l.b16 %v6579
        %v7977 = vunpack.c.h.b16 %v6579
        %v7978 = vunpack.c.l.b16 %v6580
        %v7979 = vunpack.c.h.b16 %v6580
        %v7980 = vunpack.c.l.b16 %v6581
        %v7981 = vunpack.c.h.b16 %v6581
        %v7982 = vunpack.c.l.b16 %v6582
        %v7983 = vunpack.c.h.b16 %v6582
        %v7984 = vunpack.c.l.b16 %v6583
        %v7985 = vunpack.c.h.b16 %v6583
        %v7986 = vunpack.c.l.b16 %v6584
        %v7987 = vunpack.c.h.b16 %v6584
        %v7988 = vunpack.c.l.b16 %v6585
        %v7989 = vunpack.c.h.b16 %v6585
        %v7990 = vunpack.c.l.b16 %v6586
        %v7991 = vunpack.c.h.b16 %v6586
        %v7992 = vunpack.c.l.b16 %v6587
        %v7993 = vunpack.c.h.b16 %v6587
        %v7994 = vunpack.c.l.b16 %v6588
        %v7995 = vunpack.c.h.b16 %v6588
        %v7996 = vunpack.c.l.b16 %v6589
        %v7997 = vunpack.c.h.b16 %v6589
        %v7998 = vunpack.c.l.b16 %v6590
        %v7999 = vunpack.c.h.b16 %v6590
        %v8000 = vunpack.c.l.b16 %v6591
        %v8001 = vunpack.c.h.b16 %v6591
        %v8002 = vunpack.c.l.b16 %v6592
        %v8003 = vunpack.c.h.b16 %v6592
        %v8004 = vunpack.c.l.b16 %v6593
        %v8005 = vunpack.c.h.b16 %v6593
        %v8006 = vunpack.c.l.b16 %v6594
        %v8007 = vunpack.c.h.b16 %v6594
        %v8008 = vunpack.c.l.b16 %v6595
        %v8009 = vunpack.c.h.b16 %v6595
        %v8010 = vunpack.c.l.b16 %v6596
        %v8011 = vunpack.c.h.b16 %v6596
        %v8012 = vunpack.c.l.b16 %v6597
        %v8013 = vunpack.c.h.b16 %v6597
        %v8014 = vunpack.c.l.b16 %v6598
        %v8015 = vunpack.c.h.b16 %v6598
        %v8016 = vunpack.c.l.b16 %v6599
        %v8017 = vunpack.c.h.b16 %v6599
        %v8018 = vunpack.c.l.b16 %v6600
        %v8019 = vunpack.c.h.b16 %v6600
        %v8020 = vunpack.c.l.b16 %v6601
        %v8021 = vunpack.c.h.b16 %v6601
        %v8022 = vunpack.c.l.b16 %v6602
        %v8023 = vunpack.c.h.b16 %v6602
        %v8024 = vunpack.c.l.b16 %v6603
        %v8025 = vunpack.c.h.b16 %v6603
        %v8026 = vunpack.c.l.b16 %v6604
        %v8027 = vunpack.c.h.b16 %v6604
        %v8028 = vunpack.c.l.b16 %v6605
        %v8029 = vunpack.c.h.b16 %v6605
        %v8030 = vunpack.c.l.b16 %v6606
        %v8031 = vunpack.c.h.b16 %v6606
        %v8032 = vunpack.c.l.b16 %v6607
        %v8033 = vunpack.c.h.b16 %v6607
        %v8034 = vunpack.c.l.b16 %v6608
        %v8035 = vunpack.c.h.b16 %v6608
        %v8036 = vunpack.c.l.b16 %v6609
        %v8037 = vunpack.c.h.b16 %v6609
        %v8038 = vunpack.c.l.b16 %v6610
        %v8039 = vunpack.c.h.b16 %v6610
        %v8040 = vunpack.c.l.b16 %v6611
        %v8041 = vunpack.c.h.b16 %v6611
        %v8042 = vunpack.c.l.b16 %v6612
        %v8043 = vunpack.c.h.b16 %v6612
        %v8044 = vunpack.c.l.b16 %v6613
        %v8045 = vunpack.c.h.b16 %v6613
        %v8046 = vunpack.c.l.b16 %v6614
        %v8047 = vunpack.c.h.b16 %v6614
        %v8048 = vunpack.c.l.b16 %v6615
        %v8049 = vunpack.c.h.b16 %v6615
        %v8050 = vunpack.c.l.b16 %v6616
        %v8051 = vunpack.c.h.b16 %v6616
        %v8052 = vunpack.c.l.b16 %v6617
        %v8053 = vunpack.c.h.b16 %v6617
        %v8054 = vunpack.c.l.b16 %v6618
        %v8055 = vunpack.c.h.b16 %v6618
        %v8056 = vunpack.c.l.b16 %v6619
        %v8057 = vunpack.c.h.b16 %v6619
        %v8058 = vunpack.c.l.b16 %v6620
        %v8059 = vunpack.c.h.b16 %v6620
        %v8060 = vunpack.c.l.b16 %v6621
        %v8061 = vunpack.c.h.b16 %v6621
        %v8062 = vunpack.c.l.b16 %v6622
        %v8063 = vunpack.c.h.b16 %v6622
        %v8064 = vunpack.c.l.b16 %v6623
        %v8065 = vunpack.c.h.b16 %v6623
        %v8066 = vunpack.c.l.b16 %v6624
        %v8067 = vunpack.c.h.b16 %v6624
        %v8068 = vunpack.c.l.b16 %v6625
        %v8069 = vunpack.c.h.b16 %v6625
        %v8070 = vunpack.c.l.b16 %v6626
        %v8071 = vunpack.c.h.b16 %v6626
        %v8072 = vunpack.c.l.b16 %v6627
        %v8073 = vunpack.c.h.b16 %v6627
        %v8074 = vunpack.c.l.b16 %v6628
        %v8075 = vunpack.c.h.b16 %v6628
        %v8076 = vunpack.c.l.b16 %v6629
        %v8077 = vunpack.c.h.b16 %v6629
        %v8078 = vunpack.c.l.b16 %v6630
        %v8079 = vunpack.c.h.b16 %v6630
        %v8080 = vunpack.c.l.b16 %v6631
        %v8081 = vunpack.c.h.b16 %v6631
        %v8082 = vunpack.c.l.b16 %v6632
        %v8083 = vunpack.c.h.b16 %v6632
        %v8084 = vunpack.c.l.b16 %v6633
        %v8085 = vunpack.c.h.b16 %v6633
        %v8086 = vunpack.c.l.b16 %v6634
        %v8087 = vunpack.c.h.b16 %v6634
        %v8088 = vunpack.c.l.b16 %v6635
        %v8089 = vunpack.c.h.b16 %v6635
        %v8090 = vunpack.c.l.b16 %v6636
        %v8091 = vunpack.c.h.b16 %v6636
        %v8092 = vunpack.c.l.b16 %v6637
        %v8093 = vunpack.c.h.b16 %v6637
        %v8094 = vunpack.c.l.b16 %v6638
        %v8095 = vunpack.c.h.b16 %v6638
        %v8096 = vunpack.c.l.b16 %v6639
        %v8097 = vunpack.c.h.b16 %v6639
        %v8098 = vunpack.c.l.b16 %v6640
        %v8099 = vunpack.c.h.b16 %v6640
        %v8100 = vunpack.c.l.b16 %v6641
        %v8101 = vunpack.c.h.b16 %v6641
        %v8102 = vunpack.c.l.b16 %v6642
        %v8103 = vunpack.c.h.b16 %v6642
        %v8104 = vunpack.c.l.b16 %v6643
        %v8105 = vunpack.c.h.b16 %v6643
        %v8106 = vunpack.c.l.b16 %v6644
        %v8107 = vunpack.c.h.b16 %v6644
        %v8108 = vunpack.c.l.b16 %v6645
        %v8109 = vunpack.c.h.b16 %v6645
        %v8110 = vunpack.c.l.b16 %v6646
        %v8111 = vunpack.c.h.b16 %v6646
        %v8112 = vunpack.c.l.b16 %v6647
        %v8113 = vunpack.c.h.b16 %v6647
        %v8114 = vunpack.c.l.b16 %v6648
        %v8115 = vunpack.c.h.b16 %v6648
        %v8116 = vunpack.c.l.b16 %v6649
        %v8117 = vunpack.c.h.b16 %v6649
        %v8118 = vunpack.c.l.b16 %v6650
        %v8119 = vunpack.c.h.b16 %v6650
        %v8120 = vunpack.c.l.b16 %v6651
        %v8121 = vunpack.c.h.b16 %v6651
        %v8122 = vunpack.c.l.b16 %v6652
        %v8123 = vunpack.c.h.b16 %v6652
        %v8124 = vunpack.c.l.b16 %v6653
        %v8125 = vunpack.c.h.b16 %v6653
        %v8126 = vunpack.c.l.b16 %v6654
        %v8127 = vunpack.c.h.b16 %v6654
        %v8128 = vunpack.c.l.b16 %v6655
        %v8129 = vunpack.c.h.b16 %v6655
        %v8130 = vunpack.c.l.b16 %v6656
        %v8131 = vunpack.c.h.b16 %v6656
        %v8132 = vunpack.c.l.b16 %v6657
        %v8133 = vunpack.c.h.b16 %v6657
        %v8134 = vunpack.c.l.b16 %v6658
        %v8135 = vunpack.c.h.b16 %v6658
        %v8136 = vunpack.c.l.b16 %v6659
        %v8137 = vunpack.c.h.b16 %v6659
        %v8138 = vunpack.c.l.b16 %v6660
        %v8139 = vunpack.c.h.b16 %v6660
        %v8140 = vunpack.c.l.b16 %v6661
        %v8141 = vunpack.c.h.b16 %v6661
        %v8142 = vunpack.c.l.b16 %v6662
        %v8143 = vunpack.c.h.b16 %v6662
        %v8144 = vunpack.c.l.b16 %v6663
        %v8145 = vunpack.c.h.b16 %v6663
        %v8146 = vunpack.c.l.b16 %v6664
        %v8147 = vunpack.c.h.b16 %v6664
        %v8148 = vunpack.c.l.b16 %v6665
        %v8149 = vunpack.c.h.b16 %v6665
        %v8150 = vunpack.c.l.b16 %v6666
        %v8151 = vunpack.c.h.b16 %v6666
        %v8152 = vunpack.c.l.b16 %v6667
        %v8153 = vunpack.c.h.b16 %v6667
        %v8154 = vunpack.c.l.b16 %v6668
        %v8155 = vunpack.c.h.b16 %v6668
        %v8156 = vunpack.c.l.b16 %v6669
        %v8157 = vunpack.c.h.b16 %v6669
        %v8158 = vunpack.c.l.b16 %v6670
        %v8159 = vunpack.c.h.b16 %v6670
        %v8160 = vunpack.c.l.b16 %v6671
        %v8161 = vunpack.c.h.b16 %v6671
        %v8162 = vunpack.c.l.b16 %v6672
        %v8163 = vunpack.c.h.b16 %v6672
        %v8164 = vunpack.c.l.b16 %v6673
        %v8165 = vunpack.c.h.b16 %v6673
        %v8166 = vunpack.c.l.b16 %v6674
        %v8167 = vunpack.c.h.b16 %v6674
        %v8168 = vunpack.c.l.b16 %v6675
        %v8169 = vunpack.c.h.b16 %v6675
        %v8170 = vunpack.c.l.b16 %v6676
        %v8171 = vunpack.c.h.b16 %v6676
        %v8172 = vunpack.c.l.b16 %v6677
        %v8173 = vunpack.c.h.b16 %v6677
        %v8174 = vunpack.c.l.b16 %v6678
        %v8175 = vunpack.c.h.b16 %v6678
        %v8176 = vunpack.c.l.b16 %v6679
        %v8177 = vunpack.c.h.b16 %v6679
        %v8178 = vunpack.c.l.b16 %v6680
        %v8179 = vunpack.c.h.b16 %v6680
        %v8180 = vunpack.c.l.b16 %v6681
        %v8181 = vunpack.c.h.b16 %v6681
        %v8182 = vunpack.c.l.b16 %v6682
        %v8183 = vunpack.c.h.b16 %v6682
        %v8184 = vunpack.c.l.b16 %v6683
        %v8185 = vunpack.c.h.b16 %v6683
        %v8186 = vunpack.c.l.b16 %v6684
        %v8187 = vunpack.c.h.b16 %v6684
        %v8188 = vunpack.c.l.b16 %v6685
        %v8189 = vunpack.c.h.b16 %v6685
        %v8190 = vunpack.c.l.b16 %v6686
        %v8191 = vunpack.c.h.b16 %v6686
        %v8192 = vunpack.c.l.b16 %v6687
        %v8193 = vunpack.c.h.b16 %v6687
        %v8194 = vunpack.c.l.b16 %v6688
        %v8195 = vunpack.c.h.b16 %v6688
        %v8196 = vunpack.c.l.b16 %v6689
        %v8197 = vunpack.c.h.b16 %v6689
        %v8198 = vunpack.c.l.b16 %v6690
        %v8199 = vunpack.c.h.b16 %v6690
        %v8200 = vunpack.c.l.b16 %v6691
        %v8201 = vunpack.c.h.b16 %v6691
        %v8202 = vunpack.c.l.b16 %v6692
        %v8203 = vunpack.c.h.b16 %v6692
        %v8204 = vunpack.c.l.b16 %v6693
        %v8205 = vunpack.c.h.b16 %v6693
        %v8206 = vunpack.c.l.b16 %v6694
        %v8207 = vunpack.c.h.b16 %v6694
        %v8208 = vunpack.c.l.b16 %v6695
        %v8209 = vunpack.c.h.b16 %v6695
        %v8210 = vunpack.c.l.b16 %v6696
        %v8211 = vunpack.c.h.b16 %v6696
        %v8212 = vunpack.c.l.b16 %v6697
        %v8213 = vunpack.c.h.b16 %v6697
        %v8214 = vunpack.c.l.b16 %v6698
        %v8215 = vunpack.c.h.b16 %v6698
        %v8216 = vunpack.c.l.b16 %v6699
        %v8217 = vunpack.c.h.b16 %v6699
        %v8218 = vunpack.c.l.b16 %v6700
        %v8219 = vunpack.c.h.b16 %v6700
        %v8220 = vunpack.c.l.b16 %v6701
        %v8221 = vunpack.c.h.b16 %v6701
        %v8222 = vunpack.c.l.b16 %v6702
        %v8223 = vunpack.c.h.b16 %v6702
        %v8224 = vunpack.c.l.b16 %v6703
        %v8225 = vunpack.c.h.b16 %v6703
        %v8226 = vunpack.c.l.b16 %v6704
        %v8227 = vunpack.c.h.b16 %v6704
        %v8228 = vunpack.c.l.b16 %v6705
        %v8229 = vunpack.c.h.b16 %v6705
        %v8230 = vunpack.c.l.b16 %v6706
        %v8231 = vunpack.c.h.b16 %v6706
        %v8232 = vunpack.c.l.b16 %v6707
        %v8233 = vunpack.c.h.b16 %v6707
        %v8234 = vunpack.c.l.b16 %v6708
        %v8235 = vunpack.c.h.b16 %v6708
        %v8236 = vunpack.c.l.b16 %v6709
        %v8237 = vunpack.c.h.b16 %v6709
        %v8238 = vunpack.c.l.b16 %v6710
        %v8239 = vunpack.c.h.b16 %v6710
        %v8240 = vunpack.c.l.b16 %v6711
        %v8241 = vunpack.c.h.b16 %v6711
        %v8242 = vunpack.c.l.b16 %v6712
        %v8243 = vunpack.c.h.b16 %v6712
        %v8244 = vunpack.c.l.b16 %v6713
        %v8245 = vunpack.c.h.b16 %v6713
        %v8246 = vunpack.c.l.b16 %v6714
        %v8247 = vunpack.c.h.b16 %v6714
        %v8248 = vunpack.c.l.b16 %v6715
        %v8249 = vunpack.c.h.b16 %v6715
        %v8250 = vunpack.c.l.b16 %v6716
        %v8251 = vunpack.c.h.b16 %v6716
        %v8252 = vunpack.c.l.b16 %v6717
        %v8253 = vunpack.c.h.b16 %v6717
        %v8254 = vunpack.c.l.b16 %v6718
        %v8255 = vunpack.c.h.b16 %v6718
        %v8256 = vunpack.c.l.b16 %v6719
        %v8257 = vunpack.c.h.b16 %v6719
        %v8258 = vunpack.c.l.b16 %v6720
        %v8259 = vunpack.c.h.b16 %v6720
        %v8260 = vunpack.c.l.b16 %v6721
        %v8261 = vunpack.c.h.b16 %v6721
        %v8262 = vunpack.c.l.b16 %v6722
        %v8263 = vunpack.c.h.b16 %v6722
        %v8264 = vunpack.c.l.b16 %v6723
        %v8265 = vunpack.c.h.b16 %v6723
        %v8266 = vunpack.c.l.b16 %v6724
        %v8267 = vunpack.c.h.b16 %v6724
        %v8268 = vunpack.c.l.b16 %v6725
        %v8269 = vunpack.c.h.b16 %v6725
        %v8270 = vunpack.c.l.b16 %v6726
        %v8271 = vunpack.c.h.b16 %v6726
        %v8272 = vunpack.c.l.b16 %v6727
        %v8273 = vunpack.c.h.b16 %v6727
        %v8274 = vunpack.c.l.b16 %v6728
        %v8275 = vunpack.c.h.b16 %v6728
        %v8276 = vunpack.c.l.b16 %v6729
        %v8277 = vunpack.c.h.b16 %v6729
        %v8278 = vunpack.c.l.b16 %v6730
        %v8279 = vunpack.c.h.b16 %v6730
        %v8280 = vunpack.c.l.b16 %v6731
        %v8281 = vunpack.c.h.b16 %v6731
        %v8282 = vunpack.c.l.b16 %v6732
        %v8283 = vunpack.c.h.b16 %v6732
        %v8284 = vunpack.c.l.b16 %v6733
        %v8285 = vunpack.c.h.b16 %v6733
        %v8286 = vunpack.c.l.b16 %v6734
        %v8287 = vunpack.c.h.b16 %v6734
        %v8288 = vunpack.c.l.b16 %v6735
        %v8289 = vunpack.c.h.b16 %v6735
        %v8290 = vunpack.c.l.b16 %v6736
        %v8291 = vunpack.c.h.b16 %v6736
        %v8292 = vunpack.c.l.b16 %v6737
        %v8293 = vunpack.c.h.b16 %v6737
        %v8294 = vunpack.c.l.b16 %v6738
        %v8295 = vunpack.c.h.b16 %v6738
        %v8296 = vunpack.c.l.b16 %v6739
        %v8297 = vunpack.c.h.b16 %v6739
        %v8298 = vunpack.c.l.b16 %v6740
        %v8299 = vunpack.c.h.b16 %v6740
        %v8300 = vunpack.c.l.b16 %v6741
        %v8301 = vunpack.c.h.b16 %v6741
        %v8302 = vunpack.c.l.b16 %v6742
        %v8303 = vunpack.c.h.b16 %v6742
        %v8304 = vunpack.c.l.b16 %v6743
        %v8305 = vunpack.c.h.b16 %v6743
        %v8306 = vunpack.c.l.b16 %v6744
        %v8307 = vunpack.c.h.b16 %v6744
        %v8308 = vunpack.c.l.b16 %v6745
        %v8309 = vunpack.c.h.b16 %v6745
        %v8310 = vunpack.c.l.b16 %v6746
        %v8311 = vunpack.c.h.b16 %v6746
        %v8312 = vunpack.c.l.b16 %v6747
        %v8313 = vunpack.c.h.b16 %v6747
        %v8314 = vunpack.c.l.b16 %v6748
        %v8315 = vunpack.c.h.b16 %v6748
        %v8316 = vunpack.c.l.b16 %v6749
        %v8317 = vunpack.c.h.b16 %v6749
        %v8318 = vunpack.c.l.b16 %v6750
        %v8319 = vunpack.c.h.b16 %v6750
        %v8320 = vunpack.c.l.b16 %v6751
        %v8321 = vunpack.c.h.b16 %v6751
        %v8322 = vunpack.c.l.b16 %v6752
        %v8323 = vunpack.c.h.b16 %v6752
        %v8324 = vunpack.c.l.b16 %v6753
        %v8325 = vunpack.c.h.b16 %v6753
        %v8326 = vunpack.c.l.b16 %v6754
        %v8327 = vunpack.c.h.b16 %v6754
        %v8328 = vunpack.c.l.b16 %v6755
        %v8329 = vunpack.c.h.b16 %v6755
        %v8330 = vunpack.c.l.b16 %v6756
        %v8331 = vunpack.c.h.b16 %v6756
        %v8332 = vunpack.c.l.b16 %v6757
        %v8333 = vunpack.c.h.b16 %v6757
        %v8334 = vunpack.c.l.b16 %v6758
        %v8335 = vunpack.c.h.b16 %v6758
        %v8336 = vunpack.c.l.b16 %v6759
        %v8337 = vunpack.c.h.b16 %v6759
        %v8338 = vpack.c.b16 %v7322, %v7314
        %v8339 = vpack.c.b16 %v7323, %v7315
        %v8340 = vpack.c.b16 %v7324, %v7316
        %v8341 = vpack.c.b16 %v7325, %v7317
        %v8342 = vpack.c.b16 %v7326, %v7318
        %v8343 = vpack.c.b16 %v7327, %v7319
        %v8344 = vpack.c.b16 %v7328, %v7320
        %v8345 = vpack.c.b16 %v7329, %v7321
        %v8346 = vpack.c.b16 %v7338, %v7330
        %v8347 = vpack.c.b16 %v7339, %v7331
        %v8348 = vpack.c.b16 %v7340, %v7332
        %v8349 = vpack.c.b16 %v7341, %v7333
        %v8350 = vpack.c.b16 %v7342, %v7334
        %v8351 = vpack.c.b16 %v7343, %v7335
        %v8352 = vpack.c.b16 %v7344, %v7336
        %v8353 = vpack.c.b16 %v7345, %v7337
        %v8354 = vpack.c.b16 %v7354, %v7346
        %v8355 = vpack.c.b16 %v7355, %v7347
        %v8356 = vpack.c.b16 %v7356, %v7348
        %v8357 = vpack.c.b16 %v7357, %v7349
        %v8358 = vpack.c.b16 %v7358, %v7350
        %v8359 = vpack.c.b16 %v7359, %v7351
        %v8360 = vpack.c.b16 %v7360, %v7352
        %v8361 = vpack.c.b16 %v7361, %v7353
        %v8362 = vpack.c.b16 %v7370, %v7362
        %v8363 = vpack.c.b16 %v7371, %v7363
        %v8364 = vpack.c.b16 %v7372, %v7364
        %v8365 = vpack.c.b16 %v7373, %v7365
        %v8366 = vpack.c.b16 %v7374, %v7366
        %v8367 = vpack.c.b16 %v7375, %v7367
        %v8368 = vpack.c.b16 %v7376, %v7368
        %v8369 = vpack.c.b16 %v7377, %v7369
        %v8370 = vpack.c.b16 %v7386, %v7378
        %v8371 = vpack.c.b16 %v7387, %v7379
        %v8372 = vpack.c.b16 %v7388, %v7380
        %v8373 = vpack.c.b16 %v7389, %v7381
        %v8374 = vpack.c.b16 %v7390, %v7382
        %v8375 = vpack.c.b16 %v7391, %v7383
        %v8376 = vpack.c.b16 %v7392, %v7384
        %v8377 = vpack.c.b16 %v7393, %v7385
        %v8378 = vpack.c.b16 %v7402, %v7394
        %v8379 = vpack.c.b16 %v7403, %v7395
        %v8380 = vpack.c.b16 %v7404, %v7396
        %v8381 = vpack.c.b16 %v7405, %v7397
        %v8382 = vpack.c.b16 %v7406, %v7398
        %v8383 = vpack.c.b16 %v7407, %v7399
        %v8384 = vpack.c.b16 %v7408, %v7400
        %v8385 = vpack.c.b16 %v7409, %v7401
        %v8386 = vpack.c.b16 %v7418, %v7410
        %v8387 = vpack.c.b16 %v7419, %v7411
        %v8388 = vpack.c.b16 %v7420, %v7412
        %v8389 = vpack.c.b16 %v7421, %v7413
        %v8390 = vpack.c.b16 %v7422, %v7414
        %v8391 = vpack.c.b16 %v7423, %v7415
        %v8392 = vpack.c.b16 %v7424, %v7416
        %v8393 = vpack.c.b16 %v7425, %v7417
        %v8394 = vpack.c.b16 %v7434, %v7426
        %v8395 = vpack.c.b16 %v7435, %v7427
        %v8396 = vpack.c.b16 %v7436, %v7428
        %v8397 = vpack.c.b16 %v7437, %v7429
        %v8398 = vpack.c.b16 %v7438, %v7430
        %v8399 = vpack.c.b16 %v7439, %v7431
        %v8400 = vpack.c.b16 %v7440, %v7432
        %v8401 = vpack.c.b16 %v7441, %v7433
        %v8402 = vpack.c.b16 %v7450, %v7442
        %v8403 = vpack.c.b16 %v7451, %v7443
        %v8404 = vpack.c.b16 %v7452, %v7444
        %v8405 = vpack.c.b16 %v7453, %v7445
        %v8406 = vpack.c.b16 %v7454, %v7446
        %v8407 = vpack.c.b16 %v7455, %v7447
        %v8408 = vpack.c.b16 %v7456, %v7448
        %v8409 = vpack.c.b16 %v7457, %v7449
        %v8410 = vpack.c.b16 %v7466, %v7458
        %v8411 = vpack.c.b16 %v7467, %v7459
        %v8412 = vpack.c.b16 %v7468, %v7460
        %v8413 = vpack.c.b16 %v7469, %v7461
        %v8414 = vpack.c.b16 %v7470, %v7462
        %v8415 = vpack.c.b16 %v7471, %v7463
        %v8416 = vpack.c.b16 %v7472, %v7464
        %v8417 = vpack.c.b16 %v7473, %v7465
        %v8418 = vpack.c.b16 %v7482, %v7474
        %v8419 = vpack.c.b16 %v7483, %v7475
        %v8420 = vpack.c.b16 %v7484, %v7476
        %v8421 = vpack.c.b16 %v7485, %v7477
        %v8422 = vpack.c.b16 %v7486, %v7478
        %v8423 = vpack.c.b16 %v7487, %v7479
        %v8424 = vpack.c.b16 %v7488, %v7480
        %v8425 = vpack.c.b16 %v7489, %v7481
        %v8426 = vpack.c.b16 %v7498, %v7490
        %v8427 = vpack.c.b16 %v7499, %v7491
        %v8428 = vpack.c.b16 %v7500, %v7492
        %v8429 = vpack.c.b16 %v7501, %v7493
        %v8430 = vpack.c.b16 %v7502, %v7494
        %v8431 = vpack.c.b16 %v7503, %v7495
        %v8432 = vpack.c.b16 %v7504, %v7496
        %v8433 = vpack.c.b16 %v7505, %v7497
        %v8434 = vpack.c.b16 %v7514, %v7506
        %v8435 = vpack.c.b16 %v7515, %v7507
        %v8436 = vpack.c.b16 %v7516, %v7508
        %v8437 = vpack.c.b16 %v7517, %v7509
        %v8438 = vpack.c.b16 %v7518, %v7510
        %v8439 = vpack.c.b16 %v7519, %v7511
        %v8440 = vpack.c.b16 %v7520, %v7512
        %v8441 = vpack.c.b16 %v7521, %v7513
        %v8442 = vpack.c.b16 %v7530, %v7522
        %v8443 = vpack.c.b16 %v7531, %v7523
        %v8444 = vpack.c.b16 %v7532, %v7524
        %v8445 = vpack.c.b16 %v7533, %v7525
        %v8446 = vpack.c.b16 %v7534, %v7526
        %v8447 = vpack.c.b16 %v7535, %v7527
        %v8448 = vpack.c.b16 %v7536, %v7528
        %v8449 = vpack.c.b16 %v7537, %v7529
        %v8450 = vpack.c.b16 %v7546, %v7538
        %v8451 = vpack.c.b16 %v7547, %v7539
        %v8452 = vpack.c.b16 %v7548, %v7540
        %v8453 = vpack.c.b16 %v7549, %v7541
        %v8454 = vpack.c.b16 %v7550, %v7542
        %v8455 = vpack.c.b16 %v7551, %v7543
        %v8456 = vpack.c.b16 %v7552, %v7544
        %v8457 = vpack.c.b16 %v7553, %v7545
        %v8458 = vpack.c.b16 %v7562, %v7554
        %v8459 = vpack.c.b16 %v7563, %v7555
        %v8460 = vpack.c.b16 %v7564, %v7556
        %v8461 = vpack.c.b16 %v7565, %v7557
        %v8462 = vpack.c.b16 %v7566, %v7558
        %v8463 = vpack.c.b16 %v7567, %v7559
        %v8464 = vpack.c.b16 %v7568, %v7560
        %v8465 = vpack.c.b16 %v7569, %v7561
        %v8466 = vpack.c.b16 %v7578, %v7570
        %v8467 = vpack.c.b16 %v7579, %v7571
        %v8468 = vpack.c.b16 %v7580, %v7572
        %v8469 = vpack.c.b16 %v7581, %v7573
        %v8470 = vpack.c.b16 %v7582, %v7574
        %v8471 = vpack.c.b16 %v7583, %v7575
        %v8472 = vpack.c.b16 %v7584, %v7576
        %v8473 = vpack.c.b16 %v7585, %v7577
        %v8474 = vpack.c.b16 %v7594, %v7586
        %v8475 = vpack.c.b16 %v7595, %v7587
        %v8476 = vpack.c.b16 %v7596, %v7588
        %v8477 = vpack.c.b16 %v7597, %v7589
        %v8478 = vpack.c.b16 %v7598, %v7590
        %v8479 = vpack.c.b16 %v7599, %v7591
        %v8480 = vpack.c.b16 %v7600, %v7592
        %v8481 = vpack.c.b16 %v7601, %v7593
        %v8482 = vpack.c.b16 %v7610, %v7602
        %v8483 = vpack.c.b16 %v7611, %v7603
        %v8484 = vpack.c.b16 %v7612, %v7604
        %v8485 = vpack.c.b16 %v7613, %v7605
        %v8486 = vpack.c.b16 %v7614, %v7606
        %v8487 = vpack.c.b16 %v7615, %v7607
        %v8488 = vpack.c.b16 %v7616, %v7608
        %v8489 = vpack.c.b16 %v7617, %v7609
        %v8490 = vpack.c.b16 %v7626, %v7618
        %v8491 = vpack.c.b16 %v7627, %v7619
        %v8492 = vpack.c.b16 %v7628, %v7620
        %v8493 = vpack.c.b16 %v7629, %v7621
        %v8494 = vpack.c.b16 %v7630, %v7622
        %v8495 = vpack.c.b16 %v7631, %v7623
        %v8496 = vpack.c.b16 %v7632, %v7624
        %v8497 = vpack.c.b16 %v7633, %v7625
        %v8498 = vpack.c.b16 %v7642, %v7634
        %v8499 = vpack.c.b16 %v7643, %v7635
        %v8500 = vpack.c.b16 %v7644, %v7636
        %v8501 = vpack.c.b16 %v7645, %v7637
        %v8502 = vpack.c.b16 %v7646, %v7638
        %v8503 = vpack.c.b16 %v7647, %v7639
        %v8504 = vpack.c.b16 %v7648, %v7640
        %v8505 = vpack.c.b16 %v7649, %v7641
        %v8506 = vpack.c.b16 %v7658, %v7650
        %v8507 = vpack.c.b16 %v7659, %v7651
        %v8508 = vpack.c.b16 %v7660, %v7652
        %v8509 = vpack.c.b16 %v7661, %v7653
        %v8510 = vpack.c.b16 %v7662, %v7654
        %v8511 = vpack.c.b16 %v7663, %v7655
        %v8512 = vpack.c.b16 %v7664, %v7656
        %v8513 = vpack.c.b16 %v7665, %v7657
        %v8514 = vpack.c.b16 %v7674, %v7666
        %v8515 = vpack.c.b16 %v7675, %v7667
        %v8516 = vpack.c.b16 %v7676, %v7668
        %v8517 = vpack.c.b16 %v7677, %v7669
        %v8518 = vpack.c.b16 %v7678, %v7670
        %v8519 = vpack.c.b16 %v7679, %v7671
        %v8520 = vpack.c.b16 %v7680, %v7672
        %v8521 = vpack.c.b16 %v7681, %v7673
        %v8522 = vpack.c.b16 %v7690, %v7682
        %v8523 = vpack.c.b16 %v7691, %v7683
        %v8524 = vpack.c.b16 %v7692, %v7684
        %v8525 = vpack.c.b16 %v7693, %v7685
        %v8526 = vpack.c.b16 %v7694, %v7686
        %v8527 = vpack.c.b16 %v7695, %v7687
        %v8528 = vpack.c.b16 %v7696, %v7688
        %v8529 = vpack.c.b16 %v7697, %v7689
        %v8530 = vpack.c.b16 %v7706, %v7698
        %v8531 = vpack.c.b16 %v7707, %v7699
        %v8532 = vpack.c.b16 %v7708, %v7700
        %v8533 = vpack.c.b16 %v7709, %v7701
        %v8534 = vpack.c.b16 %v7710, %v7702
        %v8535 = vpack.c.b16 %v7711, %v7703
        %v8536 = vpack.c.b16 %v7712, %v7704
        %v8537 = vpack.c.b16 %v7713, %v7705
        %v8538 = vpack.c.b16 %v7722, %v7714
        %v8539 = vpack.c.b16 %v7723, %v7715
        %v8540 = vpack.c.b16 %v7724, %v7716
        %v8541 = vpack.c.b16 %v7725, %v7717
        %v8542 = vpack.c.b16 %v7726, %v7718
        %v8543 = vpack.c.b16 %v7727, %v7719
        %v8544 = vpack.c.b16 %v7728, %v7720
        %v8545 = vpack.c.b16 %v7729, %v7721
        %v8546 = vpack.c.b16 %v7738, %v7730
        %v8547 = vpack.c.b16 %v7739, %v7731
        %v8548 = vpack.c.b16 %v7740, %v7732
        %v8549 = vpack.c.b16 %v7741, %v7733
        %v8550 = vpack.c.b16 %v7742, %v7734
        %v8551 = vpack.c.b16 %v7743, %v7735
        %v8552 = vpack.c.b16 %v7744, %v7736
        %v8553 = vpack.c.b16 %v7745, %v7737
        %v8554 = vpack.c.b16 %v7754, %v7746
        %v8555 = vpack.c.b16 %v7755, %v7747
        %v8556 = vpack.c.b16 %v7756, %v7748
        %v8557 = vpack.c.b16 %v7757, %v7749
        %v8558 = vpack.c.b16 %v7758, %v7750
        %v8559 = vpack.c.b16 %v7759, %v7751
        %v8560 = vpack.c.b16 %v7760, %v7752
        %v8561 = vpack.c.b16 %v7761, %v7753
        %v8562 = vpack.c.b16 %v7770, %v7762
        %v8563 = vpack.c.b16 %v7771, %v7763
        %v8564 = vpack.c.b16 %v7772, %v7764
        %v8565 = vpack.c.b16 %v7773, %v7765
        %v8566 = vpack.c.b16 %v7774, %v7766
        %v8567 = vpack.c.b16 %v7775, %v7767
        %v8568 = vpack.c.b16 %v7776, %v7768
        %v8569 = vpack.c.b16 %v7777, %v7769
        %v8570 = vpack.c.b16 %v7786, %v7778
        %v8571 = vpack.c.b16 %v7787, %v7779
        %v8572 = vpack.c.b16 %v7788, %v7780
        %v8573 = vpack.c.b16 %v7789, %v7781
        %v8574 = vpack.c.b16 %v7790, %v7782
        %v8575 = vpack.c.b16 %v7791, %v7783
        %v8576 = vpack.c.b16 %v7792, %v7784
        %v8577 = vpack.c.b16 %v7793, %v7785
        %v8578 = vpack.c.b16 %v7802, %v7794
        %v8579 = vpack.c.b16 %v7803, %v7795
        %v8580 = vpack.c.b16 %v7804, %v7796
        %v8581 = vpack.c.b16 %v7805, %v7797
        %v8582 = vpack.c.b16 %v7806, %v7798
        %v8583 = vpack.c.b16 %v7807, %v7799
        %v8584 = vpack.c.b16 %v7808, %v7800
        %v8585 = vpack.c.b16 %v7809, %v7801
        %v8586 = vpack.c.b16 %v7818, %v7810
        %v8587 = vpack.c.b16 %v7819, %v7811
        %v8588 = vpack.c.b16 %v7820, %v7812
        %v8589 = vpack.c.b16 %v7821, %v7813
        %v8590 = vpack.c.b16 %v7822, %v7814
        %v8591 = vpack.c.b16 %v7823, %v7815
        %v8592 = vpack.c.b16 %v7824, %v7816
        %v8593 = vpack.c.b16 %v7825, %v7817
        %v8594 = vpack.c.b16 %v7834, %v7826
        %v8595 = vpack.c.b16 %v7835, %v7827
        %v8596 = vpack.c.b16 %v7836, %v7828
        %v8597 = vpack.c.b16 %v7837, %v7829
        %v8598 = vpack.c.b16 %v7838, %v7830
        %v8599 = vpack.c.b16 %v7839, %v7831
        %v8600 = vpack.c.b16 %v7840, %v7832
        %v8601 = vpack.c.b16 %v7841, %v7833
        %v8602 = vpack.c.b16 %v7850, %v7842
        %v8603 = vpack.c.b16 %v7851, %v7843
        %v8604 = vpack.c.b16 %v7852, %v7844
        %v8605 = vpack.c.b16 %v7853, %v7845
        %v8606 = vpack.c.b16 %v7854, %v7846
        %v8607 = vpack.c.b16 %v7855, %v7847
        %v8608 = vpack.c.b16 %v7856, %v7848
        %v8609 = vpack.c.b16 %v7857, %v7849
        %v8610 = vpack.c.b16 %v7866, %v7858
        %v8611 = vpack.c.b16 %v7867, %v7859
        %v8612 = vpack.c.b16 %v7868, %v7860
        %v8613 = vpack.c.b16 %v7869, %v7861
        %v8614 = vpack.c.b16 %v7870, %v7862
        %v8615 = vpack.c.b16 %v7871, %v7863
        %v8616 = vpack.c.b16 %v7872, %v7864
        %v8617 = vpack.c.b16 %v7873, %v7865
        %v8618 = vpack.c.b16 %v7882, %v7874
        %v8619 = vpack.c.b16 %v7883, %v7875
        %v8620 = vpack.c.b16 %v7884, %v7876
        %v8621 = vpack.c.b16 %v7885, %v7877
        %v8622 = vpack.c.b16 %v7886, %v7878
        %v8623 = vpack.c.b16 %v7887, %v7879
        %v8624 = vpack.c.b16 %v7888, %v7880
        %v8625 = vpack.c.b16 %v7889, %v7881
        %v8626 = vpack.c.b16 %v7898, %v7890
        %v8627 = vpack.c.b16 %v7899, %v7891
        %v8628 = vpack.c.b16 %v7900, %v7892
        %v8629 = vpack.c.b16 %v7901, %v7893
        %v8630 = vpack.c.b16 %v7902, %v7894
        %v8631 = vpack.c.b16 %v7903, %v7895
        %v8632 = vpack.c.b16 %v7904, %v7896
        %v8633 = vpack.c.b16 %v7905, %v7897
        %v8634 = vpack.c.b16 %v7914, %v7906
        %v8635 = vpack.c.b16 %v7915, %v7907
        %v8636 = vpack.c.b16 %v7916, %v7908
        %v8637 = vpack.c.b16 %v7917, %v7909
        %v8638 = vpack.c.b16 %v7918, %v7910
        %v8639 = vpack.c.b16 %v7919, %v7911
        %v8640 = vpack.c.b16 %v7920, %v7912
        %v8641 = vpack.c.b16 %v7921, %v7913
        %v8642 = vpack.c.b16 %v7930, %v7922
        %v8643 = vpack.c.b16 %v7931, %v7923
        %v8644 = vpack.c.b16 %v7932, %v7924
        %v8645 = vpack.c.b16 %v7933, %v7925
        %v8646 = vpack.c.b16 %v7934, %v7926
        %v8647 = vpack.c.b16 %v7935, %v7927
        %v8648 = vpack.c.b16 %v7936, %v7928
        %v8649 = vpack.c.b16 %v7937, %v7929
        %v8650 = vpack.c.b16 %v7946, %v7938
        %v8651 = vpack.c.b16 %v7947, %v7939
        %v8652 = vpack.c.b16 %v7948, %v7940
        %v8653 = vpack.c.b16 %v7949, %v7941
        %v8654 = vpack.c.b16 %v7950, %v7942
        %v8655 = vpack.c.b16 %v7951, %v7943
        %v8656 = vpack.c.b16 %v7952, %v7944
        %v8657 = vpack.c.b16 %v7953, %v7945
        %v8658 = vpack.c.b16 %v7962, %v7954
        %v8659 = vpack.c.b16 %v7963, %v7955
        %v8660 = vpack.c.b16 %v7964, %v7956
        %v8661 = vpack.c.b16 %v7965, %v7957
        %v8662 = vpack.c.b16 %v7966, %v7958
        %v8663 = vpack.c.b16 %v7967, %v7959
        %v8664 = vpack.c.b16 %v7968, %v7960
        %v8665 = vpack.c.b16 %v7969, %v7961
        %v8666 = vpack.c.b16 %v7978, %v7970
        %v8667 = vpack.c.b16 %v7979, %v7971
        %v8668 = vpack.c.b16 %v7980, %v7972
        %v8669 = vpack.c.b16 %v7981, %v7973
        %v8670 = vpack.c.b16 %v7982, %v7974
        %v8671 = vpack.c.b16 %v7983, %v7975
        %v8672 = vpack.c.b16 %v7984, %v7976
        %v8673 = vpack.c.b16 %v7985, %v7977
        %v8674 = vpack.c.b16 %v7994, %v7986
        %v8675 = vpack.c.b16 %v7995, %v7987
        %v8676 = vpack.c.b16 %v7996, %v7988
        %v8677 = vpack.c.b16 %v7997, %v7989
        %v8678 = vpack.c.b16 %v7998, %v7990
        %v8679 = vpack.c.b16 %v7999, %v7991
        %v8680 = vpack.c.b16 %v8000, %v7992
        %v8681 = vpack.c.b16 %v8001, %v7993
        %v8682 = vpack.c.b16 %v8010, %v8002
        %v8683 = vpack.c.b16 %v8011, %v8003
        %v8684 = vpack.c.b16 %v8012, %v8004
        %v8685 = vpack.c.b16 %v8013, %v8005
        %v8686 = vpack.c.b16 %v8014, %v8006
        %v8687 = vpack.c.b16 %v8015, %v8007
        %v8688 = vpack.c.b16 %v8016, %v8008
        %v8689 = vpack.c.b16 %v8017, %v8009
        %v8690 = vpack.c.b16 %v8026, %v8018
        %v8691 = vpack.c.b16 %v8027, %v8019
        %v8692 = vpack.c.b16 %v8028, %v8020
        %v8693 = vpack.c.b16 %v8029, %v8021
        %v8694 = vpack.c.b16 %v8030, %v8022
        %v8695 = vpack.c.b16 %v8031, %v8023
        %v8696 = vpack.c.b16 %v8032, %v8024
        %v8697 = vpack.c.b16 %v8033, %v8025
        %v8698 = vpack.c.b16 %v8042, %v8034
        %v8699 = vpack.c.b16 %v8043, %v8035
        %v8700 = vpack.c.b16 %v8044, %v8036
        %v8701 = vpack.c.b16 %v8045, %v8037
        %v8702 = vpack.c.b16 %v8046, %v8038
        %v8703 = vpack.c.b16 %v8047, %v8039
        %v8704 = vpack.c.b16 %v8048, %v8040
        %v8705 = vpack.c.b16 %v8049, %v8041
        %v8706 = vpack.c.b16 %v8058, %v8050
        %v8707 = vpack.c.b16 %v8059, %v8051
        %v8708 = vpack.c.b16 %v8060, %v8052
        %v8709 = vpack.c.b16 %v8061, %v8053
        %v8710 = vpack.c.b16 %v8062, %v8054
        %v8711 = vpack.c.b16 %v8063, %v8055
        %v8712 = vpack.c.b16 %v8064, %v8056
        %v8713 = vpack.c.b16 %v8065, %v8057
        %v8714 = vpack.c.b16 %v8074, %v8066
        %v8715 = vpack.c.b16 %v8075, %v8067
        %v8716 = vpack.c.b16 %v8076, %v8068
        %v8717 = vpack.c.b16 %v8077, %v8069
        %v8718 = vpack.c.b16 %v8078, %v8070
        %v8719 = vpack.c.b16 %v8079, %v8071
        %v8720 = vpack.c.b16 %v8080, %v8072
        %v8721 = vpack.c.b16 %v8081, %v8073
        %v8722 = vpack.c.b16 %v8090, %v8082
        %v8723 = vpack.c.b16 %v8091, %v8083
        %v8724 = vpack.c.b16 %v8092, %v8084
        %v8725 = vpack.c.b16 %v8093, %v8085
        %v8726 = vpack.c.b16 %v8094, %v8086
        %v8727 = vpack.c.b16 %v8095, %v8087
        %v8728 = vpack.c.b16 %v8096, %v8088
        %v8729 = vpack.c.b16 %v8097, %v8089
        %v8730 = vpack.c.b16 %v8106, %v8098
        %v8731 = vpack.c.b16 %v8107, %v8099
        %v8732 = vpack.c.b16 %v8108, %v8100
        %v8733 = vpack.c.b16 %v8109, %v8101
        %v8734 = vpack.c.b16 %v8110, %v8102
        %v8735 = vpack.c.b16 %v8111, %v8103
        %v8736 = vpack.c.b16 %v8112, %v8104
        %v8737 = vpack.c.b16 %v8113, %v8105
        %v8738 = vpack.c.b16 %v8122, %v8114
        %v8739 = vpack.c.b16 %v8123, %v8115
        %v8740 = vpack.c.b16 %v8124, %v8116
        %v8741 = vpack.c.b16 %v8125, %v8117
        %v8742 = vpack.c.b16 %v8126, %v8118
        %v8743 = vpack.c.b16 %v8127, %v8119
        %v8744 = vpack.c.b16 %v8128, %v8120
        %v8745 = vpack.c.b16 %v8129, %v8121
        %v8746 = vpack.c.b16 %v8138, %v8130
        %v8747 = vpack.c.b16 %v8139, %v8131
        %v8748 = vpack.c.b16 %v8140, %v8132
        %v8749 = vpack.c.b16 %v8141, %v8133
        %v8750 = vpack.c.b16 %v8142, %v8134
        %v8751 = vpack.c.b16 %v8143, %v8135
        %v8752 = vpack.c.b16 %v8144, %v8136
        %v8753 = vpack.c.b16 %v8145, %v8137
        %v8754 = vpack.c.b16 %v8154, %v8146
        %v8755 = vpack.c.b16 %v8155, %v8147
        %v8756 = vpack.c.b16 %v8156, %v8148
        %v8757 = vpack.c.b16 %v8157, %v8149
        %v8758 = vpack.c.b16 %v8158, %v8150
        %v8759 = vpack.c.b16 %v8159, %v8151
        %v8760 = vpack.c.b16 %v8160, %v8152
        %v8761 = vpack.c.b16 %v8161, %v8153
        %v8762 = vpack.c.b16 %v8170, %v8162
        %v8763 = vpack.c.b16 %v8171, %v8163
        %v8764 = vpack.c.b16 %v8172, %v8164
        %v8765 = vpack.c.b16 %v8173, %v8165
        %v8766 = vpack.c.b16 %v8174, %v8166
        %v8767 = vpack.c.b16 %v8175, %v8167
        %v8768 = vpack.c.b16 %v8176, %v8168
        %v8769 = vpack.c.b16 %v8177, %v8169
        %v8770 = vpack.c.b16 %v8186, %v8178
        %v8771 = vpack.c.b16 %v8187, %v8179
        %v8772 = vpack.c.b16 %v8188, %v8180
        %v8773 = vpack.c.b16 %v8189, %v8181
        %v8774 = vpack.c.b16 %v8190, %v8182
        %v8775 = vpack.c.b16 %v8191, %v8183
        %v8776 = vpack.c.b16 %v8192, %v8184
        %v8777 = vpack.c.b16 %v8193, %v8185
        %v8778 = vpack.c.b16 %v8202, %v8194
        %v8779 = vpack.c.b16 %v8203, %v8195
        %v8780 = vpack.c.b16 %v8204, %v8196
        %v8781 = vpack.c.b16 %v8205, %v8197
        %v8782 = vpack.c.b16 %v8206, %v8198
        %v8783 = vpack.c.b16 %v8207, %v8199
        %v8784 = vpack.c.b16 %v8208, %v8200
        %v8785 = vpack.c.b16 %v8209, %v8201
        %v8786 = vpack.c.b16 %v8218, %v8210
        %v8787 = vpack.c.b16 %v8219, %v8211
        %v8788 = vpack.c.b16 %v8220, %v8212
        %v8789 = vpack.c.b16 %v8221, %v8213
        %v8790 = vpack.c.b16 %v8222, %v8214
        %v8791 = vpack.c.b16 %v8223, %v8215
        %v8792 = vpack.c.b16 %v8224, %v8216
        %v8793 = vpack.c.b16 %v8225, %v8217
        %v8794 = vpack.c.b16 %v8234, %v8226
        %v8795 = vpack.c.b16 %v8235, %v8227
        %v8796 = vpack.c.b16 %v8236, %v8228
        %v8797 = vpack.c.b16 %v8237, %v8229
        %v8798 = vpack.c.b16 %v8238, %v8230
        %v8799 = vpack.c.b16 %v8239, %v8231
        %v8800 = vpack.c.b16 %v8240, %v8232
        %v8801 = vpack.c.b16 %v8241, %v8233
        %v8802 = vpack.c.b16 %v8250, %v8242
        %v8803 = vpack.c.b16 %v8251, %v8243
        %v8804 = vpack.c.b16 %v8252, %v8244
        %v8805 = vpack.c.b16 %v8253, %v8245
        %v8806 = vpack.c.b16 %v8254, %v8246
        %v8807 = vpack.c.b16 %v8255, %v8247
        %v8808 = vpack.c.b16 %v8256, %v8248
        %v8809 = vpack.c.b16 %v8257, %v8249
        %v8810 = vpack.c.b16 %v8266, %v8258
        %v8811 = vpack.c.b16 %v8267, %v8259
        %v8812 = vpack.c.b16 %v8268, %v8260
        %v8813 = vpack.c.b16 %v8269, %v8261
        %v8814 = vpack.c.b16 %v8270, %v8262
        %v8815 = vpack.c.b16 %v8271, %v8263
        %v8816 = vpack.c.b16 %v8272, %v8264
        %v8817 = vpack.c.b16 %v8273, %v8265
        %v8818 = vpack.c.b16 %v8282, %v8274
        %v8819 = vpack.c.b16 %v8283, %v8275
        %v8820 = vpack.c.b16 %v8284, %v8276
        %v8821 = vpack.c.b16 %v8285, %v8277
        %v8822 = vpack.c.b16 %v8286, %v8278
        %v8823 = vpack.c.b16 %v8287, %v8279
        %v8824 = vpack.c.b16 %v8288, %v8280
        %v8825 = vpack.c.b16 %v8289, %v8281
        %v8826 = vpack.c.b16 %v8298, %v8290
        %v8827 = vpack.c.b16 %v8299, %v8291
        %v8828 = vpack.c.b16 %v8300, %v8292
        %v8829 = vpack.c.b16 %v8301, %v8293
        %v8830 = vpack.c.b16 %v8302, %v8294
        %v8831 = vpack.c.b16 %v8303, %v8295
        %v8832 = vpack.c.b16 %v8304, %v8296
        %v8833 = vpack.c.b16 %v8305, %v8297
        %v8834 = vpack.c.b16 %v8314, %v8306
        %v8835 = vpack.c.b16 %v8315, %v8307
        %v8836 = vpack.c.b16 %v8316, %v8308
        %v8837 = vpack.c.b16 %v8317, %v8309
        %v8838 = vpack.c.b16 %v8318, %v8310
        %v8839 = vpack.c.b16 %v8319, %v8311
        %v8840 = vpack.c.b16 %v8320, %v8312
        %v8841 = vpack.c.b16 %v8321, %v8313
        %v8842 = vpack.c.b16 %v8330, %v8322
        %v8843 = vpack.c.b16 %v8331, %v8323
        %v8844 = vpack.c.b16 %v8332, %v8324
        %v8845 = vpack.c.b16 %v8333, %v8325
        %v8846 = vpack.c.b16 %v8334, %v8326
        %v8847 = vpack.c.b16 %v8335, %v8327
        %v8848 = vpack.c.b16 %v8336, %v8328
        %v8849 = vpack.c.b16 %v8337, %v8329
        %9362 = vmatprep.subr.bf16.mxu0 %v8339
        %9363 = vmatpush1.bf16.msra.mxu0 %v8338
        %9364 = vmatprep.subr.bf16.mxu0 %v8347
        %9365 = vmatpush1.bf16.msra.mxu0 %v8346
        %9366 = vmatprep.subr.bf16.mxu0 %v8355
        %9367 = vmatpush1.bf16.msra.mxu0 %v8354
        %9368 = vmatprep.subr.bf16.mxu0 %v8363
        %9369 = vmatpush1.bf16.msra.mxu0 %v8362
        %9370 = vmatprep.subr.bf16.mxu0 %v8371
        %9371 = vmatpush1.bf16.msra.mxu0 %v8370
        %9372 = vmatprep.subr.bf16.mxu0 %v8379
        %9373 = vmatpush1.bf16.msra.mxu0 %v8378
        %9374 = vmatprep.subr.bf16.mxu0 %v8387
        %9375 = vmatpush1.bf16.msra.mxu0 %v8386
        %9376 = vmatprep.subr.bf16.mxu0 %v8395
        %9377 = vmatpush1.bf16.msra.mxu0 %v8394
        %9378 = vmatprep.subr.bf16.mxu0 %v8403
        %9379 = vmatpush1.bf16.msra.mxu0 %v8402
        %9380 = vmatprep.subr.bf16.mxu0 %v8411
        %9381 = vmatpush1.bf16.msra.mxu0 %v8410
        %9382 = vmatprep.subr.bf16.mxu0 %v8419
        %9383 = vmatpush1.bf16.msra.mxu0 %v8418
        %9384 = vmatprep.subr.bf16.mxu0 %v8427
        %9385 = vmatpush1.bf16.msra.mxu0 %v8426
        %9386 = vmatprep.subr.bf16.mxu0 %v8435
        %9387 = vmatpush1.bf16.msra.mxu0 %v8434
        %9388 = vmatprep.subr.bf16.mxu0 %v8443
        %9389 = vmatpush1.bf16.msra.mxu0 %v8442
        %9390 = vmatprep.subr.bf16.mxu0 %v8451
        %9391 = vmatpush1.bf16.msra.mxu0 %v8450
        %9392 = vmatprep.subr.bf16.mxu0 %v8459
        %9393 = vmatpush1.bf16.msra.mxu0 %v8458
        %9394 = vmatprep.mubr.bf16.mxu0 %v6241
        %9395 = vmatmul.mubr.bf16.gmra.mrb[0].mxu0 %v6240
        %v9396 = vpop.f32.mrb[0].mxu0
        %v9397 = vadd.f32 %v6765, %v9396
        %v9398 = vpop.f32.mrb[0].mxu0
        %v9399 = vadd.f32 %v6769, %v9398
        %v9400 = vpop.f32.mrb[0].mxu0
        %v9401 = vpop.f32.mrb[0].mxu0
        %9402 = vdwg.mxu0
        %9403 = vmatprep.subr.bf16.mxu0 %v8467
        %9404 = vmatpush1.bf16.msra.mxu0 %v8466
        %9405 = vmatprep.subr.bf16.mxu0 %v8475
        %9406 = vmatpush1.bf16.msra.mxu0 %v8474
        %9407 = vmatprep.subr.bf16.mxu0 %v8483
        %9408 = vmatpush1.bf16.msra.mxu0 %v8482
        %9409 = vmatprep.subr.bf16.mxu0 %v8491
        %9410 = vmatpush1.bf16.msra.mxu0 %v8490
        %9411 = vmatprep.subr.bf16.mxu0 %v8499
        %9412 = vmatpush1.bf16.msra.mxu0 %v8498
        %9413 = vmatprep.subr.bf16.mxu0 %v8507
        %9414 = vmatpush1.bf16.msra.mxu0 %v8506
        %9415 = vmatprep.subr.bf16.mxu0 %v8515
        %9416 = vmatpush1.bf16.msra.mxu0 %v8514
        %9417 = vmatprep.subr.bf16.mxu0 %v8523
        %9418 = vmatpush1.bf16.msra.mxu0 %v8522
        %9419 = vmatprep.subr.bf16.mxu0 %v8531
        %9420 = vmatpush1.bf16.msra.mxu0 %v8530
        %9421 = vmatprep.subr.bf16.mxu0 %v8539
        %9422 = vmatpush1.bf16.msra.mxu0 %v8538
        %9423 = vmatprep.subr.bf16.mxu0 %v8547
        %9424 = vmatpush1.bf16.msra.mxu0 %v8546
        %9425 = vmatprep.subr.bf16.mxu0 %v8555
        %9426 = vmatpush1.bf16.msra.mxu0 %v8554
        %9427 = vmatprep.subr.bf16.mxu0 %v8563
        %9428 = vmatpush1.bf16.msra.mxu0 %v8562
        %9429 = vmatprep.subr.bf16.mxu0 %v8571
        %9430 = vmatpush1.bf16.msra.mxu0 %v8570
        %9431 = vmatprep.subr.bf16.mxu0 %v8579
        %9432 = vmatpush1.bf16.msra.mxu0 %v8578
        %9433 = vmatprep.subr.bf16.mxu0 %v8587
        %9434 = vmatpush1.bf16.msra.mxu0 %v8586
        %9435 = vmatprep.mubr.bf16.mxu0 %v6243
        %9436 = vmatmul.mubr.bf16.gmra.mrb[0].mxu0 %v6242
        %v9437 = vpop.f32.mrb[0].mxu0
        %v9438 = vadd.f32 %v9397, %v9437
        %v9439 = vpop.f32.mrb[0].mxu0
        %v9440 = vadd.f32 %v9399, %v9439
        %v9441 = vpop.f32.mrb[0].mxu0
        %v9442 = vpop.f32.mrb[0].mxu0
        %9443 = vdwg.mxu0
        %9444 = vmatprep.subr.bf16.mxu0 %v8595
        %9445 = vmatpush1.bf16.msra.mxu0 %v8594
        %9446 = vmatprep.subr.bf16.mxu0 %v8603
        %9447 = vmatpush1.bf16.msra.mxu0 %v8602
        %9448 = vmatprep.subr.bf16.mxu0 %v8611
        %9449 = vmatpush1.bf16.msra.mxu0 %v8610
        %9450 = vmatprep.subr.bf16.mxu0 %v8619
        %9451 = vmatpush1.bf16.msra.mxu0 %v8618
        %9452 = vmatprep.subr.bf16.mxu0 %v8627
        %9453 = vmatpush1.bf16.msra.mxu0 %v8626
        %9454 = vmatprep.subr.bf16.mxu0 %v8635
        %9455 = vmatpush1.bf16.msra.mxu0 %v8634
        %9456 = vmatprep.subr.bf16.mxu0 %v8643
        %9457 = vmatpush1.bf16.msra.mxu0 %v8642
        %9458 = vmatprep.subr.bf16.mxu0 %v8651
        %9459 = vmatpush1.bf16.msra.mxu0 %v8650
        %9460 = vmatprep.subr.bf16.mxu0 %v8659
        %9461 = vmatpush1.bf16.msra.mxu0 %v8658
        %9462 = vmatprep.subr.bf16.mxu0 %v8667
        %9463 = vmatpush1.bf16.msra.mxu0 %v8666
        %9464 = vmatprep.subr.bf16.mxu0 %v8675
        %9465 = vmatpush1.bf16.msra.mxu0 %v8674
        %9466 = vmatprep.subr.bf16.mxu0 %v8683
        %9467 = vmatpush1.bf16.msra.mxu0 %v8682
        %9468 = vmatprep.subr.bf16.mxu0 %v8691
        %9469 = vmatpush1.bf16.msra.mxu0 %v8690
        %9470 = vmatprep.subr.bf16.mxu0 %v8699
        %9471 = vmatpush1.bf16.msra.mxu0 %v8698
        %9472 = vmatprep.subr.bf16.mxu0 %v8707
        %9473 = vmatpush1.bf16.msra.mxu0 %v8706
        %9474 = vmatprep.subr.bf16.mxu0 %v8715
        %9475 = vmatpush1.bf16.msra.mxu0 %v8714
        %9476 = vmatprep.mubr.bf16.mxu0 %v6245
        %9477 = vmatmul.mubr.bf16.gmra.mrb[0].mxu0 %v6244
        %v9478 = vpop.f32.mrb[0].mxu0
        %v9479 = vadd.f32 %v9438, %v9478
        %v9480 = vpop.f32.mrb[0].mxu0
        %v9481 = vadd.f32 %v9440, %v9480
        %v9482 = vpop.f32.mrb[0].mxu0
        %v9483 = vpop.f32.mrb[0].mxu0
        %9484 = vdwg.mxu0
        %9485 = vmatprep.subr.bf16.mxu0 %v8723
        %9486 = vmatpush1.bf16.msra.mxu0 %v8722
        %9487 = vmatprep.subr.bf16.mxu0 %v8731
        %9488 = vmatpush1.bf16.msra.mxu0 %v8730
        %9489 = vmatprep.subr.bf16.mxu0 %v8739
        %9490 = vmatpush1.bf16.msra.mxu0 %v8738
        %9491 = vmatprep.subr.bf16.mxu0 %v8747
        %9492 = vmatpush1.bf16.msra.mxu0 %v8746
        %9493 = vmatprep.subr.bf16.mxu0 %v8755
        %9494 = vmatpush1.bf16.msra.mxu0 %v8754
        %9495 = vmatprep.subr.bf16.mxu0 %v8763
        %9496 = vmatpush1.bf16.msra.mxu0 %v8762
        %9497 = vmatprep.subr.bf16.mxu0 %v8771
        %9498 = vmatpush1.bf16.msra.mxu0 %v8770
        %9499 = vmatprep.subr.bf16.mxu0 %v8779
        %9500 = vmatpush1.bf16.msra.mxu0 %v8778
        %9501 = vmatprep.subr.bf16.mxu0 %v8787
        %9502 = vmatpush1.bf16.msra.mxu0 %v8786
        %9503 = vmatprep.subr.bf16.mxu0 %v8795
        %9504 = vmatpush1.bf16.msra.mxu0 %v8794
        %9505 = vmatprep.subr.bf16.mxu0 %v8803
        %9506 = vmatpush1.bf16.msra.mxu0 %v8802
        %9507 = vmatprep.subr.bf16.mxu0 %v8811
        %9508 = vmatpush1.bf16.msra.mxu0 %v8810
        %9509 = vmatprep.subr.bf16.mxu0 %v8819
        %9510 = vmatpush1.bf16.msra.mxu0 %v8818
        %9511 = vmatprep.subr.bf16.mxu0 %v8827
        %9512 = vmatpush1.bf16.msra.mxu0 %v8826
        %9513 = vmatprep.subr.bf16.mxu0 %v8835
        %9514 = vmatpush1.bf16.msra.mxu0 %v8834
        %9515 = vmatprep.subr.bf16.mxu0 %v8843
        %9516 = vmatpush1.bf16.msra.mxu0 %v8842
        %9517 = vmatprep.mubr.bf16.mxu0 %v6247
        %9518 = vmatmul.mubr.bf16.gmra.mrb[0].mxu0 %v6246
        %v9519 = vpop.f32.mrb[0].mxu0
        %v9520 = vadd.f32 %v9479, %v9519
        %v9521 = vpop.f32.mrb[0].mxu0
        %v9522 = vadd.f32 %v9481, %v9521
        %v9523 = vpop.f32.mrb[0].mxu0
        %v9524 = vpop.f32.mrb[0].mxu0
        %9525 = vdwg.mxu0
        %9526 = vmatprep.subr.bf16.mxu0 %v8341
        %9527 = vmatpush1.bf16.msra.mxu0 %v8340
        %9528 = vmatprep.subr.bf16.mxu0 %v8349
        %9529 = vmatpush1.bf16.msra.mxu0 %v8348
        %9530 = vmatprep.subr.bf16.mxu0 %v8357
        %9531 = vmatpush1.bf16.msra.mxu0 %v8356
        %9532 = vmatprep.subr.bf16.mxu0 %v8365
        %9533 = vmatpush1.bf16.msra.mxu0 %v8364
        %9534 = vmatprep.subr.bf16.mxu0 %v8373
        %9535 = vmatpush1.bf16.msra.mxu0 %v8372
        %9536 = vmatprep.subr.bf16.mxu0 %v8381
        %9537 = vmatpush1.bf16.msra.mxu0 %v8380
        %9538 = vmatprep.subr.bf16.mxu0 %v8389
        %9539 = vmatpush1.bf16.msra.mxu0 %v8388
        %9540 = vmatprep.subr.bf16.mxu0 %v8397
        %9541 = vmatpush1.bf16.msra.mxu0 %v8396
        %9542 = vmatprep.subr.bf16.mxu0 %v8405
        %9543 = vmatpush1.bf16.msra.mxu0 %v8404
        %9544 = vmatprep.subr.bf16.mxu0 %v8413
        %9545 = vmatpush1.bf16.msra.mxu0 %v8412
        %9546 = vmatprep.subr.bf16.mxu0 %v8421
        %9547 = vmatpush1.bf16.msra.mxu0 %v8420
        %9548 = vmatprep.subr.bf16.mxu0 %v8429
        %9549 = vmatpush1.bf16.msra.mxu0 %v8428
        %9550 = vmatprep.subr.bf16.mxu0 %v8437
        %9551 = vmatpush1.bf16.msra.mxu0 %v8436
        %9552 = vmatprep.subr.bf16.mxu0 %v8445
        %9553 = vmatpush1.bf16.msra.mxu0 %v8444
        %9554 = vmatprep.subr.bf16.mxu0 %v8453
        %9555 = vmatpush1.bf16.msra.mxu0 %v8452
        %9556 = vmatprep.subr.bf16.mxu0 %v8461
        %9557 = vmatpush1.bf16.msra.mxu0 %v8460
        %9558 = vmatprep.mubr.bf16.mxu0 %v6241
        %9559 = vmatmul.mubr.bf16.gmra.mrb[0].mxu0 %v6240
        %v9560 = vpop.f32.mrb[0].mxu0
        %v9561 = vadd.f32 %v6773, %v9560
        %v9562 = vpop.f32.mrb[0].mxu0
        %v9563 = vadd.f32 %v6777, %v9562
        %v9564 = vpop.f32.mrb[0].mxu0
        %v9565 = vpop.f32.mrb[0].mxu0
        %9566 = vdwg.mxu0
        %9567 = vmatprep.subr.bf16.mxu0 %v8469
        %9568 = vmatpush1.bf16.msra.mxu0 %v8468
        %9569 = vmatprep.subr.bf16.mxu0 %v8477
        %9570 = vmatpush1.bf16.msra.mxu0 %v8476
        %9571 = vmatprep.subr.bf16.mxu0 %v8485
        %9572 = vmatpush1.bf16.msra.mxu0 %v8484
        %9573 = vmatprep.subr.bf16.mxu0 %v8493
        %9574 = vmatpush1.bf16.msra.mxu0 %v8492
        %9575 = vmatprep.subr.bf16.mxu0 %v8501
        %9576 = vmatpush1.bf16.msra.mxu0 %v8500
        %9577 = vmatprep.subr.bf16.mxu0 %v8509
        %9578 = vmatpush1.bf16.msra.mxu0 %v8508
        %9579 = vmatprep.subr.bf16.mxu0 %v8517
        %9580 = vmatpush1.bf16.msra.mxu0 %v8516
        %9581 = vmatprep.subr.bf16.mxu0 %v8525
        %9582 = vmatpush1.bf16.msra.mxu0 %v8524
        %9583 = vmatprep.subr.bf16.mxu0 %v8533
        %9584 = vmatpush1.bf16.msra.mxu0 %v8532
        %9585 = vmatprep.subr.bf16.mxu0 %v8541
        %9586 = vmatpush1.bf16.msra.mxu0 %v8540
        %9587 = vmatprep.subr.bf16.mxu0 %v8549
        %9588 = vmatpush1.bf16.msra.mxu0 %v8548
        %9589 = vmatprep.subr.bf16.mxu0 %v8557
        %9590 = vmatpush1.bf16.msra.mxu0 %v8556
        %9591 = vmatprep.subr.bf16.mxu0 %v8565
        %9592 = vmatpush1.bf16.msra.mxu0 %v8564
        %9593 = vmatprep.subr.bf16.mxu0 %v8573
        %9594 = vmatpush1.bf16.msra.mxu0 %v8572
        %9595 = vmatprep.subr.bf16.mxu0 %v8581
        %9596 = vmatpush1.bf16.msra.mxu0 %v8580
        %9597 = vmatprep.subr.bf16.mxu0 %v8589
        %9598 = vmatpush1.bf16.msra.mxu0 %v8588
        %9599 = vmatprep.mubr.bf16.mxu0 %v6243
        %9600 = vmatmul.mubr.bf16.gmra.mrb[0].mxu0 %v6242
        %v9601 = vpop.f32.mrb[0].mxu0
        %v9602 = vadd.f32 %v9561, %v9601
        %v9603 = vpop.f32.mrb[0].mxu0
        %v9604 = vadd.f32 %v9563, %v9603
        %v9605 = vpop.f32.mrb[0].mxu0
        %v9606 = vpop.f32.mrb[0].mxu0
        %9607 = vdwg.mxu0
        %9608 = vmatprep.subr.bf16.mxu0 %v8597
        %9609 = vmatpush1.bf16.msra.mxu0 %v8596
        %9610 = vmatprep.subr.bf16.mxu0 %v8605
        %9611 = vmatpush1.bf16.msra.mxu0 %v8604
        %9612 = vmatprep.subr.bf16.mxu0 %v8613
        %9613 = vmatpush1.bf16.msra.mxu0 %v8612
        %9614 = vmatprep.subr.bf16.mxu0 %v8621
        %9615 = vmatpush1.bf16.msra.mxu0 %v8620
        %9616 = vmatprep.subr.bf16.mxu0 %v8629
        %9617 = vmatpush1.bf16.msra.mxu0 %v8628
        %9618 = vmatprep.subr.bf16.mxu0 %v8637
        %9619 = vmatpush1.bf16.msra.mxu0 %v8636
        %9620 = vmatprep.subr.bf16.mxu0 %v8645
        %9621 = vmatpush1.bf16.msra.mxu0 %v8644
        %9622 = vmatprep.subr.bf16.mxu0 %v8653
        %9623 = vmatpush1.bf16.msra.mxu0 %v8652
        %9624 = vmatprep.subr.bf16.mxu0 %v8661
        %9625 = vmatpush1.bf16.msra.mxu0 %v8660
        %9626 = vmatprep.subr.bf16.mxu0 %v8669
        %9627 = vmatpush1.bf16.msra.mxu0 %v8668
        %9628 = vmatprep.subr.bf16.mxu0 %v8677
        %9629 = vmatpush1.bf16.msra.mxu0 %v8676
        %9630 = vmatprep.subr.bf16.mxu0 %v8685
        %9631 = vmatpush1.bf16.msra.mxu0 %v8684
        %9632 = vmatprep.subr.bf16.mxu0 %v8693
        %9633 = vmatpush1.bf16.msra.mxu0 %v8692
        %9634 = vmatprep.subr.bf16.mxu0 %v8701
        %9635 = vmatpush1.bf16.msra.mxu0 %v8700
        %9636 = vmatprep.subr.bf16.mxu0 %v8709
        %9637 = vmatpush1.bf16.msra.mxu0 %v8708
        %9638 = vmatprep.subr.bf16.mxu0 %v8717
        %9639 = vmatpush1.bf16.msra.mxu0 %v8716
        %9640 = vmatprep.mubr.bf16.mxu0 %v6245
        %9641 = vmatmul.mubr.bf16.gmra.mrb[0].mxu0 %v6244
        %v9642 = vpop.f32.mrb[0].mxu0
        %v9643 = vadd.f32 %v9602, %v9642
        %v9644 = vpop.f32.mrb[0].mxu0
        %v9645 = vadd.f32 %v9604, %v9644
        %v9646 = vpop.f32.mrb[0].mxu0
        %v9647 = vpop.f32.mrb[0].mxu0
        %9648 = vdwg.mxu0
        %9649 = vmatprep.subr.bf16.mxu0 %v8725
        %9650 = vmatpush1.bf16.msra.mxu0 %v8724
        %9651 = vmatprep.subr.bf16.mxu0 %v8733
        %9652 = vmatpush1.bf16.msra.mxu0 %v8732
        %9653 = vmatprep.subr.bf16.mxu0 %v8741
        %9654 = vmatpush1.bf16.msra.mxu0 %v8740
        %9655 = vmatprep.subr.bf16.mxu0 %v8749
        %9656 = vmatpush1.bf16.msra.mxu0 %v8748
        %9657 = vmatprep.subr.bf16.mxu0 %v8757
        %9658 = vmatpush1.bf16.msra.mxu0 %v8756
        %9659 = vmatprep.subr.bf16.mxu0 %v8765
        %9660 = vmatpush1.bf16.msra.mxu0 %v8764
        %9661 = vmatprep.subr.bf16.mxu0 %v8773
        %9662 = vmatpush1.bf16.msra.mxu0 %v8772
        %9663 = vmatprep.subr.bf16.mxu0 %v8781
        %9664 = vmatpush1.bf16.msra.mxu0 %v8780
        %9665 = vmatprep.subr.bf16.mxu0 %v8789
        %9666 = vmatpush1.bf16.msra.mxu0 %v8788
        %9667 = vmatprep.subr.bf16.mxu0 %v8797
        %9668 = vmatpush1.bf16.msra.mxu0 %v8796
        %9669 = vmatprep.subr.bf16.mxu0 %v8805
        %9670 = vmatpush1.bf16.msra.mxu0 %v8804
        %9671 = vmatprep.subr.bf16.mxu0 %v8813
        %9672 = vmatpush1.bf16.msra.mxu0 %v8812
        %9673 = vmatprep.subr.bf16.mxu0 %v8821
        %9674 = vmatpush1.bf16.msra.mxu0 %v8820
        %9675 = vmatprep.subr.bf16.mxu0 %v8829
        %9676 = vmatpush1.bf16.msra.mxu0 %v8828
        %9677 = vmatprep.subr.bf16.mxu0 %v8837
        %9678 = vmatpush1.bf16.msra.mxu0 %v8836
        %9679 = vmatprep.subr.bf16.mxu0 %v8845
        %9680 = vmatpush1.bf16.msra.mxu0 %v8844
        %9681 = vmatprep.mubr.bf16.mxu0 %v6247
        %9682 = vmatmul.mubr.bf16.gmra.mrb[0].mxu0 %v6246
        %v9683 = vpop.f32.mrb[0].mxu0
        %v9684 = vadd.f32 %v9643, %v9683
        %v9685 = vpop.f32.mrb[0].mxu0
        %v9686 = vadd.f32 %v9645, %v9685
        %v9687 = vpop.f32.mrb[0].mxu0
        %v9688 = vpop.f32.mrb[0].mxu0
        %9689 = vdwg.mxu0
        %9690 = vmatprep.subr.bf16.mxu0 %v8343
        %9691 = vmatpush1.bf16.msra.mxu0 %v8342
        %9692 = vmatprep.subr.bf16.mxu0 %v8351
        %9693 = vmatpush1.bf16.msra.mxu0 %v8350
        %9694 = vmatprep.subr.bf16.mxu0 %v8359
        %9695 = vmatpush1.bf16.msra.mxu0 %v8358
        %9696 = vmatprep.subr.bf16.mxu0 %v8367
        %9697 = vmatpush1.bf16.msra.mxu0 %v8366
        %9698 = vmatprep.subr.bf16.mxu0 %v8375
        %9699 = vmatpush1.bf16.msra.mxu0 %v8374
        %9700 = vmatprep.subr.bf16.mxu0 %v8383
        %9701 = vmatpush1.bf16.msra.mxu0 %v8382
        %9702 = vmatprep.subr.bf16.mxu0 %v8391
        %9703 = vmatpush1.bf16.msra.mxu0 %v8390
        %9704 = vmatprep.subr.bf16.mxu0 %v8399
        %9705 = vmatpush1.bf16.msra.mxu0 %v8398
        %9706 = vmatprep.subr.bf16.mxu0 %v8407
        %9707 = vmatpush1.bf16.msra.mxu0 %v8406
        %9708 = vmatprep.subr.bf16.mxu0 %v8415
        %9709 = vmatpush1.bf16.msra.mxu0 %v8414
        %9710 = vmatprep.subr.bf16.mxu0 %v8423
        %9711 = vmatpush1.bf16.msra.mxu0 %v8422
        %9712 = vmatprep.subr.bf16.mxu0 %v8431
        %9713 = vmatpush1.bf16.msra.mxu0 %v8430
        %9714 = vmatprep.subr.bf16.mxu0 %v8439
        %9715 = vmatpush1.bf16.msra.mxu0 %v8438
        %9716 = vmatprep.subr.bf16.mxu0 %v8447
        %9717 = vmatpush1.bf16.msra.mxu0 %v8446
        %9718 = vmatprep.subr.bf16.mxu0 %v8455
        %9719 = vmatpush1.bf16.msra.mxu0 %v8454
        %9720 = vmatprep.subr.bf16.mxu0 %v8463
        %9721 = vmatpush1.bf16.msra.mxu0 %v8462
        %9722 = vmatprep.mubr.bf16.mxu0 %v6241
        %9723 = vmatmul.mubr.bf16.gmra.mrb[0].mxu0 %v6240
        %v9724 = vpop.f32.mrb[0].mxu0
        %v9725 = vadd.f32 %v6781, %v9724
        %v9726 = vpop.f32.mrb[0].mxu0
        %v9727 = vadd.f32 %v6785, %v9726
        %v9728 = vpop.f32.mrb[0].mxu0
        %v9729 = vpop.f32.mrb[0].mxu0
        %9730 = vdwg.mxu0
        %9731 = vmatprep.subr.bf16.mxu0 %v8471
        %9732 = vmatpush1.bf16.msra.mxu0 %v8470
        %9733 = vmatprep.subr.bf16.mxu0 %v8479
        %9734 = vmatpush1.bf16.msra.mxu0 %v8478
        %9735 = vmatprep.subr.bf16.mxu0 %v8487
        %9736 = vmatpush1.bf16.msra.mxu0 %v8486
        %9737 = vmatprep.subr.bf16.mxu0 %v8495
        %9738 = vmatpush1.bf16.msra.mxu0 %v8494
        %9739 = vmatprep.subr.bf16.mxu0 %v8503
        %9740 = vmatpush1.bf16.msra.mxu0 %v8502
        %9741 = vmatprep.subr.bf16.mxu0 %v8511
        %9742 = vmatpush1.bf16.msra.mxu0 %v8510
        %9743 = vmatprep.subr.bf16.mxu0 %v8519
        %9744 = vmatpush1.bf16.msra.mxu0 %v8518
        %9745 = vmatprep.subr.bf16.mxu0 %v8527
        %9746 = vmatpush1.bf16.msra.mxu0 %v8526
        %9747 = vmatprep.subr.bf16.mxu0 %v8535
        %9748 = vmatpush1.bf16.msra.mxu0 %v8534
        %9749 = vmatprep.subr.bf16.mxu0 %v8543
        %9750 = vmatpush1.bf16.msra.mxu0 %v8542
        %9751 = vmatprep.subr.bf16.mxu0 %v8551
        %9752 = vmatpush1.bf16.msra.mxu0 %v8550
        %9753 = vmatprep.subr.bf16.mxu0 %v8559
        %9754 = vmatpush1.bf16.msra.mxu0 %v8558
        %9755 = vmatprep.subr.bf16.mxu0 %v8567
        %9756 = vmatpush1.bf16.msra.mxu0 %v8566
        %9757 = vmatprep.subr.bf16.mxu0 %v8575
        %9758 = vmatpush1.bf16.msra.mxu0 %v8574
        %9759 = vmatprep.subr.bf16.mxu0 %v8583
        %9760 = vmatpush1.bf16.msra.mxu0 %v8582
        %9761 = vmatprep.subr.bf16.mxu0 %v8591
        %9762 = vmatpush1.bf16.msra.mxu0 %v8590
        %9763 = vmatprep.mubr.bf16.mxu0 %v6243
        %9764 = vmatmul.mubr.bf16.gmra.mrb[0].mxu0 %v6242
        %v9765 = vpop.f32.mrb[0].mxu0
        %v9766 = vadd.f32 %v9725, %v9765
        %v9767 = vpop.f32.mrb[0].mxu0
        %v9768 = vadd.f32 %v9727, %v9767
        %v9769 = vpop.f32.mrb[0].mxu0
        %v9770 = vpop.f32.mrb[0].mxu0
        %9771 = vdwg.mxu0
        %9772 = vmatprep.subr.bf16.mxu0 %v8599
        %9773 = vmatpush1.bf16.msra.mxu0 %v8598
        %9774 = vmatprep.subr.bf16.mxu0 %v8607
        %9775 = vmatpush1.bf16.msra.mxu0 %v8606
        %9776 = vmatprep.subr.bf16.mxu0 %v8615
        %9777 = vmatpush1.bf16.msra.mxu0 %v8614
        %9778 = vmatprep.subr.bf16.mxu0 %v8623
        %9779 = vmatpush1.bf16.msra.mxu0 %v8622
        %9780 = vmatprep.subr.bf16.mxu0 %v8631
        %9781 = vmatpush1.bf16.msra.mxu0 %v8630
        %9782 = vmatprep.subr.bf16.mxu0 %v8639
        %9783 = vmatpush1.bf16.msra.mxu0 %v8638
        %9784 = vmatprep.subr.bf16.mxu0 %v8647
        %9785 = vmatpush1.bf16.msra.mxu0 %v8646
        %9786 = vmatprep.subr.bf16.mxu0 %v8655
        %9787 = vmatpush1.bf16.msra.mxu0 %v8654
        %9788 = vmatprep.subr.bf16.mxu0 %v8663
        %9789 = vmatpush1.bf16.msra.mxu0 %v8662
        %9790 = vmatprep.subr.bf16.mxu0 %v8671
        %9791 = vmatpush1.bf16.msra.mxu0 %v8670
        %9792 = vmatprep.subr.bf16.mxu0 %v8679
        %9793 = vmatpush1.bf16.msra.mxu0 %v8678
        %9794 = vmatprep.subr.bf16.mxu0 %v8687
        %9795 = vmatpush1.bf16.msra.mxu0 %v8686
        %9796 = vmatprep.subr.bf16.mxu0 %v8695
        %9797 = vmatpush1.bf16.msra.mxu0 %v8694
        %9798 = vmatprep.subr.bf16.mxu0 %v8703
        %9799 = vmatpush1.bf16.msra.mxu0 %v8702
        %9800 = vmatprep.subr.bf16.mxu0 %v8711
        %9801 = vmatpush1.bf16.msra.mxu0 %v8710
        %9802 = vmatprep.subr.bf16.mxu0 %v8719
        %9803 = vmatpush1.bf16.msra.mxu0 %v8718
        %9804 = vmatprep.mubr.bf16.mxu0 %v6245
        %9805 = vmatmul.mubr.bf16.gmra.mrb[0].mxu0 %v6244
        %v9806 = vpop.f32.mrb[0].mxu0
        %v9807 = vadd.f32 %v9766, %v9806
        %v9808 = vpop.f32.mrb[0].mxu0
        %v9809 = vadd.f32 %v9768, %v9808
        %v9810 = vpop.f32.mrb[0].mxu0
        %v9811 = vpop.f32.mrb[0].mxu0
        %9812 = vdwg.mxu0
        %9813 = vmatprep.subr.bf16.mxu0 %v8727
        %9814 = vmatpush1.bf16.msra.mxu0 %v8726
        %9815 = vmatprep.subr.bf16.mxu0 %v8735
        %9816 = vmatpush1.bf16.msra.mxu0 %v8734
        %9817 = vmatprep.subr.bf16.mxu0 %v8743
        %9818 = vmatpush1.bf16.msra.mxu0 %v8742
        %9819 = vmatprep.subr.bf16.mxu0 %v8751
        %9820 = vmatpush1.bf16.msra.mxu0 %v8750
        %9821 = vmatprep.subr.bf16.mxu0 %v8759
        %9822 = vmatpush1.bf16.msra.mxu0 %v8758
        %9823 = vmatprep.subr.bf16.mxu0 %v8767
        %9824 = vmatpush1.bf16.msra.mxu0 %v8766
        %9825 = vmatprep.subr.bf16.mxu0 %v8775
        %9826 = vmatpush1.bf16.msra.mxu0 %v8774
        %9827 = vmatprep.subr.bf16.mxu0 %v8783
        %9828 = vmatpush1.bf16.msra.mxu0 %v8782
        %9829 = vmatprep.subr.bf16.mxu0 %v8791
        %9830 = vmatpush1.bf16.msra.mxu0 %v8790
        %9831 = vmatprep.subr.bf16.mxu0 %v8799
        %9832 = vmatpush1.bf16.msra.mxu0 %v8798
        %9833 = vmatprep.subr.bf16.mxu0 %v8807
        %9834 = vmatpush1.bf16.msra.mxu0 %v8806
        %9835 = vmatprep.subr.bf16.mxu0 %v8815
        %9836 = vmatpush1.bf16.msra.mxu0 %v8814
        %9837 = vmatprep.subr.bf16.mxu0 %v8823
        %9838 = vmatpush1.bf16.msra.mxu0 %v8822
        %9839 = vmatprep.subr.bf16.mxu0 %v8831
        %9840 = vmatpush1.bf16.msra.mxu0 %v8830
        %9841 = vmatprep.subr.bf16.mxu0 %v8839
        %9842 = vmatpush1.bf16.msra.mxu0 %v8838
        %9843 = vmatprep.subr.bf16.mxu0 %v8847
        %9844 = vmatpush1.bf16.msra.mxu0 %v8846
        %9845 = vmatprep.mubr.bf16.mxu0 %v6247
        %9846 = vmatmul.mubr.bf16.gmra.mrb[0].mxu0 %v6246
        %v9847 = vpop.f32.mrb[0].mxu0
        %v9848 = vadd.f32 %v9807, %v9847
        %v9849 = vpop.f32.mrb[0].mxu0
        %v9850 = vadd.f32 %v9809, %v9849
        %v9851 = vpop.f32.mrb[0].mxu0
        %v9852 = vpop.f32.mrb[0].mxu0
        %9853 = vdwg.mxu0
        %9854 = vmatprep.subr.bf16.mxu0 %v8345
        %9855 = vmatpush1.bf16.msra.mxu0 %v8344
        %9856 = vmatprep.subr.bf16.mxu0 %v8353
        %9857 = vmatpush1.bf16.msra.mxu0 %v8352
        %9858 = vmatprep.subr.bf16.mxu0 %v8361
        %9859 = vmatpush1.bf16.msra.mxu0 %v8360
        %9860 = vmatprep.subr.bf16.mxu0 %v8369
        %9861 = vmatpush1.bf16.msra.mxu0 %v8368
        %9862 = vmatprep.subr.bf16.mxu0 %v8377
        %9863 = vmatpush1.bf16.msra.mxu0 %v8376
        %9864 = vmatprep.subr.bf16.mxu0 %v8385
        %9865 = vmatpush1.bf16.msra.mxu0 %v8384
        %9866 = vmatprep.subr.bf16.mxu0 %v8393
        %9867 = vmatpush1.bf16.msra.mxu0 %v8392
        %9868 = vmatprep.subr.bf16.mxu0 %v8401
        %9869 = vmatpush1.bf16.msra.mxu0 %v8400
        %9870 = vmatprep.subr.bf16.mxu0 %v8409
        %9871 = vmatpush1.bf16.msra.mxu0 %v8408
        %9872 = vmatprep.subr.bf16.mxu0 %v8417
        %9873 = vmatpush1.bf16.msra.mxu0 %v8416
        %9874 = vmatprep.subr.bf16.mxu0 %v8425
        %9875 = vmatpush1.bf16.msra.mxu0 %v8424
        %9876 = vmatprep.subr.bf16.mxu0 %v8433
        %9877 = vmatpush1.bf16.msra.mxu0 %v8432
        %9878 = vmatprep.subr.bf16.mxu0 %v8441
        %9879 = vmatpush1.bf16.msra.mxu0 %v8440
        %9880 = vmatprep.subr.bf16.mxu0 %v8449
        %9881 = vmatpush1.bf16.msra.mxu0 %v8448
        %9882 = vmatprep.subr.bf16.mxu0 %v8457
        %9883 = vmatpush1.bf16.msra.mxu0 %v8456
        %9884 = vmatprep.subr.bf16.mxu0 %v8465
        %9885 = vmatpush1.bf16.msra.mxu0 %v8464
        %9886 = vmatprep.mubr.bf16.mxu0 %v6241
        %9887 = vmatmul.mubr.bf16.gmra.mrb[0].mxu0 %v6240
        %v9888 = vpop.f32.mrb[0].mxu0
        %v9889 = vadd.f32 %v6789, %v9888
        %v9890 = vpop.f32.mrb[0].mxu0
        %v9891 = vadd.f32 %v6793, %v9890
        %v9892 = vpop.f32.mrb[0].mxu0
        %v9893 = vpop.f32.mrb[0].mxu0
        %9894 = vdwg.mxu0
        %9895 = vmatprep.subr.bf16.mxu0 %v8473
        %9896 = vmatpush1.bf16.msra.mxu0 %v8472
        %9897 = vmatprep.subr.bf16.mxu0 %v8481
        %9898 = vmatpush1.bf16.msra.mxu0 %v8480
        %9899 = vmatprep.subr.bf16.mxu0 %v8489
        %9900 = vmatpush1.bf16.msra.mxu0 %v8488
        %9901 = vmatprep.subr.bf16.mxu0 %v8497
        %9902 = vmatpush1.bf16.msra.mxu0 %v8496
        %9903 = vmatprep.subr.bf16.mxu0 %v8505
        %9904 = vmatpush1.bf16.msra.mxu0 %v8504
        %9905 = vmatprep.subr.bf16.mxu0 %v8513
        %9906 = vmatpush1.bf16.msra.mxu0 %v8512
        %9907 = vmatprep.subr.bf16.mxu0 %v8521
        %9908 = vmatpush1.bf16.msra.mxu0 %v8520
        %9909 = vmatprep.subr.bf16.mxu0 %v8529
        %9910 = vmatpush1.bf16.msra.mxu0 %v8528
        %9911 = vmatprep.subr.bf16.mxu0 %v8537
        %9912 = vmatpush1.bf16.msra.mxu0 %v8536
        %9913 = vmatprep.subr.bf16.mxu0 %v8545
        %9914 = vmatpush1.bf16.msra.mxu0 %v8544
        %9915 = vmatprep.subr.bf16.mxu0 %v8553
        %9916 = vmatpush1.bf16.msra.mxu0 %v8552
        %9917 = vmatprep.subr.bf16.mxu0 %v8561
        %9918 = vmatpush1.bf16.msra.mxu0 %v8560
        %9919 = vmatprep.subr.bf16.mxu0 %v8569
        %9920 = vmatpush1.bf16.msra.mxu0 %v8568
        %9921 = vmatprep.subr.bf16.mxu0 %v8577
        %9922 = vmatpush1.bf16.msra.mxu0 %v8576
        %9923 = vmatprep.subr.bf16.mxu0 %v8585
        %9924 = vmatpush1.bf16.msra.mxu0 %v8584
        %9925 = vmatprep.subr.bf16.mxu0 %v8593
        %9926 = vmatpush1.bf16.msra.mxu0 %v8592
        %9927 = vmatprep.mubr.bf16.mxu0 %v6243
        %9928 = vmatmul.mubr.bf16.gmra.mrb[0].mxu0 %v6242
        %v9929 = vpop.f32.mrb[0].mxu0
        %v9930 = vadd.f32 %v9889, %v9929
        %v9931 = vpop.f32.mrb[0].mxu0
        %v9932 = vadd.f32 %v9891, %v9931
        %v9933 = vpop.f32.mrb[0].mxu0
        %v9934 = vpop.f32.mrb[0].mxu0
        %9935 = vdwg.mxu0
        %9936 = vmatprep.subr.bf16.mxu0 %v8601
        %9937 = vmatpush1.bf16.msra.mxu0 %v8600
        %9938 = vmatprep.subr.bf16.mxu0 %v8609
        %9939 = vmatpush1.bf16.msra.mxu0 %v8608
        %9940 = vmatprep.subr.bf16.mxu0 %v8617
        %9941 = vmatpush1.bf16.msra.mxu0 %v8616
        %9942 = vmatprep.subr.bf16.mxu0 %v8625
        %9943 = vmatpush1.bf16.msra.mxu0 %v8624
        %9944 = vmatprep.subr.bf16.mxu0 %v8633
        %9945 = vmatpush1.bf16.msra.mxu0 %v8632
        %9946 = vmatprep.subr.bf16.mxu0 %v8641
        %9947 = vmatpush1.bf16.msra.mxu0 %v8640
        %9948 = vmatprep.subr.bf16.mxu0 %v8649
        %9949 = vmatpush1.bf16.msra.mxu0 %v8648
        %9950 = vmatprep.subr.bf16.mxu0 %v8657
        %9951 = vmatpush1.bf16.msra.mxu0 %v8656
        %9952 = vmatprep.subr.bf16.mxu0 %v8665
        %9953 = vmatpush1.bf16.msra.mxu0 %v8664
        %9954 = vmatprep.subr.bf16.mxu0 %v8673
        %9955 = vmatpush1.bf16.msra.mxu0 %v8672
        %9956 = vmatprep.subr.bf16.mxu0 %v8681
        %9957 = vmatpush1.bf16.msra.mxu0 %v8680
        %9958 = vmatprep.subr.bf16.mxu0 %v8689
        %9959 = vmatpush1.bf16.msra.mxu0 %v8688
        %9960 = vmatprep.subr.bf16.mxu0 %v8697
        %9961 = vmatpush1.bf16.msra.mxu0 %v8696
        %9962 = vmatprep.subr.bf16.mxu0 %v8705
        %9963 = vmatpush1.bf16.msra.mxu0 %v8704
        %9964 = vmatprep.subr.bf16.mxu0 %v8713
        %9965 = vmatpush1.bf16.msra.mxu0 %v8712
        %9966 = vmatprep.subr.bf16.mxu0 %v8721
        %9967 = vmatpush1.bf16.msra.mxu0 %v8720
        %9968 = vmatprep.mubr.bf16.mxu0 %v6245
        %9969 = vmatmul.mubr.bf16.gmra.mrb[0].mxu0 %v6244
        %v9970 = vpop.f32.mrb[0].mxu0
        %v9971 = vadd.f32 %v9930, %v9970
        %v9972 = vpop.f32.mrb[0].mxu0
        %v9973 = vadd.f32 %v9932, %v9972
        %v9974 = vpop.f32.mrb[0].mxu0
        %v9975 = vpop.f32.mrb[0].mxu0
        %9976 = vdwg.mxu0
        %9977 = vmatprep.subr.bf16.mxu0 %v8729
        %9978 = vmatpush1.bf16.msra.mxu0 %v8728
        %9979 = vmatprep.subr.bf16.mxu0 %v8737
        %9980 = vmatpush1.bf16.msra.mxu0 %v8736
        %9981 = vmatprep.subr.bf16.mxu0 %v8745
        %9982 = vmatpush1.bf16.msra.mxu0 %v8744
        %9983 = vmatprep.subr.bf16.mxu0 %v8753
        %9984 = vmatpush1.bf16.msra.mxu0 %v8752
        %9985 = vmatprep.subr.bf16.mxu0 %v8761
        %9986 = vmatpush1.bf16.msra.mxu0 %v8760
        %9987 = vmatprep.subr.bf16.mxu0 %v8769
        %9988 = vmatpush1.bf16.msra.mxu0 %v8768
        %9989 = vmatprep.subr.bf16.mxu0 %v8777
        %9990 = vmatpush1.bf16.msra.mxu0 %v8776
        %9991 = vmatprep.subr.bf16.mxu0 %v8785
        %9992 = vmatpush1.bf16.msra.mxu0 %v8784
        %9993 = vmatprep.subr.bf16.mxu0 %v8793
        %9994 = vmatpush1.bf16.msra.mxu0 %v8792
        %9995 = vmatprep.subr.bf16.mxu0 %v8801
        %9996 = vmatpush1.bf16.msra.mxu0 %v8800
        %9997 = vmatprep.subr.bf16.mxu0 %v8809
        %9998 = vmatpush1.bf16.msra.mxu0 %v8808
        %9999 = vmatprep.subr.bf16.mxu0 %v8817
        %10000 = vmatpush1.bf16.msra.mxu0 %v8816
        %10001 = vmatprep.subr.bf16.mxu0 %v8825
        %10002 = vmatpush1.bf16.msra.mxu0 %v8824
        %10003 = vmatprep.subr.bf16.mxu0 %v8833
        %10004 = vmatpush1.bf16.msra.mxu0 %v8832
        %10005 = vmatprep.subr.bf16.mxu0 %v8841
        %10006 = vmatpush1.bf16.msra.mxu0 %v8840
        %10007 = vmatprep.subr.bf16.mxu0 %v8849
        %10008 = vmatpush1.bf16.msra.mxu0 %v8848
        %10009 = vmatprep.mubr.bf16.mxu0 %v6247
        %10010 = vmatmul.mubr.bf16.gmra.mrb[0].mxu0 %v6246
        %v10011 = vpop.f32.mrb[0].mxu0
        %v10012 = vadd.f32 %v9971, %v10011
        %v10013 = vpop.f32.mrb[0].mxu0
        %v10014 = vadd.f32 %v9973, %v10013
        %v10015 = vpop.f32.mrb[0].mxu0
        %v10016 = vpop.f32.mrb[0].mxu0
        %10017 = vdwg.mxu0
        %v10018 = vmax.f32 %v9520, 0.0
        %v10019 = vmax.f32 %v9522, 0.0
        %v10020 = vmax.f32 %v9684, 0.0
        %v10021 = vmax.f32 %v9686, 0.0
        %v10022 = vmax.f32 %v9848, 0.0
        %v10023 = vmax.f32 %v9850, 0.0
        %v10024 = vmax.f32 %v10012, 0.0
        %v10025 = vmax.f32 %v10014, 0.0
        %v10026 = vrot.slane %v10018, 4
        %v10027 = vadd.f32 %v10018, %v10026
        %v10028 = vrot.slane %v10027, 2
        %v10029 = vadd.f32 %v10027, %v10028
        %v10030 = vrot.slane %v10029, 1
        %v10031 = vadd.f32 %v10029, %v10030
        %v10032 = vrot.slane %v10019, 4
        %v10033 = vadd.f32 %v10019, %v10032
        %v10034 = vrot.slane %v10033, 2
        %v10035 = vadd.f32 %v10033, %v10034
        %v10036 = vrot.slane %v10035, 1
        %v10037 = vadd.f32 %v10035, %v10036
        %v10038 = vrot.slane %v10020, 4
        %v10039 = vadd.f32 %v10020, %v10038
        %v10040 = vrot.slane %v10039, 2
        %v10041 = vadd.f32 %v10039, %v10040
        %v10042 = vrot.slane %v10041, 1
        %v10043 = vadd.f32 %v10041, %v10042
        %v10044 = vrot.slane %v10021, 4
        %v10045 = vadd.f32 %v10021, %v10044
        %v10046 = vrot.slane %v10045, 2
        %v10047 = vadd.f32 %v10045, %v10046
        %v10048 = vrot.slane %v10047, 1
        %v10049 = vadd.f32 %v10047, %v10048
        %v10050 = vrot.slane %v10022, 4
        %v10051 = vadd.f32 %v10022, %v10050
        %v10052 = vrot.slane %v10051, 2
        %v10053 = vadd.f32 %v10051, %v10052
        %v10054 = vrot.slane %v10053, 1
        %v10055 = vadd.f32 %v10053, %v10054
        %v10056 = vrot.slane %v10023, 4
        %v10057 = vadd.f32 %v10023, %v10056
        %v10058 = vrot.slane %v10057, 2
        %v10059 = vadd.f32 %v10057, %v10058
        %v10060 = vrot.slane %v10059, 1
        %v10061 = vadd.f32 %v10059, %v10060
        %v10062 = vrot.slane %v10024, 4
        %v10063 = vadd.f32 %v10024, %v10062
        %v10064 = vrot.slane %v10063, 2
        %v10065 = vadd.f32 %v10063, %v10064
        %v10066 = vrot.slane %v10065, 1
        %v10067 = vadd.f32 %v10065, %v10066
        %v10068 = vrot.slane %v10025, 4
        %v10069 = vadd.f32 %v10025, %v10068
        %v10070 = vrot.slane %v10069, 2
        %v10071 = vadd.f32 %v10069, %v10070
        %v10072 = vrot.slane %v10071, 1
        %v10073 = vadd.f32 %v10071, %v10072
        %v10074 = vmul.f32 %v10031, %v1729
        %v10075 = vmul.f32 %v10037, %v1729
        %v10076 = vmul.f32 %v10043, %v1729
        %v10077 = vmul.f32 %v10049, %v1729
        %v10078 = vmul.f32 %v10055, %v1729
        %v10079 = vmul.f32 %v10061, %v1729
        %v10080 = vmul.f32 %v10067, %v1729
        %v10081 = vmul.f32 %v10073, %v1729
        %v10082 = vmul.f32 %v10018, %v10018
        %v10083 = vmul.f32 %v10019, %v10019
        %v10084 = vmul.f32 %v10020, %v10020
        %v10085 = vmul.f32 %v10021, %v10021
        %v10086 = vmul.f32 %v10022, %v10022
        %v10087 = vmul.f32 %v10023, %v10023
        %v10088 = vmul.f32 %v10024, %v10024
        %v10089 = vmul.f32 %v10025, %v10025
        %v10090 = vrot.slane %v10082, 4
        %v10091 = vadd.f32 %v10082, %v10090
        %v10092 = vrot.slane %v10091, 2
        %v10093 = vadd.f32 %v10091, %v10092
        %v10094 = vrot.slane %v10093, 1
        %v10095 = vadd.f32 %v10093, %v10094
        %v10096 = vrot.slane %v10083, 4
        %v10097 = vadd.f32 %v10083, %v10096
        %v10098 = vrot.slane %v10097, 2
        %v10099 = vadd.f32 %v10097, %v10098
        %v10100 = vrot.slane %v10099, 1
        %v10101 = vadd.f32 %v10099, %v10100
        %v10102 = vrot.slane %v10084, 4
        %v10103 = vadd.f32 %v10084, %v10102
        %v10104 = vrot.slane %v10103, 2
        %v10105 = vadd.f32 %v10103, %v10104
        %v10106 = vrot.slane %v10105, 1
        %v10107 = vadd.f32 %v10105, %v10106
        %v10108 = vrot.slane %v10085, 4
        %v10109 = vadd.f32 %v10085, %v10108
        %v10110 = vrot.slane %v10109, 2
        %v10111 = vadd.f32 %v10109, %v10110
        %v10112 = vrot.slane %v10111, 1
        %v10113 = vadd.f32 %v10111, %v10112
        %v10114 = vrot.slane %v10086, 4
        %v10115 = vadd.f32 %v10086, %v10114
        %v10116 = vrot.slane %v10115, 2
        %v10117 = vadd.f32 %v10115, %v10116
        %v10118 = vrot.slane %v10117, 1
        %v10119 = vadd.f32 %v10117, %v10118
        %v10120 = vrot.slane %v10087, 4
        %v10121 = vadd.f32 %v10087, %v10120
        %v10122 = vrot.slane %v10121, 2
        %v10123 = vadd.f32 %v10121, %v10122
        %v10124 = vrot.slane %v10123, 1
        %v10125 = vadd.f32 %v10123, %v10124
        %v10126 = vrot.slane %v10088, 4
        %v10127 = vadd.f32 %v10088, %v10126
        %v10128 = vrot.slane %v10127, 2
        %v10129 = vadd.f32 %v10127, %v10128
        %v10130 = vrot.slane %v10129, 1
        %v10131 = vadd.f32 %v10129, %v10130
        %v10132 = vrot.slane %v10089, 4
        %v10133 = vadd.f32 %v10089, %v10132
        %v10134 = vrot.slane %v10133, 2
        %v10135 = vadd.f32 %v10133, %v10134
        %v10136 = vrot.slane %v10135, 1
        %v10137 = vadd.f32 %v10135, %v10136
        %v10138 = vmul.f32 %v10095, %v1729
        %v10139 = vmul.f32 %v10101, %v1729
        %v10140 = vmul.f32 %v10107, %v1729
        %v10141 = vmul.f32 %v10113, %v1729
        %v10142 = vmul.f32 %v10119, %v1729
        %v10143 = vmul.f32 %v10125, %v1729
        %v10144 = vmul.f32 %v10131, %v1729
        %v10145 = vmul.f32 %v10137, %v1729
        %v10146 = vmul.f32 %v10074, %v10074
        %v10147 = vmul.f32 %v10075, %v10075
        %v10148 = vmul.f32 %v10076, %v10076
        %v10149 = vmul.f32 %v10077, %v10077
        %v10150 = vmul.f32 %v10078, %v10078
        %v10151 = vmul.f32 %v10079, %v10079
        %v10152 = vmul.f32 %v10080, %v10080
        %v10153 = vmul.f32 %v10081, %v10081
        %v10154 = vsub.f32 %v10138, %v10146
        %v10155 = vsub.f32 %v10139, %v10147
        %v10156 = vsub.f32 %v10140, %v10148
        %v10157 = vsub.f32 %v10141, %v10149
        %v10158 = vsub.f32 %v10142, %v10150
        %v10159 = vsub.f32 %v10143, %v10151
        %v10160 = vsub.f32 %v10144, %v10152
        %v10161 = vsub.f32 %v10145, %v10153
        %v10162 = vmax.f32 %v10154, 0.0
        %v10163 = vmax.f32 %v10155, 0.0
        %v10164 = vmax.f32 %v10156, 0.0
        %v10165 = vmax.f32 %v10157, 0.0
        %v10166 = vmax.f32 %v10158, 0.0
        %v10167 = vmax.f32 %v10159, 0.0
        %v10168 = vmax.f32 %v10160, 0.0
        %v10169 = vmax.f32 %v10161, 0.0
        %v10170 = vld [vmem:[#allocation20] sm:$0xff]
        %v10171 = vadd.f32 %v10162, 1e-05
        %v10172 = vadd.f32 %v10163, 1e-05
        %v10173 = vadd.f32 %v10164, 1e-05
        %v10174 = vadd.f32 %v10165, 1e-05
        %v10175 = vadd.f32 %v10166, 1e-05
        %v10176 = vadd.f32 %v10167, 1e-05
        %v10177 = vadd.f32 %v10168, 1e-05
        %v10178 = vadd.f32 %v10169, 1e-05
        %v10179 = vrsqrt.pop %v10171
        %v10180 = vrsqrt.pop %v10172
        %v10181 = vrsqrt.pop %v10173
        %v10182 = vrsqrt.pop %v10174
        %v10183 = vrsqrt.pop %v10175
        %v10184 = vrsqrt.pop %v10176
        %v10185 = vrsqrt.pop %v10177
        %v10186 = vrsqrt.pop %v10178
        %v10195 = vcombine.low %v10179, %v10180
        %v10196 = vcombine.low %v10181, %v10182
        %v10197 = vcombine.low %v10183, %v10184
        %v10198 = vcombine.low %v10185, %v10186
        %v10200 = vunpack.c.l.s4 1966171168
        %v10201 = vunpack.c.0.s8 %v10200
        %v10202 = vlaneseq
        %v10203 = vshrl.u32 %v10202, 7
        %v10204 = vsub.s32 %v10201, %v10203
        %v10205 = vrot.slane %v10195, %v10204
        %v10207 = vunpack.c.l.s4 1966171168
        %v10208 = vunpack.c.0.s8 %v10207
        %v10209 = vlaneseq
        %v10210 = vshrl.u32 %v10209, 7
        %v10211 = vsub.s32 %v10208, %v10210
        %v10212 = vrot.slane %v10196, %v10211
        %v10214 = vunpack.c.l.s4 1966171168
        %v10215 = vunpack.c.0.s8 %v10214
        %v10216 = vlaneseq
        %v10217 = vshrl.u32 %v10216, 7
        %v10218 = vsub.s32 %v10215, %v10217
        %v10219 = vrot.slane %v10197, %v10218
        %v10221 = vunpack.c.l.s4 1966171168
        %v10222 = vunpack.c.0.s8 %v10221
        %v10223 = vlaneseq
        %v10224 = vshrl.u32 %v10223, 7
        %v10225 = vsub.s32 %v10222, %v10224
        %v10226 = vrot.slane %v10198, %v10225
        %v10227 = vcombine.low %v10205, %v10212
        %v10228 = vcombine.low %v10219, %v10226
        %v10230 = vunpack.c.l.s4 1966171168
        %v10231 = vunpack.c.0.s8 %v10230
        %v10232 = vlaneseq
        %v10233 = vshrl.u32 %v10232, 7
        %v10234 = vsub.s32 %v10231, %v10233
        %v10235 = vrot.slane %v10227, %v10234
        %v10237 = vunpack.c.l.s4 1966171168
        %v10238 = vunpack.c.0.s8 %v10237
        %v10239 = vlaneseq
        %v10240 = vshrl.u32 %v10239, 7
        %v10241 = vsub.s32 %v10238, %v10240
        %v10242 = vrot.slane %v10228, %v10241
        %v10243 = vcombine.low %v10235, %v10242
        %v10245 = vmul.f32 %v10170, %v10243
        %v10246 = vld [vmem:[#allocation22] sm:$0xff]
        %v10248 = vlaneseq
        %v10249 = vshrl.u32 %v10248, 7
        %v10250 = vsub.s32 0, %v10249
        %v10251 = vrot.slane %v10245, %v10250
        %v10252 = vlaneseq
        %v10253 = vshrl.u32 %v10252, 7
        %v10254 = vsub.s32 1, %v10253
        %v10255 = vrot.slane %v10245, %v10254
        %v10256 = vlaneseq
        %v10257 = vshrl.u32 %v10256, 7
        %v10258 = vsub.s32 2, %v10257
        %v10259 = vrot.slane %v10245, %v10258
        %v10260 = vlaneseq
        %v10261 = vshrl.u32 %v10260, 7
        %v10262 = vsub.s32 3, %v10261
        %v10263 = vrot.slane %v10245, %v10262
        %v10264 = vlaneseq
        %v10265 = vshrl.u32 %v10264, 7
        %v10266 = vsub.s32 4, %v10265
        %v10267 = vrot.slane %v10245, %v10266
        %v10268 = vlaneseq
        %v10269 = vshrl.u32 %v10268, 7
        %v10270 = vsub.s32 5, %v10269
        %v10271 = vrot.slane %v10245, %v10270
        %v10272 = vlaneseq
        %v10273 = vshrl.u32 %v10272, 7
        %v10274 = vsub.s32 6, %v10273
        %v10275 = vrot.slane %v10245, %v10274
        %v10276 = vlaneseq
        %v10277 = vshrl.u32 %v10276, 7
        %v10278 = vsub.s32 7, %v10277
        %v10279 = vrot.slane %v10245, %v10278
        %v10288 = vmul.f32 %v10074, %v10251
        %v10289 = vmul.f32 %v10075, %v10255
        %v10290 = vmul.f32 %v10076, %v10259
        %v10291 = vmul.f32 %v10077, %v10263
        %v10292 = vmul.f32 %v10078, %v10267
        %v10293 = vmul.f32 %v10079, %v10271
        %v10294 = vmul.f32 %v10080, %v10275
        %v10295 = vmul.f32 %v10081, %v10279
        %v10304 = vcombine.low %v10288, %v10289
        %v10305 = vcombine.low %v10290, %v10291
        %v10306 = vcombine.low %v10292, %v10293
        %v10307 = vcombine.low %v10294, %v10295
        %v10309 = vunpack.c.l.s4 1966171168
        %v10310 = vunpack.c.0.s8 %v10309
        %v10311 = vlaneseq
        %v10312 = vshrl.u32 %v10311, 7
        %v10313 = vsub.s32 %v10310, %v10312
        %v10314 = vrot.slane %v10304, %v10313
        %v10316 = vunpack.c.l.s4 1966171168
        %v10317 = vunpack.c.0.s8 %v10316
        %v10318 = vlaneseq
        %v10319 = vshrl.u32 %v10318, 7
        %v10320 = vsub.s32 %v10317, %v10319
        %v10321 = vrot.slane %v10305, %v10320
        %v10323 = vunpack.c.l.s4 1966171168
        %v10324 = vunpack.c.0.s8 %v10323
        %v10325 = vlaneseq
        %v10326 = vshrl.u32 %v10325, 7
        %v10327 = vsub.s32 %v10324, %v10326
        %v10328 = vrot.slane %v10306, %v10327
        %v10330 = vunpack.c.l.s4 1966171168
        %v10331 = vunpack.c.0.s8 %v10330
        %v10332 = vlaneseq
        %v10333 = vshrl.u32 %v10332, 7
        %v10334 = vsub.s32 %v10331, %v10333
        %v10335 = vrot.slane %v10307, %v10334
        %v10336 = vcombine.low %v10314, %v10321
        %v10337 = vcombine.low %v10328, %v10335
        %v10339 = vunpack.c.l.s4 1966171168
        %v10340 = vunpack.c.0.s8 %v10339
        %v10341 = vlaneseq
        %v10342 = vshrl.u32 %v10341, 7
        %v10343 = vsub.s32 %v10340, %v10342
        %v10344 = vrot.slane %v10336, %v10343
        %v10346 = vunpack.c.l.s4 1966171168
        %v10347 = vunpack.c.0.s8 %v10346
        %v10348 = vlaneseq
        %v10349 = vshrl.u32 %v10348, 7
        %v10350 = vsub.s32 %v10347, %v10349
        %v10351 = vrot.slane %v10337, %v10350
        %v10352 = vcombine.low %v10344, %v10351
        %v10354 = vsub.f32 %v10246, %v10352
        %v10355 = vmul.f32 %v10018, %v10251
        %v10356 = vmul.f32 %v10019, %v10255
        %v10357 = vmul.f32 %v10020, %v10259
        %v10358 = vmul.f32 %v10021, %v10263
        %v10359 = vmul.f32 %v10022, %v10267
        %v10360 = vmul.f32 %v10023, %v10271
        %v10361 = vmul.f32 %v10024, %v10275
        %v10362 = vmul.f32 %v10025, %v10279
        %v10364 = vlaneseq
        %v10365 = vshrl.u32 %v10364, 7
        %v10366 = vsub.s32 0, %v10365
        %v10367 = vrot.slane %v10354, %v10366
        %v10368 = vlaneseq
        %v10369 = vshrl.u32 %v10368, 7
        %v10370 = vsub.s32 1, %v10369
        %v10371 = vrot.slane %v10354, %v10370
        %v10372 = vlaneseq
        %v10373 = vshrl.u32 %v10372, 7
        %v10374 = vsub.s32 2, %v10373
        %v10375 = vrot.slane %v10354, %v10374
        %v10376 = vlaneseq
        %v10377 = vshrl.u32 %v10376, 7
        %v10378 = vsub.s32 3, %v10377
        %v10379 = vrot.slane %v10354, %v10378
        %v10380 = vlaneseq
        %v10381 = vshrl.u32 %v10380, 7
        %v10382 = vsub.s32 4, %v10381
        %v10383 = vrot.slane %v10354, %v10382
        %v10384 = vlaneseq
        %v10385 = vshrl.u32 %v10384, 7
        %v10386 = vsub.s32 5, %v10385
        %v10387 = vrot.slane %v10354, %v10386
        %v10388 = vlaneseq
        %v10389 = vshrl.u32 %v10388, 7
        %v10390 = vsub.s32 6, %v10389
        %v10391 = vrot.slane %v10354, %v10390
        %v10392 = vlaneseq
        %v10393 = vshrl.u32 %v10392, 7
        %v10394 = vsub.s32 7, %v10393
        %v10395 = vrot.slane %v10354, %v10394
        %v10404 = vadd.f32 %v10355, %v10367
        %v10405 = vadd.f32 %v10356, %v10371
        %v10406 = vadd.f32 %v10357, %v10375
        %v10407 = vadd.f32 %v10358, %v10379
        %v10408 = vadd.f32 %v10359, %v10383
        %v10409 = vadd.f32 %v10360, %v10387
        %v10410 = vadd.f32 %v10361, %v10391
        %v10411 = vadd.f32 %v10362, %v10395
        %v10412 = vpack.c.bf16 %v10404, %v10404
        %v10413 = vpack.c.bf16 %v10405, %v10405
        %v10414 = vpack.c.bf16 %v10406, %v10406
        %v10415 = vpack.c.bf16 %v10407, %v10407
        %v10416 = vpack.c.bf16 %v10408, %v10408
        %v10417 = vpack.c.bf16 %v10409, %v10409
        %v10418 = vpack.c.bf16 %v10410, %v10410
        %v10419 = vpack.c.bf16 %v10411, %v10411
        %v10420 = vld [vmem:[#allocation23] sm:$0xf]
        %v10421 = vld [vmem:[#allocation23 + $0x4] sm:$0xf]
        %v10422 = vld [vmem:[#allocation23 + $0x8] sm:$0xf]
        %v10423 = vld [vmem:[#allocation23 + $0xc] sm:$0xf]
        %v10424 = vld [vmem:[#allocation23 + $0x10] sm:$0xf]
        %v10425 = vld [vmem:[#allocation23 + $0x14] sm:$0xf]
        %v10426 = vld [vmem:[#allocation23 + $0x18] sm:$0xf]
        %v10427 = vld [vmem:[#allocation23 + $0x1c] sm:$0xf]
        %v10428 = vld [vmem:[#allocation23 + $0x20] sm:$0xf]
        %v10429 = vld [vmem:[#allocation23 + $0x24] sm:$0xf]
        %v10430 = vld [vmem:[#allocation23 + $0x28] sm:$0xf]
        %v10431 = vld [vmem:[#allocation23 + $0x2c] sm:$0xf]
        %v10432 = vld [vmem:[#allocation23 + $0x30] sm:$0xf]
        %v10433 = vld [vmem:[#allocation23 + $0x34] sm:$0xf]
        %v10434 = vld [vmem:[#allocation23 + $0x38] sm:$0xf]
        %v10435 = vld [vmem:[#allocation23 + $0x3c] sm:$0xf]
        %v10436 = vld [vmem:[#allocation23 + $0x40] sm:$0xf]
        %v10437 = vld [vmem:[#allocation23 + $0x44] sm:$0xf]
        %v10438 = vld [vmem:[#allocation23 + $0x48] sm:$0xf]
        %v10439 = vld [vmem:[#allocation23 + $0x4c] sm:$0xf]
        %v10440 = vld [vmem:[#allocation23 + $0x50] sm:$0xf]
        %v10441 = vld [vmem:[#allocation23 + $0x54] sm:$0xf]
        %v10442 = vld [vmem:[#allocation23 + $0x58] sm:$0xf]
        %v10443 = vld [vmem:[#allocation23 + $0x5c] sm:$0xf]
        %v10444 = vld [vmem:[#allocation23 + $0x60] sm:$0xf]
        %v10445 = vld [vmem:[#allocation23 + $0x64] sm:$0xf]
        %v10446 = vld [vmem:[#allocation23 + $0x68] sm:$0xf]
        %v10447 = vld [vmem:[#allocation23 + $0x6c] sm:$0xf]
        %v10448 = vld [vmem:[#allocation23 + $0x70] sm:$0xf]
        %v10449 = vld [vmem:[#allocation23 + $0x74] sm:$0xf]
        %v10450 = vld [vmem:[#allocation23 + $0x78] sm:$0xf]
        %v10451 = vld [vmem:[#allocation23 + $0x7c] sm:$0xf]
        %v10452 = vld [vmem:[#allocation23 + $0x80] sm:$0xf]
        %v10453 = vld [vmem:[#allocation23 + $0x84] sm:$0xf]
        %v10454 = vld [vmem:[#allocation23 + $0x88] sm:$0xf]
        %v10455 = vld [vmem:[#allocation23 + $0x8c] sm:$0xf]
        %v10456 = vld [vmem:[#allocation23 + $0x90] sm:$0xf]
        %v10457 = vld [vmem:[#allocation23 + $0x94] sm:$0xf]
        %v10458 = vld [vmem:[#allocation23 + $0x98] sm:$0xf]
        %v10459 = vld [vmem:[#allocation23 + $0x9c] sm:$0xf]
        %v10460 = vld [vmem:[#allocation23 + $0xa0] sm:$0xf]
        %v10461 = vld [vmem:[#allocation23 + $0xa4] sm:$0xf]
        %v10462 = vld [vmem:[#allocation23 + $0xa8] sm:$0xf]
        %v10463 = vld [vmem:[#allocation23 + $0xac] sm:$0xf]
        %v10464 = vld [vmem:[#allocation23 + $0xb0] sm:$0xf]
        %v10465 = vld [vmem:[#allocation23 + $0xb4] sm:$0xf]
        %v10466 = vld [vmem:[#allocation23 + $0xb8] sm:$0xf]
        %v10467 = vld [vmem:[#allocation23 + $0xbc] sm:$0xf]
        %v10468 = vld [vmem:[#allocation23 + $0xc0] sm:$0xf]
        %v10469 = vld [vmem:[#allocation23 + $0xc4] sm:$0xf]
        %v10470 = vld [vmem:[#allocation23 + $0xc8] sm:$0xf]
        %v10471 = vld [vmem:[#allocation23 + $0xcc] sm:$0xf]
        %v10472 = vld [vmem:[#allocation23 + $0xd0] sm:$0xf]
        %v10473 = vld [vmem:[#allocation23 + $0xd4] sm:$0xf]
        %v10474 = vld [vmem:[#allocation23 + $0xd8] sm:$0xf]
        %v10475 = vld [vmem:[#allocation23 + $0xdc] sm:$0xf]
        %v10476 = vld [vmem:[#allocation23 + $0xe0] sm:$0xf]
        %v10477 = vld [vmem:[#allocation23 + $0xe4] sm:$0xf]
        %v10478 = vld [vmem:[#allocation23 + $0xe8] sm:$0xf]
        %v10479 = vld [vmem:[#allocation23 + $0xec] sm:$0xf]
        %v10480 = vld [vmem:[#allocation23 + $0xf0] sm:$0xf]
        %v10481 = vld [vmem:[#allocation23 + $0xf4] sm:$0xf]
        %v10482 = vld [vmem:[#allocation23 + $0xf8] sm:$0xf]
        %v10483 = vld [vmem:[#allocation23 + $0xfc] sm:$0xf]
        %v10484 = vld [vmem:[#allocation23 + $0x100] sm:$0xf]
        %v10485 = vld [vmem:[#allocation23 + $0x104] sm:$0xf]
        %v10486 = vld [vmem:[#allocation23 + $0x108] sm:$0xf]
        %v10487 = vld [vmem:[#allocation23 + $0x10c] sm:$0xf]
        %v10488 = vld [vmem:[#allocation23 + $0x110] sm:$0xf]
        %v10489 = vld [vmem:[#allocation23 + $0x114] sm:$0xf]
        %v10490 = vld [vmem:[#allocation23 + $0x118] sm:$0xf]
        %v10491 = vld [vmem:[#allocation23 + $0x11c] sm:$0xf]
        %v10492 = vld [vmem:[#allocation23 + $0x120] sm:$0xf]
        %v10493 = vld [vmem:[#allocation23 + $0x124] sm:$0xf]
        %v10494 = vld [vmem:[#allocation23 + $0x128] sm:$0xf]
        %v10495 = vld [vmem:[#allocation23 + $0x12c] sm:$0xf]
        %v10496 = vld [vmem:[#allocation23 + $0x130] sm:$0xf]
        %v10497 = vld [vmem:[#allocation23 + $0x134] sm:$0xf]
        %v10498 = vld [vmem:[#allocation23 + $0x138] sm:$0xf]
        %v10499 = vld [vmem:[#allocation23 + $0x13c] sm:$0xf]
        %v10500 = vld [vmem:[#allocation23 + $0x140] sm:$0xf]
        %v10501 = vld [vmem:[#allocation23 + $0x144] sm:$0xf]
        %v10502 = vld [vmem:[#allocation23 + $0x148] sm:$0xf]
        %v10503 = vld [vmem:[#allocation23 + $0x14c] sm:$0xf]
        %v10504 = vld [vmem:[#allocation23 + $0x150] sm:$0xf]
        %v10505 = vld [vmem:[#allocation23 + $0x154] sm:$0xf]
        %v10506 = vld [vmem:[#allocation23 + $0x158] sm:$0xf]
        %v10507 = vld [vmem:[#allocation23 + $0x15c] sm:$0xf]
        %v10508 = vld [vmem:[#allocation23 + $0x160] sm:$0xf]
        %v10509 = vld [vmem:[#allocation23 + $0x164] sm:$0xf]
        %v10510 = vld [vmem:[#allocation23 + $0x168] sm:$0xf]
        %v10511 = vld [vmem:[#allocation23 + $0x16c] sm:$0xf]
        %v10512 = vld [vmem:[#allocation23 + $0x170] sm:$0xf]
        %v10513 = vld [vmem:[#allocation23 + $0x174] sm:$0xf]
        %v10514 = vld [vmem:[#allocation23 + $0x178] sm:$0xf]
        %v10515 = vld [vmem:[#allocation23 + $0x17c] sm:$0xf]
        %v10516 = vld [vmem:[#allocation23 + $0x180] sm:$0xf]
        %v10517 = vld [vmem:[#allocation23 + $0x184] sm:$0xf]
        %v10518 = vld [vmem:[#allocation23 + $0x188] sm:$0xf]
        %v10519 = vld [vmem:[#allocation23 + $0x18c] sm:$0xf]
        %v10520 = vld [vmem:[#allocation23 + $0x190] sm:$0xf]
        %v10521 = vld [vmem:[#allocation23 + $0x194] sm:$0xf]
        %v10522 = vld [vmem:[#allocation23 + $0x198] sm:$0xf]
        %v10523 = vld [vmem:[#allocation23 + $0x19c] sm:$0xf]
        %v10524 = vld [vmem:[#allocation23 + $0x1a0] sm:$0xf]
        %v10525 = vld [vmem:[#allocation23 + $0x1a4] sm:$0xf]
        %v10526 = vld [vmem:[#allocation23 + $0x1a8] sm:$0xf]
        %v10527 = vld [vmem:[#allocation23 + $0x1ac] sm:$0xf]
        %v10528 = vld [vmem:[#allocation23 + $0x1b0] sm:$0xf]
        %v10529 = vld [vmem:[#allocation23 + $0x1b4] sm:$0xf]
        %v10530 = vld [vmem:[#allocation23 + $0x1b8] sm:$0xf]
        %v10531 = vld [vmem:[#allocation23 + $0x1bc] sm:$0xf]
        %v10532 = vld [vmem:[#allocation23 + $0x1c0] sm:$0xf]
        %v10533 = vld [vmem:[#allocation23 + $0x1c4] sm:$0xf]
        %v10534 = vld [vmem:[#allocation23 + $0x1c8] sm:$0xf]
        %v10535 = vld [vmem:[#allocation23 + $0x1cc] sm:$0xf]
        %v10536 = vld [vmem:[#allocation23 + $0x1d0] sm:$0xf]
        %v10537 = vld [vmem:[#allocation23 + $0x1d4] sm:$0xf]
        %v10538 = vld [vmem:[#allocation23 + $0x1d8] sm:$0xf]
        %v10539 = vld [vmem:[#allocation23 + $0x1dc] sm:$0xf]
        %v10540 = vld [vmem:[#allocation23 + $0x1e0] sm:$0xf]
        %v10541 = vld [vmem:[#allocation23 + $0x1e4] sm:$0xf]
        %v10542 = vld [vmem:[#allocation23 + $0x1e8] sm:$0xf]
        %v10543 = vld [vmem:[#allocation23 + $0x1ec] sm:$0xf]
        %v10544 = vld [vmem:[#allocation23 + $0x1f0] sm:$0xf]
        %v10545 = vld [vmem:[#allocation23 + $0x1f4] sm:$0xf]
        %v10546 = vld [vmem:[#allocation23 + $0x1f8] sm:$0xf]
        %v10547 = vld [vmem:[#allocation23 + $0x1fc] sm:$0xf]
        %v10548 = vld [vmem:[#allocation25] sm:$0x1]
        %v10550 = vlaneseq
        %v10551 = vshrl.u32 %v10550, 7
        %v10552 = vsub.s32 0, %v10551
        %v10553 = vrot.slane %v10548, %v10552
        %v10683 = vunpack.c.l.b16 %v10420
        %v10684 = vunpack.c.l.b16 %v10421
        %v10685 = vunpack.c.l.b16 %v10422
        %v10686 = vunpack.c.l.b16 %v10423
        %v10687 = vunpack.c.l.b16 %v10424
        %v10688 = vunpack.c.l.b16 %v10425
        %v10689 = vunpack.c.l.b16 %v10426
        %v10690 = vunpack.c.l.b16 %v10427
        %v10691 = vunpack.c.l.b16 %v10428
        %v10692 = vunpack.c.l.b16 %v10429
        %v10693 = vunpack.c.l.b16 %v10430
        %v10694 = vunpack.c.l.b16 %v10431
        %v10695 = vunpack.c.l.b16 %v10432
        %v10696 = vunpack.c.l.b16 %v10433
        %v10697 = vunpack.c.l.b16 %v10434
        %v10698 = vunpack.c.l.b16 %v10435
        %v10699 = vunpack.c.l.b16 %v10436
        %v10700 = vunpack.c.l.b16 %v10437
        %v10701 = vunpack.c.l.b16 %v10438
        %v10702 = vunpack.c.l.b16 %v10439
        %v10703 = vunpack.c.l.b16 %v10440
        %v10704 = vunpack.c.l.b16 %v10441
        %v10705 = vunpack.c.l.b16 %v10442
        %v10706 = vunpack.c.l.b16 %v10443
        %v10707 = vunpack.c.l.b16 %v10444
        %v10708 = vunpack.c.l.b16 %v10445
        %v10709 = vunpack.c.l.b16 %v10446
        %v10710 = vunpack.c.l.b16 %v10447
        %v10711 = vunpack.c.l.b16 %v10448
        %v10712 = vunpack.c.l.b16 %v10449
        %v10713 = vunpack.c.l.b16 %v10450
        %v10714 = vunpack.c.l.b16 %v10451
        %v10715 = vunpack.c.l.b16 %v10452
        %v10716 = vunpack.c.l.b16 %v10453
        %v10717 = vunpack.c.l.b16 %v10454
        %v10718 = vunpack.c.l.b16 %v10455
        %v10719 = vunpack.c.l.b16 %v10456
        %v10720 = vunpack.c.l.b16 %v10457
        %v10721 = vunpack.c.l.b16 %v10458
        %v10722 = vunpack.c.l.b16 %v10459
        %v10723 = vunpack.c.l.b16 %v10460
        %v10724 = vunpack.c.l.b16 %v10461
        %v10725 = vunpack.c.l.b16 %v10462
        %v10726 = vunpack.c.l.b16 %v10463
        %v10727 = vunpack.c.l.b16 %v10464
        %v10728 = vunpack.c.l.b16 %v10465
        %v10729 = vunpack.c.l.b16 %v10466
        %v10730 = vunpack.c.l.b16 %v10467
        %v10731 = vunpack.c.l.b16 %v10468
        %v10732 = vunpack.c.l.b16 %v10469
        %v10733 = vunpack.c.l.b16 %v10470
        %v10734 = vunpack.c.l.b16 %v10471
        %v10735 = vunpack.c.l.b16 %v10472
        %v10736 = vunpack.c.l.b16 %v10473
        %v10737 = vunpack.c.l.b16 %v10474
        %v10738 = vunpack.c.l.b16 %v10475
        %v10739 = vunpack.c.l.b16 %v10476
        %v10740 = vunpack.c.l.b16 %v10477
        %v10741 = vunpack.c.l.b16 %v10478
        %v10742 = vunpack.c.l.b16 %v10479
        %v10743 = vunpack.c.l.b16 %v10480
        %v10744 = vunpack.c.l.b16 %v10481
        %v10745 = vunpack.c.l.b16 %v10482
        %v10746 = vunpack.c.l.b16 %v10483
        %v10747 = vunpack.c.l.b16 %v10484
        %v10748 = vunpack.c.l.b16 %v10485
        %v10749 = vunpack.c.l.b16 %v10486
        %v10750 = vunpack.c.l.b16 %v10487
        %v10751 = vunpack.c.l.b16 %v10488
        %v10752 = vunpack.c.l.b16 %v10489
        %v10753 = vunpack.c.l.b16 %v10490
        %v10754 = vunpack.c.l.b16 %v10491
        %v10755 = vunpack.c.l.b16 %v10492
        %v10756 = vunpack.c.l.b16 %v10493
        %v10757 = vunpack.c.l.b16 %v10494
        %v10758 = vunpack.c.l.b16 %v10495
        %v10759 = vunpack.c.l.b16 %v10496
        %v10760 = vunpack.c.l.b16 %v10497
        %v10761 = vunpack.c.l.b16 %v10498
        %v10762 = vunpack.c.l.b16 %v10499
        %v10763 = vunpack.c.l.b16 %v10500
        %v10764 = vunpack.c.l.b16 %v10501
        %v10765 = vunpack.c.l.b16 %v10502
        %v10766 = vunpack.c.l.b16 %v10503
        %v10767 = vunpack.c.l.b16 %v10504
        %v10768 = vunpack.c.l.b16 %v10505
        %v10769 = vunpack.c.l.b16 %v10506
        %v10770 = vunpack.c.l.b16 %v10507
        %v10771 = vunpack.c.l.b16 %v10508
        %v10772 = vunpack.c.l.b16 %v10509
        %v10773 = vunpack.c.l.b16 %v10510
        %v10774 = vunpack.c.l.b16 %v10511
        %v10775 = vunpack.c.l.b16 %v10512
        %v10776 = vunpack.c.l.b16 %v10513
        %v10777 = vunpack.c.l.b16 %v10514
        %v10778 = vunpack.c.l.b16 %v10515
        %v10779 = vunpack.c.l.b16 %v10516
        %v10780 = vunpack.c.l.b16 %v10517
        %v10781 = vunpack.c.l.b16 %v10518
        %v10782 = vunpack.c.l.b16 %v10519
        %v10783 = vunpack.c.l.b16 %v10520
        %v10784 = vunpack.c.l.b16 %v10521
        %v10785 = vunpack.c.l.b16 %v10522
        %v10786 = vunpack.c.l.b16 %v10523
        %v10787 = vunpack.c.l.b16 %v10524
        %v10788 = vunpack.c.l.b16 %v10525
        %v10789 = vunpack.c.l.b16 %v10526
        %v10790 = vunpack.c.l.b16 %v10527
        %v10791 = vunpack.c.l.b16 %v10528
        %v10792 = vunpack.c.l.b16 %v10529
        %v10793 = vunpack.c.l.b16 %v10530
        %v10794 = vunpack.c.l.b16 %v10531
        %v10795 = vunpack.c.l.b16 %v10532
        %v10796 = vunpack.c.l.b16 %v10533
        %v10797 = vunpack.c.l.b16 %v10534
        %v10798 = vunpack.c.l.b16 %v10535
        %v10799 = vunpack.c.l.b16 %v10536
        %v10800 = vunpack.c.l.b16 %v10537
        %v10801 = vunpack.c.l.b16 %v10538
        %v10802 = vunpack.c.l.b16 %v10539
        %v10803 = vunpack.c.l.b16 %v10540
        %v10804 = vunpack.c.l.b16 %v10541
        %v10805 = vunpack.c.l.b16 %v10542
        %v10806 = vunpack.c.l.b16 %v10543
        %v10807 = vunpack.c.l.b16 %v10544
        %v10808 = vunpack.c.l.b16 %v10545
        %v10809 = vunpack.c.l.b16 %v10546
        %v10810 = vunpack.c.l.b16 %v10547
        %v10811 = vpack.c.b16 %v10684, %v10683
        %v10812 = vpack.c.b16 %v10686, %v10685
        %v10813 = vpack.c.b16 %v10688, %v10687
        %v10814 = vpack.c.b16 %v10690, %v10689
        %v10815 = vpack.c.b16 %v10692, %v10691
        %v10816 = vpack.c.b16 %v10694, %v10693
        %v10817 = vpack.c.b16 %v10696, %v10695
        %v10818 = vpack.c.b16 %v10698, %v10697
        %v10819 = vpack.c.b16 %v10700, %v10699
        %v10820 = vpack.c.b16 %v10702, %v10701
        %v10821 = vpack.c.b16 %v10704, %v10703
        %v10822 = vpack.c.b16 %v10706, %v10705
        %v10823 = vpack.c.b16 %v10708, %v10707
        %v10824 = vpack.c.b16 %v10710, %v10709
        %v10825 = vpack.c.b16 %v10712, %v10711
        %v10826 = vpack.c.b16 %v10714, %v10713
        %v10827 = vpack.c.b16 %v10716, %v10715
        %v10828 = vpack.c.b16 %v10718, %v10717
        %v10829 = vpack.c.b16 %v10720, %v10719
        %v10830 = vpack.c.b16 %v10722, %v10721
        %v10831 = vpack.c.b16 %v10724, %v10723
        %v10832 = vpack.c.b16 %v10726, %v10725
        %v10833 = vpack.c.b16 %v10728, %v10727
        %v10834 = vpack.c.b16 %v10730, %v10729
        %v10835 = vpack.c.b16 %v10732, %v10731
        %v10836 = vpack.c.b16 %v10734, %v10733
        %v10837 = vpack.c.b16 %v10736, %v10735
        %v10838 = vpack.c.b16 %v10738, %v10737
        %v10839 = vpack.c.b16 %v10740, %v10739
        %v10840 = vpack.c.b16 %v10742, %v10741
        %v10841 = vpack.c.b16 %v10744, %v10743
        %v10842 = vpack.c.b16 %v10746, %v10745
        %v10843 = vpack.c.b16 %v10748, %v10747
        %v10844 = vpack.c.b16 %v10750, %v10749
        %v10845 = vpack.c.b16 %v10752, %v10751
        %v10846 = vpack.c.b16 %v10754, %v10753
        %v10847 = vpack.c.b16 %v10756, %v10755
        %v10848 = vpack.c.b16 %v10758, %v10757
        %v10849 = vpack.c.b16 %v10760, %v10759
        %v10850 = vpack.c.b16 %v10762, %v10761
        %v10851 = vpack.c.b16 %v10764, %v10763
        %v10852 = vpack.c.b16 %v10766, %v10765
        %v10853 = vpack.c.b16 %v10768, %v10767
        %v10854 = vpack.c.b16 %v10770, %v10769
        %v10855 = vpack.c.b16 %v10772, %v10771
        %v10856 = vpack.c.b16 %v10774, %v10773
        %v10857 = vpack.c.b16 %v10776, %v10775
        %v10858 = vpack.c.b16 %v10778, %v10777
        %v10859 = vpack.c.b16 %v10780, %v10779
        %v10860 = vpack.c.b16 %v10782, %v10781
        %v10861 = vpack.c.b16 %v10784, %v10783
        %v10862 = vpack.c.b16 %v10786, %v10785
        %v10863 = vpack.c.b16 %v10788, %v10787
        %v10864 = vpack.c.b16 %v10790, %v10789
        %v10865 = vpack.c.b16 %v10792, %v10791
        %v10866 = vpack.c.b16 %v10794, %v10793
        %v10867 = vpack.c.b16 %v10796, %v10795
        %v10868 = vpack.c.b16 %v10798, %v10797
        %v10869 = vpack.c.b16 %v10800, %v10799
        %v10870 = vpack.c.b16 %v10802, %v10801
        %v10871 = vpack.c.b16 %v10804, %v10803
        %v10872 = vpack.c.b16 %v10806, %v10805
        %v10873 = vpack.c.b16 %v10808, %v10807
        %v10874 = vpack.c.b16 %v10810, %v10809
        %10939 = vmatprep.subr.bf16.mxu0 0
        %10940 = vmatpush1.bf16.msra.mxu0 %v10811
        %10941 = vmatprep.subr.bf16.mxu0 0
        %10942 = vmatpush1.bf16.msra.mxu0 %v10812
        %10943 = vmatprep.subr.bf16.mxu0 0
        %10944 = vmatpush1.bf16.msra.mxu0 %v10813
        %10945 = vmatprep.subr.bf16.mxu0 0
        %10946 = vmatpush1.bf16.msra.mxu0 %v10814
        %10947 = vmatprep.subr.bf16.mxu0 0
        %10948 = vmatpush1.bf16.msra.mxu0 %v10815
        %10949 = vmatprep.subr.bf16.mxu0 0
        %10950 = vmatpush1.bf16.msra.mxu0 %v10816
        %10951 = vmatprep.subr.bf16.mxu0 0
        %10952 = vmatpush1.bf16.msra.mxu0 %v10817
        %10953 = vmatprep.subr.bf16.mxu0 0
        %10954 = vmatpush1.bf16.msra.mxu0 %v10818
        %10955 = vmatprep.subr.bf16.mxu0 0
        %10956 = vmatpush1.bf16.msra.mxu0 %v10819
        %10957 = vmatprep.subr.bf16.mxu0 0
        %10958 = vmatpush1.bf16.msra.mxu0 %v10820
        %10959 = vmatprep.subr.bf16.mxu0 0
        %10960 = vmatpush1.bf16.msra.mxu0 %v10821
        %10961 = vmatprep.subr.bf16.mxu0 0
        %10962 = vmatpush1.bf16.msra.mxu0 %v10822
        %10963 = vmatprep.subr.bf16.mxu0 0
        %10964 = vmatpush1.bf16.msra.mxu0 %v10823
        %10965 = vmatprep.subr.bf16.mxu0 0
        %10966 = vmatpush1.bf16.msra.mxu0 %v10824
        %10967 = vmatprep.subr.bf16.mxu0 0
        %10968 = vmatpush1.bf16.msra.mxu0 %v10825
        %10969 = vmatprep.subr.bf16.mxu0 0
        %10970 = vmatpush1.bf16.msra.mxu0 %v10826
        %10971 = vmatprep.mubr.bf16.mxu0 %v10413
        %10972 = vmatmul.mubr.bf16.gmra.mrb[0].mxu0 %v10412
        %v10973 = vpop.f32.mrb[0].mxu0
        %v10974 = vadd.f32 %v10553, %v10973
        %v10975 = vpop.f32.mrb[0].mxu0
        %v10976 = vpop.f32.mrb[0].mxu0
        %v10977 = vpop.f32.mrb[0].mxu0
        %10978 = vdwg.mxu0
        %10979 = vmatprep.subr.bf16.mxu0 0
        %10980 = vmatpush1.bf16.msra.mxu0 %v10827
        %10981 = vmatprep.subr.bf16.mxu0 0
        %10982 = vmatpush1.bf16.msra.mxu0 %v10828
        %10983 = vmatprep.subr.bf16.mxu0 0
        %10984 = vmatpush1.bf16.msra.mxu0 %v10829
        %10985 = vmatprep.subr.bf16.mxu0 0
        %10986 = vmatpush1.bf16.msra.mxu0 %v10830
        %10987 = vmatprep.subr.bf16.mxu0 0
        %10988 = vmatpush1.bf16.msra.mxu0 %v10831
        %10989 = vmatprep.subr.bf16.mxu0 0
        %10990 = vmatpush1.bf16.msra.mxu0 %v10832
        %10991 = vmatprep.subr.bf16.mxu0 0
        %10992 = vmatpush1.bf16.msra.mxu0 %v10833
        %10993 = vmatprep.subr.bf16.mxu0 0
        %10994 = vmatpush1.bf16.msra.mxu0 %v10834
        %10995 = vmatprep.subr.bf16.mxu0 0
        %10996 = vmatpush1.bf16.msra.mxu0 %v10835
        %10997 = vmatprep.subr.bf16.mxu0 0
        %10998 = vmatpush1.bf16.msra.mxu0 %v10836
        %10999 = vmatprep.subr.bf16.mxu0 0
        %11000 = vmatpush1.bf16.msra.mxu0 %v10837
        %11001 = vmatprep.subr.bf16.mxu0 0
        %11002 = vmatpush1.bf16.msra.mxu0 %v10838
        %11003 = vmatprep.subr.bf16.mxu0 0
        %11004 = vmatpush1.bf16.msra.mxu0 %v10839
        %11005 = vmatprep.subr.bf16.mxu0 0
        %11006 = vmatpush1.bf16.msra.mxu0 %v10840
        %11007 = vmatprep.subr.bf16.mxu0 0
        %11008 = vmatpush1.bf16.msra.mxu0 %v10841
        %11009 = vmatprep.subr.bf16.mxu0 0
        %11010 = vmatpush1.bf16.msra.mxu0 %v10842
        %11011 = vmatprep.mubr.bf16.mxu0 %v10415
        %11012 = vmatmul.mubr.bf16.gmra.mrb[0].mxu0 %v10414
        %v11013 = vpop.f32.mrb[0].mxu0
        %v11014 = vadd.f32 %v10974, %v11013
        %v11015 = vpop.f32.mrb[0].mxu0
        %v11016 = vpop.f32.mrb[0].mxu0
        %v11017 = vpop.f32.mrb[0].mxu0
        %11018 = vdwg.mxu0
        %11019 = vmatprep.subr.bf16.mxu0 0
        %11020 = vmatpush1.bf16.msra.mxu0 %v10843
        %11021 = vmatprep.subr.bf16.mxu0 0
        %11022 = vmatpush1.bf16.msra.mxu0 %v10844
        %11023 = vmatprep.subr.bf16.mxu0 0
        %11024 = vmatpush1.bf16.msra.mxu0 %v10845
        %11025 = vmatprep.subr.bf16.mxu0 0
        %11026 = vmatpush1.bf16.msra.mxu0 %v10846
        %11027 = vmatprep.subr.bf16.mxu0 0
        %11028 = vmatpush1.bf16.msra.mxu0 %v10847
        %11029 = vmatprep.subr.bf16.mxu0 0
        %11030 = vmatpush1.bf16.msra.mxu0 %v10848
        %11031 = vmatprep.subr.bf16.mxu0 0
        %11032 = vmatpush1.bf16.msra.mxu0 %v10849
        %11033 = vmatprep.subr.bf16.mxu0 0
        %11034 = vmatpush1.bf16.msra.mxu0 %v10850
        %11035 = vmatprep.subr.bf16.mxu0 0
        %11036 = vmatpush1.bf16.msra.mxu0 %v10851
        %11037 = vmatprep.subr.bf16.mxu0 0
        %11038 = vmatpush1.bf16.msra.mxu0 %v10852
        %11039 = vmatprep.subr.bf16.mxu0 0
        %11040 = vmatpush1.bf16.msra.mxu0 %v10853
        %11041 = vmatprep.subr.bf16.mxu0 0
        %11042 = vmatpush1.bf16.msra.mxu0 %v10854
        %11043 = vmatprep.subr.bf16.mxu0 0
        %11044 = vmatpush1.bf16.msra.mxu0 %v10855
        %11045 = vmatprep.subr.bf16.mxu0 0
        %11046 = vmatpush1.bf16.msra.mxu0 %v10856
        %11047 = vmatprep.subr.bf16.mxu0 0
        %11048 = vmatpush1.bf16.msra.mxu0 %v10857
        %11049 = vmatprep.subr.bf16.mxu0 0
        %11050 = vmatpush1.bf16.msra.mxu0 %v10858
        %11051 = vmatprep.mubr.bf16.mxu0 %v10417
        %11052 = vmatmul.mubr.bf16.gmra.mrb[0].mxu0 %v10416
        %v11053 = vpop.f32.mrb[0].mxu0
        %v11054 = vadd.f32 %v11014, %v11053
        %v11055 = vpop.f32.mrb[0].mxu0
        %v11056 = vpop.f32.mrb[0].mxu0
        %v11057 = vpop.f32.mrb[0].mxu0
        %11058 = vdwg.mxu0
        %11059 = vmatprep.subr.bf16.mxu0 0
        %11060 = vmatpush1.bf16.msra.mxu0 %v10859
        %11061 = vmatprep.subr.bf16.mxu0 0
        %11062 = vmatpush1.bf16.msra.mxu0 %v10860
        %11063 = vmatprep.subr.bf16.mxu0 0
        %11064 = vmatpush1.bf16.msra.mxu0 %v10861
        %11065 = vmatprep.subr.bf16.mxu0 0
        %11066 = vmatpush1.bf16.msra.mxu0 %v10862
        %11067 = vmatprep.subr.bf16.mxu0 0
        %11068 = vmatpush1.bf16.msra.mxu0 %v10863
        %11069 = vmatprep.subr.bf16.mxu0 0
        %11070 = vmatpush1.bf16.msra.mxu0 %v10864
        %11071 = vmatprep.subr.bf16.mxu0 0
        %11072 = vmatpush1.bf16.msra.mxu0 %v10865
        %11073 = vmatprep.subr.bf16.mxu0 0
        %11074 = vmatpush1.bf16.msra.mxu0 %v10866
        %11075 = vmatprep.subr.bf16.mxu0 0
        %11076 = vmatpush1.bf16.msra.mxu0 %v10867
        %11077 = vmatprep.subr.bf16.mxu0 0
        %11078 = vmatpush1.bf16.msra.mxu0 %v10868
        %11079 = vmatprep.subr.bf16.mxu0 0
        %11080 = vmatpush1.bf16.msra.mxu0 %v10869
        %11081 = vmatprep.subr.bf16.mxu0 0
        %11082 = vmatpush1.bf16.msra.mxu0 %v10870
        %11083 = vmatprep.subr.bf16.mxu0 0
        %11084 = vmatpush1.bf16.msra.mxu0 %v10871
        %11085 = vmatprep.subr.bf16.mxu0 0
        %11086 = vmatpush1.bf16.msra.mxu0 %v10872
        %11087 = vmatprep.subr.bf16.mxu0 0
        %11088 = vmatpush1.bf16.msra.mxu0 %v10873
        %11089 = vmatprep.subr.bf16.mxu0 0
        %11090 = vmatpush1.bf16.msra.mxu0 %v10874
        %11091 = vmatprep.mubr.bf16.mxu0 %v10419
        %11092 = vmatmul.mubr.bf16.gmra.mrb[0].mxu0 %v10418
        %v11093 = vpop.f32.mrb[0].mxu0
        %v11094 = vadd.f32 %v11054, %v11093
        %v11095 = vpop.f32.mrb[0].mxu0
        %v11096 = vpop.f32.mrb[0].mxu0
        %v11097 = vpop.f32.mrb[0].mxu0
        %11098 = vdwg.mxu0
        %v11099 = vmul.f32 %v11094, %v11094
        %11100 = vadd.xlane.f32.xlu0 %v11099
        %v11101 = vpop.xlane.xlu0 %11100
        %v11102 = vmax.f32 %v11101, 1e-30
        %v11103 = vrsqrt.pop %v11102
        %v11104 = vmul.f32 %v11094, %v11103
        %11105 = vst [vmem:[%s693] sm:$0xff] %v11104
        %s11106 = sand.u32 %s367, 1
        %s11107 = scalar_lea.sflag [#allocation4], %s11106
        %s11108 = sand.u32 %s367, 1
        %s11109 = smul.addr %s11108, 8
        %s11110 = scalar_lea.vmem [#allocation26], %s11109
        // Predicated region
        $region141: #{tpu_custom_call.1} parent=79 // pred_check
          %p11111 = pneg %p377
        $region142: #{tpu_custom_call.1} parent=79 // pred_check_branch
          %11113 = sbr.rel (%p11111) target = $region144
        $region143: #{tpu_custom_call.1} parent=79 // pred_region
          %s11115 = ssub.s32 128, 128
          %11116 = vsyncadd %s11107, %s11115
          %s11117 = smul.addr %s39, 128
          %s11118 = scalar_lea.hbm %s15, %s11117
          %s11120 = sshll.u32 %s11110, 4
          %s11121 = int_to_ptr.vmem [resolvable:$true] %s11120
          %11123 = dma.vmem_to_hbm [thread:$0]  %s11121, 128, %s11118, %s11107
        $region144: #{tpu_custom_call.1} parent=79 // pred_fallthru
          _
      $region80: #{tpu_custom_call.1} parent=5 // pred_fallthru
        _
      %p11124 = scmp.le.s32.totalorder 2, %s34
      // Predicated region
      $region145: #{tpu_custom_call.1} parent=5 // pred_check
        %p11125 = pneg %p11124
      $region146: #{tpu_custom_call.1} parent=5 // pred_check_branch
        %11127 = sbr.rel (%p11125) target = $region148
      $region147: #{tpu_custom_call.1} parent=5 // pred_region
        %s11128 = ssub.s32 %s34, 2
        // Predicated region
        $region149: #{tpu_custom_call.1} parent=147 // pred_check
          %p11129 = pneg %p383
        $region150: #{tpu_custom_call.1} parent=147 // pred_check_branch
          %11131 = sbr.rel (%p11129) target = $region152
        $region151: #{tpu_custom_call.1} parent=147 // pred_region
          %s11132 = sand.u32 %s368, 1
          %s11133 = scalar_lea.sflag [#allocation4], %s11132
          %s11134 = sand.u32 %s368, 1
          %s11135 = smul.addr %s11134, 8
          %s11136 = scalar_lea.vmem [#allocation26], %s11135
          %11137 = dma.done %s11133, 128
        $region152: #{tpu_custom_call.1} parent=147 // pred_fallthru
          _
      $region148: #{tpu_custom_call.1} parent=5 // pred_fallthru
        _
    $region6: #{tpu_custom_call.1} parent=1 // loop_footer
      %s38 = sadd.s32 1, %s34
    $region7: #{tpu_custom_call.1} parent=1 // loop_footer_branch
      %33 = sbr.rel target = $region3
    $region8: #{tpu_custom_call.1} parent=1 // loop_exit
      _
    %11138 = vsyncpa [#allocation3], 1
    %s11139 = scalar_lea.sflag [#allocation3], 1
    %11140 = vsyncpa %s11139, 1
    %11141 = vsyncpa [#allocation6], 1
    %11142 = vsyncpa [#allocation9], 1
    %11143 = vsyncpa [#allocation12], 1
    %11144 = vsyncpa [#allocation15], 1
    %11145 = vsyncpa [#allocation18], 1
    %11146 = vsyncpa [#allocation21], 1
    %11147 = vsyncpa [#allocation24], 1
    %11148 = vsyncpa [#allocation4], 1
    %s11149 = scalar_lea.sflag [#allocation4], 1
    %11150 = vsyncpa %s11149, 1

</llo_original>
